<compile_context>
chip_gen: v6e
topology: v6e:2x2x1
jax: 0.10.0
libtpu: 0.0.40
codegen_flags: <defaults>
</compile_context>

<pallas_src>
import functools

import jax
import jax.numpy as jnp
import numpy as np
from jax.experimental import pallas as pl
from jax.experimental.pallas import tpu as pltpu

EPS = 1e-6


# ----------------------------------------------------------------------------
# Pallas kernel: fused forward-DFT (real & imag in one matmul, window folded in)
# ----------------------------------------------------------------------------
def _dft_kernel(x_ref, w_ref, o_ref):
    o_ref[...] = jnp.dot(x_ref[0], w_ref[...],
                         preferred_element_type=jnp.float32)[None]


def pallas_dft(frames_t, w):
    B, F, n_fft = frames_t.shape
    N = w.shape[1]
    return pl.pallas_call(
        _dft_kernel,
        out_shape=jax.ShapeDtypeStruct((B, F, N), jnp.float32),
        grid=(B,),
        in_specs=[pl.BlockSpec((1, F, n_fft), lambda b: (b, 0, 0)),
                  pl.BlockSpec((n_fft, N), lambda b: (0, 0))],
        out_specs=pl.BlockSpec((1, F, N), lambda b: (b, 0, 0)),
        compiler_params=pltpu.CompilerParams(dimension_semantics=("parallel",)),
    )(frames_t, w)


# ----------------------------------------------------------------------------
# Pallas kernel: fully fused trunk
#   conv1d projections + input proj/norm + ConvNeXt blocks + out norm/proj + iDFT
# ----------------------------------------------------------------------------
def _trunk_kernel(p1pad_ref, p2pad_ref, cpad_ref,
                  pw_ref, pb_ref, cw_ref, cb_ref,
                  inw_ref, ing_ref, inb_ref,
                  dww_ref, dwb_ref, lng_ref, lnb_ref,
                  w1_ref, b1_ref, w2_ref, b2_ref, ls_ref,
                  ong_ref, onb_ref, opw_ref, opb_ref,
                  icw_ref, isw_ref,
                  o_ref, pad_scr,
                  *, ksize, num_blocks):
    K1 = pw_ref.shape[0]                 # conv1d kernel size (7)
    Fp = p1pad_ref.shape[1]
    F = Fp - (K1 - 1)                    # frames
    H = pw_ref.shape[2]                  # n_bins
    C = ing_ref.shape[-1]                # hidden channels
    p = ksize // 2

    p1pad = p1pad_ref[0]                 # (F+K1-1, H), reflect-padded by caller
    p2pad = p2pad_ref[0]
    cpad = cpad_ref[0]                   # (F+K1-1, Ci)
    c0 = K1 // 2
    prior1 = p1pad[c0:c0 + F, :]         # (F, H) un-padded priors
    prior2 = p2pad[c0:c0 + F, :]

    # ---- Conv1d projections (k=7, reflect padding) -------------------------
    acc1 = jnp.zeros((F, H), jnp.float32)
    acc2 = jnp.zeros((F, H), jnp.float32)
    accc = jnp.zeros((F, H), jnp.float32)
    for k in range(K1):
        wk = pw_ref[k]                   # (H, H)
        acc1 = acc1 + jnp.dot(p1pad[k:k + F, :], wk, preferred_element_type=jnp.float32)
        acc2 = acc2 + jnp.dot(p2pad[k:k + F, :], wk, preferred_element_type=jnp.float32)
        accc = accc + jnp.dot(cpad[k:k + F, :], cw_ref[k], preferred_element_type=jnp.float32)
    p1p = acc1 + pb_ref[...]
    p2p = acc2 + pb_ref[...]
    cdp = accc + cb_ref[...]

    # ---- input 1x1 conv (5 -> C, no bias): broadcast-accumulate ------------
    inw = inw_ref[...]                   # (5, C)
    h = (prior1[:, :, None] * inw[0:1, :]
         + prior2[:, :, None] * inw[1:2, :]
         + p1p[:, :, None] * inw[2:3, :]
         + p2p[:, :, None] * inw[3:4, :]
         + cdp[:, :, None] * inw[4:5, :])          # (F, H, C)

    def layer_norm(x, g, b):
        mu = jnp.mean(x, axis=-1, keepdims=True)
        var = jnp.mean(jnp.square(x - mu), axis=-1, keepdims=True)
        return (x - mu) * jax.lax.rsqrt(var + EPS) * g + b

    h = layer_norm(h, ing_ref[...], inb_ref[...])  # input LayerNorm2d

    # ---- ConvNeXt2d blocks: activation stays resident in VMEM --------------
    pad_scr[...] = jnp.zeros_like(pad_scr)         # zero halo once
    for blk in range(num_blocks):
        # depthwise KxK conv with zero padding, via padded VMEM scratch
        pad_scr[pl.ds(p, F), pl.ds(p, H), :] = h
        hp = pad_scr[...]                          # (F+2p, H+2p, C)
        dww = dww_ref[blk]                         # (K*K, C)
        dw = jnp.zeros((F, H, C), jnp.float32)
        for i in range(ksize):                     # i: n_bins (height) tap
            for j in range(ksize):                 # j: frames (width) tap
                tap = i * ksize + j
                dw = dw + hp[j:j + F, i:i + H, :] * dww[tap:tap + 1, :]
        dw = dw + dwb_ref[blk]
        t = layer_norm(dw, lng_ref[blk], lnb_ref[blk])
        t2 = t.reshape(F * H, C)
        y = jnp.dot(t2, w1_ref[blk], preferred_element_type=jnp.float32) + b1_ref[blk]
        # TODO(synk): torch nn.GELU uses exact erf; tanh approximation used here.
        y = jax.nn.gelu(y)
        y = jnp.dot(y, w2_ref[blk], preferred_element_type=jnp.float32) + b2_ref[blk]
        y = y * ls_ref[blk]                        # layer scale (drop_prob=0 -> identity)
        h = h + y.reshape(F, H, C)                 # residual

    # ---- output LayerNorm2d + 1x1 conv (C -> real/imag), fused with iDFT ---
    xo = layer_norm(h, ong_ref[...], onb_ref[...])
    opw = opw_ref[...]                             # (2, C) torch (out, in) layout
    opb = opb_ref[...]                             # (1, 2)
    real = jnp.sum(xo * opw[0:1, :], axis=-1) + opb[0, 0]   # (F, H)
    imag = jnp.sum(xo * opw[1:2, :], axis=-1) + opb[0, 1]
    # inverse DFT with synthesis window folded into icw/isw -> (F, n_fft), lane-dense
    frames_t = (jnp.dot(real, icw_ref[...], preferred_element_type=jnp.float32)
                + jnp.dot(imag, isw_ref[...], preferred_element_type=jnp.float32))
    o_ref[...] = frames_t[None]


def pallas_trunk(p1pad, p2pad, cpad, params, cfg):
    B, Fp6, n_bins = p1pad.shape
    K1 = params["prior_w"].shape[0]
    F = Fp6 - (K1 - 1)
    n_fft = cfg["n_fft"]
    C = cfg["channels"]
    K = cfg["kernel_size"]
    nb = cfg["num_blocks"]
    Ci = cpad.shape[-1]
    p = K // 2

    def bspec(tail):
        n = len(tail)
        return pl.BlockSpec((1,) + tail, lambda b, _n=n: (b,) + (0,) * _n)

    def wspec(arr):
        n = arr.ndim
        return pl.BlockSpec(arr.shape, lambda b, _n=n: (0,) * _n)

    weights = (params["prior_w"], params["prior_b"], params["cond_w"], params["cond_b"],
               params["in_w"], params["in_g"], params["in_b"],
               params["dw_w"], params["dw_b"], params["ln_g"], params["ln_b"],
               params["w1"], params["b1"], params["w2"], params["b2"], params["ls"],
               params["out_g"], params["out_be"], params["out_w"], params["out_b"],
               params["icw"], params["isw"])

    kern = functools.partial(_trunk_kernel, ksize=K, num_blocks=nb)
    return pl.pallas_call(
        kern,
        out_shape=jax.ShapeDtypeStruct((B, F, n_fft), jnp.float32),
        grid=(B,),
        in_specs=[bspec((Fp6, n_bins)), bspec((Fp6, n_bins)), bspec((Fp6, Ci))]
                 + [wspec(w) for w in weights],
        out_specs=bspec((F, n_fft)),
        scratch_shapes=[pltpu.VMEM((F + 2 * p, n_bins + 2 * p, C), jnp.float32)],
        compiler_params=pltpu.CompilerParams(dimension_semantics=("parallel",)),
    )(p1pad, p2pad, cpad, *weights)


# ----------------------------------------------------------------------------
# Plain-JAX glue: prior generation, framing / overlap-add (no gather/scatter)
# ----------------------------------------------------------------------------
def generate_sine(f0, hop_length, sample_rate):
    # TODO(synk): simplified sine prior; wavehax's generate_* (e.g. pcph)
    #             adds harmonic weighting / noise not reproduced here.
    f0_up = jnp.repeat(f0[:, 0, :], hop_length, axis=-1)          # (B, T)
    voiced = (f0_up > 0.0).astype(jnp.float32)
    phase = 2.0 * jnp.pi * jnp.cumsum(f0_up / sample_rate, axis=-1)
    return (jnp.sin(phase) * voiced)[:, None, :]                  # (B, 1, T)


def make_stft_consts(n_fft):
    n_bins = n_fft // 2 + 1
    n = np.arange(n_fft)[:, None]
    k = np.arange(n_bins)[None, :]
    ang = 2.0 * np.pi * n * k / n_fft
    window = 0.5 * (1.0 - np.cos(2.0 * np.pi * np.arange(n_fft) / n_fft))
    # analysis window folded into the fused (real | imag) forward DFT matrix
    fwd_w = (window[:, None] * np.concatenate([np.cos(ang), -np.sin(ang)], axis=1))
    # inverse (onesided) DFT with synthesis window folded in
    ang2 = ang.T                                                  # (n_bins, n_fft)
    c = np.full((n_bins,), 2.0); c[0] = 1.0; c[-1] = 1.0
    s = np.full((n_bins,), 2.0); s[0] = 0.0; s[-1] = 0.0
    cinv = c[:, None] * np.cos(ang2) / n_fft
    sinv = -s[:, None] * np.sin(ang2) / n_fft
    icw = (cinv * window[None, :]).astype(np.float32)
    isw = (sinv * window[None, :]).astype(np.float32)
    return (jnp.asarray(fwd_w.astype(np.float32)), jnp.asarray(icw),
            jnp.asarray(isw), jnp.asarray(window.astype(np.float32)))


def frame_signal(xp, F, n_fft, hop):
    # reshape-based framing (requires hop | n_fft), no gather
    B = xp.shape[0]
    r = n_fft // hop
    chunks = [xp[:, k * hop:k * hop + F * hop].reshape(B, F, hop) for k in range(r)]
    return jnp.concatenate(chunks, axis=-1)                       # (B, F, n_fft)


def overlap_add(tframes, window, hop, n_fft):
    # overlap-add + window-square normalization via r shifted adds, no scatter
    B, F, _ = tframes.shape
    r = n_fft // hop
    T = F * hop
    pad = (n_fft - hop) // 2
    Tp = T + (n_fft - hop)
    sig = jnp.zeros((B, Tp), jnp.float32)
    env = jnp.zeros((Tp,), jnp.float32)
    win2 = window * window
    for k in range(r):
        left = k * hop
        right = Tp - T - left
        sig = sig + jnp.pad(tframes[:, :, k * hop:(k + 1) * hop].reshape(B, T),
                            ((0, 0), (left, right)))
        env = env + jnp.pad(jnp.tile(win2[k * hop:(k + 1) * hop], F), (left, right))
    sig = sig / jnp.where(env > 1e-8, env, 1.0)[None, :]
    return sig[:, pad:pad + T][:, None, :]                        # (B, 1, T)


# ----------------------------------------------------------------------------
# Parameters (deterministic, synthetic)
# ----------------------------------------------------------------------------
def trunc_normal(key, shape, std=0.02):
    return std * jax.random.truncated_normal(key, -2.0, 2.0, shape, jnp.float32)


def init_params(key, cfg):
    n_fft = cfg["n_fft"]
    n_bins = n_fft // 2 + 1
    C = cfg["channels"]
    MC = C * cfg["mult_channels"]
    K = cfg["kernel_size"]
    nb = cfg["num_blocks"]
    Ci = cfg["in_channels"]
    keys = jax.random.split(key, 8 + nb)
    p = {}
    p["prior_w"] = trunc_normal(keys[0], (7, n_bins, n_bins))
    p["prior_b"] = jnp.zeros((1, n_bins), jnp.float32)
    p["cond_w"] = trunc_normal(keys[1], (7, Ci, n_bins))
    p["cond_b"] = jnp.zeros((1, n_bins), jnp.float32)
    p["in_w"] = trunc_normal(keys[2], (5, C))
    p["in_g"] = jnp.ones((1, C), jnp.float32)
    p["in_b"] = jnp.zeros((1, C), jnp.float32)
    dw_w, w1, w2 = [], [], []
    for i in range(nb):
        kd, kw1, kw2 = jax.random.split(keys[3 + i], 3)
        dw_w.append(trunc_normal(kd, (K * K, C)))
        w1.append(trunc_normal(kw1, (C, MC)))
        w2.append(trunc_normal(kw2, (MC, C)))
    p["dw_w"] = jnp.stack(dw_w)
    p["dw_b"] = jnp.zeros((nb, 1, C), jnp.float32)
    p["ln_g"] = jnp.ones((nb, 1, C), jnp.float32)
    p["ln_b"] = jnp.zeros((nb, 1, C), jnp.float32)
    p["w1"] = jnp.stack(w1)
    p["b1"] = jnp.zeros((nb, 1, MC), jnp.float32)
    p["w2"] = jnp.stack(w2)
    p["b2"] = jnp.zeros((nb, 1, C), jnp.float32)
    p["ls"] = jnp.full((nb, 1, C), 1.0 / nb, jnp.float32)
    p["out_g"] = jnp.ones((1, C), jnp.float32)
    p["out_be"] = jnp.zeros((1, C), jnp.float32)
    p["out_w"] = trunc_normal(keys[3 + nb], (2, C))               # torch (out, in)
    p["out_b"] = jnp.zeros((1, 2), jnp.float32)
    p["fwd_w"], p["icw"], p["isw"], p["window"] = make_stft_consts(n_fft)
    return p


# ----------------------------------------------------------------------------
# Forward pass
# ----------------------------------------------------------------------------
def wavehax_forward(params, cond, f0, cfg):
    n_fft, hop, sr = cfg["n_fft"], cfg["hop_length"], cfg["sample_rate"]
    n_bins = n_fft // 2 + 1
    F = cond.shape[-1]
    assert n_fft % hop == 0 and (n_fft - hop) % 2 == 0

    # prior waveform + STFT (no-grad region in torch)
    prior = generate_sine(f0, hop, sr)                            # (B, 1, T)
    pad = (n_fft - hop) // 2
    xp = jnp.pad(prior[:, 0, :], ((0, 0), (pad, pad)), mode="reflect")
    frames_t = frame_signal(xp, F, n_fft, hop)                    # (B, F, n_fft)
    spec = pallas_dft(frames_t, params["fwd_w"])                  # (B, F, 2*n_bins)
    prior1 = spec[:, :, :n_bins]                                  # frames-major, no transposes
    prior2 = spec[:, :, n_bins:]

    # reflect padding over frames for the k=7 Conv1d projections (small, done once)
    cp = 3
    p1pad = jnp.pad(prior1, ((0, 0), (cp, cp), (0, 0)), mode="reflect")
    p2pad = jnp.pad(prior2, ((0, 0), (cp, cp), (0, 0)), mode="reflect")
    cdpad = jnp.pad(jnp.transpose(cond, (0, 2, 1)),
                    ((0, 0), (cp, cp), (0, 0)), mode="reflect")

    # fused trunk: projections -> input proj/norm -> ConvNeXt blocks
    #              -> output norm/proj -> windowed inverse-DFT frames
    tframes = pallas_trunk(p1pad, p2pad, cdpad, params, cfg)      # (B, F, n_fft)

    wave = overlap_add(tframes, params["window"], hop, n_fft)     # (B, 1, T)
    return wave, prior


# ----------------------------------------------------------------------------
if __name__ == "__main__":
    cfg = dict(in_channels=4, channels=16, mult_channels=2, kernel_size=3,
               num_blocks=2, n_fft=16, hop_length=4, sample_rate=16000)
    params = init_params(jax.random.PRNGKey(0), cfg)

    B, frames = 2, 8
    k1, k2 = jax.random.split(jax.random.PRNGKey(0))
    cond = jax.random.normal(k1, (B, cfg["in_channels"], frames), jnp.float32)
    f0 = 100.0 + 200.0 * jax.random.uniform(k2, (B, 1, frames), jnp.float32)

    fwd = jax.jit(lambda c, f: wavehax_forward(params, c, f, cfg))
    wave, prior = fwd(cond, f0)
    jax.block_until_ready(wave)

    T = frames * cfg["hop_length"]
    assert wave.shape == (B, 1, T), wave.shape
    assert prior.shape == (B, 1, T), prior.shape
    assert bool(jnp.all(jnp.isfinite(wave))) and bool(jnp.all(jnp.isfinite(prior)))
    print("KERNEL_OK")
</pallas_src>

<mosaic_0001>
module attributes {stable_mosaic.version = 11 : i64} {
  func.func @_dft_kernel(%arg0: i32, %arg1: memref<1x8x16xf32, #tpu.memory_space<vmem>>, %arg2: memref<16x18xf32, #tpu.memory_space<vmem>>, %arg3: memref<1x8x18xf32, #tpu.memory_space<vmem>>) attributes {dimension_semantics = [#tpu.dimension_semantics<parallel>], iteration_bounds = array<i64: 2>, scalar_prefetch = 0 : i64, scratch_operands = 0 : i64, tpu.core_type = #tpu.core_type<tc>, window_params = [{transform_indices = @transform_0, window_bounds = array<i64: 1, 8, 16>}, {pipeline_mode = #tpu.pipeline_mode<synchronous>, transform_indices = @transform_1, window_bounds = array<i64: 16, 18>}, {transform_indices = @transform_2, window_bounds = array<i64: 1, 8, 18>}]} {
    %c0 = arith.constant 0 : index
    %c0_0 = arith.constant 0 : index
    %c0_1 = arith.constant 0 : index
    %0 = vector.load %arg1[%c0, %c0_0, %c0_1] : memref<1x8x16xf32, #tpu.memory_space<vmem>>, vector<1x8x16xf32>
    %1 = vector.shape_cast %0 : vector<1x8x16xf32> to vector<8x16xf32>
    %c0_2 = arith.constant 0 : index
    %c0_3 = arith.constant 0 : index
    %2 = vector.load %arg2[%c0_2, %c0_3] : memref<16x18xf32, #tpu.memory_space<vmem>>, vector<16x18xf32>
    %cst = arith.constant dense<0.000000e+00> : vector<8x18xf32>
    %3 = tpu.matmul %1, %2, %cst {dimension_numbers = #tpu.dot_dimension_numbers<[1], [0], [0], [1], [0, 0, 1, 1], [], []>} : vector<8x16xf32>, vector<16x18xf32>, vector<8x18xf32> -> vector<8x18xf32>
    %4 = vector.shape_cast %3 : vector<8x18xf32> to vector<1x8x18xf32>
    %c0_4 = arith.constant 0 : index
    %c0_5 = arith.constant 0 : index
    %c0_6 = arith.constant 0 : index
    %5 = vector.load %arg3[%c0_4, %c0_5, %c0_6] : memref<1x8x18xf32, #tpu.memory_space<vmem>>, vector<1x8x18xf32>
    tpu.vector_store %arg3[%c0_4, %c0_5, %c0_6], %4 {strides = array<i32>} : memref<1x8x18xf32, #tpu.memory_space<vmem>>, vector<1x8x18xf32>,
    return
  }
  func.func @transform_0(%arg0: i32) -> (i32, i32, i32) {
    %c0_i32 = arith.constant 0 : i32
    %c0_i32_0 = arith.constant 0 : i32
    %c0_i32_1 = arith.constant 0 : i32
    return %arg0, %c0_i32, %c0_i32_0 : i32, i32, i32
  }
  func.func @transform_1(%arg0: i32) -> (i32, i32) {
    %c0_i32 = arith.constant 0 : i32
    %c0_i32_0 = arith.constant 0 : i32
    %c0_i32_1 = arith.constant 0 : i32
    return %c0_i32, %c0_i32_0 : i32, i32
  }
  func.func @transform_2(%arg0: i32) -> (i32, i32, i32) {
    %c0_i32 = arith.constant 0 : i32
    %c0_i32_0 = arith.constant 0 : i32
    %c0_i32_1 = arith.constant 0 : i32
    return %arg0, %c0_i32, %c0_i32_0 : i32, i32, i32
  }
}

module attributes {stable_mosaic.version = 11 : i64} {
  func.func @_trunk_kernel(%arg0: i32, %arg1: memref<1x14x9xf32, #tpu.memory_space<vmem>>, %arg2: memref<1x14x9xf32, #tpu.memory_space<vmem>>, %arg3: memref<1x14x4xf32, #tpu.memory_space<vmem>>, %arg4: memref<7x9x9xf32, #tpu.memory_space<vmem>>, %arg5: memref<1x9xf32, #tpu.memory_space<vmem>>, %arg6: memref<7x4x9xf32, #tpu.memory_space<vmem>>, %arg7: memref<1x9xf32, #tpu.memory_space<vmem>>, %arg8: memref<5x16xf32, #tpu.memory_space<vmem>>, %arg9: memref<1x16xf32, #tpu.memory_space<vmem>>, %arg10: memref<1x16xf32, #tpu.memory_space<vmem>>, %arg11: memref<2x9x16xf32, #tpu.memory_space<vmem>>, %arg12: memref<2x1x16xf32, #tpu.memory_space<vmem>>, %arg13: memref<2x1x16xf32, #tpu.memory_space<vmem>>, %arg14: memref<2x1x16xf32, #tpu.memory_space<vmem>>, %arg15: memref<2x16x32xf32, #tpu.memory_space<vmem>>, %arg16: memref<2x1x32xf32, #tpu.memory_space<vmem>>, %arg17: memref<2x32x16xf32, #tpu.memory_space<vmem>>, %arg18: memref<2x1x16xf32, #tpu.memory_space<vmem>>, %arg19: memref<2x1x16xf32, #tpu.memory_space<vmem>>, %arg20: memref<1x16xf32, #tpu.memory_space<vmem>>, %arg21: memref<1x16xf32, #tpu.memory_space<vmem>>, %arg22: memref<2x16xf32, #tpu.memory_space<vmem>>, %arg23: memref<1x2xf32, #tpu.memory_space<vmem>>, %arg24: memref<9x16xf32, #tpu.memory_space<vmem>>, %arg25: memref<9x16xf32, #tpu.memory_space<vmem>>, %arg26: memref<1x8x16xf32, #tpu.memory_space<vmem>>, %arg27: memref<10x11x16xf32, #tpu.memory_space<vmem>>) attributes {dimension_semantics = [#tpu.dimension_semantics<parallel>], iteration_bounds = array<i64: 2>, scalar_prefetch = 0 : i64, scratch_operands = 1 : i64, tpu.core_type = #tpu.core_type<tc>, window_params = [{transform_indices = @transform_0, window_bounds = array<i64: 1, 14, 9>}, {transform_indices = @transform_1, window_bounds = array<i64: 1, 14, 9>}, {transform_indices = @transform_2, window_bounds = array<i64: 1, 14, 4>}, {pipeline_mode = #tpu.pipeline_mode<synchronous>, transform_indices = @transform_3, window_bounds = array<i64: 7, 9, 9>}, {pipeline_mode = #tpu.pipeline_mode<synchronous>, transform_indices = @transform_4, window_bounds = array<i64: 1, 9>}, {pipeline_mode = #tpu.pipeline_mode<synchronous>, transform_indices = @transform_5, window_bounds = array<i64: 7, 4, 9>}, {pipeline_mode = #tpu.pipeline_mode<synchronous>, transform_indices = @transform_6, window_bounds = array<i64: 1, 9>}, {pipeline_mode = #tpu.pipeline_mode<synchronous>, transform_indices = @transform_7, window_bounds = array<i64: 5, 16>}, {pipeline_mode = #tpu.pipeline_mode<synchronous>, transform_indices = @transform_8, window_bounds = array<i64: 1, 16>}, {pipeline_mode = #tpu.pipeline_mode<synchronous>, transform_indices = @transform_9, window_bounds = array<i64: 1, 16>}, {pipeline_mode = #tpu.pipeline_mode<synchronous>, transform_indices = @transform_10, window_bounds = array<i64: 2, 9, 16>}, {pipeline_mode = #tpu.pipeline_mode<synchronous>, transform_indices = @transform_11, window_bounds = array<i64: 2, 1, 16>}, {pipeline_mode = #tpu.pipeline_mode<synchronous>, transform_indices = @transform_12, window_bounds = array<i64: 2, 1, 16>}, {pipeline_mode = #tpu.pipeline_mode<synchronous>, transform_indices = @transform_13, window_bounds = array<i64: 2, 1, 16>}, {pipeline_mode = #tpu.pipeline_mode<synchronous>, transform_indices = @transform_14, window_bounds = array<i64: 2, 16, 32>}, {pipeline_mode = #tpu.pipeline_mode<synchronous>, transform_indices = @transform_15, window_bounds = array<i64: 2, 1, 32>}, {pipeline_mode = #tpu.pipeline_mode<synchronous>, transform_indices = @transform_16, window_bounds = array<i64: 2, 32, 16>}, {pipeline_mode = #tpu.pipeline_mode<synchronous>, transform_indices = @transform_17, window_bounds = array<i64: 2, 1, 16>}, {pipeline_mode = #tpu.pipeline_mode<synchronous>, transform_indices = @transform_18, window_bounds = array<i64: 2, 1, 16>}, {pipeline_mode = #tpu.pipeline_mode<synchronous>, transform_indices = @transform_19, window_bounds = array<i64: 1, 16>}, {pipeline_mode = #tpu.pipeline_mode<synchronous>, transform_indices = @transform_20, window_bounds = array<i64: 1, 16>}, {pipeline_mode = #tpu.pipeline_mode<synchronous>, transform_indices = @transform_21, window_bounds = array<i64: 2, 16>}, {pipeline_mode = #tpu.pipeline_mode<synchronous>, transform_indices = @transform_22, window_bounds = array<i64: 1, 2>}, {pipeline_mode = #tpu.pipeline_mode<synchronous>, transform_indices = @transform_23, window_bounds = array<i64: 9, 16>}, {pipeline_mode = #tpu.pipeline_mode<synchronous>, transform_indices = @transform_24, window_bounds = array<i64: 9, 16>}, {transform_indices = @transform_25, window_bounds = array<i64: 1, 8, 16>}]} {
    %c0 = arith.constant 0 : index
    %c0_0 = arith.constant 0 : index
    %c0_1 = arith.constant 0 : index
    %0 = vector.load %arg1[%c0, %c0_0, %c0_1] : memref<1x14x9xf32, #tpu.memory_space<vmem>>, vector<1x14x9xf32>
    %1 = vector.shape_cast %0 : vector<1x14x9xf32> to vector<14x9xf32>
    %c0_2 = arith.constant 0 : index
    %c0_3 = arith.constant 0 : index
    %c0_4 = arith.constant 0 : index
    %2 = vector.load %arg2[%c0_2, %c0_3, %c0_4] : memref<1x14x9xf32, #tpu.memory_space<vmem>>, vector<1x14x9xf32>
    %3 = vector.shape_cast %2 : vector<1x14x9xf32> to vector<14x9xf32>
    %c0_5 = arith.constant 0 : index
    %c0_6 = arith.constant 0 : index
    %c0_7 = arith.constant 0 : index
    %4 = vector.load %arg3[%c0_5, %c0_6, %c0_7] : memref<1x14x4xf32, #tpu.memory_space<vmem>>, vector<1x14x4xf32>
    %5 = vector.shape_cast %4 : vector<1x14x4xf32> to vector<14x4xf32>
    %6 = vector.extract_strided_slice %1 {offsets = [3, 0], sizes = [8, 9], strides = [1, 1]} : vector<14x9xf32> to vector<8x9xf32>
    %7 = vector.extract_strided_slice %3 {offsets = [3, 0], sizes = [8, 9], strides = [1, 1]} : vector<14x9xf32> to vector<8x9xf32>
    %cst = arith.constant 0.000000e+00 : f32
    %8 = vector.broadcast %cst : f32 to vector<8x9xf32>
    %cst_8 = arith.constant 0.000000e+00 : f32
    %9 = vector.broadcast %cst_8 : f32 to vector<8x9xf32>
    %cst_9 = arith.constant 0.000000e+00 : f32
    %10 = vector.broadcast %cst_9 : f32 to vector<8x9xf32>
    %c0_10 = arith.constant 0 : index
    %c0_11 = arith.constant 0 : index
    %c0_12 = arith.constant 0 : index
    %11 = vector.load %arg4[%c0_10, %c0_11, %c0_12] : memref<7x9x9xf32, #tpu.memory_space<vmem>>, vector<1x9x9xf32>
    %12 = vector.shape_cast %11 : vector<1x9x9xf32> to vector<9x9xf32>
    %13 = vector.extract_strided_slice %1 {offsets = [0, 0], sizes = [8, 9], strides = [1, 1]} : vector<14x9xf32> to vector<8x9xf32>
    %cst_13 = arith.constant dense<0.000000e+00> : vector<8x9xf32>
    %14 = tpu.matmul %13, %12, %cst_13 {dimension_numbers = #tpu.dot_dimension_numbers<[1], [0], [0], [1], [0, 0, 1, 1], [], []>} : vector<8x9xf32>, vector<9x9xf32>, vector<8x9xf32> -> vector<8x9xf32>
    %15 = arith.addf %8, %14 : vector<8x9xf32>
    %16 = vector.extract_strided_slice %3 {offsets = [0, 0], sizes = [8, 9], strides = [1, 1]} : vector<14x9xf32> to vector<8x9xf32>
    %cst_14 = arith.constant dense<0.000000e+00> : vector<8x9xf32>
    %17 = tpu.matmul %16, %12, %cst_14 {dimension_numbers = #tpu.dot_dimension_numbers<[1], [0], [0], [1], [0, 0, 1, 1], [], []>} : vector<8x9xf32>, vector<9x9xf32>, vector<8x9xf32> -> vector<8x9xf32>
    %18 = arith.addf %9, %17 : vector<8x9xf32>
    %19 = vector.extract_strided_slice %5 {offsets = [0, 0], sizes = [8, 4], strides = [1, 1]} : vector<14x4xf32> to vector<8x4xf32>
    %c0_15 = arith.constant 0 : index
    %c0_16 = arith.constant 0 : index
    %c0_17 = arith.constant 0 : index
    %20 = vector.load %arg6[%c0_15, %c0_16, %c0_17] : memref<7x4x9xf32, #tpu.memory_space<vmem>>, vector<1x4x9xf32>
    %21 = vector.shape_cast %20 : vector<1x4x9xf32> to vector<4x9xf32>
    %cst_18 = arith.constant dense<0.000000e+00> : vector<8x9xf32>
    %22 = tpu.matmul %19, %21, %cst_18 {dimension_numbers = #tpu.dot_dimension_numbers<[1], [0], [0], [1], [0, 0, 1, 1], [], []>} : vector<8x4xf32>, vector<4x9xf32>, vector<8x9xf32> -> vector<8x9xf32>
    %23 = arith.addf %10, %22 : vector<8x9xf32>
    %c1 = arith.constant 1 : index
    %c0_19 = arith.constant 0 : index
    %c0_20 = arith.constant 0 : index
    %24 = vector.load %arg4[%c1, %c0_19, %c0_20] : memref<7x9x9xf32, #tpu.memory_space<vmem>>, vector<1x9x9xf32>
    %25 = vector.shape_cast %24 : vector<1x9x9xf32> to vector<9x9xf32>
    %26 = vector.extract_strided_slice %1 {offsets = [1, 0], sizes = [8, 9], strides = [1, 1]} : vector<14x9xf32> to vector<8x9xf32>
    %cst_21 = arith.constant dense<0.000000e+00> : vector<8x9xf32>
    %27 = tpu.matmul %26, %25, %cst_21 {dimension_numbers = #tpu.dot_dimension_numbers<[1], [0], [0], [1], [0, 0, 1, 1], [], []>} : vector<8x9xf32>, vector<9x9xf32>, vector<8x9xf32> -> vector<8x9xf32>
    %28 = arith.addf %15, %27 : vector<8x9xf32>
    %29 = vector.extract_strided_slice %3 {offsets = [1, 0], sizes = [8, 9], strides = [1, 1]} : vector<14x9xf32> to vector<8x9xf32>
    %cst_22 = arith.constant dense<0.000000e+00> : vector<8x9xf32>
    %30 = tpu.matmul %29, %25, %cst_22 {dimension_numbers = #tpu.dot_dimension_numbers<[1], [0], [0], [1], [0, 0, 1, 1], [], []>} : vector<8x9xf32>, vector<9x9xf32>, vector<8x9xf32> -> vector<8x9xf32>
    %31 = arith.addf %18, %30 : vector<8x9xf32>
    %32 = vector.extract_strided_slice %5 {offsets = [1, 0], sizes = [8, 4], strides = [1, 1]} : vector<14x4xf32> to vector<8x4xf32>
    %c1_23 = arith.constant 1 : index
    %c0_24 = arith.constant 0 : index
    %c0_25 = arith.constant 0 : index
    %33 = vector.load %arg6[%c1_23, %c0_24, %c0_25] : memref<7x4x9xf32, #tpu.memory_space<vmem>>, vector<1x4x9xf32>
    %34 = vector.shape_cast %33 : vector<1x4x9xf32> to vector<4x9xf32>
    %cst_26 = arith.constant dense<0.000000e+00> : vector<8x9xf32>
    %35 = tpu.matmul %32, %34, %cst_26 {dimension_numbers = #tpu.dot_dimension_numbers<[1], [0], [0], [1], [0, 0, 1, 1], [], []>} : vector<8x4xf32>, vector<4x9xf32>, vector<8x9xf32> -> vector<8x9xf32>
    %36 = arith.addf %23, %35 : vector<8x9xf32>
    %c2 = arith.constant 2 : index
    %c0_27 = arith.constant 0 : index
    %c0_28 = arith.constant 0 : index
    %37 = vector.load %arg4[%c2, %c0_27, %c0_28] : memref<7x9x9xf32, #tpu.memory_space<vmem>>, vector<1x9x9xf32>
    %38 = vector.shape_cast %37 : vector<1x9x9xf32> to vector<9x9xf32>
    %39 = vector.extract_strided_slice %1 {offsets = [2, 0], sizes = [8, 9], strides = [1, 1]} : vector<14x9xf32> to vector<8x9xf32>
    %cst_29 = arith.constant dense<0.000000e+00> : vector<8x9xf32>
    %40 = tpu.matmul %39, %38, %cst_29 {dimension_numbers = #tpu.dot_dimension_numbers<[1], [0], [0], [1], [0, 0, 1, 1], [], []>} : vector<8x9xf32>, vector<9x9xf32>, vector<8x9xf32> -> vector<8x9xf32>
    %41 = arith.addf %28, %40 : vector<8x9xf32>
    %42 = vector.extract_strided_slice %3 {offsets = [2, 0], sizes = [8, 9], strides = [1, 1]} : vector<14x9xf32> to vector<8x9xf32>
    %cst_30 = arith.constant dense<0.000000e+00> : vector<8x9xf32>
    %43 = tpu.matmul %42, %38, %cst_30 {dimension_numbers = #tpu.dot_dimension_numbers<[1], [0], [0], [1], [0, 0, 1, 1], [], []>} : vector<8x9xf32>, vector<9x9xf32>, vector<8x9xf32> -> vector<8x9xf32>
    %44 = arith.addf %31, %43 : vector<8x9xf32>
    %45 = vector.extract_strided_slice %5 {offsets = [2, 0], sizes = [8, 4], strides = [1, 1]} : vector<14x4xf32> to vector<8x4xf32>
    %c2_31 = arith.constant 2 : index
    %c0_32 = arith.constant 0 : index
    %c0_33 = arith.constant 0 : index
    %46 = vector.load %arg6[%c2_31, %c0_32, %c0_33] : memref<7x4x9xf32, #tpu.memory_space<vmem>>, vector<1x4x9xf32>
    %47 = vector.shape_cast %46 : vector<1x4x9xf32> to vector<4x9xf32>
    %cst_34 = arith.constant dense<0.000000e+00> : vector<8x9xf32>
    %48 = tpu.matmul %45, %47, %cst_34 {dimension_numbers = #tpu.dot_dimension_numbers<[1], [0], [0], [1], [0, 0, 1, 1], [], []>} : vector<8x4xf32>, vector<4x9xf32>, vector<8x9xf32> -> vector<8x9xf32>
    %49 = arith.addf %36, %48 : vector<8x9xf32>
    %c3 = arith.constant 3 : index
    %c0_35 = arith.constant 0 : index
    %c0_36 = arith.constant 0 : index
    %50 = vector.load %arg4[%c3, %c0_35, %c0_36] : memref<7x9x9xf32, #tpu.memory_space<vmem>>, vector<1x9x9xf32>
    %51 = vector.shape_cast %50 : vector<1x9x9xf32> to vector<9x9xf32>
    %52 = vector.extract_strided_slice %1 {offsets = [3, 0], sizes = [8, 9], strides = [1, 1]} : vector<14x9xf32> to vector<8x9xf32>
    %cst_37 = arith.constant dense<0.000000e+00> : vector<8x9xf32>
    %53 = tpu.matmul %52, %51, %cst_37 {dimension_numbers = #tpu.dot_dimension_numbers<[1], [0], [0], [1], [0, 0, 1, 1], [], []>} : vector<8x9xf32>, vector<9x9xf32>, vector<8x9xf32> -> vector<8x9xf32>
    %54 = arith.addf %41, %53 : vector<8x9xf32>
    %55 = vector.extract_strided_slice %3 {offsets = [3, 0], sizes = [8, 9], strides = [1, 1]} : vector<14x9xf32> to vector<8x9xf32>
    %cst_38 = arith.constant dense<0.000000e+00> : vector<8x9xf32>
    %56 = tpu.matmul %55, %51, %cst_38 {dimension_numbers = #tpu.dot_dimension_numbers<[1], [0], [0], [1], [0, 0, 1, 1], [], []>} : vector<8x9xf32>, vector<9x9xf32>, vector<8x9xf32> -> vector<8x9xf32>
    %57 = arith.addf %44, %56 : vector<8x9xf32>
    %58 = vector.extract_strided_slice %5 {offsets = [3, 0], sizes = [8, 4], strides = [1, 1]} : vector<14x4xf32> to vector<8x4xf32>
    %c3_39 = arith.constant 3 : index
    %c0_40 = arith.constant 0 : index
    %c0_41 = arith.constant 0 : index
    %59 = vector.load %arg6[%c3_39, %c0_40, %c0_41] : memref<7x4x9xf32, #tpu.memory_space<vmem>>, vector<1x4x9xf32>
    %60 = vector.shape_cast %59 : vector<1x4x9xf32> to vector<4x9xf32>
    %cst_42 = arith.constant dense<0.000000e+00> : vector<8x9xf32>
    %61 = tpu.matmul %58, %60, %cst_42 {dimension_numbers = #tpu.dot_dimension_numbers<[1], [0], [0], [1], [0, 0, 1, 1], [], []>} : vector<8x4xf32>, vector<4x9xf32>, vector<8x9xf32> -> vector<8x9xf32>
    %62 = arith.addf %49, %61 : vector<8x9xf32>
    %c4 = arith.constant 4 : index
    %c0_43 = arith.constant 0 : index
    %c0_44 = arith.constant 0 : index
    %63 = vector.load %arg4[%c4, %c0_43, %c0_44] : memref<7x9x9xf32, #tpu.memory_space<vmem>>, vector<1x9x9xf32>
    %64 = vector.shape_cast %63 : vector<1x9x9xf32> to vector<9x9xf32>
    %65 = vector.extract_strided_slice %1 {offsets = [4, 0], sizes = [8, 9], strides = [1, 1]} : vector<14x9xf32> to vector<8x9xf32>
    %cst_45 = arith.constant dense<0.000000e+00> : vector<8x9xf32>
    %66 = tpu.matmul %65, %64, %cst_45 {dimension_numbers = #tpu.dot_dimension_numbers<[1], [0], [0], [1], [0, 0, 1, 1], [], []>} : vector<8x9xf32>, vector<9x9xf32>, vector<8x9xf32> -> vector<8x9xf32>
    %67 = arith.addf %54, %66 : vector<8x9xf32>
    %68 = vector.extract_strided_slice %3 {offsets = [4, 0], sizes = [8, 9], strides = [1, 1]} : vector<14x9xf32> to vector<8x9xf32>
    %cst_46 = arith.constant dense<0.000000e+00> : vector<8x9xf32>
    %69 = tpu.matmul %68, %64, %cst_46 {dimension_numbers = #tpu.dot_dimension_numbers<[1], [0], [0], [1], [0, 0, 1, 1], [], []>} : vector<8x9xf32>, vector<9x9xf32>, vector<8x9xf32> -> vector<8x9xf32>
    %70 = arith.addf %57, %69 : vector<8x9xf32>
    %71 = vector.extract_strided_slice %5 {offsets = [4, 0], sizes = [8, 4], strides = [1, 1]} : vector<14x4xf32> to vector<8x4xf32>
    %c4_47 = arith.constant 4 : index
    %c0_48 = arith.constant 0 : index
    %c0_49 = arith.constant 0 : index
    %72 = vector.load %arg6[%c4_47, %c0_48, %c0_49] : memref<7x4x9xf32, #tpu.memory_space<vmem>>, vector<1x4x9xf32>
    %73 = vector.shape_cast %72 : vector<1x4x9xf32> to vector<4x9xf32>
    %cst_50 = arith.constant dense<0.000000e+00> : vector<8x9xf32>
    %74 = tpu.matmul %71, %73, %cst_50 {dimension_numbers = #tpu.dot_dimension_numbers<[1], [0], [0], [1], [0, 0, 1, 1], [], []>} : vector<8x4xf32>, vector<4x9xf32>, vector<8x9xf32> -> vector<8x9xf32>
    %75 = arith.addf %62, %74 : vector<8x9xf32>
    %c5 = arith.constant 5 : index
    %c0_51 = arith.constant 0 : index
    %c0_52 = arith.constant 0 : index
    %76 = vector.load %arg4[%c5, %c0_51, %c0_52] : memref<7x9x9xf32, #tpu.memory_space<vmem>>, vector<1x9x9xf32>
    %77 = vector.shape_cast %76 : vector<1x9x9xf32> to vector<9x9xf32>
    %78 = vector.extract_strided_slice %1 {offsets = [5, 0], sizes = [8, 9], strides = [1, 1]} : vector<14x9xf32> to vector<8x9xf32>
    %cst_53 = arith.constant dense<0.000000e+00> : vector<8x9xf32>
    %79 = tpu.matmul %78, %77, %cst_53 {dimension_numbers = #tpu.dot_dimension_numbers<[1], [0], [0], [1], [0, 0, 1, 1], [], []>} : vector<8x9xf32>, vector<9x9xf32>, vector<8x9xf32> -> vector<8x9xf32>
    %80 = arith.addf %67, %79 : vector<8x9xf32>
    %81 = vector.extract_strided_slice %3 {offsets = [5, 0], sizes = [8, 9], strides = [1, 1]} : vector<14x9xf32> to vector<8x9xf32>
    %cst_54 = arith.constant dense<0.000000e+00> : vector<8x9xf32>
    %82 = tpu.matmul %81, %77, %cst_54 {dimension_numbers = #tpu.dot_dimension_numbers<[1], [0], [0], [1], [0, 0, 1, 1], [], []>} : vector<8x9xf32>, vector<9x9xf32>, vector<8x9xf32> -> vector<8x9xf32>
    %83 = arith.addf %70, %82 : vector<8x9xf32>
    %84 = vector.extract_strided_slice %5 {offsets = [5, 0], sizes = [8, 4], strides = [1, 1]} : vector<14x4xf32> to vector<8x4xf32>
    %c5_55 = arith.constant 5 : index
    %c0_56 = arith.constant 0 : index
    %c0_57 = arith.constant 0 : index
    %85 = vector.load %arg6[%c5_55, %c0_56, %c0_57] : memref<7x4x9xf32, #tpu.memory_space<vmem>>, vector<1x4x9xf32>
    %86 = vector.shape_cast %85 : vector<1x4x9xf32> to vector<4x9xf32>
    %cst_58 = arith.constant dense<0.000000e+00> : vector<8x9xf32>
    %87 = tpu.matmul %84, %86, %cst_58 {dimension_numbers = #tpu.dot_dimension_numbers<[1], [0], [0], [1], [0, 0, 1, 1], [], []>} : vector<8x4xf32>, vector<4x9xf32>, vector<8x9xf32> -> vector<8x9xf32>
    %88 = arith.addf %75, %87 : vector<8x9xf32>
    %c6 = arith.constant 6 : index
    %c0_59 = arith.constant 0 : index
    %c0_60 = arith.constant 0 : index
    %89 = vector.load %arg4[%c6, %c0_59, %c0_60] : memref<7x9x9xf32, #tpu.memory_space<vmem>>, vector<1x9x9xf32>
    %90 = vector.shape_cast %89 : vector<1x9x9xf32> to vector<9x9xf32>
    %91 = vector.extract_strided_slice %1 {offsets = [6, 0], sizes = [8, 9], strides = [1, 1]} : vector<14x9xf32> to vector<8x9xf32>
    %cst_61 = arith.constant dense<0.000000e+00> : vector<8x9xf32>
    %92 = tpu.matmul %91, %90, %cst_61 {dimension_numbers = #tpu.dot_dimension_numbers<[1], [0], [0], [1], [0, 0, 1, 1], [], []>} : vector<8x9xf32>, vector<9x9xf32>, vector<8x9xf32> -> vector<8x9xf32>
    %93 = arith.addf %80, %92 : vector<8x9xf32>
    %94 = vector.extract_strided_slice %3 {offsets = [6, 0], sizes = [8, 9], strides = [1, 1]} : vector<14x9xf32> to vector<8x9xf32>
    %cst_62 = arith.constant dense<0.000000e+00> : vector<8x9xf32>
    %95 = tpu.matmul %94, %90, %cst_62 {dimension_numbers = #tpu.dot_dimension_numbers<[1], [0], [0], [1], [0, 0, 1, 1], [], []>} : vector<8x9xf32>, vector<9x9xf32>, vector<8x9xf32> -> vector<8x9xf32>
    %96 = arith.addf %83, %95 : vector<8x9xf32>
    %97 = vector.extract_strided_slice %5 {offsets = [6, 0], sizes = [8, 4], strides = [1, 1]} : vector<14x4xf32> to vector<8x4xf32>
    %c6_63 = arith.constant 6 : index
    %c0_64 = arith.constant 0 : index
    %c0_65 = arith.constant 0 : index
    %98 = vector.load %arg6[%c6_63, %c0_64, %c0_65] : memref<7x4x9xf32, #tpu.memory_space<vmem>>, vector<1x4x9xf32>
    %99 = vector.shape_cast %98 : vector<1x4x9xf32> to vector<4x9xf32>
    %cst_66 = arith.constant dense<0.000000e+00> : vector<8x9xf32>
    %100 = tpu.matmul %97, %99, %cst_66 {dimension_numbers = #tpu.dot_dimension_numbers<[1], [0], [0], [1], [0, 0, 1, 1], [], []>} : vector<8x4xf32>, vector<4x9xf32>, vector<8x9xf32> -> vector<8x9xf32>
    %101 = arith.addf %88, %100 : vector<8x9xf32>
    %c0_67 = arith.constant 0 : index
    %c0_68 = arith.constant 0 : index
    %102 = vector.load %arg5[%c0_67, %c0_68] : memref<1x9xf32, #tpu.memory_space<vmem>>, vector<1x9xf32>
    %103 = vector.broadcast %102 : vector<1x9xf32> to vector<8x9xf32>
    %104 = arith.addf %93, %103 : vector<8x9xf32>
    %c0_69 = arith.constant 0 : index
    %c0_70 = arith.constant 0 : index
    %105 = vector.load %arg5[%c0_69, %c0_70] : memref<1x9xf32, #tpu.memory_space<vmem>>, vector<1x9xf32>
    %106 = vector.broadcast %105 : vector<1x9xf32> to vector<8x9xf32>
    %107 = arith.addf %96, %106 : vector<8x9xf32>
    %c0_71 = arith.constant 0 : index
    %c0_72 = arith.constant 0 : index
    %108 = vector.load %arg7[%c0_71, %c0_72] : memref<1x9xf32, #tpu.memory_space<vmem>>, vector<1x9xf32>
    %109 = vector.broadcast %108 : vector<1x9xf32> to vector<8x9xf32>
    %110 = arith.addf %101, %109 : vector<8x9xf32>
    %c0_73 = arith.constant 0 : index
    %c0_74 = arith.constant 0 : index
    %111 = vector.load %arg8[%c0_73, %c0_74] : memref<5x16xf32, #tpu.memory_space<vmem>>, vector<5x16xf32>
    %112 = vector.shape_cast %6 : vector<8x9xf32> to vector<8x9x1xf32>
    %113 = vector.extract_strided_slice %111 {offsets = [0, 0], sizes = [1, 16], strides = [1, 1]} : vector<5x16xf32> to vector<1x16xf32>
    %114 = vector.shape_cast %113 : vector<1x16xf32> to vector<1x1x16xf32>
    %115 = vector.broadcast %112 : vector<8x9x1xf32> to vector<8x9x16xf32>
    %116 = vector.broadcast %114 : vector<1x1x16xf32> to vector<8x9x16xf32>
    %117 = arith.mulf %115, %116 : vector<8x9x16xf32>
    %118 = vector.shape_cast %7 : vector<8x9xf32> to vector<8x9x1xf32>
    %119 = vector.extract_strided_slice %111 {offsets = [1, 0], sizes = [1, 16], strides = [1, 1]} : vector<5x16xf32> to vector<1x16xf32>
    %120 = vector.shape_cast %119 : vector<1x16xf32> to vector<1x1x16xf32>
    %121 = vector.broadcast %118 : vector<8x9x1xf32> to vector<8x9x16xf32>
    %122 = vector.broadcast %120 : vector<1x1x16xf32> to vector<8x9x16xf32>
    %123 = arith.mulf %121, %122 : vector<8x9x16xf32>
    %124 = arith.addf %117, %123 : vector<8x9x16xf32>
    %125 = vector.shape_cast %104 : vector<8x9xf32> to vector<8x9x1xf32>
    %126 = vector.extract_strided_slice %111 {offsets = [2, 0], sizes = [1, 16], strides = [1, 1]} : vector<5x16xf32> to vector<1x16xf32>
    %127 = vector.shape_cast %126 : vector<1x16xf32> to vector<1x1x16xf32>
    %128 = vector.broadcast %125 : vector<8x9x1xf32> to vector<8x9x16xf32>
    %129 = vector.broadcast %127 : vector<1x1x16xf32> to vector<8x9x16xf32>
    %130 = arith.mulf %128, %129 : vector<8x9x16xf32>
    %131 = arith.addf %124, %130 : vector<8x9x16xf32>
    %132 = vector.shape_cast %107 : vector<8x9xf32> to vector<8x9x1xf32>
    %133 = vector.extract_strided_slice %111 {offsets = [3, 0], sizes = [1, 16], strides = [1, 1]} : vector<5x16xf32> to vector<1x16xf32>
    %134 = vector.shape_cast %133 : vector<1x16xf32> to vector<1x1x16xf32>
    %135 = vector.broadcast %132 : vector<8x9x1xf32> to vector<8x9x16xf32>
    %136 = vector.broadcast %134 : vector<1x1x16xf32> to vector<8x9x16xf32>
    %137 = arith.mulf %135, %136 : vector<8x9x16xf32>
    %138 = arith.addf %131, %137 : vector<8x9x16xf32>
    %139 = vector.shape_cast %110 : vector<8x9xf32> to vector<8x9x1xf32>
    %140 = vector.extract_strided_slice %111 {offsets = [4, 0], sizes = [1, 16], strides = [1, 1]} : vector<5x16xf32> to vector<1x16xf32>
    %141 = vector.shape_cast %140 : vector<1x16xf32> to vector<1x1x16xf32>
    %142 = vector.broadcast %139 : vector<8x9x1xf32> to vector<8x9x16xf32>
    %143 = vector.broadcast %141 : vector<1x1x16xf32> to vector<8x9x16xf32>
    %144 = arith.mulf %142, %143 : vector<8x9x16xf32>
    %145 = arith.addf %138, %144 : vector<8x9x16xf32>
    %c0_75 = arith.constant 0 : index
    %c0_76 = arith.constant 0 : index
    %146 = vector.load %arg9[%c0_75, %c0_76] : memref<1x16xf32, #tpu.memory_space<vmem>>, vector<1x16xf32>
    %c0_77 = arith.constant 0 : index
    %c0_78 = arith.constant 0 : index
    %147 = vector.load %arg10[%c0_77, %c0_78] : memref<1x16xf32, #tpu.memory_space<vmem>>, vector<1x16xf32>
    %cst_79 = arith.constant dense<0.000000e+00> : vector<8x9xf32>
    %148 = vector.multi_reduction <add>, %145, %cst_79 [2] : vector<8x9x16xf32> to vector<8x9xf32>
    %149 = vector.shape_cast %148 : vector<8x9xf32> to vector<8x9x1xf32>
    %cst_80 = arith.constant 1.600000e+01 : f32
    %150 = vector.broadcast %cst_80 : f32 to vector<8x9x1xf32>
    %151 = arith.divf %149, %150 : vector<8x9x1xf32>
    %152 = vector.broadcast %151 : vector<8x9x1xf32> to vector<8x9x16xf32>
    %153 = arith.subf %145, %152 : vector<8x9x16xf32>
    %154 = arith.mulf %153, %153 : vector<8x9x16xf32>
    %cst_81 = arith.constant dense<0.000000e+00> : vector<8x9xf32>
    %155 = vector.multi_reduction <add>, %154, %cst_81 [2] : vector<8x9x16xf32> to vector<8x9xf32>
    %156 = vector.shape_cast %155 : vector<8x9xf32> to vector<8x9x1xf32>
    %cst_82 = arith.constant 1.600000e+01 : f32
    %157 = vector.broadcast %cst_82 : f32 to vector<8x9x1xf32>
    %158 = arith.divf %156, %157 : vector<8x9x1xf32>
    %159 = vector.broadcast %151 : vector<8x9x1xf32> to vector<8x9x16xf32>
    %160 = arith.subf %145, %159 : vector<8x9x16xf32>
    %cst_83 = arith.constant 9.99999997E-7 : f32
    %161 = vector.broadcast %cst_83 : f32 to vector<8x9x1xf32>
    %162 = arith.addf %158, %161 : vector<8x9x1xf32>
    %163 = math.rsqrt %162 : vector<8x9x1xf32>
    %164 = vector.broadcast %163 : vector<8x9x1xf32> to vector<8x9x16xf32>
    %165 = arith.mulf %160, %164 : vector<8x9x16xf32>
    %166 = vector.shape_cast %146 : vector<1x16xf32> to vector<1x1x16xf32>
    %167 = vector.broadcast %166 : vector<1x1x16xf32> to vector<8x9x16xf32>
    %168 = arith.mulf %165, %167 : vector<8x9x16xf32>
    %169 = vector.shape_cast %147 : vector<1x16xf32> to vector<1x1x16xf32>
    %170 = vector.broadcast %169 : vector<1x1x16xf32> to vector<8x9x16xf32>
    %171 = arith.addf %168, %170 : vector<8x9x16xf32>
    %cst_84 = arith.constant 0.000000e+00 : f32
    %172 = vector.broadcast %cst_84 : f32 to vector<10x11x16xf32>
    %c0_85 = arith.constant 0 : index
    %c0_86 = arith.constant 0 : index
    %c0_87 = arith.constant 0 : index
    %173 = vector.load %arg27[%c0_85, %c0_86, %c0_87] : memref<10x11x16xf32, #tpu.memory_space<vmem>>, vector<10x11x16xf32>
    tpu.vector_store %arg27[%c0_85, %c0_86, %c0_87], %172 {strides = array<i32>} : memref<10x11x16xf32, #tpu.memory_space<vmem>>, vector<10x11x16xf32>,
    %c1_88 = arith.constant 1 : index
    %c1_89 = arith.constant 1 : index
    %c0_90 = arith.constant 0 : index
    %174 = vector.load %arg27[%c1_88, %c1_89, %c0_90] : memref<10x11x16xf32, #tpu.memory_space<vmem>>, vector<8x9x16xf32>
    tpu.vector_store %arg27[%c1_88, %c1_89, %c0_90], %171 {strides = array<i32>} : memref<10x11x16xf32, #tpu.memory_space<vmem>>, vector<8x9x16xf32>,
    %c0_91 = arith.constant 0 : index
    %c0_92 = arith.constant 0 : index
    %c0_93 = arith.constant 0 : index
    %175 = vector.load %arg27[%c0_91, %c0_92, %c0_93] : memref<10x11x16xf32, #tpu.memory_space<vmem>>, vector<10x11x16xf32>
    %c0_94 = arith.constant 0 : index
    %c0_95 = arith.constant 0 : index
    %c0_96 = arith.constant 0 : index
    %176 = vector.load %arg11[%c0_94, %c0_95, %c0_96] : memref<2x9x16xf32, #tpu.memory_space<vmem>>, vector<1x9x16xf32>
    %177 = vector.shape_cast %176 : vector<1x9x16xf32> to vector<9x16xf32>
    %cst_97 = arith.constant 0.000000e+00 : f32
    %178 = vector.broadcast %cst_97 : f32 to vector<8x9x16xf32>
    %179 = vector.extract_strided_slice %175 {offsets = [0, 0, 0], sizes = [8, 9, 16], strides = [1, 1, 1]} : vector<10x11x16xf32> to vector<8x9x16xf32>
    %180 = vector.extract_strided_slice %177 {offsets = [0, 0], sizes = [1, 16], strides = [1, 1]} : vector<9x16xf32> to vector<1x16xf32>
    %181 = vector.shape_cast %180 : vector<1x16xf32> to vector<1x1x16xf32>
    %182 = vector.broadcast %181 : vector<1x1x16xf32> to vector<8x9x16xf32>
    %183 = arith.mulf %179, %182 : vector<8x9x16xf32>
    %184 = arith.addf %178, %183 : vector<8x9x16xf32>
    %185 = vector.extract_strided_slice %175 {offsets = [1, 0, 0], sizes = [8, 9, 16], strides = [1, 1, 1]} : vector<10x11x16xf32> to vector<8x9x16xf32>
    %186 = vector.extract_strided_slice %177 {offsets = [1, 0], sizes = [1, 16], strides = [1, 1]} : vector<9x16xf32> to vector<1x16xf32>
    %187 = vector.shape_cast %186 : vector<1x16xf32> to vector<1x1x16xf32>
    %188 = vector.broadcast %187 : vector<1x1x16xf32> to vector<8x9x16xf32>
    %189 = arith.mulf %185, %188 : vector<8x9x16xf32>
    %190 = arith.addf %184, %189 : vector<8x9x16xf32>
    %191 = vector.extract_strided_slice %175 {offsets = [2, 0, 0], sizes = [8, 9, 16], strides = [1, 1, 1]} : vector<10x11x16xf32> to vector<8x9x16xf32>
    %192 = vector.extract_strided_slice %177 {offsets = [2, 0], sizes = [1, 16], strides = [1, 1]} : vector<9x16xf32> to vector<1x16xf32>
    %193 = vector.shape_cast %192 : vector<1x16xf32> to vector<1x1x16xf32>
    %194 = vector.broadcast %193 : vector<1x1x16xf32> to vector<8x9x16xf32>
    %195 = arith.mulf %191, %194 : vector<8x9x16xf32>
    %196 = arith.addf %190, %195 : vector<8x9x16xf32>
    %197 = vector.extract_strided_slice %175 {offsets = [0, 1, 0], sizes = [8, 9, 16], strides = [1, 1, 1]} : vector<10x11x16xf32> to vector<8x9x16xf32>
    %198 = vector.extract_strided_slice %177 {offsets = [3, 0], sizes = [1, 16], strides = [1, 1]} : vector<9x16xf32> to vector<1x16xf32>
    %199 = vector.shape_cast %198 : vector<1x16xf32> to vector<1x1x16xf32>
    %200 = vector.broadcast %199 : vector<1x1x16xf32> to vector<8x9x16xf32>
    %201 = arith.mulf %197, %200 : vector<8x9x16xf32>
    %202 = arith.addf %196, %201 : vector<8x9x16xf32>
    %203 = vector.extract_strided_slice %175 {offsets = [1, 1, 0], sizes = [8, 9, 16], strides = [1, 1, 1]} : vector<10x11x16xf32> to vector<8x9x16xf32>
    %204 = vector.extract_strided_slice %177 {offsets = [4, 0], sizes = [1, 16], strides = [1, 1]} : vector<9x16xf32> to vector<1x16xf32>
    %205 = vector.shape_cast %204 : vector<1x16xf32> to vector<1x1x16xf32>
    %206 = vector.broadcast %205 : vector<1x1x16xf32> to vector<8x9x16xf32>
    %207 = arith.mulf %203, %206 : vector<8x9x16xf32>
    %208 = arith.addf %202, %207 : vector<8x9x16xf32>
    %209 = vector.extract_strided_slice %175 {offsets = [2, 1, 0], sizes = [8, 9, 16], strides = [1, 1, 1]} : vector<10x11x16xf32> to vector<8x9x16xf32>
    %210 = vector.extract_strided_slice %177 {offsets = [5, 0], sizes = [1, 16], strides = [1, 1]} : vector<9x16xf32> to vector<1x16xf32>
    %211 = vector.shape_cast %210 : vector<1x16xf32> to vector<1x1x16xf32>
    %212 = vector.broadcast %211 : vector<1x1x16xf32> to vector<8x9x16xf32>
    %213 = arith.mulf %209, %212 : vector<8x9x16xf32>
    %214 = arith.addf %208, %213 : vector<8x9x16xf32>
    %215 = vector.extract_strided_slice %175 {offsets = [0, 2, 0], sizes = [8, 9, 16], strides = [1, 1, 1]} : vector<10x11x16xf32> to vector<8x9x16xf32>
    %216 = vector.extract_strided_slice %177 {offsets = [6, 0], sizes = [1, 16], strides = [1, 1]} : vector<9x16xf32> to vector<1x16xf32>
    %217 = vector.shape_cast %216 : vector<1x16xf32> to vector<1x1x16xf32>
    %218 = vector.broadcast %217 : vector<1x1x16xf32> to vector<8x9x16xf32>
    %219 = arith.mulf %215, %218 : vector<8x9x16xf32>
    %220 = arith.addf %214, %219 : vector<8x9x16xf32>
    %221 = vector.extract_strided_slice %175 {offsets = [1, 2, 0], sizes = [8, 9, 16], strides = [1, 1, 1]} : vector<10x11x16xf32> to vector<8x9x16xf32>
    %222 = vector.extract_strided_slice %177 {offsets = [7, 0], sizes = [1, 16], strides = [1, 1]} : vector<9x16xf32> to vector<1x16xf32>
    %223 = vector.shape_cast %222 : vector<1x16xf32> to vector<1x1x16xf32>
    %224 = vector.broadcast %223 : vector<1x1x16xf32> to vector<8x9x16xf32>
    %225 = arith.mulf %221, %224 : vector<8x9x16xf32>
    %226 = arith.addf %220, %225 : vector<8x9x16xf32>
    %227 = vector.extract_strided_slice %175 {offsets = [2, 2, 0], sizes = [8, 9, 16], strides = [1, 1, 1]} : vector<10x11x16xf32> to vector<8x9x16xf32>
    %228 = vector.extract_strided_slice %177 {offsets = [8, 0], sizes = [1, 16], strides = [1, 1]} : vector<9x16xf32> to vector<1x16xf32>
    %229 = vector.shape_cast %228 : vector<1x16xf32> to vector<1x1x16xf32>
    %230 = vector.broadcast %229 : vector<1x1x16xf32> to vector<8x9x16xf32>
    %231 = arith.mulf %227, %230 : vector<8x9x16xf32>
    %232 = arith.addf %226, %231 : vector<8x9x16xf32>
    %c0_98 = arith.constant 0 : index
    %c0_99 = arith.constant 0 : index
    %c0_100 = arith.constant 0 : index
    %233 = vector.load %arg12[%c0_98, %c0_99, %c0_100] : memref<2x1x16xf32, #tpu.memory_space<vmem>>, vector<1x1x16xf32>
    %234 = vector.shape_cast %233 : vector<1x1x16xf32> to vector<1x16xf32>
    %235 = vector.shape_cast %234 : vector<1x16xf32> to vector<1x1x16xf32>
    %236 = vector.broadcast %235 : vector<1x1x16xf32> to vector<8x9x16xf32>
    %237 = arith.addf %232, %236 : vector<8x9x16xf32>
    %c0_101 = arith.constant 0 : index
    %c0_102 = arith.constant 0 : index
    %c0_103 = arith.constant 0 : index
    %238 = vector.load %arg13[%c0_101, %c0_102, %c0_103] : memref<2x1x16xf32, #tpu.memory_space<vmem>>, vector<1x1x16xf32>
    %239 = vector.shape_cast %238 : vector<1x1x16xf32> to vector<1x16xf32>
    %c0_104 = arith.constant 0 : index
    %c0_105 = arith.constant 0 : index
    %c0_106 = arith.constant 0 : index
    %240 = vector.load %arg14[%c0_104, %c0_105, %c0_106] : memref<2x1x16xf32, #tpu.memory_space<vmem>>, vector<1x1x16xf32>
    %241 = vector.shape_cast %240 : vector<1x1x16xf32> to vector<1x16xf32>
    %cst_107 = arith.constant dense<0.000000e+00> : vector<8x9xf32>
    %242 = vector.multi_reduction <add>, %237, %cst_107 [2] : vector<8x9x16xf32> to vector<8x9xf32>
    %243 = vector.shape_cast %242 : vector<8x9xf32> to vector<8x9x1xf32>
    %cst_108 = arith.constant 1.600000e+01 : f32
    %244 = vector.broadcast %cst_108 : f32 to vector<8x9x1xf32>
    %245 = arith.divf %243, %244 : vector<8x9x1xf32>
    %246 = vector.broadcast %245 : vector<8x9x1xf32> to vector<8x9x16xf32>
    %247 = arith.subf %237, %246 : vector<8x9x16xf32>
    %248 = arith.mulf %247, %247 : vector<8x9x16xf32>
    %cst_109 = arith.constant dense<0.000000e+00> : vector<8x9xf32>
    %249 = vector.multi_reduction <add>, %248, %cst_109 [2] : vector<8x9x16xf32> to vector<8x9xf32>
    %250 = vector.shape_cast %249 : vector<8x9xf32> to vector<8x9x1xf32>
    %cst_110 = arith.constant 1.600000e+01 : f32
    %251 = vector.broadcast %cst_110 : f32 to vector<8x9x1xf32>
    %252 = arith.divf %250, %251 : vector<8x9x1xf32>
    %253 = vector.broadcast %245 : vector<8x9x1xf32> to vector<8x9x16xf32>
    %254 = arith.subf %237, %253 : vector<8x9x16xf32>
    %cst_111 = arith.constant 9.99999997E-7 : f32
    %255 = vector.broadcast %cst_111 : f32 to vector<8x9x1xf32>
    %256 = arith.addf %252, %255 : vector<8x9x1xf32>
    %257 = math.rsqrt %256 : vector<8x9x1xf32>
    %258 = vector.broadcast %257 : vector<8x9x1xf32> to vector<8x9x16xf32>
    %259 = arith.mulf %254, %258 : vector<8x9x16xf32>
    %260 = vector.shape_cast %239 : vector<1x16xf32> to vector<1x1x16xf32>
    %261 = vector.broadcast %260 : vector<1x1x16xf32> to vector<8x9x16xf32>
    %262 = arith.mulf %259, %261 : vector<8x9x16xf32>
    %263 = vector.shape_cast %241 : vector<1x16xf32> to vector<1x1x16xf32>
    %264 = vector.broadcast %263 : vector<1x1x16xf32> to vector<8x9x16xf32>
    %265 = arith.addf %262, %264 : vector<8x9x16xf32>
    %266 = vector.shape_cast %265 : vector<8x9x16xf32> to vector<72x16xf32>
    %c0_112 = arith.constant 0 : index
    %c0_113 = arith.constant 0 : index
    %c0_114 = arith.constant 0 : index
    %267 = vector.load %arg15[%c0_112, %c0_113, %c0_114] : memref<2x16x32xf32, #tpu.memory_space<vmem>>, vector<1x16x32xf32>
    %268 = vector.shape_cast %267 : vector<1x16x32xf32> to vector<16x32xf32>
    %cst_115 = arith.constant dense<0.000000e+00> : vector<72x32xf32>
    %269 = tpu.matmul %266, %268, %cst_115 {dimension_numbers = #tpu.dot_dimension_numbers<[1], [0], [0], [1], [0, 0, 1, 1], [], []>} : vector<72x16xf32>, vector<16x32xf32>, vector<72x32xf32> -> vector<72x32xf32>
    %c0_116 = arith.constant 0 : index
    %c0_117 = arith.constant 0 : index
    %c0_118 = arith.constant 0 : index
    %270 = vector.load %arg16[%c0_116, %c0_117, %c0_118] : memref<2x1x32xf32, #tpu.memory_space<vmem>>, vector<1x1x32xf32>
    %271 = vector.shape_cast %270 : vector<1x1x32xf32> to vector<1x32xf32>
    %272 = vector.broadcast %271 : vector<1x32xf32> to vector<72x32xf32>
    %273 = arith.addf %269, %272 : vector<72x32xf32>
    %274 = arith.mulf %273, %273 : vector<72x32xf32>
    %275 = arith.mulf %273, %274 : vector<72x32xf32>
    %cst_119 = arith.constant 4.471500e-02 : f32
    %276 = vector.broadcast %cst_119 : f32 to vector<72x32xf32>
    %277 = arith.mulf %276, %275 : vector<72x32xf32>
    %278 = arith.addf %273, %277 : vector<72x32xf32>
    %cst_120 = arith.constant 0.797884583 : f32
    %279 = vector.broadcast %cst_120 : f32 to vector<72x32xf32>
    %280 = arith.mulf %279, %278 : vector<72x32xf32>
    %281 = math.tanh %280 : vector<72x32xf32>
    %cst_121 = arith.constant 1.000000e+00 : f32
    %282 = vector.broadcast %cst_121 : f32 to vector<72x32xf32>
    %283 = arith.addf %282, %281 : vector<72x32xf32>
    %cst_122 = arith.constant 5.000000e-01 : f32
    %284 = vector.broadcast %cst_122 : f32 to vector<72x32xf32>
    %285 = arith.mulf %284, %283 : vector<72x32xf32>
    %286 = arith.mulf %273, %285 : vector<72x32xf32>
    %c0_123 = arith.constant 0 : index
    %c0_124 = arith.constant 0 : index
    %c0_125 = arith.constant 0 : index
    %287 = vector.load %arg17[%c0_123, %c0_124, %c0_125] : memref<2x32x16xf32, #tpu.memory_space<vmem>>, vector<1x32x16xf32>
    %288 = vector.shape_cast %287 : vector<1x32x16xf32> to vector<32x16xf32>
    %cst_126 = arith.constant dense<0.000000e+00> : vector<72x16xf32>
    %289 = tpu.matmul %286, %288, %cst_126 {dimension_numbers = #tpu.dot_dimension_numbers<[1], [0], [0], [1], [0, 0, 1, 1], [], []>} : vector<72x32xf32>, vector<32x16xf32>, vector<72x16xf32> -> vector<72x16xf32>
    %c0_127 = arith.constant 0 : index
    %c0_128 = arith.constant 0 : index
    %c0_129 = arith.constant 0 : index
    %290 = vector.load %arg18[%c0_127, %c0_128, %c0_129] : memref<2x1x16xf32, #tpu.memory_space<vmem>>, vector<1x1x16xf32>
    %291 = vector.shape_cast %290 : vector<1x1x16xf32> to vector<1x16xf32>
    %292 = vector.broadcast %291 : vector<1x16xf32> to vector<72x16xf32>
    %293 = arith.addf %289, %292 : vector<72x16xf32>
    %c0_130 = arith.constant 0 : index
    %c0_131 = arith.constant 0 : index
    %c0_132 = arith.constant 0 : index
    %294 = vector.load %arg19[%c0_130, %c0_131, %c0_132] : memref<2x1x16xf32, #tpu.memory_space<vmem>>, vector<1x1x16xf32>
    %295 = vector.shape_cast %294 : vector<1x1x16xf32> to vector<1x16xf32>
    %296 = vector.broadcast %295 : vector<1x16xf32> to vector<72x16xf32>
    %297 = arith.mulf %293, %296 : vector<72x16xf32>
    %298 = vector.shape_cast %297 : vector<72x16xf32> to vector<8x9x16xf32>
    %299 = arith.addf %171, %298 : vector<8x9x16xf32>
    %c1_133 = arith.constant 1 : index
    %c1_134 = arith.constant 1 : index
    %c0_135 = arith.constant 0 : index
    %300 = vector.load %arg27[%c1_133, %c1_134, %c0_135] : memref<10x11x16xf32, #tpu.memory_space<vmem>>, vector<8x9x16xf32>
    tpu.vector_store %arg27[%c1_133, %c1_134, %c0_135], %299 {strides = array<i32>} : memref<10x11x16xf32, #tpu.memory_space<vmem>>, vector<8x9x16xf32>,
    %c0_136 = arith.constant 0 : index
    %c0_137 = arith.constant 0 : index
    %c0_138 = arith.constant 0 : index
    %301 = vector.load %arg27[%c0_136, %c0_137, %c0_138] : memref<10x11x16xf32, #tpu.memory_space<vmem>>, vector<10x11x16xf32>
    %c1_139 = arith.constant 1 : index
    %c0_140 = arith.constant 0 : index
    %c0_141 = arith.constant 0 : index
    %302 = vector.load %arg11[%c1_139, %c0_140, %c0_141] : memref<2x9x16xf32, #tpu.memory_space<vmem>>, vector<1x9x16xf32>
    %303 = vector.shape_cast %302 : vector<1x9x16xf32> to vector<9x16xf32>
    %cst_142 = arith.constant 0.000000e+00 : f32
    %304 = vector.broadcast %cst_142 : f32 to vector<8x9x16xf32>
    %305 = vector.extract_strided_slice %301 {offsets = [0, 0, 0], sizes = [8, 9, 16], strides = [1, 1, 1]} : vector<10x11x16xf32> to vector<8x9x16xf32>
    %306 = vector.extract_strided_slice %303 {offsets = [0, 0], sizes = [1, 16], strides = [1, 1]} : vector<9x16xf32> to vector<1x16xf32>
    %307 = vector.shape_cast %306 : vector<1x16xf32> to vector<1x1x16xf32>
    %308 = vector.broadcast %307 : vector<1x1x16xf32> to vector<8x9x16xf32>
    %309 = arith.mulf %305, %308 : vector<8x9x16xf32>
    %310 = arith.addf %304, %309 : vector<8x9x16xf32>
    %311 = vector.extract_strided_slice %301 {offsets = [1, 0, 0], sizes = [8, 9, 16], strides = [1, 1, 1]} : vector<10x11x16xf32> to vector<8x9x16xf32>
    %312 = vector.extract_strided_slice %303 {offsets = [1, 0], sizes = [1, 16], strides = [1, 1]} : vector<9x16xf32> to vector<1x16xf32>
    %313 = vector.shape_cast %312 : vector<1x16xf32> to vector<1x1x16xf32>
    %314 = vector.broadcast %313 : vector<1x1x16xf32> to vector<8x9x16xf32>
    %315 = arith.mulf %311, %314 : vector<8x9x16xf32>
    %316 = arith.addf %310, %315 : vector<8x9x16xf32>
    %317 = vector.extract_strided_slice %301 {offsets = [2, 0, 0], sizes = [8, 9, 16], strides = [1, 1, 1]} : vector<10x11x16xf32> to vector<8x9x16xf32>
    %318 = vector.extract_strided_slice %303 {offsets = [2, 0], sizes = [1, 16], strides = [1, 1]} : vector<9x16xf32> to vector<1x16xf32>
    %319 = vector.shape_cast %318 : vector<1x16xf32> to vector<1x1x16xf32>
    %320 = vector.broadcast %319 : vector<1x1x16xf32> to vector<8x9x16xf32>
    %321 = arith.mulf %317, %320 : vector<8x9x16xf32>
    %322 = arith.addf %316, %321 : vector<8x9x16xf32>
    %323 = vector.extract_strided_slice %301 {offsets = [0, 1, 0], sizes = [8, 9, 16], strides = [1, 1, 1]} : vector<10x11x16xf32> to vector<8x9x16xf32>
    %324 = vector.extract_strided_slice %303 {offsets = [3, 0], sizes = [1, 16], strides = [1, 1]} : vector<9x16xf32> to vector<1x16xf32>
    %325 = vector.shape_cast %324 : vector<1x16xf32> to vector<1x1x16xf32>
    %326 = vector.broadcast %325 : vector<1x1x16xf32> to vector<8x9x16xf32>
    %327 = arith.mulf %323, %326 : vector<8x9x16xf32>
    %328 = arith.addf %322, %327 : vector<8x9x16xf32>
    %329 = vector.extract_strided_slice %301 {offsets = [1, 1, 0], sizes = [8, 9, 16], strides = [1, 1, 1]} : vector<10x11x16xf32> to vector<8x9x16xf32>
    %330 = vector.extract_strided_slice %303 {offsets = [4, 0], sizes = [1, 16], strides = [1, 1]} : vector<9x16xf32> to vector<1x16xf32>
    %331 = vector.shape_cast %330 : vector<1x16xf32> to vector<1x1x16xf32>
    %332 = vector.broadcast %331 : vector<1x1x16xf32> to vector<8x9x16xf32>
    %333 = arith.mulf %329, %332 : vector<8x9x16xf32>
    %334 = arith.addf %328, %333 : vector<8x9x16xf32>
    %335 = vector.extract_strided_slice %301 {offsets = [2, 1, 0], sizes = [8, 9, 16], strides = [1, 1, 1]} : vector<10x11x16xf32> to vector<8x9x16xf32>
    %336 = vector.extract_strided_slice %303 {offsets = [5, 0], sizes = [1, 16], strides = [1, 1]} : vector<9x16xf32> to vector<1x16xf32>
    %337 = vector.shape_cast %336 : vector<1x16xf32> to vector<1x1x16xf32>
    %338 = vector.broadcast %337 : vector<1x1x16xf32> to vector<8x9x16xf32>
    %339 = arith.mulf %335, %338 : vector<8x9x16xf32>
    %340 = arith.addf %334, %339 : vector<8x9x16xf32>
    %341 = vector.extract_strided_slice %301 {offsets = [0, 2, 0], sizes = [8, 9, 16], strides = [1, 1, 1]} : vector<10x11x16xf32> to vector<8x9x16xf32>
    %342 = vector.extract_strided_slice %303 {offsets = [6, 0], sizes = [1, 16], strides = [1, 1]} : vector<9x16xf32> to vector<1x16xf32>
    %343 = vector.shape_cast %342 : vector<1x16xf32> to vector<1x1x16xf32>
    %344 = vector.broadcast %343 : vector<1x1x16xf32> to vector<8x9x16xf32>
    %345 = arith.mulf %341, %344 : vector<8x9x16xf32>
    %346 = arith.addf %340, %345 : vector<8x9x16xf32>
    %347 = vector.extract_strided_slice %301 {offsets = [1, 2, 0], sizes = [8, 9, 16], strides = [1, 1, 1]} : vector<10x11x16xf32> to vector<8x9x16xf32>
    %348 = vector.extract_strided_slice %303 {offsets = [7, 0], sizes = [1, 16], strides = [1, 1]} : vector<9x16xf32> to vector<1x16xf32>
    %349 = vector.shape_cast %348 : vector<1x16xf32> to vector<1x1x16xf32>
    %350 = vector.broadcast %349 : vector<1x1x16xf32> to vector<8x9x16xf32>
    %351 = arith.mulf %347, %350 : vector<8x9x16xf32>
    %352 = arith.addf %346, %351 : vector<8x9x16xf32>
    %353 = vector.extract_strided_slice %301 {offsets = [2, 2, 0], sizes = [8, 9, 16], strides = [1, 1, 1]} : vector<10x11x16xf32> to vector<8x9x16xf32>
    %354 = vector.extract_strided_slice %303 {offsets = [8, 0], sizes = [1, 16], strides = [1, 1]} : vector<9x16xf32> to vector<1x16xf32>
    %355 = vector.shape_cast %354 : vector<1x16xf32> to vector<1x1x16xf32>
    %356 = vector.broadcast %355 : vector<1x1x16xf32> to vector<8x9x16xf32>
    %357 = arith.mulf %353, %356 : vector<8x9x16xf32>
    %358 = arith.addf %352, %357 : vector<8x9x16xf32>
    %c1_143 = arith.constant 1 : index
    %c0_144 = arith.constant 0 : index
    %c0_145 = arith.constant 0 : index
    %359 = vector.load %arg12[%c1_143, %c0_144, %c0_145] : memref<2x1x16xf32, #tpu.memory_space<vmem>>, vector<1x1x16xf32>
    %360 = vector.shape_cast %359 : vector<1x1x16xf32> to vector<1x16xf32>
    %361 = vector.shape_cast %360 : vector<1x16xf32> to vector<1x1x16xf32>
    %362 = vector.broadcast %361 : vector<1x1x16xf32> to vector<8x9x16xf32>
    %363 = arith.addf %358, %362 : vector<8x9x16xf32>
    %c1_146 = arith.constant 1 : index
    %c0_147 = arith.constant 0 : index
    %c0_148 = arith.constant 0 : index
    %364 = vector.load %arg13[%c1_146, %c0_147, %c0_148] : memref<2x1x16xf32, #tpu.memory_space<vmem>>, vector<1x1x16xf32>
    %365 = vector.shape_cast %364 : vector<1x1x16xf32> to vector<1x16xf32>
    %c1_149 = arith.constant 1 : index
    %c0_150 = arith.constant 0 : index
    %c0_151 = arith.constant 0 : index
    %366 = vector.load %arg14[%c1_149, %c0_150, %c0_151] : memref<2x1x16xf32, #tpu.memory_space<vmem>>, vector<1x1x16xf32>
    %367 = vector.shape_cast %366 : vector<1x1x16xf32> to vector<1x16xf32>
    %cst_152 = arith.constant dense<0.000000e+00> : vector<8x9xf32>
    %368 = vector.multi_reduction <add>, %363, %cst_152 [2] : vector<8x9x16xf32> to vector<8x9xf32>
    %369 = vector.shape_cast %368 : vector<8x9xf32> to vector<8x9x1xf32>
    %cst_153 = arith.constant 1.600000e+01 : f32
    %370 = vector.broadcast %cst_153 : f32 to vector<8x9x1xf32>
    %371 = arith.divf %369, %370 : vector<8x9x1xf32>
    %372 = vector.broadcast %371 : vector<8x9x1xf32> to vector<8x9x16xf32>
    %373 = arith.subf %363, %372 : vector<8x9x16xf32>
    %374 = arith.mulf %373, %373 : vector<8x9x16xf32>
    %cst_154 = arith.constant dense<0.000000e+00> : vector<8x9xf32>
    %375 = vector.multi_reduction <add>, %374, %cst_154 [2] : vector<8x9x16xf32> to vector<8x9xf32>
    %376 = vector.shape_cast %375 : vector<8x9xf32> to vector<8x9x1xf32>
    %cst_155 = arith.constant 1.600000e+01 : f32
    %377 = vector.broadcast %cst_155 : f32 to vector<8x9x1xf32>
    %378 = arith.divf %376, %377 : vector<8x9x1xf32>
    %379 = vector.broadcast %371 : vector<8x9x1xf32> to vector<8x9x16xf32>
    %380 = arith.subf %363, %379 : vector<8x9x16xf32>
    %cst_156 = arith.constant 9.99999997E-7 : f32
    %381 = vector.broadcast %cst_156 : f32 to vector<8x9x1xf32>
    %382 = arith.addf %378, %381 : vector<8x9x1xf32>
    %383 = math.rsqrt %382 : vector<8x9x1xf32>
    %384 = vector.broadcast %383 : vector<8x9x1xf32> to vector<8x9x16xf32>
    %385 = arith.mulf %380, %384 : vector<8x9x16xf32>
    %386 = vector.shape_cast %365 : vector<1x16xf32> to vector<1x1x16xf32>
    %387 = vector.broadcast %386 : vector<1x1x16xf32> to vector<8x9x16xf32>
    %388 = arith.mulf %385, %387 : vector<8x9x16xf32>
    %389 = vector.shape_cast %367 : vector<1x16xf32> to vector<1x1x16xf32>
    %390 = vector.broadcast %389 : vector<1x1x16xf32> to vector<8x9x16xf32>
    %391 = arith.addf %388, %390 : vector<8x9x16xf32>
    %392 = vector.shape_cast %391 : vector<8x9x16xf32> to vector<72x16xf32>
    %c1_157 = arith.constant 1 : index
    %c0_158 = arith.constant 0 : index
    %c0_159 = arith.constant 0 : index
    %393 = vector.load %arg15[%c1_157, %c0_158, %c0_159] : memref<2x16x32xf32, #tpu.memory_space<vmem>>, vector<1x16x32xf32>
    %394 = vector.shape_cast %393 : vector<1x16x32xf32> to vector<16x32xf32>
    %cst_160 = arith.constant dense<0.000000e+00> : vector<72x32xf32>
    %395 = tpu.matmul %392, %394, %cst_160 {dimension_numbers = #tpu.dot_dimension_numbers<[1], [0], [0], [1], [0, 0, 1, 1], [], []>} : vector<72x16xf32>, vector<16x32xf32>, vector<72x32xf32> -> vector<72x32xf32>
    %c1_161 = arith.constant 1 : index
    %c0_162 = arith.constant 0 : index
    %c0_163 = arith.constant 0 : index
    %396 = vector.load %arg16[%c1_161, %c0_162, %c0_163] : memref<2x1x32xf32, #tpu.memory_space<vmem>>, vector<1x1x32xf32>
    %397 = vector.shape_cast %396 : vector<1x1x32xf32> to vector<1x32xf32>
    %398 = vector.broadcast %397 : vector<1x32xf32> to vector<72x32xf32>
    %399 = arith.addf %395, %398 : vector<72x32xf32>
    %400 = arith.mulf %399, %399 : vector<72x32xf32>
    %401 = arith.mulf %399, %400 : vector<72x32xf32>
    %cst_164 = arith.constant 4.471500e-02 : f32
    %402 = vector.broadcast %cst_164 : f32 to vector<72x32xf32>
    %403 = arith.mulf %402, %401 : vector<72x32xf32>
    %404 = arith.addf %399, %403 : vector<72x32xf32>
    %cst_165 = arith.constant 0.797884583 : f32
    %405 = vector.broadcast %cst_165 : f32 to vector<72x32xf32>
    %406 = arith.mulf %405, %404 : vector<72x32xf32>
    %407 = math.tanh %406 : vector<72x32xf32>
    %cst_166 = arith.constant 1.000000e+00 : f32
    %408 = vector.broadcast %cst_166 : f32 to vector<72x32xf32>
    %409 = arith.addf %408, %407 : vector<72x32xf32>
    %cst_167 = arith.constant 5.000000e-01 : f32
    %410 = vector.broadcast %cst_167 : f32 to vector<72x32xf32>
    %411 = arith.mulf %410, %409 : vector<72x32xf32>
    %412 = arith.mulf %399, %411 : vector<72x32xf32>
    %c1_168 = arith.constant 1 : index
    %c0_169 = arith.constant 0 : index
    %c0_170 = arith.constant 0 : index
    %413 = vector.load %arg17[%c1_168, %c0_169, %c0_170] : memref<2x32x16xf32, #tpu.memory_space<vmem>>, vector<1x32x16xf32>
    %414 = vector.shape_cast %413 : vector<1x32x16xf32> to vector<32x16xf32>
    %cst_171 = arith.constant dense<0.000000e+00> : vector<72x16xf32>
    %415 = tpu.matmul %412, %414, %cst_171 {dimension_numbers = #tpu.dot_dimension_numbers<[1], [0], [0], [1], [0, 0, 1, 1], [], []>} : vector<72x32xf32>, vector<32x16xf32>, vector<72x16xf32> -> vector<72x16xf32>
    %c1_172 = arith.constant 1 : index
    %c0_173 = arith.constant 0 : index
    %c0_174 = arith.constant 0 : index
    %416 = vector.load %arg18[%c1_172, %c0_173, %c0_174] : memref<2x1x16xf32, #tpu.memory_space<vmem>>, vector<1x1x16xf32>
    %417 = vector.shape_cast %416 : vector<1x1x16xf32> to vector<1x16xf32>
    %418 = vector.broadcast %417 : vector<1x16xf32> to vector<72x16xf32>
    %419 = arith.addf %415, %418 : vector<72x16xf32>
    %c1_175 = arith.constant 1 : index
    %c0_176 = arith.constant 0 : index
    %c0_177 = arith.constant 0 : index
    %420 = vector.load %arg19[%c1_175, %c0_176, %c0_177] : memref<2x1x16xf32, #tpu.memory_space<vmem>>, vector<1x1x16xf32>
    %421 = vector.shape_cast %420 : vector<1x1x16xf32> to vector<1x16xf32>
    %422 = vector.broadcast %421 : vector<1x16xf32> to vector<72x16xf32>
    %423 = arith.mulf %419, %422 : vector<72x16xf32>
    %424 = vector.shape_cast %423 : vector<72x16xf32> to vector<8x9x16xf32>
    %425 = arith.addf %299, %424 : vector<8x9x16xf32>
    %c0_178 = arith.constant 0 : index
    %c0_179 = arith.constant 0 : index
    %426 = vector.load %arg20[%c0_178, %c0_179] : memref<1x16xf32, #tpu.memory_space<vmem>>, vector<1x16xf32>
    %c0_180 = arith.constant 0 : index
    %c0_181 = arith.constant 0 : index
    %427 = vector.load %arg21[%c0_180, %c0_181] : memref<1x16xf32, #tpu.memory_space<vmem>>, vector<1x16xf32>
    %cst_182 = arith.constant dense<0.000000e+00> : vector<8x9xf32>
    %428 = vector.multi_reduction <add>, %425, %cst_182 [2] : vector<8x9x16xf32> to vector<8x9xf32>
    %429 = vector.shape_cast %428 : vector<8x9xf32> to vector<8x9x1xf32>
    %cst_183 = arith.constant 1.600000e+01 : f32
    %430 = vector.broadcast %cst_183 : f32 to vector<8x9x1xf32>
    %431 = arith.divf %429, %430 : vector<8x9x1xf32>
    %432 = vector.broadcast %431 : vector<8x9x1xf32> to vector<8x9x16xf32>
    %433 = arith.subf %425, %432 : vector<8x9x16xf32>
    %434 = arith.mulf %433, %433 : vector<8x9x16xf32>
    %cst_184 = arith.constant dense<0.000000e+00> : vector<8x9xf32>
    %435 = vector.multi_reduction <add>, %434, %cst_184 [2] : vector<8x9x16xf32> to vector<8x9xf32>
    %436 = vector.shape_cast %435 : vector<8x9xf32> to vector<8x9x1xf32>
    %cst_185 = arith.constant 1.600000e+01 : f32
    %437 = vector.broadcast %cst_185 : f32 to vector<8x9x1xf32>
    %438 = arith.divf %436, %437 : vector<8x9x1xf32>
    %439 = vector.broadcast %431 : vector<8x9x1xf32> to vector<8x9x16xf32>
    %440 = arith.subf %425, %439 : vector<8x9x16xf32>
    %cst_186 = arith.constant 9.99999997E-7 : f32
    %441 = vector.broadcast %cst_186 : f32 to vector<8x9x1xf32>
    %442 = arith.addf %438, %441 : vector<8x9x1xf32>
    %443 = math.rsqrt %442 : vector<8x9x1xf32>
    %444 = vector.broadcast %443 : vector<8x9x1xf32> to vector<8x9x16xf32>
    %445 = arith.mulf %440, %444 : vector<8x9x16xf32>
    %446 = vector.shape_cast %426 : vector<1x16xf32> to vector<1x1x16xf32>
    %447 = vector.broadcast %446 : vector<1x1x16xf32> to vector<8x9x16xf32>
    %448 = arith.mulf %445, %447 : vector<8x9x16xf32>
    %449 = vector.shape_cast %427 : vector<1x16xf32> to vector<1x1x16xf32>
    %450 = vector.broadcast %449 : vector<1x1x16xf32> to vector<8x9x16xf32>
    %451 = arith.addf %448, %450 : vector<8x9x16xf32>
    %c0_187 = arith.constant 0 : index
    %c0_188 = arith.constant 0 : index
    %452 = vector.load %arg22[%c0_187, %c0_188] : memref<2x16xf32, #tpu.memory_space<vmem>>, vector<2x16xf32>
    %c0_189 = arith.constant 0 : index
    %c0_190 = arith.constant 0 : index
    %453 = vector.load %arg23[%c0_189, %c0_190] : memref<1x2xf32, #tpu.memory_space<vmem>>, vector<1x2xf32>
    %454 = vector.extract_strided_slice %452 {offsets = [0, 0], sizes = [1, 16], strides = [1, 1]} : vector<2x16xf32> to vector<1x16xf32>
    %455 = vector.shape_cast %454 : vector<1x16xf32> to vector<1x1x16xf32>
    %456 = vector.broadcast %455 : vector<1x1x16xf32> to vector<8x9x16xf32>
    %457 = arith.mulf %451, %456 : vector<8x9x16xf32>
    %cst_191 = arith.constant dense<0.000000e+00> : vector<8x9xf32>
    %458 = vector.multi_reduction <add>, %457, %cst_191 [2] : vector<8x9x16xf32> to vector<8x9xf32>
    %459 = vector.extract_strided_slice %453 {offsets = [0, 0], sizes = [1, 1], strides = [1, 1]} : vector<1x2xf32> to vector<1x1xf32>
    %460 = vector.extract %459[0, 0] : f32 from vector<1x1xf32>
    %461 = vector.broadcast %460 : f32 to vector<8x9xf32>
    %462 = arith.addf %458, %461 : vector<8x9xf32>
    %463 = vector.extract_strided_slice %452 {offsets = [1, 0], sizes = [1, 16], strides = [1, 1]} : vector<2x16xf32> to vector<1x16xf32>
    %464 = vector.shape_cast %463 : vector<1x16xf32> to vector<1x1x16xf32>
    %465 = vector.broadcast %464 : vector<1x1x16xf32> to vector<8x9x16xf32>
    %466 = arith.mulf %451, %465 : vector<8x9x16xf32>
    %cst_192 = arith.constant dense<0.000000e+00> : vector<8x9xf32>
    %467 = vector.multi_reduction <add>, %466, %cst_192 [2] : vector<8x9x16xf32> to vector<8x9xf32>
    %468 = vector.extract_strided_slice %453 {offsets = [0, 1], sizes = [1, 1], strides = [1, 1]} : vector<1x2xf32> to vector<1x1xf32>
    %469 = vector.extract %468[0, 0] : f32 from vector<1x1xf32>
    %470 = vector.broadcast %469 : f32 to vector<8x9xf32>
    %471 = arith.addf %467, %470 : vector<8x9xf32>
    %c0_193 = arith.constant 0 : index
    %c0_194 = arith.constant 0 : index
    %472 = vector.load %arg24[%c0_193, %c0_194] : memref<9x16xf32, #tpu.memory_space<vmem>>, vector<9x16xf32>
    %cst_195 = arith.constant dense<0.000000e+00> : vector<8x16xf32>
    %473 = tpu.matmul %462, %472, %cst_195 {dimension_numbers = #tpu.dot_dimension_numbers<[1], [0], [0], [1], [0, 0, 1, 1], [], []>} : vector<8x9xf32>, vector<9x16xf32>, vector<8x16xf32> -> vector<8x16xf32>
    %c0_196 = arith.constant 0 : index
    %c0_197 = arith.constant 0 : index
    %474 = vector.load %arg25[%c0_196, %c0_197] : memref<9x16xf32, #tpu.memory_space<vmem>>, vector<9x16xf32>
    %cst_198 = arith.constant dense<0.000000e+00> : vector<8x16xf32>
    %475 = tpu.matmul %471, %474, %cst_198 {dimension_numbers = #tpu.dot_dimension_numbers<[1], [0], [0], [1], [0, 0, 1, 1], [], []>} : vector<8x9xf32>, vector<9x16xf32>, vector<8x16xf32> -> vector<8x16xf32>
    %476 = arith.addf %473, %475 : vector<8x16xf32>
    %477 = vector.shape_cast %476 : vector<8x16xf32> to vector<1x8x16xf32>
    %c0_199 = arith.constant 0 : index
    %c0_200 = arith.constant 0 : index
    %c0_201 = arith.constant 0 : index
    %478 = vector.load %arg26[%c0_199, %c0_200, %c0_201] : memref<1x8x16xf32, #tpu.memory_space<vmem>>, vector<1x8x16xf32>
    tpu.vector_store %arg26[%c0_199, %c0_200, %c0_201], %477 {strides = array<i32>} : memref<1x8x16xf32, #tpu.memory_space<vmem>>, vector<1x8x16xf32>,
    return
  }
  func.func @transform_0(%arg0: i32) -> (i32, i32, i32) {
    %c0_i32 = arith.constant 0 : i32
    %c0_i32_0 = arith.constant 0 : i32
    %c0_i32_1 = arith.constant 0 : i32
    return %arg0, %c0_i32, %c0_i32_0 : i32, i32, i32
  }
  func.func @transform_1(%arg0: i32) -> (i32, i32, i32) {
    %c0_i32 = arith.constant 0 : i32
    %c0_i32_0 = arith.constant 0 : i32
    %c0_i32_1 = arith.constant 0 : i32
    return %arg0, %c0_i32, %c0_i32_0 : i32, i32, i32
  }
  func.func @transform_2(%arg0: i32) -> (i32, i32, i32) {
    %c0_i32 = arith.constant 0 : i32
    %c0_i32_0 = arith.constant 0 : i32
    %c0_i32_1 = arith.constant 0 : i32
    return %arg0, %c0_i32, %c0_i32_0 : i32, i32, i32
  }
  func.func @transform_3(%arg0: i32) -> (i32, i32, i32) {
    %c0_i32 = arith.constant 0 : i32
    %c0_i32_0 = arith.constant 0 : i32
    %c0_i32_1 = arith.constant 0 : i32
    %c0_i32_2 = arith.constant 0 : i32
    return %c0_i32, %c0_i32_0, %c0_i32_1 : i32, i32, i32
  }
  func.func @transform_4(%arg0: i32) -> (i32, i32) {
    %c0_i32 = arith.constant 0 : i32
    %c0_i32_0 = arith.constant 0 : i32
    %c0_i32_1 = arith.constant 0 : i32
    return %c0_i32, %c0_i32_0 : i32, i32
  }
  func.func @transform_5(%arg0: i32) -> (i32, i32, i32) {
    %c0_i32 = arith.constant 0 : i32
    %c0_i32_0 = arith.constant 0 : i32
    %c0_i32_1 = arith.constant 0 : i32
    %c0_i32_2 = arith.constant 0 : i32
    return %c0_i32, %c0_i32_0, %c0_i32_1 : i32, i32, i32
  }
  func.func @transform_6(%arg0: i32) -> (i32, i32) {
    %c0_i32 = arith.constant 0 : i32
    %c0_i32_0 = arith.constant 0 : i32
    %c0_i32_1 = arith.constant 0 : i32
    return %c0_i32, %c0_i32_0 : i32, i32
  }
  func.func @transform_7(%arg0: i32) -> (i32, i32) {
    %c0_i32 = arith.constant 0 : i32
    %c0_i32_0 = arith.constant 0 : i32
    %c0_i32_1 = arith.constant 0 : i32
    return %c0_i32, %c0_i32_0 : i32, i32
  }
  func.func @transform_8(%arg0: i32) -> (i32, i32) {
    %c0_i32 = arith.constant 0 : i32
    %c0_i32_0 = arith.constant 0 : i32
    %c0_i32_1 = arith.constant 0 : i32
    return %c0_i32, %c0_i32_0 : i32, i32
  }
  func.func @transform_9(%arg0: i32) -> (i32, i32) {
    %c0_i32 = arith.constant 0 : i32
    %c0_i32_0 = arith.constant 0 : i32
    %c0_i32_1 = arith.constant 0 : i32
    return %c0_i32, %c0_i32_0 : i32, i32
  }
  func.func @transform_10(%arg0: i32) -> (i32, i32, i32) {
    %c0_i32 = arith.constant 0 : i32
    %c0_i32_0 = arith.constant 0 : i32
    %c0_i32_1 = arith.constant 0 : i32
    %c0_i32_2 = arith.constant 0 : i32
    return %c0_i32, %c0_i32_0, %c0_i32_1 : i32, i32, i32
  }
  func.func @transform_11(%arg0: i32) -> (i32, i32, i32) {
    %c0_i32 = arith.constant 0 : i32
    %c0_i32_0 = arith.constant 0 : i32
    %c0_i32_1 = arith.constant 0 : i32
    %c0_i32_2 = arith.constant 0 : i32
    return %c0_i32, %c0_i32_0, %c0_i32_1 : i32, i32, i32
  }
  func.func @transform_12(%arg0: i32) -> (i32, i32, i32) {
    %c0_i32 = arith.constant 0 : i32
    %c0_i32_0 = arith.constant 0 : i32
    %c0_i32_1 = arith.constant 0 : i32
    %c0_i32_2 = arith.constant 0 : i32
    return %c0_i32, %c0_i32_0, %c0_i32_1 : i32, i32, i32
  }
  func.func @transform_13(%arg0: i32) -> (i32, i32, i32) {
    %c0_i32 = arith.constant 0 : i32
    %c0_i32_0 = arith.constant 0 : i32
    %c0_i32_1 = arith.constant 0 : i32
    %c0_i32_2 = arith.constant 0 : i32
    return %c0_i32, %c0_i32_0, %c0_i32_1 : i32, i32, i32
  }
  func.func @transform_14(%arg0: i32) -> (i32, i32, i32) {
    %c0_i32 = arith.constant 0 : i32
    %c0_i32_0 = arith.constant 0 : i32
    %c0_i32_1 = arith.constant 0 : i32
    %c0_i32_2 = arith.constant 0 : i32
    return %c0_i32, %c0_i32_0, %c0_i32_1 : i32, i32, i32
  }
  func.func @transform_15(%arg0: i32) -> (i32, i32, i32) {
    %c0_i32 = arith.constant 0 : i32
    %c0_i32_0 = arith.constant 0 : i32
    %c0_i32_1 = arith.constant 0 : i32
    %c0_i32_2 = arith.constant 0 : i32
    return %c0_i32, %c0_i32_0, %c0_i32_1 : i32, i32, i32
  }
  func.func @transform_16(%arg0: i32) -> (i32, i32, i32) {
    %c0_i32 = arith.constant 0 : i32
    %c0_i32_0 = arith.constant 0 : i32
    %c0_i32_1 = arith.constant 0 : i32
    %c0_i32_2 = arith.constant 0 : i32
    return %c0_i32, %c0_i32_0, %c0_i32_1 : i32, i32, i32
  }
  func.func @transform_17(%arg0: i32) -> (i32, i32, i32) {
    %c0_i32 = arith.constant 0 : i32
    %c0_i32_0 = arith.constant 0 : i32
    %c0_i32_1 = arith.constant 0 : i32
    %c0_i32_2 = arith.constant 0 : i32
    return %c0_i32, %c0_i32_0, %c0_i32_1 : i32, i32, i32
  }
  func.func @transform_18(%arg0: i32) -> (i32, i32, i32) {
    %c0_i32 = arith.constant 0 : i32
    %c0_i32_0 = arith.constant 0 : i32
    %c0_i32_1 = arith.constant 0 : i32
    %c0_i32_2 = arith.constant 0 : i32
    return %c0_i32, %c0_i32_0, %c0_i32_1 : i32, i32, i32
  }
  func.func @transform_19(%arg0: i32) -> (i32, i32) {
    %c0_i32 = arith.constant 0 : i32
    %c0_i32_0 = arith.constant 0 : i32
    %c0_i32_1 = arith.constant 0 : i32
    return %c0_i32, %c0_i32_0 : i32, i32
  }
  func.func @transform_20(%arg0: i32) -> (i32, i32) {
    %c0_i32 = arith.constant 0 : i32
    %c0_i32_0 = arith.constant 0 : i32
    %c0_i32_1 = arith.constant 0 : i32
    return %c0_i32, %c0_i32_0 : i32, i32
  }
  func.func @transform_21(%arg0: i32) -> (i32, i32) {
    %c0_i32 = arith.constant 0 : i32
    %c0_i32_0 = arith.constant 0 : i32
    %c0_i32_1 = arith.constant 0 : i32
    return %c0_i32, %c0_i32_0 : i32, i32
  }
  func.func @transform_22(%arg0: i32) -> (i32, i32) {
    %c0_i32 = arith.constant 0 : i32
    %c0_i32_0 = arith.constant 0 : i32
    %c0_i32_1 = arith.constant 0 : i32
    return %c0_i32, %c0_i32_0 : i32, i32
  }
  func.func @transform_23(%arg0: i32) -> (i32, i32) {
    %c0_i32 = arith.constant 0 : i32
    %c0_i32_0 = arith.constant 0 : i32
    %c0_i32_1 = arith.constant 0 : i32
    return %c0_i32, %c0_i32_0 : i32, i32
  }
  func.func @transform_24(%arg0: i32) -> (i32, i32) {
    %c0_i32 = arith.constant 0 : i32
    %c0_i32_0 = arith.constant 0 : i32
    %c0_i32_1 = arith.constant 0 : i32
    return %c0_i32, %c0_i32_0 : i32, i32
  }
  func.func @transform_25(%arg0: i32) -> (i32, i32, i32) {
    %c0_i32 = arith.constant 0 : i32
    %c0_i32_0 = arith.constant 0 : i32
    %c0_i32_1 = arith.constant 0 : i32
    return %arg0, %c0_i32, %c0_i32_0 : i32, i32, i32
  }
}

</mosaic_0001>

<llo_original>
// kernel: tile.18
$region0: #{tile.18}
  #allocation0 [shape = 's32[1]{0}', space=sflag, size = 0x4, scoped, tag = 'scoped memory for tile.18']
  %s0 = inlined_call_operand.vmem [shape: f32[4], index: 0, kind: input, shape index: {}]
  %s1 = inlined_call_operand.vmem [shape: f32[8,4], index: 1, kind: output, shape index: {}]
  // Predicated region
  $region2: #{tile.18} parent=0 // pred_check
    _
  $region3: #{tile.18} parent=0 // pred_check_branch
    %3 = sbr.rel (0) target = $region5
  $region4: #{tile.18} parent=0 // pred_region
    _
  $region5: #{tile.18} parent=0 // pred_fallthru
    _
  %v4 = vld [vmem:[%s0] ss:$0 sm:$0xff]
  %5 = vst [vmem:[%s1] sm:$0xff] %v4

// kernel: tile.19
$region0: #{tile.19}
  %s0 = inlined_call_operand.vmem [shape: f32[8,4], index: 0, kind: input, shape index: {}]
  %s1 = inlined_call_operand.vmem [shape: f32[32], index: 1, kind: output, shape index: {}]
  $region1: #{tile.19} parent=0
    #allocation0 [shape = 'u8[4096]{0}', space=vmem, size = 0x1000, scoped, tag = 'scoped mem for output reshape']
    %v2 = vld [vmem:[%s0] sm:$0x1]
    %vm3 = vcmask 31744
    %4 = vst.msk [vmem:[#allocation0] sm:$0x1] %vm3, %v2
    %s5 = scalar_lea.vmem %s0, 7
    %v6 = vld [vmem:[%s5] sm:$0x1]
    %7 = vrot.lane.b32.xlu0 %v6, 28
    %v8 = vpop.permute.xlu0 %7
    %vm9 = vcmask 261344
    %10 = vst.msk [vmem:[#allocation0] sm:$0x1] %vm9, %v8
    %s11 = scalar_lea.vmem %s0, 6
    %v12 = vld [vmem:[%s11] sm:$0x1]
    %13 = vrot.lane.b32.xlu0 %v12, 24
    %v14 = vpop.permute.xlu0 %13
    %vm15 = vcmask 228544
    %16 = vst.msk [vmem:[#allocation0] sm:$0x1] %vm15, %v14
    %s17 = scalar_lea.vmem %s0, 5
    %v18 = vld [vmem:[%s17] sm:$0x1]
    %19 = vrot.lane.b32.xlu0 %v18, 20
    %v20 = vpop.permute.xlu0 %19
    %vm21 = vcmask 195744
    %22 = vst.msk [vmem:[#allocation0] sm:$0x1] %vm21, %v20
    %s23 = scalar_lea.vmem %s0, 4
    %v24 = vld [vmem:[%s23] sm:$0x1]
    %25 = vrot.lane.b32.xlu0 %v24, 16
    %v26 = vpop.permute.xlu0 %25
    %vm27 = vcmask 162944
    %28 = vst.msk [vmem:[#allocation0] sm:$0x1] %vm27, %v26
    %s29 = scalar_lea.vmem %s0, 3
    %v30 = vld [vmem:[%s29] sm:$0x1]
    %31 = vrot.lane.b32.xlu0 %v30, 12
    %v32 = vpop.permute.xlu0 %31
    %vm33 = vcmask 130144
    %34 = vst.msk [vmem:[#allocation0] sm:$0x1] %vm33, %v32
    %s35 = scalar_lea.vmem %s0, 2
    %v36 = vld [vmem:[%s35] sm:$0x1]
    %37 = vrot.lane.b32.xlu0 %v36, 8
    %v38 = vpop.permute.xlu0 %37
    %vm39 = vcmask 97344
    %40 = vst.msk [vmem:[#allocation0] sm:$0x1] %vm39, %v38
    %s41 = scalar_lea.vmem %s0, 1
    %v42 = vld [vmem:[%s41] sm:$0x1]
    %43 = vrot.lane.b32.xlu0 %v42, 4
    %v44 = vpop.permute.xlu0 %43
    %vm45 = vcmask 64544
    %46 = vst.msk [vmem:[#allocation0] sm:$0x1] %vm45, %v44
    %s48 = sshll.u32 1, 1
    %s49 = ssub.s32 %s48, 1
    %v51 = vld [vmem:[#allocation0] sm:%s49]
    %s52 = sshll.u32 1, 1
    %s53 = ssub.s32 %s52, 1
    %54 = vst [vmem:[%s1] sm:%s53] %v51

// kernel: _lambda_.2
$region0: #{_lambda_.2}
  #allocation0 [shape = 'u32[]', space=smem, size = 0x4, offset = 0x4, fixed_abs, tag = 'smem constant byte address 0x4 - core index']
  #allocation1 [shape = 'u32[144,128]{1,0:T(1,128)}', space=vmem, size = 0x12000, scoped, tag = 'internal scratch']
  %s0 = inlined_call_operand.vmem [shape: f32[2,8,16], index: 0, kind: input, shape index: {}]
  %s1 = inlined_call_operand.vmem [shape: f32[16,18], index: 1, kind: input, shape index: {}]
  %s2 = inlined_call_operand.vmem [shape: f32[2,8,18], index: 2, kind: output, shape index: {}]
  %s3 = sld [smem:[#allocation0]]
  $region41: #{_lambda_.2} parent=0
    _
  %s5 = ssub.s32 1, %s3
  %s6 = scalar_select 0, %s5, %s3
  loop: start=0, step=1, limit=4
  $region2: #{_lambda_.2} parent=0 // loop_pre_header
    _
  $region3: #{_lambda_.2} parent=0 // loop_header
    %s8 = sphi 0, %s12
    %p9 = scmp.ge.s32.totalorder %s8, 4
    %s18 = sphi 0, %s20
    %s21 = sphi 0, %s18
    %s22 = sphi 0, %s21
    %s38 = sphi 0, %s22
    %s42 = sphi 0, %s42
    %s44 = sphi 0, %s42
    %s45 = sphi 0, %s44
    %s59 = sphi 0, %s45
    %s65 = sphi 0, %s67
    %s68 = sphi 0, %s65
    %s69 = sphi 0, %s68
    %s85 = sphi 0, %s69
  $region4: #{_lambda_.2} parent=0 // loop_header_branch
    %11 = sbr.rel (%p9) target = $region8
  $region5: #{_lambda_.2} parent=0 // loop_body
    %s13 = ssub.s32 %s8, 1
    %s14 = ssub.s32 %s8, 2
    %s15 = sadd.s32 %s8, 1
    %s16 = ssub.s32 %s8, %s15
    %p17 = scmp.eq.s32.totalorder %s16, 0
    %s19 = sadd.s32 %s18, 1
    %s20 = scalar_select %p17, %s18, %s19
    %p23 = pneg %p17
    %p24 = scmp.eq.s32.totalorder %s8, 1
    %p25 = por %p23, %p24
    %p26 = scmp.ne.s32.totalorder %s18, %s21
    %p27 = scmp.eq.s32.totalorder %s8, 0
    %p28 = por %p26, %p27
    %p29 = scmp.ne.s32.totalorder %s18, %s21
    %p30 = scmp.eq.s32.totalorder %s13, 1
    %p31 = por %p29, %p30
    %p32 = scmp.ne.s32.totalorder %s21, %s22
    %p33 = scmp.eq.s32.totalorder %s13, 0
    %p34 = por %p32, %p33
    %p35 = scmp.ne.s32.totalorder %s21, %s22
    %p36 = scmp.eq.s32.totalorder %s14, 1
    %p37 = por %p35, %p36
    %p39 = scmp.ne.s32.totalorder %s22, %s38
    %p40 = scmp.eq.s32.totalorder %s14, 0
    %p41 = por %p39, %p40
    %s43 = sadd.s32 %s42, 1
    %p46 = scmp.eq.s32.totalorder %s8, 1
    %p47 = scmp.ne.s32.totalorder %s42, %s44
    %p48 = scmp.eq.s32.totalorder %s8, 0
    %p49 = por %p47, %p48
    %p50 = scmp.ne.s32.totalorder %s42, %s44
    %p51 = scmp.eq.s32.totalorder %s13, 1
    %p52 = por %p50, %p51
    %p53 = scmp.ne.s32.totalorder %s44, %s45
    %p54 = scmp.eq.s32.totalorder %s13, 0
    %p55 = por %p53, %p54
    %p56 = scmp.ne.s32.totalorder %s44, %s45
    %p57 = scmp.eq.s32.totalorder %s14, 1
    %p58 = por %p56, %p57
    %p60 = scmp.ne.s32.totalorder %s45, %s59
    %p61 = scmp.eq.s32.totalorder %s14, 0
    %p62 = por %p60, %p61
    %s63 = ssub.s32 %s8, %s15
    %p64 = scmp.eq.s32.totalorder %s63, 0
    %s66 = sadd.s32 %s65, 1
    %s67 = scalar_select %p64, %s65, %s66
    %p70 = pneg %p64
    %p71 = scmp.eq.s32.totalorder %s8, 1
    %p72 = por %p70, %p71
    %p73 = scmp.ne.s32.totalorder %s65, %s68
    %p74 = scmp.eq.s32.totalorder %s8, 0
    %p75 = por %p73, %p74
    %p76 = scmp.ne.s32.totalorder %s65, %s68
    %p77 = scmp.eq.s32.totalorder %s13, 1
    %p78 = por %p76, %p77
    %p79 = scmp.ne.s32.totalorder %s68, %s69
    %p80 = scmp.eq.s32.totalorder %s13, 0
    %p81 = por %p79, %p80
    %p82 = scmp.ne.s32.totalorder %s68, %s69
    %p83 = scmp.eq.s32.totalorder %s14, 1
    %p84 = por %p82, %p83
    %p86 = scmp.ne.s32.totalorder %s69, %s85
    %p87 = scmp.eq.s32.totalorder %s14, 0
    %p88 = por %p86, %p87
    %p89 = scmp.le.s32.totalorder 1, %s8
    %p90 = scmp.lt.s32.totalorder %s8, 3
    %p91 = pnand %p89, %p90
    %p92 = pneg %p91
    // Predicated region
    $region9: #{_lambda_.2} parent=5 // pred_check
      _
    $region10: #{_lambda_.2} parent=5 // pred_check_branch
      %94 = sbr.rel (%p91) target = $region12
    $region11: #{_lambda_.2} parent=5 // pred_region
      %s95 = ssub.s32 %s8, 1
      // Predicated region
      $region13: #{_lambda_.2} parent=11 // pred_check
        %p96 = pneg %p55
      $region14: #{_lambda_.2} parent=11 // pred_check_branch
        %98 = sbr.rel (%p96) target = $region16
      $region15: #{_lambda_.2} parent=11 // pred_region
        _
      $region16: #{_lambda_.2} parent=11 // pred_fallthru
        _
    $region12: #{_lambda_.2} parent=5 // pred_fallthru
      _
    %p99 = scmp.lt.s32.totalorder %s8, 2
    // Predicated region
    $region17: #{_lambda_.2} parent=5 // pred_check
      %p100 = pneg %p99
    $region18: #{_lambda_.2} parent=5 // pred_check_branch
      %102 = sbr.rel (%p100) target = $region20
    $region19: #{_lambda_.2} parent=5 // pred_region
      // Predicated region
      $region21: #{_lambda_.2} parent=19 // pred_check
        %p103 = pneg %p28
      $region22: #{_lambda_.2} parent=19 // pred_check_branch
        %105 = sbr.rel (%p103) target = $region24
      $region23: #{_lambda_.2} parent=19 // pred_region
        %p106 = scmp.lt.s32.totalorder %s8, 1
        %s107 = scalar_select %p106, %s8, 1
        %s108 = smul.addr %s107, 8
        %s109 = scalar_lea.vmem %s0, %s108
      $region24: #{_lambda_.2} parent=19 // pred_fallthru
        _
    $region20: #{_lambda_.2} parent=5 // pred_fallthru
      _
    %p110 = scmp.le.s32.totalorder 1, %s8
    %p111 = scmp.lt.s32.totalorder %s8, 3
    %p112 = pnand %p110, %p111
    %p113 = pneg %p112
    // Predicated region
    $region25: #{_lambda_.2} parent=5 // pred_check
      _
    $region26: #{_lambda_.2} parent=5 // pred_check_branch
      %115 = sbr.rel (%p112) target = $region28
    $region27: #{_lambda_.2} parent=5 // pred_region
      %s116 = ssub.s32 %s8, 1
      %p117 = scmp.lt.s32.totalorder %s13, 1
      %s118 = scalar_select %p117, %s13, 1
      %s119 = smul.addr %s118, 8
      %s120 = scalar_lea.vmem %s0, %s119
      %p121 = pneg %p34
      %p122 = pneg %p31
      %p123 = pneg %p55
      %p124 = pneg %p52
      %p125 = pneg %p81
      %p126 = pneg %p78
      %p127 = scmp.lt.s32.totalorder %s13, 1
      %s128 = scalar_select %p127, %s13, 1
      %s129 = smul.addr %s128, 8
      %s130 = scalar_lea.vmem %s2, %s129
      %p131 = scmp.lt.s32.totalorder %s13, 1
      %s132 = scalar_select %p131, %s13, 1
      %s133 = smul.addr %s132, 8
      %s134 = scalar_lea.vmem %s0, %s133
      %p135 = scmp.lt.s32.totalorder %s13, 1
      %s136 = scalar_select %p135, %s13, 1
      %s137 = smul.addr %s136, 8
      %s138 = scalar_lea.vmem %s2, %s137
      %v139 = vld [vmem:[%s134] sm:$0xff]
      %v140 = vld [vmem:[%s1] sm:$0xff]
      %v141 = vld [vmem:[%s1 + $0x8] sm:$0xff]
      %vm142 = vcmask 130048
      %v144 = vsel %vm142, %v139, 0
      %146 = vmatprep.subr.mxu0 0.0
      %147 = vmatpush1.msra.mxu0 0.0
      %148 = vmatprep.subr.mxu0 0.0
      %149 = vmatpush1.msra.mxu0 0.0
      %150 = vmatprep.subr.mxu0 0.0
      %151 = vmatpush1.msra.mxu0 0.0
      %152 = vmatprep.subr.mxu0 0.0
      %153 = vmatpush1.msra.mxu0 0.0
      %154 = vmatprep.subr.mxu0 0.0
      %155 = vmatpush1.msra.mxu0 0.0
      %156 = vmatprep.subr.mxu0 0.0
      %157 = vmatpush1.msra.mxu0 0.0
      %158 = vmatprep.subr.mxu0 0.0
      %159 = vmatpush1.msra.mxu0 0.0
      %160 = vmatprep.subr.mxu0 0.0
      %161 = vmatpush1.msra.mxu0 0.0
      %162 = vmatprep.subr.mxu0 0.0
      %163 = vmatpush1.msra.mxu0 0.0
      %164 = vmatprep.subr.mxu0 0.0
      %165 = vmatpush1.msra.mxu0 0.0
      %166 = vmatprep.subr.mxu0 0.0
      %167 = vmatpush1.msra.mxu0 0.0
      %168 = vmatprep.subr.mxu0 0.0
      %169 = vmatpush1.msra.mxu0 0.0
      %170 = vmatprep.subr.mxu0 0.0
      %171 = vmatpush1.msra.mxu0 0.0
      %172 = vmatprep.subr.mxu0 0.0
      %173 = vmatpush1.msra.mxu0 0.0
      %174 = vmatprep.subr.mxu0 0.0
      %175 = vmatpush1.msra.mxu0 %v141
      %176 = vmatprep.subr.mxu0 0.0
      %177 = vmatpush1.msra.mxu0 %v140
      %178 = vmatprep.subr.mxu0 0.0
      %179 = vmatpush2.msra.mxu0 0.0
      %180 = vmatprep.subr.mxu0 0.0
      %181 = vmatpush2.msra.mxu0 0.0
      %182 = vmatprep.subr.mxu0 0.0
      %183 = vmatpush2.msra.mxu0 0.0
      %184 = vmatprep.subr.mxu0 0.0
      %185 = vmatpush2.msra.mxu0 0.0
      %186 = vmatprep.subr.mxu0 0.0
      %187 = vmatpush2.msra.mxu0 0.0
      %188 = vmatprep.subr.mxu0 0.0
      %189 = vmatpush2.msra.mxu0 0.0
      %190 = vmatprep.subr.mxu0 0.0
      %191 = vmatpush2.msra.mxu0 0.0
      %192 = vmatprep.subr.mxu0 0.0
      %193 = vmatpush2.msra.mxu0 0.0
      %194 = vmatprep.subr.mxu0 0.0
      %195 = vmatpush2.msra.mxu0 0.0
      %196 = vmatprep.subr.mxu0 0.0
      %197 = vmatpush2.msra.mxu0 0.0
      %198 = vmatprep.subr.mxu0 0.0
      %199 = vmatpush2.msra.mxu0 0.0
      %200 = vmatprep.subr.mxu0 0.0
      %201 = vmatpush2.msra.mxu0 0.0
      %202 = vmatprep.subr.mxu0 0.0
      %203 = vmatpush2.msra.mxu0 0.0
      %204 = vmatprep.subr.mxu0 0.0
      %205 = vmatpush2.msra.mxu0 0.0
      %206 = vmatprep.subr.mxu0 0.0
      %207 = vmatpush2.msra.mxu0 0.0
      %208 = vmatprep.subr.mxu0 0.0
      %209 = vmatpush2.msra.mxu0 0.0
      %210 = vmatprep.mubr.f32.mxu0 0.0
      %211 = vmatmul.mubr.f32.gmra.mxu0 %v144
      %v212 = vpop.f32.mrf.mxu0
      %v213 = vadd.f32 0.0, %v212
      %v214 = vpop.f32.mrf.mxu0
      %215 = vdwg.mxu0
      %vm216 = vcmask 146432
      %217 = vst.msk [vmem:[%s138] sm:$0xff] %vm216, %v213
      %p218 = scmp.lt.s32.totalorder %s13, 1
      %s219 = scalar_select %p218, %s13, 1
      %s220 = smul.addr %s219, 8
      %s221 = scalar_lea.vmem %s2, %s220
      // Predicated region
      $region29: #{_lambda_.2} parent=27 // pred_check
        %p222 = pneg %p78
      $region30: #{_lambda_.2} parent=27 // pred_check_branch
        %224 = sbr.rel (%p222) target = $region32
      $region31: #{_lambda_.2} parent=27 // pred_region
        _
      $region32: #{_lambda_.2} parent=27 // pred_fallthru
        _
    $region28: #{_lambda_.2} parent=5 // pred_fallthru
      _
    %p225 = scmp.le.s32.totalorder 2, %s8
    // Predicated region
    $region33: #{_lambda_.2} parent=5 // pred_check
      %p226 = pneg %p225
    $region34: #{_lambda_.2} parent=5 // pred_check_branch
      %228 = sbr.rel (%p226) target = $region36
    $region35: #{_lambda_.2} parent=5 // pred_region
      %s229 = ssub.s32 %s8, 2
      // Predicated region
      $region37: #{_lambda_.2} parent=35 // pred_check
        %p230 = pneg %p84
      $region38: #{_lambda_.2} parent=35 // pred_check_branch
        %232 = sbr.rel (%p230) target = $region40
      $region39: #{_lambda_.2} parent=35 // pred_region
        %p233 = scmp.lt.s32.totalorder %s14, 1
        %s234 = scalar_select %p233, %s14, 1
        %s235 = smul.addr %s234, 8
        %s236 = scalar_lea.vmem %s2, %s235
      $region40: #{_lambda_.2} parent=35 // pred_fallthru
        _
    $region36: #{_lambda_.2} parent=5 // pred_fallthru
      _
  $region6: #{_lambda_.2} parent=0 // loop_footer
    %s12 = sadd.s32 1, %s8
  $region7: #{_lambda_.2} parent=0 // loop_footer_branch
    %7 = sbr.rel target = $region3
  $region8: #{_lambda_.2} parent=0 // loop_exit
    _

// kernel: _lambda_.3
$region0: #{_lambda_.3}
  #allocation0 [shape = 'u32[]', space=smem, size = 0x4, offset = 0x4, fixed_abs, tag = 'smem constant byte address 0x4 - core index']
  #allocation1 [shape = 'u32[144,128]{1,0:T(1,128)}', space=vmem, size = 0x12000, scoped, tag = 'internal scratch']
  #allocation2 [shape = 'f32[10,11,16]{2,1,0:T(8,128)}', space=vmem, size = 0x14000, scoped, tag = 'scratch operand']
  %s0 = inlined_call_operand.vmem [shape: f32[2,14,9], index: 0, kind: input, shape index: {}]
  %s1 = inlined_call_operand.vmem [shape: f32[2,14,9], index: 1, kind: input, shape index: {}]
  %s2 = inlined_call_operand.vmem [shape: f32[2,14,4], index: 2, kind: input, shape index: {}]
  %s3 = inlined_call_operand.vmem [shape: f32[7,9,9], index: 3, kind: input, shape index: {}]
  %s4 = inlined_call_operand.vmem [shape: f32[1,9], index: 4, kind: input, shape index: {}, may-alias: {4,6}]
  %s5 = inlined_call_operand.vmem [shape: f32[7,4,9], index: 5, kind: input, shape index: {}]
  %s6 = inlined_call_operand.vmem [shape: f32[1,9], index: 6, kind: input, shape index: {}, may-alias: {4,6}]
  %s7 = inlined_call_operand.vmem [shape: f32[5,16], index: 7, kind: input, shape index: {}]
  %s8 = inlined_call_operand.vmem [shape: f32[1,16], index: 8, kind: input, shape index: {}, may-alias: {8,19}]
  %s9 = inlined_call_operand.vmem [shape: f32[1,16], index: 9, kind: input, shape index: {}, may-alias: {9,20}]
  %s10 = inlined_call_operand.vmem [shape: f32[2,9,16], index: 10, kind: input, shape index: {}]
  %s11 = inlined_call_operand.vmem [shape: f32[2,1,16], index: 11, kind: input, shape index: {}, may-alias: {11,13,17}]
  %s12 = inlined_call_operand.vmem [shape: f32[2,1,16], index: 12, kind: input, shape index: {}]
  %s13 = inlined_call_operand.vmem [shape: f32[2,1,16], index: 13, kind: input, shape index: {}, may-alias: {11,13,17}]
  %s14 = inlined_call_operand.vmem [shape: f32[2,16,32], index: 14, kind: input, shape index: {}]
  %s15 = inlined_call_operand.vmem [shape: f32[2,1,32], index: 15, kind: input, shape index: {}]
  %s16 = inlined_call_operand.vmem [shape: f32[2,32,16], index: 16, kind: input, shape index: {}]
  %s17 = inlined_call_operand.vmem [shape: f32[2,1,16], index: 17, kind: input, shape index: {}, may-alias: {11,13,17}]
  %s18 = inlined_call_operand.vmem [shape: f32[2,1,16], index: 18, kind: input, shape index: {}]
  %s19 = inlined_call_operand.vmem [shape: f32[1,16], index: 19, kind: input, shape index: {}, may-alias: {8,19}]
  %s20 = inlined_call_operand.vmem [shape: f32[1,16], index: 20, kind: input, shape index: {}, may-alias: {9,20}]
  %s21 = inlined_call_operand.vmem [shape: f32[2,16], index: 21, kind: input, shape index: {}]
  %s22 = inlined_call_operand.vmem [shape: f32[1,2], index: 22, kind: input, shape index: {}]
  %s23 = inlined_call_operand.vmem [shape: f32[9,16], index: 23, kind: input, shape index: {}]
  %s24 = inlined_call_operand.vmem [shape: f32[9,16], index: 24, kind: input, shape index: {}]
  %s25 = inlined_call_operand.vmem [shape: f32[2,8,16], index: 25, kind: output, shape index: {}]
  %s26 = sld [smem:[#allocation0]]
  $region133: #{_lambda_.3} parent=0
    _
  %s28 = ssub.s32 1, %s26
  %s29 = scalar_select 0, %s28, %s26
  loop: start=0, step=1, limit=4
  $region2: #{_lambda_.3} parent=0 // loop_pre_header
    _
  $region3: #{_lambda_.3} parent=0 // loop_header
    %s31 = sphi 0, %s35
    %p32 = scmp.ge.s32.totalorder %s31, 4
    %s41 = sphi 0, %s43
    %s44 = sphi 0, %s41
    %s45 = sphi 0, %s44
    %s61 = sphi 0, %s45
    %s67 = sphi 0, %s69
    %s70 = sphi 0, %s67
    %s71 = sphi 0, %s70
    %s87 = sphi 0, %s71
    %s93 = sphi 0, %s95
    %s96 = sphi 0, %s93
    %s97 = sphi 0, %s96
    %s113 = sphi 0, %s97
    %s117 = sphi 0, %s117
    %s119 = sphi 0, %s117
    %s120 = sphi 0, %s119
    %s134 = sphi 0, %s120
    %s138 = sphi 0, %s138
    %s140 = sphi 0, %s138
    %s141 = sphi 0, %s140
    %s155 = sphi 0, %s141
    %s159 = sphi 0, %s159
    %s161 = sphi 0, %s159
    %s162 = sphi 0, %s161
    %s176 = sphi 0, %s162
    %s180 = sphi 0, %s180
    %s182 = sphi 0, %s180
    %s183 = sphi 0, %s182
    %s197 = sphi 0, %s183
    %s201 = sphi 0, %s201
    %s203 = sphi 0, %s201
    %s204 = sphi 0, %s203
    %s218 = sphi 0, %s204
    %s222 = sphi 0, %s222
    %s224 = sphi 0, %s222
    %s225 = sphi 0, %s224
    %s239 = sphi 0, %s225
    %s243 = sphi 0, %s243
    %s245 = sphi 0, %s243
    %s246 = sphi 0, %s245
    %s260 = sphi 0, %s246
    %s264 = sphi 0, %s264
    %s266 = sphi 0, %s264
    %s267 = sphi 0, %s266
    %s281 = sphi 0, %s267
    %s285 = sphi 0, %s285
    %s287 = sphi 0, %s285
    %s288 = sphi 0, %s287
    %s302 = sphi 0, %s288
    %s306 = sphi 0, %s306
    %s308 = sphi 0, %s306
    %s309 = sphi 0, %s308
    %s323 = sphi 0, %s309
    %s327 = sphi 0, %s327
    %s329 = sphi 0, %s327
    %s330 = sphi 0, %s329
    %s344 = sphi 0, %s330
    %s348 = sphi 0, %s348
    %s350 = sphi 0, %s348
    %s351 = sphi 0, %s350
    %s365 = sphi 0, %s351
    %s369 = sphi 0, %s369
    %s371 = sphi 0, %s369
    %s372 = sphi 0, %s371
    %s386 = sphi 0, %s372
    %s390 = sphi 0, %s390
    %s392 = sphi 0, %s390
    %s393 = sphi 0, %s392
    %s407 = sphi 0, %s393
    %s411 = sphi 0, %s411
    %s413 = sphi 0, %s411
    %s414 = sphi 0, %s413
    %s428 = sphi 0, %s414
    %s432 = sphi 0, %s432
    %s434 = sphi 0, %s432
    %s435 = sphi 0, %s434
    %s449 = sphi 0, %s435
    %s453 = sphi 0, %s453
    %s455 = sphi 0, %s453
    %s456 = sphi 0, %s455
    %s470 = sphi 0, %s456
    %s474 = sphi 0, %s474
    %s476 = sphi 0, %s474
    %s477 = sphi 0, %s476
    %s491 = sphi 0, %s477
    %s495 = sphi 0, %s495
    %s497 = sphi 0, %s495
    %s498 = sphi 0, %s497
    %s512 = sphi 0, %s498
    %s516 = sphi 0, %s516
    %s518 = sphi 0, %s516
    %s519 = sphi 0, %s518
    %s533 = sphi 0, %s519
    %s537 = sphi 0, %s537
    %s539 = sphi 0, %s537
    %s540 = sphi 0, %s539
    %s554 = sphi 0, %s540
    %s558 = sphi 0, %s558
    %s560 = sphi 0, %s558
    %s561 = sphi 0, %s560
    %s575 = sphi 0, %s561
    %s581 = sphi 0, %s583
    %s584 = sphi 0, %s581
    %s585 = sphi 0, %s584
    %s601 = sphi 0, %s585
  $region4: #{_lambda_.3} parent=0 // loop_header_branch
    %34 = sbr.rel (%p32) target = $region8
  $region5: #{_lambda_.3} parent=0 // loop_body
    %s36 = ssub.s32 %s31, 1
    %s37 = ssub.s32 %s31, 2
    %s38 = sadd.s32 %s31, 1
    %s39 = ssub.s32 %s31, %s38
    %p40 = scmp.eq.s32.totalorder %s39, 0
    %s42 = sadd.s32 %s41, 1
    %s43 = scalar_select %p40, %s41, %s42
    %p46 = pneg %p40
    %p47 = scmp.eq.s32.totalorder %s31, 1
    %p48 = por %p46, %p47
    %p49 = scmp.ne.s32.totalorder %s41, %s44
    %p50 = scmp.eq.s32.totalorder %s31, 0
    %p51 = por %p49, %p50
    %p52 = scmp.ne.s32.totalorder %s41, %s44
    %p53 = scmp.eq.s32.totalorder %s36, 1
    %p54 = por %p52, %p53
    %p55 = scmp.ne.s32.totalorder %s44, %s45
    %p56 = scmp.eq.s32.totalorder %s36, 0
    %p57 = por %p55, %p56
    %p58 = scmp.ne.s32.totalorder %s44, %s45
    %p59 = scmp.eq.s32.totalorder %s37, 1
    %p60 = por %p58, %p59
    %p62 = scmp.ne.s32.totalorder %s45, %s61
    %p63 = scmp.eq.s32.totalorder %s37, 0
    %p64 = por %p62, %p63
    %s65 = ssub.s32 %s31, %s38
    %p66 = scmp.eq.s32.totalorder %s65, 0
    %s68 = sadd.s32 %s67, 1
    %s69 = scalar_select %p66, %s67, %s68
    %p72 = pneg %p66
    %p73 = scmp.eq.s32.totalorder %s31, 1
    %p74 = por %p72, %p73
    %p75 = scmp.ne.s32.totalorder %s67, %s70
    %p76 = scmp.eq.s32.totalorder %s31, 0
    %p77 = por %p75, %p76
    %p78 = scmp.ne.s32.totalorder %s67, %s70
    %p79 = scmp.eq.s32.totalorder %s36, 1
    %p80 = por %p78, %p79
    %p81 = scmp.ne.s32.totalorder %s70, %s71
    %p82 = scmp.eq.s32.totalorder %s36, 0
    %p83 = por %p81, %p82
    %p84 = scmp.ne.s32.totalorder %s70, %s71
    %p85 = scmp.eq.s32.totalorder %s37, 1
    %p86 = por %p84, %p85
    %p88 = scmp.ne.s32.totalorder %s71, %s87
    %p89 = scmp.eq.s32.totalorder %s37, 0
    %p90 = por %p88, %p89
    %s91 = ssub.s32 %s31, %s38
    %p92 = scmp.eq.s32.totalorder %s91, 0
    %s94 = sadd.s32 %s93, 1
    %s95 = scalar_select %p92, %s93, %s94
    %p98 = pneg %p92
    %p99 = scmp.eq.s32.totalorder %s31, 1
    %p100 = por %p98, %p99
    %p101 = scmp.ne.s32.totalorder %s93, %s96
    %p102 = scmp.eq.s32.totalorder %s31, 0
    %p103 = por %p101, %p102
    %p104 = scmp.ne.s32.totalorder %s93, %s96
    %p105 = scmp.eq.s32.totalorder %s36, 1
    %p106 = por %p104, %p105
    %p107 = scmp.ne.s32.totalorder %s96, %s97
    %p108 = scmp.eq.s32.totalorder %s36, 0
    %p109 = por %p107, %p108
    %p110 = scmp.ne.s32.totalorder %s96, %s97
    %p111 = scmp.eq.s32.totalorder %s37, 1
    %p112 = por %p110, %p111
    %p114 = scmp.ne.s32.totalorder %s97, %s113
    %p115 = scmp.eq.s32.totalorder %s37, 0
    %p116 = por %p114, %p115
    %s118 = sadd.s32 %s117, 1
    %p121 = scmp.eq.s32.totalorder %s31, 1
    %p122 = scmp.ne.s32.totalorder %s117, %s119
    %p123 = scmp.eq.s32.totalorder %s31, 0
    %p124 = por %p122, %p123
    %p125 = scmp.ne.s32.totalorder %s117, %s119
    %p126 = scmp.eq.s32.totalorder %s36, 1
    %p127 = por %p125, %p126
    %p128 = scmp.ne.s32.totalorder %s119, %s120
    %p129 = scmp.eq.s32.totalorder %s36, 0
    %p130 = por %p128, %p129
    %p131 = scmp.ne.s32.totalorder %s119, %s120
    %p132 = scmp.eq.s32.totalorder %s37, 1
    %p133 = por %p131, %p132
    %p135 = scmp.ne.s32.totalorder %s120, %s134
    %p136 = scmp.eq.s32.totalorder %s37, 0
    %p137 = por %p135, %p136
    %s139 = sadd.s32 %s138, 1
    %p142 = scmp.eq.s32.totalorder %s31, 1
    %p143 = scmp.ne.s32.totalorder %s138, %s140
    %p144 = scmp.eq.s32.totalorder %s31, 0
    %p145 = por %p143, %p144
    %p146 = scmp.ne.s32.totalorder %s138, %s140
    %p147 = scmp.eq.s32.totalorder %s36, 1
    %p148 = por %p146, %p147
    %p149 = scmp.ne.s32.totalorder %s140, %s141
    %p150 = scmp.eq.s32.totalorder %s36, 0
    %p151 = por %p149, %p150
    %p152 = scmp.ne.s32.totalorder %s140, %s141
    %p153 = scmp.eq.s32.totalorder %s37, 1
    %p154 = por %p152, %p153
    %p156 = scmp.ne.s32.totalorder %s141, %s155
    %p157 = scmp.eq.s32.totalorder %s37, 0
    %p158 = por %p156, %p157
    %s160 = sadd.s32 %s159, 1
    %p163 = scmp.eq.s32.totalorder %s31, 1
    %p164 = scmp.ne.s32.totalorder %s159, %s161
    %p165 = scmp.eq.s32.totalorder %s31, 0
    %p166 = por %p164, %p165
    %p167 = scmp.ne.s32.totalorder %s159, %s161
    %p168 = scmp.eq.s32.totalorder %s36, 1
    %p169 = por %p167, %p168
    %p170 = scmp.ne.s32.totalorder %s161, %s162
    %p171 = scmp.eq.s32.totalorder %s36, 0
    %p172 = por %p170, %p171
    %p173 = scmp.ne.s32.totalorder %s161, %s162
    %p174 = scmp.eq.s32.totalorder %s37, 1
    %p175 = por %p173, %p174
    %p177 = scmp.ne.s32.totalorder %s162, %s176
    %p178 = scmp.eq.s32.totalorder %s37, 0
    %p179 = por %p177, %p178
    %s181 = sadd.s32 %s180, 1
    %p184 = scmp.eq.s32.totalorder %s31, 1
    %p185 = scmp.ne.s32.totalorder %s180, %s182
    %p186 = scmp.eq.s32.totalorder %s31, 0
    %p187 = por %p185, %p186
    %p188 = scmp.ne.s32.totalorder %s180, %s182
    %p189 = scmp.eq.s32.totalorder %s36, 1
    %p190 = por %p188, %p189
    %p191 = scmp.ne.s32.totalorder %s182, %s183
    %p192 = scmp.eq.s32.totalorder %s36, 0
    %p193 = por %p191, %p192
    %p194 = scmp.ne.s32.totalorder %s182, %s183
    %p195 = scmp.eq.s32.totalorder %s37, 1
    %p196 = por %p194, %p195
    %p198 = scmp.ne.s32.totalorder %s183, %s197
    %p199 = scmp.eq.s32.totalorder %s37, 0
    %p200 = por %p198, %p199
    %s202 = sadd.s32 %s201, 1
    %p205 = scmp.eq.s32.totalorder %s31, 1
    %p206 = scmp.ne.s32.totalorder %s201, %s203
    %p207 = scmp.eq.s32.totalorder %s31, 0
    %p208 = por %p206, %p207
    %p209 = scmp.ne.s32.totalorder %s201, %s203
    %p210 = scmp.eq.s32.totalorder %s36, 1
    %p211 = por %p209, %p210
    %p212 = scmp.ne.s32.totalorder %s203, %s204
    %p213 = scmp.eq.s32.totalorder %s36, 0
    %p214 = por %p212, %p213
    %p215 = scmp.ne.s32.totalorder %s203, %s204
    %p216 = scmp.eq.s32.totalorder %s37, 1
    %p217 = por %p215, %p216
    %p219 = scmp.ne.s32.totalorder %s204, %s218
    %p220 = scmp.eq.s32.totalorder %s37, 0
    %p221 = por %p219, %p220
    %s223 = sadd.s32 %s222, 1
    %p226 = scmp.eq.s32.totalorder %s31, 1
    %p227 = scmp.ne.s32.totalorder %s222, %s224
    %p228 = scmp.eq.s32.totalorder %s31, 0
    %p229 = por %p227, %p228
    %p230 = scmp.ne.s32.totalorder %s222, %s224
    %p231 = scmp.eq.s32.totalorder %s36, 1
    %p232 = por %p230, %p231
    %p233 = scmp.ne.s32.totalorder %s224, %s225
    %p234 = scmp.eq.s32.totalorder %s36, 0
    %p235 = por %p233, %p234
    %p236 = scmp.ne.s32.totalorder %s224, %s225
    %p237 = scmp.eq.s32.totalorder %s37, 1
    %p238 = por %p236, %p237
    %p240 = scmp.ne.s32.totalorder %s225, %s239
    %p241 = scmp.eq.s32.totalorder %s37, 0
    %p242 = por %p240, %p241
    %s244 = sadd.s32 %s243, 1
    %p247 = scmp.eq.s32.totalorder %s31, 1
    %p248 = scmp.ne.s32.totalorder %s243, %s245
    %p249 = scmp.eq.s32.totalorder %s31, 0
    %p250 = por %p248, %p249
    %p251 = scmp.ne.s32.totalorder %s243, %s245
    %p252 = scmp.eq.s32.totalorder %s36, 1
    %p253 = por %p251, %p252
    %p254 = scmp.ne.s32.totalorder %s245, %s246
    %p255 = scmp.eq.s32.totalorder %s36, 0
    %p256 = por %p254, %p255
    %p257 = scmp.ne.s32.totalorder %s245, %s246
    %p258 = scmp.eq.s32.totalorder %s37, 1
    %p259 = por %p257, %p258
    %p261 = scmp.ne.s32.totalorder %s246, %s260
    %p262 = scmp.eq.s32.totalorder %s37, 0
    %p263 = por %p261, %p262
    %s265 = sadd.s32 %s264, 1
    %p268 = scmp.eq.s32.totalorder %s31, 1
    %p269 = scmp.ne.s32.totalorder %s264, %s266
    %p270 = scmp.eq.s32.totalorder %s31, 0
    %p271 = por %p269, %p270
    %p272 = scmp.ne.s32.totalorder %s264, %s266
    %p273 = scmp.eq.s32.totalorder %s36, 1
    %p274 = por %p272, %p273
    %p275 = scmp.ne.s32.totalorder %s266, %s267
    %p276 = scmp.eq.s32.totalorder %s36, 0
    %p277 = por %p275, %p276
    %p278 = scmp.ne.s32.totalorder %s266, %s267
    %p279 = scmp.eq.s32.totalorder %s37, 1
    %p280 = por %p278, %p279
    %p282 = scmp.ne.s32.totalorder %s267, %s281
    %p283 = scmp.eq.s32.totalorder %s37, 0
    %p284 = por %p282, %p283
    %s286 = sadd.s32 %s285, 1
    %p289 = scmp.eq.s32.totalorder %s31, 1
    %p290 = scmp.ne.s32.totalorder %s285, %s287
    %p291 = scmp.eq.s32.totalorder %s31, 0
    %p292 = por %p290, %p291
    %p293 = scmp.ne.s32.totalorder %s285, %s287
    %p294 = scmp.eq.s32.totalorder %s36, 1
    %p295 = por %p293, %p294
    %p296 = scmp.ne.s32.totalorder %s287, %s288
    %p297 = scmp.eq.s32.totalorder %s36, 0
    %p298 = por %p296, %p297
    %p299 = scmp.ne.s32.totalorder %s287, %s288
    %p300 = scmp.eq.s32.totalorder %s37, 1
    %p301 = por %p299, %p300
    %p303 = scmp.ne.s32.totalorder %s288, %s302
    %p304 = scmp.eq.s32.totalorder %s37, 0
    %p305 = por %p303, %p304
    %s307 = sadd.s32 %s306, 1
    %p310 = scmp.eq.s32.totalorder %s31, 1
    %p311 = scmp.ne.s32.totalorder %s306, %s308
    %p312 = scmp.eq.s32.totalorder %s31, 0
    %p313 = por %p311, %p312
    %p314 = scmp.ne.s32.totalorder %s306, %s308
    %p315 = scmp.eq.s32.totalorder %s36, 1
    %p316 = por %p314, %p315
    %p317 = scmp.ne.s32.totalorder %s308, %s309
    %p318 = scmp.eq.s32.totalorder %s36, 0
    %p319 = por %p317, %p318
    %p320 = scmp.ne.s32.totalorder %s308, %s309
    %p321 = scmp.eq.s32.totalorder %s37, 1
    %p322 = por %p320, %p321
    %p324 = scmp.ne.s32.totalorder %s309, %s323
    %p325 = scmp.eq.s32.totalorder %s37, 0
    %p326 = por %p324, %p325
    %s328 = sadd.s32 %s327, 1
    %p331 = scmp.eq.s32.totalorder %s31, 1
    %p332 = scmp.ne.s32.totalorder %s327, %s329
    %p333 = scmp.eq.s32.totalorder %s31, 0
    %p334 = por %p332, %p333
    %p335 = scmp.ne.s32.totalorder %s327, %s329
    %p336 = scmp.eq.s32.totalorder %s36, 1
    %p337 = por %p335, %p336
    %p338 = scmp.ne.s32.totalorder %s329, %s330
    %p339 = scmp.eq.s32.totalorder %s36, 0
    %p340 = por %p338, %p339
    %p341 = scmp.ne.s32.totalorder %s329, %s330
    %p342 = scmp.eq.s32.totalorder %s37, 1
    %p343 = por %p341, %p342
    %p345 = scmp.ne.s32.totalorder %s330, %s344
    %p346 = scmp.eq.s32.totalorder %s37, 0
    %p347 = por %p345, %p346
    %s349 = sadd.s32 %s348, 1
    %p352 = scmp.eq.s32.totalorder %s31, 1
    %p353 = scmp.ne.s32.totalorder %s348, %s350
    %p354 = scmp.eq.s32.totalorder %s31, 0
    %p355 = por %p353, %p354
    %p356 = scmp.ne.s32.totalorder %s348, %s350
    %p357 = scmp.eq.s32.totalorder %s36, 1
    %p358 = por %p356, %p357
    %p359 = scmp.ne.s32.totalorder %s350, %s351
    %p360 = scmp.eq.s32.totalorder %s36, 0
    %p361 = por %p359, %p360
    %p362 = scmp.ne.s32.totalorder %s350, %s351
    %p363 = scmp.eq.s32.totalorder %s37, 1
    %p364 = por %p362, %p363
    %p366 = scmp.ne.s32.totalorder %s351, %s365
    %p367 = scmp.eq.s32.totalorder %s37, 0
    %p368 = por %p366, %p367
    %s370 = sadd.s32 %s369, 1
    %p373 = scmp.eq.s32.totalorder %s31, 1
    %p374 = scmp.ne.s32.totalorder %s369, %s371
    %p375 = scmp.eq.s32.totalorder %s31, 0
    %p376 = por %p374, %p375
    %p377 = scmp.ne.s32.totalorder %s369, %s371
    %p378 = scmp.eq.s32.totalorder %s36, 1
    %p379 = por %p377, %p378
    %p380 = scmp.ne.s32.totalorder %s371, %s372
    %p381 = scmp.eq.s32.totalorder %s36, 0
    %p382 = por %p380, %p381
    %p383 = scmp.ne.s32.totalorder %s371, %s372
    %p384 = scmp.eq.s32.totalorder %s37, 1
    %p385 = por %p383, %p384
    %p387 = scmp.ne.s32.totalorder %s372, %s386
    %p388 = scmp.eq.s32.totalorder %s37, 0
    %p389 = por %p387, %p388
    %s391 = sadd.s32 %s390, 1
    %p394 = scmp.eq.s32.totalorder %s31, 1
    %p395 = scmp.ne.s32.totalorder %s390, %s392
    %p396 = scmp.eq.s32.totalorder %s31, 0
    %p397 = por %p395, %p396
    %p398 = scmp.ne.s32.totalorder %s390, %s392
    %p399 = scmp.eq.s32.totalorder %s36, 1
    %p400 = por %p398, %p399
    %p401 = scmp.ne.s32.totalorder %s392, %s393
    %p402 = scmp.eq.s32.totalorder %s36, 0
    %p403 = por %p401, %p402
    %p404 = scmp.ne.s32.totalorder %s392, %s393
    %p405 = scmp.eq.s32.totalorder %s37, 1
    %p406 = por %p404, %p405
    %p408 = scmp.ne.s32.totalorder %s393, %s407
    %p409 = scmp.eq.s32.totalorder %s37, 0
    %p410 = por %p408, %p409
    %s412 = sadd.s32 %s411, 1
    %p415 = scmp.eq.s32.totalorder %s31, 1
    %p416 = scmp.ne.s32.totalorder %s411, %s413
    %p417 = scmp.eq.s32.totalorder %s31, 0
    %p418 = por %p416, %p417
    %p419 = scmp.ne.s32.totalorder %s411, %s413
    %p420 = scmp.eq.s32.totalorder %s36, 1
    %p421 = por %p419, %p420
    %p422 = scmp.ne.s32.totalorder %s413, %s414
    %p423 = scmp.eq.s32.totalorder %s36, 0
    %p424 = por %p422, %p423
    %p425 = scmp.ne.s32.totalorder %s413, %s414
    %p426 = scmp.eq.s32.totalorder %s37, 1
    %p427 = por %p425, %p426
    %p429 = scmp.ne.s32.totalorder %s414, %s428
    %p430 = scmp.eq.s32.totalorder %s37, 0
    %p431 = por %p429, %p430
    %s433 = sadd.s32 %s432, 1
    %p436 = scmp.eq.s32.totalorder %s31, 1
    %p437 = scmp.ne.s32.totalorder %s432, %s434
    %p438 = scmp.eq.s32.totalorder %s31, 0
    %p439 = por %p437, %p438
    %p440 = scmp.ne.s32.totalorder %s432, %s434
    %p441 = scmp.eq.s32.totalorder %s36, 1
    %p442 = por %p440, %p441
    %p443 = scmp.ne.s32.totalorder %s434, %s435
    %p444 = scmp.eq.s32.totalorder %s36, 0
    %p445 = por %p443, %p444
    %p446 = scmp.ne.s32.totalorder %s434, %s435
    %p447 = scmp.eq.s32.totalorder %s37, 1
    %p448 = por %p446, %p447
    %p450 = scmp.ne.s32.totalorder %s435, %s449
    %p451 = scmp.eq.s32.totalorder %s37, 0
    %p452 = por %p450, %p451
    %s454 = sadd.s32 %s453, 1
    %p457 = scmp.eq.s32.totalorder %s31, 1
    %p458 = scmp.ne.s32.totalorder %s453, %s455
    %p459 = scmp.eq.s32.totalorder %s31, 0
    %p460 = por %p458, %p459
    %p461 = scmp.ne.s32.totalorder %s453, %s455
    %p462 = scmp.eq.s32.totalorder %s36, 1
    %p463 = por %p461, %p462
    %p464 = scmp.ne.s32.totalorder %s455, %s456
    %p465 = scmp.eq.s32.totalorder %s36, 0
    %p466 = por %p464, %p465
    %p467 = scmp.ne.s32.totalorder %s455, %s456
    %p468 = scmp.eq.s32.totalorder %s37, 1
    %p469 = por %p467, %p468
    %p471 = scmp.ne.s32.totalorder %s456, %s470
    %p472 = scmp.eq.s32.totalorder %s37, 0
    %p473 = por %p471, %p472
    %s475 = sadd.s32 %s474, 1
    %p478 = scmp.eq.s32.totalorder %s31, 1
    %p479 = scmp.ne.s32.totalorder %s474, %s476
    %p480 = scmp.eq.s32.totalorder %s31, 0
    %p481 = por %p479, %p480
    %p482 = scmp.ne.s32.totalorder %s474, %s476
    %p483 = scmp.eq.s32.totalorder %s36, 1
    %p484 = por %p482, %p483
    %p485 = scmp.ne.s32.totalorder %s476, %s477
    %p486 = scmp.eq.s32.totalorder %s36, 0
    %p487 = por %p485, %p486
    %p488 = scmp.ne.s32.totalorder %s476, %s477
    %p489 = scmp.eq.s32.totalorder %s37, 1
    %p490 = por %p488, %p489
    %p492 = scmp.ne.s32.totalorder %s477, %s491
    %p493 = scmp.eq.s32.totalorder %s37, 0
    %p494 = por %p492, %p493
    %s496 = sadd.s32 %s495, 1
    %p499 = scmp.eq.s32.totalorder %s31, 1
    %p500 = scmp.ne.s32.totalorder %s495, %s497
    %p501 = scmp.eq.s32.totalorder %s31, 0
    %p502 = por %p500, %p501
    %p503 = scmp.ne.s32.totalorder %s495, %s497
    %p504 = scmp.eq.s32.totalorder %s36, 1
    %p505 = por %p503, %p504
    %p506 = scmp.ne.s32.totalorder %s497, %s498
    %p507 = scmp.eq.s32.totalorder %s36, 0
    %p508 = por %p506, %p507
    %p509 = scmp.ne.s32.totalorder %s497, %s498
    %p510 = scmp.eq.s32.totalorder %s37, 1
    %p511 = por %p509, %p510
    %p513 = scmp.ne.s32.totalorder %s498, %s512
    %p514 = scmp.eq.s32.totalorder %s37, 0
    %p515 = por %p513, %p514
    %s517 = sadd.s32 %s516, 1
    %p520 = scmp.eq.s32.totalorder %s31, 1
    %p521 = scmp.ne.s32.totalorder %s516, %s518
    %p522 = scmp.eq.s32.totalorder %s31, 0
    %p523 = por %p521, %p522
    %p524 = scmp.ne.s32.totalorder %s516, %s518
    %p525 = scmp.eq.s32.totalorder %s36, 1
    %p526 = por %p524, %p525
    %p527 = scmp.ne.s32.totalorder %s518, %s519
    %p528 = scmp.eq.s32.totalorder %s36, 0
    %p529 = por %p527, %p528
    %p530 = scmp.ne.s32.totalorder %s518, %s519
    %p531 = scmp.eq.s32.totalorder %s37, 1
    %p532 = por %p530, %p531
    %p534 = scmp.ne.s32.totalorder %s519, %s533
    %p535 = scmp.eq.s32.totalorder %s37, 0
    %p536 = por %p534, %p535
    %s538 = sadd.s32 %s537, 1
    %p541 = scmp.eq.s32.totalorder %s31, 1
    %p542 = scmp.ne.s32.totalorder %s537, %s539
    %p543 = scmp.eq.s32.totalorder %s31, 0
    %p544 = por %p542, %p543
    %p545 = scmp.ne.s32.totalorder %s537, %s539
    %p546 = scmp.eq.s32.totalorder %s36, 1
    %p547 = por %p545, %p546
    %p548 = scmp.ne.s32.totalorder %s539, %s540
    %p549 = scmp.eq.s32.totalorder %s36, 0
    %p550 = por %p548, %p549
    %p551 = scmp.ne.s32.totalorder %s539, %s540
    %p552 = scmp.eq.s32.totalorder %s37, 1
    %p553 = por %p551, %p552
    %p555 = scmp.ne.s32.totalorder %s540, %s554
    %p556 = scmp.eq.s32.totalorder %s37, 0
    %p557 = por %p555, %p556
    %s559 = sadd.s32 %s558, 1
    %p562 = scmp.eq.s32.totalorder %s31, 1
    %p563 = scmp.ne.s32.totalorder %s558, %s560
    %p564 = scmp.eq.s32.totalorder %s31, 0
    %p565 = por %p563, %p564
    %p566 = scmp.ne.s32.totalorder %s558, %s560
    %p567 = scmp.eq.s32.totalorder %s36, 1
    %p568 = por %p566, %p567
    %p569 = scmp.ne.s32.totalorder %s560, %s561
    %p570 = scmp.eq.s32.totalorder %s36, 0
    %p571 = por %p569, %p570
    %p572 = scmp.ne.s32.totalorder %s560, %s561
    %p573 = scmp.eq.s32.totalorder %s37, 1
    %p574 = por %p572, %p573
    %p576 = scmp.ne.s32.totalorder %s561, %s575
    %p577 = scmp.eq.s32.totalorder %s37, 0
    %p578 = por %p576, %p577
    %s579 = ssub.s32 %s31, %s38
    %p580 = scmp.eq.s32.totalorder %s579, 0
    %s582 = sadd.s32 %s581, 1
    %s583 = scalar_select %p580, %s581, %s582
    %p586 = pneg %p580
    %p587 = scmp.eq.s32.totalorder %s31, 1
    %p588 = por %p586, %p587
    %p589 = scmp.ne.s32.totalorder %s581, %s584
    %p590 = scmp.eq.s32.totalorder %s31, 0
    %p591 = por %p589, %p590
    %p592 = scmp.ne.s32.totalorder %s581, %s584
    %p593 = scmp.eq.s32.totalorder %s36, 1
    %p594 = por %p592, %p593
    %p595 = scmp.ne.s32.totalorder %s584, %s585
    %p596 = scmp.eq.s32.totalorder %s36, 0
    %p597 = por %p595, %p596
    %p598 = scmp.ne.s32.totalorder %s584, %s585
    %p599 = scmp.eq.s32.totalorder %s37, 1
    %p600 = por %p598, %p599
    %p602 = scmp.ne.s32.totalorder %s585, %s601
    %p603 = scmp.eq.s32.totalorder %s37, 0
    %p604 = por %p602, %p603
    %p605 = scmp.le.s32.totalorder 1, %s31
    %p606 = scmp.lt.s32.totalorder %s31, 3
    %p607 = pnand %p605, %p606
    %p608 = pneg %p607
    // Predicated region
    $region9: #{_lambda_.3} parent=5 // pred_check
      _
    $region10: #{_lambda_.3} parent=5 // pred_check_branch
      %610 = sbr.rel (%p607) target = $region12
    $region11: #{_lambda_.3} parent=5 // pred_region
      %s611 = ssub.s32 %s31, 1
      // Predicated region
      $region13: #{_lambda_.3} parent=11 // pred_check
        %p612 = pneg %p130
      $region14: #{_lambda_.3} parent=11 // pred_check_branch
        %614 = sbr.rel (%p612) target = $region16
      $region15: #{_lambda_.3} parent=11 // pred_region
        _
      $region16: #{_lambda_.3} parent=11 // pred_fallthru
        _
      // Predicated region
      $region17: #{_lambda_.3} parent=11 // pred_check
        %p615 = pneg %p151
      $region18: #{_lambda_.3} parent=11 // pred_check_branch
        %617 = sbr.rel (%p615) target = $region20
      $region19: #{_lambda_.3} parent=11 // pred_region
        _
      $region20: #{_lambda_.3} parent=11 // pred_fallthru
        _
      // Predicated region
      $region21: #{_lambda_.3} parent=11 // pred_check
        %p618 = pneg %p172
      $region22: #{_lambda_.3} parent=11 // pred_check_branch
        %620 = sbr.rel (%p618) target = $region24
      $region23: #{_lambda_.3} parent=11 // pred_region
        _
      $region24: #{_lambda_.3} parent=11 // pred_fallthru
        _
      // Predicated region
      $region25: #{_lambda_.3} parent=11 // pred_check
        %p621 = pneg %p193
      $region26: #{_lambda_.3} parent=11 // pred_check_branch
        %623 = sbr.rel (%p621) target = $region28
      $region27: #{_lambda_.3} parent=11 // pred_region
        _
      $region28: #{_lambda_.3} parent=11 // pred_fallthru
        _
      // Predicated region
      $region29: #{_lambda_.3} parent=11 // pred_check
        %p624 = pneg %p214
      $region30: #{_lambda_.3} parent=11 // pred_check_branch
        %626 = sbr.rel (%p624) target = $region32
      $region31: #{_lambda_.3} parent=11 // pred_region
        _
      $region32: #{_lambda_.3} parent=11 // pred_fallthru
        _
      // Predicated region
      $region33: #{_lambda_.3} parent=11 // pred_check
        %p627 = pneg %p235
      $region34: #{_lambda_.3} parent=11 // pred_check_branch
        %629 = sbr.rel (%p627) target = $region36
      $region35: #{_lambda_.3} parent=11 // pred_region
        _
      $region36: #{_lambda_.3} parent=11 // pred_fallthru
        _
      // Predicated region
      $region37: #{_lambda_.3} parent=11 // pred_check
        %p630 = pneg %p256
      $region38: #{_lambda_.3} parent=11 // pred_check_branch
        %632 = sbr.rel (%p630) target = $region40
      $region39: #{_lambda_.3} parent=11 // pred_region
        _
      $region40: #{_lambda_.3} parent=11 // pred_fallthru
        _
      // Predicated region
      $region41: #{_lambda_.3} parent=11 // pred_check
        %p633 = pneg %p277
      $region42: #{_lambda_.3} parent=11 // pred_check_branch
        %635 = sbr.rel (%p633) target = $region44
      $region43: #{_lambda_.3} parent=11 // pred_region
        _
      $region44: #{_lambda_.3} parent=11 // pred_fallthru
        _
      // Predicated region
      $region45: #{_lambda_.3} parent=11 // pred_check
        %p636 = pneg %p298
      $region46: #{_lambda_.3} parent=11 // pred_check_branch
        %638 = sbr.rel (%p636) target = $region48
      $region47: #{_lambda_.3} parent=11 // pred_region
        _
      $region48: #{_lambda_.3} parent=11 // pred_fallthru
        _
      // Predicated region
      $region49: #{_lambda_.3} parent=11 // pred_check
        %p639 = pneg %p319
      $region50: #{_lambda_.3} parent=11 // pred_check_branch
        %641 = sbr.rel (%p639) target = $region52
      $region51: #{_lambda_.3} parent=11 // pred_region
        _
      $region52: #{_lambda_.3} parent=11 // pred_fallthru
        _
      // Predicated region
      $region53: #{_lambda_.3} parent=11 // pred_check
        %p642 = pneg %p340
      $region54: #{_lambda_.3} parent=11 // pred_check_branch
        %644 = sbr.rel (%p642) target = $region56
      $region55: #{_lambda_.3} parent=11 // pred_region
        _
      $region56: #{_lambda_.3} parent=11 // pred_fallthru
        _
      // Predicated region
      $region57: #{_lambda_.3} parent=11 // pred_check
        %p645 = pneg %p361
      $region58: #{_lambda_.3} parent=11 // pred_check_branch
        %647 = sbr.rel (%p645) target = $region60
      $region59: #{_lambda_.3} parent=11 // pred_region
        _
      $region60: #{_lambda_.3} parent=11 // pred_fallthru
        _
      // Predicated region
      $region61: #{_lambda_.3} parent=11 // pred_check
        %p648 = pneg %p382
      $region62: #{_lambda_.3} parent=11 // pred_check_branch
        %650 = sbr.rel (%p648) target = $region64
      $region63: #{_lambda_.3} parent=11 // pred_region
        _
      $region64: #{_lambda_.3} parent=11 // pred_fallthru
        _
      // Predicated region
      $region65: #{_lambda_.3} parent=11 // pred_check
        %p651 = pneg %p403
      $region66: #{_lambda_.3} parent=11 // pred_check_branch
        %653 = sbr.rel (%p651) target = $region68
      $region67: #{_lambda_.3} parent=11 // pred_region
        _
      $region68: #{_lambda_.3} parent=11 // pred_fallthru
        _
      // Predicated region
      $region69: #{_lambda_.3} parent=11 // pred_check
        %p654 = pneg %p424
      $region70: #{_lambda_.3} parent=11 // pred_check_branch
        %656 = sbr.rel (%p654) target = $region72
      $region71: #{_lambda_.3} parent=11 // pred_region
        _
      $region72: #{_lambda_.3} parent=11 // pred_fallthru
        _
      // Predicated region
      $region73: #{_lambda_.3} parent=11 // pred_check
        %p657 = pneg %p445
      $region74: #{_lambda_.3} parent=11 // pred_check_branch
        %659 = sbr.rel (%p657) target = $region76
      $region75: #{_lambda_.3} parent=11 // pred_region
        _
      $region76: #{_lambda_.3} parent=11 // pred_fallthru
        _
      // Predicated region
      $region77: #{_lambda_.3} parent=11 // pred_check
        %p660 = pneg %p466
      $region78: #{_lambda_.3} parent=11 // pred_check_branch
        %662 = sbr.rel (%p660) target = $region80
      $region79: #{_lambda_.3} parent=11 // pred_region
        _
      $region80: #{_lambda_.3} parent=11 // pred_fallthru
        _
      // Predicated region
      $region81: #{_lambda_.3} parent=11 // pred_check
        %p663 = pneg %p487
      $region82: #{_lambda_.3} parent=11 // pred_check_branch
        %665 = sbr.rel (%p663) target = $region84
      $region83: #{_lambda_.3} parent=11 // pred_region
        _
      $region84: #{_lambda_.3} parent=11 // pred_fallthru
        _
      // Predicated region
      $region85: #{_lambda_.3} parent=11 // pred_check
        %p666 = pneg %p508
      $region86: #{_lambda_.3} parent=11 // pred_check_branch
        %668 = sbr.rel (%p666) target = $region88
      $region87: #{_lambda_.3} parent=11 // pred_region
        _
      $region88: #{_lambda_.3} parent=11 // pred_fallthru
        _
      // Predicated region
      $region89: #{_lambda_.3} parent=11 // pred_check
        %p669 = pneg %p529
      $region90: #{_lambda_.3} parent=11 // pred_check_branch
        %671 = sbr.rel (%p669) target = $region92
      $region91: #{_lambda_.3} parent=11 // pred_region
        _
      $region92: #{_lambda_.3} parent=11 // pred_fallthru
        _
      // Predicated region
      $region93: #{_lambda_.3} parent=11 // pred_check
        %p672 = pneg %p550
      $region94: #{_lambda_.3} parent=11 // pred_check_branch
        %674 = sbr.rel (%p672) target = $region96
      $region95: #{_lambda_.3} parent=11 // pred_region
        _
      $region96: #{_lambda_.3} parent=11 // pred_fallthru
        _
      // Predicated region
      $region97: #{_lambda_.3} parent=11 // pred_check
        %p675 = pneg %p571
      $region98: #{_lambda_.3} parent=11 // pred_check_branch
        %677 = sbr.rel (%p675) target = $region100
      $region99: #{_lambda_.3} parent=11 // pred_region
        _
      $region100: #{_lambda_.3} parent=11 // pred_fallthru
        _
    $region12: #{_lambda_.3} parent=5 // pred_fallthru
      _
    %p678 = scmp.lt.s32.totalorder %s31, 2
    // Predicated region
    $region101: #{_lambda_.3} parent=5 // pred_check
      %p679 = pneg %p678
    $region102: #{_lambda_.3} parent=5 // pred_check_branch
      %681 = sbr.rel (%p679) target = $region104
    $region103: #{_lambda_.3} parent=5 // pred_region
      // Predicated region
      $region105: #{_lambda_.3} parent=103 // pred_check
        %p682 = pneg %p51
      $region106: #{_lambda_.3} parent=103 // pred_check_branch
        %684 = sbr.rel (%p682) target = $region108
      $region107: #{_lambda_.3} parent=103 // pred_region
        %p685 = scmp.lt.s32.totalorder %s31, 1
        %s686 = scalar_select %p685, %s31, 1
        %s687 = smul.addr %s686, 2
        %s688 = smul.addr %s687, 8
        %s689 = scalar_lea.vmem %s0, %s688
      $region108: #{_lambda_.3} parent=103 // pred_fallthru
        _
      // Predicated region
      $region109: #{_lambda_.3} parent=103 // pred_check
        %p690 = pneg %p77
      $region110: #{_lambda_.3} parent=103 // pred_check_branch
        %692 = sbr.rel (%p690) target = $region112
      $region111: #{_lambda_.3} parent=103 // pred_region
        %p693 = scmp.lt.s32.totalorder %s31, 1
        %s694 = scalar_select %p693, %s31, 1
        %s695 = smul.addr %s694, 2
        %s696 = smul.addr %s695, 8
        %s697 = scalar_lea.vmem %s1, %s696
      $region112: #{_lambda_.3} parent=103 // pred_fallthru
        _
      // Predicated region
      $region113: #{_lambda_.3} parent=103 // pred_check
        %p698 = pneg %p103
      $region114: #{_lambda_.3} parent=103 // pred_check_branch
        %700 = sbr.rel (%p698) target = $region116
      $region115: #{_lambda_.3} parent=103 // pred_region
        %p701 = scmp.lt.s32.totalorder %s31, 1
        %s702 = scalar_select %p701, %s31, 1
        %s703 = smul.addr %s702, 2
        %s704 = smul.addr %s703, 8
        %s705 = scalar_lea.vmem %s2, %s704
      $region116: #{_lambda_.3} parent=103 // pred_fallthru
        _
    $region104: #{_lambda_.3} parent=5 // pred_fallthru
      _
    %p706 = scmp.le.s32.totalorder 1, %s31
    %p707 = scmp.lt.s32.totalorder %s31, 3
    %p708 = pnand %p706, %p707
    %p709 = pneg %p708
    // Predicated region
    $region117: #{_lambda_.3} parent=5 // pred_check
      _
    $region118: #{_lambda_.3} parent=5 // pred_check_branch
      %711 = sbr.rel (%p708) target = $region120
    $region119: #{_lambda_.3} parent=5 // pred_region
      %s712 = ssub.s32 %s31, 1
      %p713 = scmp.lt.s32.totalorder %s36, 1
      %s714 = scalar_select %p713, %s36, 1
      %s715 = smul.addr %s714, 2
      %s716 = smul.addr %s715, 8
      %s717 = scalar_lea.vmem %s0, %s716
      %p718 = pneg %p57
      %p719 = pneg %p54
      %p720 = scmp.lt.s32.totalorder %s36, 1
      %s721 = scalar_select %p720, %s36, 1
      %s722 = smul.addr %s721, 2
      %s723 = smul.addr %s722, 8
      %s724 = scalar_lea.vmem %s1, %s723
      %p725 = pneg %p83
      %p726 = pneg %p80
      %p727 = scmp.lt.s32.totalorder %s36, 1
      %s728 = scalar_select %p727, %s36, 1
      %s729 = smul.addr %s728, 2
      %s730 = smul.addr %s729, 8
      %s731 = scalar_lea.vmem %s2, %s730
      %p732 = pneg %p109
      %p733 = pneg %p106
      %p734 = pneg %p130
      %p735 = pneg %p127
      %p736 = pneg %p151
      %p737 = pneg %p148
      %p738 = pneg %p172
      %p739 = pneg %p169
      %p740 = pneg %p193
      %p741 = pneg %p190
      %p742 = pneg %p214
      %p743 = pneg %p211
      %p744 = pneg %p235
      %p745 = pneg %p232
      %p746 = pneg %p256
      %p747 = pneg %p253
      %p748 = pneg %p277
      %p749 = pneg %p274
      %p750 = pneg %p298
      %p751 = pneg %p295
      %p752 = pneg %p319
      %p753 = pneg %p316
      %p754 = pneg %p340
      %p755 = pneg %p337
      %p756 = pneg %p361
      %p757 = pneg %p358
      %p758 = pneg %p382
      %p759 = pneg %p379
      %p760 = pneg %p403
      %p761 = pneg %p400
      %p762 = pneg %p424
      %p763 = pneg %p421
      %p764 = pneg %p445
      %p765 = pneg %p442
      %p766 = pneg %p466
      %p767 = pneg %p463
      %p768 = pneg %p487
      %p769 = pneg %p484
      %p770 = pneg %p508
      %p771 = pneg %p505
      %p772 = pneg %p529
      %p773 = pneg %p526
      %p774 = pneg %p550
      %p775 = pneg %p547
      %p776 = pneg %p571
      %p777 = pneg %p568
      %p778 = pneg %p597
      %p779 = pneg %p594
      %p780 = scmp.lt.s32.totalorder %s36, 1
      %s781 = scalar_select %p780, %s36, 1
      %s782 = smul.addr %s781, 8
      %s783 = scalar_lea.vmem %s25, %s782
      %p784 = scmp.lt.s32.totalorder %s36, 1
      %s785 = scalar_select %p784, %s36, 1
      %s786 = smul.addr %s785, 2
      %s787 = smul.addr %s786, 8
      %s788 = scalar_lea.vmem %s0, %s787
      %p789 = scmp.lt.s32.totalorder %s36, 1
      %s790 = scalar_select %p789, %s36, 1
      %s791 = smul.addr %s790, 2
      %s792 = smul.addr %s791, 8
      %s793 = scalar_lea.vmem %s1, %s792
      %p794 = scmp.lt.s32.totalorder %s36, 1
      %s795 = scalar_select %p794, %s36, 1
      %s796 = smul.addr %s795, 2
      %s797 = smul.addr %s796, 8
      %s798 = scalar_lea.vmem %s2, %s797
      %p799 = scmp.lt.s32.totalorder %s36, 1
      %s800 = scalar_select %p799, %s36, 1
      %s801 = smul.addr %s800, 8
      %s802 = scalar_lea.vmem %s25, %s801
      %v803 = vld [vmem:[%s788] sm:$0xff]
      %v804 = vld [vmem:[%s788 + $0x8] sm:$0x3f]
      %v805 = vld [vmem:[%s793] sm:$0xff]
      %v806 = vld [vmem:[%s793 + $0x8] sm:$0x3f]
      %v807 = vld [vmem:[%s798] sm:$0xff]
      %v808 = vld [vmem:[%s798 + $0x8] sm:$0x3f]
      %v809 = vld [vmem:[%s3] sm:$0xff]
      %v810 = vld [vmem:[%s3 + $0x8] sm:$0x1]
      %v811 = vld [vmem:[%s5] sm:$0xf]
      %s812 = scalar_lea.vmem %s3, 16
      %v813 = vld [vmem:[%s812] sm:$0xff]
      %v814 = vld [vmem:[%s812 + $0x8] sm:$0x1]
      %vm817 = vcmask 1046528
      %v818 = vrot.slane %v803, 1
      %v819 = vrot.slane %v804, 1
      %v820 = vsel %vm817, %v818, %v819
      %vm821 = vcmask 72704
      %v822 = vsel %vm821, %v820, 0
      %vm824 = vcmask 1040384
      %v826 = vsel %vm824, %v814, 0
      %828 = vmatprep.subr.mxu0 0.0
      %829 = vmatpush1.msra.mxu0 0.0
      %830 = vmatprep.subr.mxu0 0.0
      %831 = vmatpush1.msra.mxu0 0.0
      %832 = vmatprep.subr.mxu0 0.0
      %833 = vmatpush1.msra.mxu0 0.0
      %834 = vmatprep.subr.mxu0 0.0
      %835 = vmatpush1.msra.mxu0 0.0
      %836 = vmatprep.subr.mxu0 0.0
      %837 = vmatpush1.msra.mxu0 0.0
      %838 = vmatprep.subr.mxu0 0.0
      %839 = vmatpush1.msra.mxu0 0.0
      %840 = vmatprep.subr.mxu0 0.0
      %841 = vmatpush1.msra.mxu0 0.0
      %842 = vmatprep.subr.mxu0 0.0
      %843 = vmatpush1.msra.mxu0 0.0
      %844 = vmatprep.subr.mxu0 0.0
      %845 = vmatpush1.msra.mxu0 0.0
      %846 = vmatprep.subr.mxu0 0.0
      %847 = vmatpush1.msra.mxu0 0.0
      %848 = vmatprep.subr.mxu0 0.0
      %849 = vmatpush1.msra.mxu0 0.0
      %850 = vmatprep.subr.mxu0 0.0
      %851 = vmatpush1.msra.mxu0 0.0
      %852 = vmatprep.subr.mxu0 0.0
      %853 = vmatpush1.msra.mxu0 0.0
      %854 = vmatprep.subr.mxu0 0.0
      %855 = vmatpush1.msra.mxu0 0.0
      %856 = vmatprep.subr.mxu0 0.0
      %857 = vmatpush1.msra.mxu0 %v826
      %858 = vmatprep.subr.mxu0 0.0
      %859 = vmatpush1.msra.mxu0 %v813
      %860 = vmatprep.subr.mxu0 0.0
      %861 = vmatpush2.msra.mxu0 0.0
      %862 = vmatprep.subr.mxu0 0.0
      %863 = vmatpush2.msra.mxu0 0.0
      %864 = vmatprep.subr.mxu0 0.0
      %865 = vmatpush2.msra.mxu0 0.0
      %866 = vmatprep.subr.mxu0 0.0
      %867 = vmatpush2.msra.mxu0 0.0
      %868 = vmatprep.subr.mxu0 0.0
      %869 = vmatpush2.msra.mxu0 0.0
      %870 = vmatprep.subr.mxu0 0.0
      %871 = vmatpush2.msra.mxu0 0.0
      %872 = vmatprep.subr.mxu0 0.0
      %873 = vmatpush2.msra.mxu0 0.0
      %874 = vmatprep.subr.mxu0 0.0
      %875 = vmatpush2.msra.mxu0 0.0
      %876 = vmatprep.subr.mxu0 0.0
      %877 = vmatpush2.msra.mxu0 0.0
      %878 = vmatprep.subr.mxu0 0.0
      %879 = vmatpush2.msra.mxu0 0.0
      %880 = vmatprep.subr.mxu0 0.0
      %881 = vmatpush2.msra.mxu0 0.0
      %882 = vmatprep.subr.mxu0 0.0
      %883 = vmatpush2.msra.mxu0 0.0
      %884 = vmatprep.subr.mxu0 0.0
      %885 = vmatpush2.msra.mxu0 0.0
      %886 = vmatprep.subr.mxu0 0.0
      %887 = vmatpush2.msra.mxu0 0.0
      %888 = vmatprep.subr.mxu0 0.0
      %889 = vmatpush2.msra.mxu0 0.0
      %890 = vmatprep.subr.mxu0 0.0
      %891 = vmatpush2.msra.mxu0 0.0
      %892 = vmatprep.mubr.f32.mxu0 0.0
      %893 = vmatmul.mubr.f32.gmra.mxu0 %v822
      %v894 = vpop.f32.mrf.mxu0
      %v895 = vadd.f32 0.0, %v894
      %v896 = vpop.f32.mrf.mxu0
      %897 = vdwg.mxu0
      %v898 = vsel %vm821, %v803, 0
      %v901 = vsel %vm824, %v810, 0
      %903 = vmatprep.subr.mxu0 0.0
      %904 = vmatpush1.msra.mxu0 0.0
      %905 = vmatprep.subr.mxu0 0.0
      %906 = vmatpush1.msra.mxu0 0.0
      %907 = vmatprep.subr.mxu0 0.0
      %908 = vmatpush1.msra.mxu0 0.0
      %909 = vmatprep.subr.mxu0 0.0
      %910 = vmatpush1.msra.mxu0 0.0
      %911 = vmatprep.subr.mxu0 0.0
      %912 = vmatpush1.msra.mxu0 0.0
      %913 = vmatprep.subr.mxu0 0.0
      %914 = vmatpush1.msra.mxu0 0.0
      %915 = vmatprep.subr.mxu0 0.0
      %916 = vmatpush1.msra.mxu0 0.0
      %917 = vmatprep.subr.mxu0 0.0
      %918 = vmatpush1.msra.mxu0 0.0
      %919 = vmatprep.subr.mxu0 0.0
      %920 = vmatpush1.msra.mxu0 0.0
      %921 = vmatprep.subr.mxu0 0.0
      %922 = vmatpush1.msra.mxu0 0.0
      %923 = vmatprep.subr.mxu0 0.0
      %924 = vmatpush1.msra.mxu0 0.0
      %925 = vmatprep.subr.mxu0 0.0
      %926 = vmatpush1.msra.mxu0 0.0
      %927 = vmatprep.subr.mxu0 0.0
      %928 = vmatpush1.msra.mxu0 0.0
      %929 = vmatprep.subr.mxu0 0.0
      %930 = vmatpush1.msra.mxu0 0.0
      %931 = vmatprep.subr.mxu0 0.0
      %932 = vmatpush1.msra.mxu0 %v901
      %933 = vmatprep.subr.mxu0 0.0
      %934 = vmatpush1.msra.mxu0 %v809
      %935 = vmatprep.subr.mxu0 0.0
      %936 = vmatpush2.msra.mxu0 0.0
      %937 = vmatprep.subr.mxu0 0.0
      %938 = vmatpush2.msra.mxu0 0.0
      %939 = vmatprep.subr.mxu0 0.0
      %940 = vmatpush2.msra.mxu0 0.0
      %941 = vmatprep.subr.mxu0 0.0
      %942 = vmatpush2.msra.mxu0 0.0
      %943 = vmatprep.subr.mxu0 0.0
      %944 = vmatpush2.msra.mxu0 0.0
      %945 = vmatprep.subr.mxu0 0.0
      %946 = vmatpush2.msra.mxu0 0.0
      %947 = vmatprep.subr.mxu0 0.0
      %948 = vmatpush2.msra.mxu0 0.0
      %949 = vmatprep.subr.mxu0 0.0
      %950 = vmatpush2.msra.mxu0 0.0
      %951 = vmatprep.subr.mxu0 0.0
      %952 = vmatpush2.msra.mxu0 0.0
      %953 = vmatprep.subr.mxu0 0.0
      %954 = vmatpush2.msra.mxu0 0.0
      %955 = vmatprep.subr.mxu0 0.0
      %956 = vmatpush2.msra.mxu0 0.0
      %957 = vmatprep.subr.mxu0 0.0
      %958 = vmatpush2.msra.mxu0 0.0
      %959 = vmatprep.subr.mxu0 0.0
      %960 = vmatpush2.msra.mxu0 0.0
      %961 = vmatprep.subr.mxu0 0.0
      %962 = vmatpush2.msra.mxu0 0.0
      %963 = vmatprep.subr.mxu0 0.0
      %964 = vmatpush2.msra.mxu0 0.0
      %965 = vmatprep.subr.mxu0 0.0
      %966 = vmatpush2.msra.mxu0 0.0
      %967 = vmatprep.mubr.f32.mxu0 0.0
      %968 = vmatmul.mubr.f32.gmra.mxu0 %v898
      %v969 = vpop.f32.mrf.mxu0
      %v970 = vadd.f32 %v895, %v969
      %v971 = vpop.f32.mrf.mxu0
      %972 = vdwg.mxu0
      %v975 = vrot.slane %v805, 1
      %v976 = vrot.slane %v806, 1
      %v977 = vsel %vm817, %v975, %v976
      %v978 = vsel %vm821, %v977, 0
      %980 = vmatprep.subr.mxu0 0.0
      %981 = vmatpush1.msra.mxu0 0.0
      %982 = vmatprep.subr.mxu0 0.0
      %983 = vmatpush1.msra.mxu0 0.0
      %984 = vmatprep.subr.mxu0 0.0
      %985 = vmatpush1.msra.mxu0 0.0
      %986 = vmatprep.subr.mxu0 0.0
      %987 = vmatpush1.msra.mxu0 0.0
      %988 = vmatprep.subr.mxu0 0.0
      %989 = vmatpush1.msra.mxu0 0.0
      %990 = vmatprep.subr.mxu0 0.0
      %991 = vmatpush1.msra.mxu0 0.0
      %992 = vmatprep.subr.mxu0 0.0
      %993 = vmatpush1.msra.mxu0 0.0
      %994 = vmatprep.subr.mxu0 0.0
      %995 = vmatpush1.msra.mxu0 0.0
      %996 = vmatprep.subr.mxu0 0.0
      %997 = vmatpush1.msra.mxu0 0.0
      %998 = vmatprep.subr.mxu0 0.0
      %999 = vmatpush1.msra.mxu0 0.0
      %1000 = vmatprep.subr.mxu0 0.0
      %1001 = vmatpush1.msra.mxu0 0.0
      %1002 = vmatprep.subr.mxu0 0.0
      %1003 = vmatpush1.msra.mxu0 0.0
      %1004 = vmatprep.subr.mxu0 0.0
      %1005 = vmatpush1.msra.mxu0 0.0
      %1006 = vmatprep.subr.mxu0 0.0
      %1007 = vmatpush1.msra.mxu0 0.0
      %1008 = vmatprep.subr.mxu0 0.0
      %1009 = vmatpush1.msra.mxu0 %v826
      %1010 = vmatprep.subr.mxu0 0.0
      %1011 = vmatpush1.msra.mxu0 %v813
      %1012 = vmatprep.subr.mxu0 0.0
      %1013 = vmatpush2.msra.mxu0 0.0
      %1014 = vmatprep.subr.mxu0 0.0
      %1015 = vmatpush2.msra.mxu0 0.0
      %1016 = vmatprep.subr.mxu0 0.0
      %1017 = vmatpush2.msra.mxu0 0.0
      %1018 = vmatprep.subr.mxu0 0.0
      %1019 = vmatpush2.msra.mxu0 0.0
      %1020 = vmatprep.subr.mxu0 0.0
      %1021 = vmatpush2.msra.mxu0 0.0
      %1022 = vmatprep.subr.mxu0 0.0
      %1023 = vmatpush2.msra.mxu0 0.0
      %1024 = vmatprep.subr.mxu0 0.0
      %1025 = vmatpush2.msra.mxu0 0.0
      %1026 = vmatprep.subr.mxu0 0.0
      %1027 = vmatpush2.msra.mxu0 0.0
      %1028 = vmatprep.subr.mxu0 0.0
      %1029 = vmatpush2.msra.mxu0 0.0
      %1030 = vmatprep.subr.mxu0 0.0
      %1031 = vmatpush2.msra.mxu0 0.0
      %1032 = vmatprep.subr.mxu0 0.0
      %1033 = vmatpush2.msra.mxu0 0.0
      %1034 = vmatprep.subr.mxu0 0.0
      %1035 = vmatpush2.msra.mxu0 0.0
      %1036 = vmatprep.subr.mxu0 0.0
      %1037 = vmatpush2.msra.mxu0 0.0
      %1038 = vmatprep.subr.mxu0 0.0
      %1039 = vmatpush2.msra.mxu0 0.0
      %1040 = vmatprep.subr.mxu0 0.0
      %1041 = vmatpush2.msra.mxu0 0.0
      %1042 = vmatprep.subr.mxu0 0.0
      %1043 = vmatpush2.msra.mxu0 0.0
      %1044 = vmatprep.mubr.f32.mxu0 0.0
      %1045 = vmatmul.mubr.f32.gmra.mxu0 %v978
      %v1046 = vpop.f32.mrf.mxu0
      %v1047 = vadd.f32 0.0, %v1046
      %v1048 = vpop.f32.mrf.mxu0
      %1049 = vdwg.mxu0
      %v1050 = vsel %vm821, %v805, 0
      %1052 = vmatprep.subr.mxu0 0.0
      %1053 = vmatpush1.msra.mxu0 0.0
      %1054 = vmatprep.subr.mxu0 0.0
      %1055 = vmatpush1.msra.mxu0 0.0
      %1056 = vmatprep.subr.mxu0 0.0
      %1057 = vmatpush1.msra.mxu0 0.0
      %1058 = vmatprep.subr.mxu0 0.0
      %1059 = vmatpush1.msra.mxu0 0.0
      %1060 = vmatprep.subr.mxu0 0.0
      %1061 = vmatpush1.msra.mxu0 0.0
      %1062 = vmatprep.subr.mxu0 0.0
      %1063 = vmatpush1.msra.mxu0 0.0
      %1064 = vmatprep.subr.mxu0 0.0
      %1065 = vmatpush1.msra.mxu0 0.0
      %1066 = vmatprep.subr.mxu0 0.0
      %1067 = vmatpush1.msra.mxu0 0.0
      %1068 = vmatprep.subr.mxu0 0.0
      %1069 = vmatpush1.msra.mxu0 0.0
      %1070 = vmatprep.subr.mxu0 0.0
      %1071 = vmatpush1.msra.mxu0 0.0
      %1072 = vmatprep.subr.mxu0 0.0
      %1073 = vmatpush1.msra.mxu0 0.0
      %1074 = vmatprep.subr.mxu0 0.0
      %1075 = vmatpush1.msra.mxu0 0.0
      %1076 = vmatprep.subr.mxu0 0.0
      %1077 = vmatpush1.msra.mxu0 0.0
      %1078 = vmatprep.subr.mxu0 0.0
      %1079 = vmatpush1.msra.mxu0 0.0
      %1080 = vmatprep.subr.mxu0 0.0
      %1081 = vmatpush1.msra.mxu0 %v901
      %1082 = vmatprep.subr.mxu0 0.0
      %1083 = vmatpush1.msra.mxu0 %v809
      %1084 = vmatprep.subr.mxu0 0.0
      %1085 = vmatpush2.msra.mxu0 0.0
      %1086 = vmatprep.subr.mxu0 0.0
      %1087 = vmatpush2.msra.mxu0 0.0
      %1088 = vmatprep.subr.mxu0 0.0
      %1089 = vmatpush2.msra.mxu0 0.0
      %1090 = vmatprep.subr.mxu0 0.0
      %1091 = vmatpush2.msra.mxu0 0.0
      %1092 = vmatprep.subr.mxu0 0.0
      %1093 = vmatpush2.msra.mxu0 0.0
      %1094 = vmatprep.subr.mxu0 0.0
      %1095 = vmatpush2.msra.mxu0 0.0
      %1096 = vmatprep.subr.mxu0 0.0
      %1097 = vmatpush2.msra.mxu0 0.0
      %1098 = vmatprep.subr.mxu0 0.0
      %1099 = vmatpush2.msra.mxu0 0.0
      %1100 = vmatprep.subr.mxu0 0.0
      %1101 = vmatpush2.msra.mxu0 0.0
      %1102 = vmatprep.subr.mxu0 0.0
      %1103 = vmatpush2.msra.mxu0 0.0
      %1104 = vmatprep.subr.mxu0 0.0
      %1105 = vmatpush2.msra.mxu0 0.0
      %1106 = vmatprep.subr.mxu0 0.0
      %1107 = vmatpush2.msra.mxu0 0.0
      %1108 = vmatprep.subr.mxu0 0.0
      %1109 = vmatpush2.msra.mxu0 0.0
      %1110 = vmatprep.subr.mxu0 0.0
      %1111 = vmatpush2.msra.mxu0 0.0
      %1112 = vmatprep.subr.mxu0 0.0
      %1113 = vmatpush2.msra.mxu0 0.0
      %1114 = vmatprep.subr.mxu0 0.0
      %1115 = vmatpush2.msra.mxu0 0.0
      %1116 = vmatprep.mubr.f32.mxu0 0.0
      %1117 = vmatmul.mubr.f32.gmra.mxu0 %v1050
      %v1118 = vpop.f32.mrf.mxu0
      %v1119 = vadd.f32 %v1047, %v1118
      %v1120 = vpop.f32.mrf.mxu0
      %1121 = vdwg.mxu0
      %s1122 = scalar_lea.vmem %s5, 4
      %v1123 = vld [vmem:[%s1122] sm:$0xf]
      %v1126 = vrot.slane %v807, 1
      %v1127 = vrot.slane %v808, 1
      %v1128 = vsel %vm817, %v1126, %v1127
      %vm1129 = vcmask 31744
      %v1130 = vsel %vm1129, %v1128, 0
      %vm1132 = vcmask 1043456
      %v1134 = vsel %vm1132, %v1123, 0
      %1136 = vmatprep.subr.mxu0 0.0
      %1137 = vmatpush1.msra.mxu0 0.0
      %1138 = vmatprep.subr.mxu0 0.0
      %1139 = vmatpush1.msra.mxu0 0.0
      %1140 = vmatprep.subr.mxu0 0.0
      %1141 = vmatpush1.msra.mxu0 0.0
      %1142 = vmatprep.subr.mxu0 0.0
      %1143 = vmatpush1.msra.mxu0 0.0
      %1144 = vmatprep.subr.mxu0 0.0
      %1145 = vmatpush1.msra.mxu0 0.0
      %1146 = vmatprep.subr.mxu0 0.0
      %1147 = vmatpush1.msra.mxu0 0.0
      %1148 = vmatprep.subr.mxu0 0.0
      %1149 = vmatpush1.msra.mxu0 0.0
      %1150 = vmatprep.subr.mxu0 0.0
      %1151 = vmatpush1.msra.mxu0 0.0
      %1152 = vmatprep.subr.mxu0 0.0
      %1153 = vmatpush1.msra.mxu0 0.0
      %1154 = vmatprep.subr.mxu0 0.0
      %1155 = vmatpush1.msra.mxu0 0.0
      %1156 = vmatprep.subr.mxu0 0.0
      %1157 = vmatpush1.msra.mxu0 0.0
      %1158 = vmatprep.subr.mxu0 0.0
      %1159 = vmatpush1.msra.mxu0 0.0
      %1160 = vmatprep.subr.mxu0 0.0
      %1161 = vmatpush1.msra.mxu0 0.0
      %1162 = vmatprep.subr.mxu0 0.0
      %1163 = vmatpush1.msra.mxu0 0.0
      %1164 = vmatprep.subr.mxu0 0.0
      %1165 = vmatpush1.msra.mxu0 0.0
      %1166 = vmatprep.subr.mxu0 0.0
      %1167 = vmatpush1.msra.mxu0 %v1134
      %1168 = vmatprep.subr.mxu0 0.0
      %1169 = vmatpush2.msra.mxu0 0.0
      %1170 = vmatprep.subr.mxu0 0.0
      %1171 = vmatpush2.msra.mxu0 0.0
      %1172 = vmatprep.subr.mxu0 0.0
      %1173 = vmatpush2.msra.mxu0 0.0
      %1174 = vmatprep.subr.mxu0 0.0
      %1175 = vmatpush2.msra.mxu0 0.0
      %1176 = vmatprep.subr.mxu0 0.0
      %1177 = vmatpush2.msra.mxu0 0.0
      %1178 = vmatprep.subr.mxu0 0.0
      %1179 = vmatpush2.msra.mxu0 0.0
      %1180 = vmatprep.subr.mxu0 0.0
      %1181 = vmatpush2.msra.mxu0 0.0
      %1182 = vmatprep.subr.mxu0 0.0
      %1183 = vmatpush2.msra.mxu0 0.0
      %1184 = vmatprep.subr.mxu0 0.0
      %1185 = vmatpush2.msra.mxu0 0.0
      %1186 = vmatprep.subr.mxu0 0.0
      %1187 = vmatpush2.msra.mxu0 0.0
      %1188 = vmatprep.subr.mxu0 0.0
      %1189 = vmatpush2.msra.mxu0 0.0
      %1190 = vmatprep.subr.mxu0 0.0
      %1191 = vmatpush2.msra.mxu0 0.0
      %1192 = vmatprep.subr.mxu0 0.0
      %1193 = vmatpush2.msra.mxu0 0.0
      %1194 = vmatprep.subr.mxu0 0.0
      %1195 = vmatpush2.msra.mxu0 0.0
      %1196 = vmatprep.subr.mxu0 0.0
      %1197 = vmatpush2.msra.mxu0 0.0
      %1198 = vmatprep.subr.mxu0 0.0
      %1199 = vmatpush2.msra.mxu0 0.0
      %1200 = vmatprep.mubr.f32.mxu0 0.0
      %1201 = vmatmul.mubr.f32.gmra.mxu0 %v1130
      %v1202 = vpop.f32.mrf.mxu0
      %v1203 = vadd.f32 0.0, %v1202
      %v1204 = vpop.f32.mrf.mxu0
      %1205 = vdwg.mxu0
      %v1206 = vsel %vm1129, %v807, 0
      %v1209 = vsel %vm1132, %v811, 0
      %1211 = vmatprep.subr.mxu0 0.0
      %1212 = vmatpush1.msra.mxu0 0.0
      %1213 = vmatprep.subr.mxu0 0.0
      %1214 = vmatpush1.msra.mxu0 0.0
      %1215 = vmatprep.subr.mxu0 0.0
      %1216 = vmatpush1.msra.mxu0 0.0
      %1217 = vmatprep.subr.mxu0 0.0
      %1218 = vmatpush1.msra.mxu0 0.0
      %1219 = vmatprep.subr.mxu0 0.0
      %1220 = vmatpush1.msra.mxu0 0.0
      %1221 = vmatprep.subr.mxu0 0.0
      %1222 = vmatpush1.msra.mxu0 0.0
      %1223 = vmatprep.subr.mxu0 0.0
      %1224 = vmatpush1.msra.mxu0 0.0
      %1225 = vmatprep.subr.mxu0 0.0
      %1226 = vmatpush1.msra.mxu0 0.0
      %1227 = vmatprep.subr.mxu0 0.0
      %1228 = vmatpush1.msra.mxu0 0.0
      %1229 = vmatprep.subr.mxu0 0.0
      %1230 = vmatpush1.msra.mxu0 0.0
      %1231 = vmatprep.subr.mxu0 0.0
      %1232 = vmatpush1.msra.mxu0 0.0
      %1233 = vmatprep.subr.mxu0 0.0
      %1234 = vmatpush1.msra.mxu0 0.0
      %1235 = vmatprep.subr.mxu0 0.0
      %1236 = vmatpush1.msra.mxu0 0.0
      %1237 = vmatprep.subr.mxu0 0.0
      %1238 = vmatpush1.msra.mxu0 0.0
      %1239 = vmatprep.subr.mxu0 0.0
      %1240 = vmatpush1.msra.mxu0 0.0
      %1241 = vmatprep.subr.mxu0 0.0
      %1242 = vmatpush1.msra.mxu0 %v1209
      %1243 = vmatprep.subr.mxu0 0.0
      %1244 = vmatpush2.msra.mxu0 0.0
      %1245 = vmatprep.subr.mxu0 0.0
      %1246 = vmatpush2.msra.mxu0 0.0
      %1247 = vmatprep.subr.mxu0 0.0
      %1248 = vmatpush2.msra.mxu0 0.0
      %1249 = vmatprep.subr.mxu0 0.0
      %1250 = vmatpush2.msra.mxu0 0.0
      %1251 = vmatprep.subr.mxu0 0.0
      %1252 = vmatpush2.msra.mxu0 0.0
      %1253 = vmatprep.subr.mxu0 0.0
      %1254 = vmatpush2.msra.mxu0 0.0
      %1255 = vmatprep.subr.mxu0 0.0
      %1256 = vmatpush2.msra.mxu0 0.0
      %1257 = vmatprep.subr.mxu0 0.0
      %1258 = vmatpush2.msra.mxu0 0.0
      %1259 = vmatprep.subr.mxu0 0.0
      %1260 = vmatpush2.msra.mxu0 0.0
      %1261 = vmatprep.subr.mxu0 0.0
      %1262 = vmatpush2.msra.mxu0 0.0
      %1263 = vmatprep.subr.mxu0 0.0
      %1264 = vmatpush2.msra.mxu0 0.0
      %1265 = vmatprep.subr.mxu0 0.0
      %1266 = vmatpush2.msra.mxu0 0.0
      %1267 = vmatprep.subr.mxu0 0.0
      %1268 = vmatpush2.msra.mxu0 0.0
      %1269 = vmatprep.subr.mxu0 0.0
      %1270 = vmatpush2.msra.mxu0 0.0
      %1271 = vmatprep.subr.mxu0 0.0
      %1272 = vmatpush2.msra.mxu0 0.0
      %1273 = vmatprep.subr.mxu0 0.0
      %1274 = vmatpush2.msra.mxu0 0.0
      %1275 = vmatprep.mubr.f32.mxu0 0.0
      %1276 = vmatmul.mubr.f32.gmra.mxu0 %v1206
      %v1277 = vpop.f32.mrf.mxu0
      %v1278 = vadd.f32 %v1203, %v1277
      %v1279 = vpop.f32.mrf.mxu0
      %1280 = vdwg.mxu0
      %s1281 = scalar_lea.vmem %s3, 32
      %v1282 = vld [vmem:[%s1281] sm:$0xff]
      %v1283 = vld [vmem:[%s1281 + $0x8] sm:$0x1]
      %vm1284 = vcmask 1045504
      %v1285 = vrot.slane %v803, 2
      %v1286 = vrot.slane %v804, 2
      %v1287 = vsel %vm1284, %v1285, %v1286
      %v1288 = vsel %vm821, %v1287, 0
      %v1291 = vsel %vm824, %v1283, 0
      %1293 = vmatprep.subr.mxu0 0.0
      %1294 = vmatpush1.msra.mxu0 0.0
      %1295 = vmatprep.subr.mxu0 0.0
      %1296 = vmatpush1.msra.mxu0 0.0
      %1297 = vmatprep.subr.mxu0 0.0
      %1298 = vmatpush1.msra.mxu0 0.0
      %1299 = vmatprep.subr.mxu0 0.0
      %1300 = vmatpush1.msra.mxu0 0.0
      %1301 = vmatprep.subr.mxu0 0.0
      %1302 = vmatpush1.msra.mxu0 0.0
      %1303 = vmatprep.subr.mxu0 0.0
      %1304 = vmatpush1.msra.mxu0 0.0
      %1305 = vmatprep.subr.mxu0 0.0
      %1306 = vmatpush1.msra.mxu0 0.0
      %1307 = vmatprep.subr.mxu0 0.0
      %1308 = vmatpush1.msra.mxu0 0.0
      %1309 = vmatprep.subr.mxu0 0.0
      %1310 = vmatpush1.msra.mxu0 0.0
      %1311 = vmatprep.subr.mxu0 0.0
      %1312 = vmatpush1.msra.mxu0 0.0
      %1313 = vmatprep.subr.mxu0 0.0
      %1314 = vmatpush1.msra.mxu0 0.0
      %1315 = vmatprep.subr.mxu0 0.0
      %1316 = vmatpush1.msra.mxu0 0.0
      %1317 = vmatprep.subr.mxu0 0.0
      %1318 = vmatpush1.msra.mxu0 0.0
      %1319 = vmatprep.subr.mxu0 0.0
      %1320 = vmatpush1.msra.mxu0 0.0
      %1321 = vmatprep.subr.mxu0 0.0
      %1322 = vmatpush1.msra.mxu0 %v1291
      %1323 = vmatprep.subr.mxu0 0.0
      %1324 = vmatpush1.msra.mxu0 %v1282
      %1325 = vmatprep.subr.mxu0 0.0
      %1326 = vmatpush2.msra.mxu0 0.0
      %1327 = vmatprep.subr.mxu0 0.0
      %1328 = vmatpush2.msra.mxu0 0.0
      %1329 = vmatprep.subr.mxu0 0.0
      %1330 = vmatpush2.msra.mxu0 0.0
      %1331 = vmatprep.subr.mxu0 0.0
      %1332 = vmatpush2.msra.mxu0 0.0
      %1333 = vmatprep.subr.mxu0 0.0
      %1334 = vmatpush2.msra.mxu0 0.0
      %1335 = vmatprep.subr.mxu0 0.0
      %1336 = vmatpush2.msra.mxu0 0.0
      %1337 = vmatprep.subr.mxu0 0.0
      %1338 = vmatpush2.msra.mxu0 0.0
      %1339 = vmatprep.subr.mxu0 0.0
      %1340 = vmatpush2.msra.mxu0 0.0
      %1341 = vmatprep.subr.mxu0 0.0
      %1342 = vmatpush2.msra.mxu0 0.0
      %1343 = vmatprep.subr.mxu0 0.0
      %1344 = vmatpush2.msra.mxu0 0.0
      %1345 = vmatprep.subr.mxu0 0.0
      %1346 = vmatpush2.msra.mxu0 0.0
      %1347 = vmatprep.subr.mxu0 0.0
      %1348 = vmatpush2.msra.mxu0 0.0
      %1349 = vmatprep.subr.mxu0 0.0
      %1350 = vmatpush2.msra.mxu0 0.0
      %1351 = vmatprep.subr.mxu0 0.0
      %1352 = vmatpush2.msra.mxu0 0.0
      %1353 = vmatprep.subr.mxu0 0.0
      %1354 = vmatpush2.msra.mxu0 0.0
      %1355 = vmatprep.subr.mxu0 0.0
      %1356 = vmatpush2.msra.mxu0 0.0
      %1357 = vmatprep.mubr.f32.mxu0 0.0
      %1358 = vmatmul.mubr.f32.gmra.mxu0 %v1288
      %v1359 = vpop.f32.mrf.mxu0
      %v1360 = vadd.f32 0.0, %v1359
      %v1361 = vpop.f32.mrf.mxu0
      %1362 = vdwg.mxu0
      %v1363 = vadd.f32 %v970, %v1360
      %v1364 = vrot.slane %v805, 2
      %v1365 = vrot.slane %v806, 2
      %v1366 = vsel %vm1284, %v1364, %v1365
      %v1367 = vsel %vm821, %v1366, 0
      %1369 = vmatprep.subr.mxu0 0.0
      %1370 = vmatpush1.msra.mxu0 0.0
      %1371 = vmatprep.subr.mxu0 0.0
      %1372 = vmatpush1.msra.mxu0 0.0
      %1373 = vmatprep.subr.mxu0 0.0
      %1374 = vmatpush1.msra.mxu0 0.0
      %1375 = vmatprep.subr.mxu0 0.0
      %1376 = vmatpush1.msra.mxu0 0.0
      %1377 = vmatprep.subr.mxu0 0.0
      %1378 = vmatpush1.msra.mxu0 0.0
      %1379 = vmatprep.subr.mxu0 0.0
      %1380 = vmatpush1.msra.mxu0 0.0
      %1381 = vmatprep.subr.mxu0 0.0
      %1382 = vmatpush1.msra.mxu0 0.0
      %1383 = vmatprep.subr.mxu0 0.0
      %1384 = vmatpush1.msra.mxu0 0.0
      %1385 = vmatprep.subr.mxu0 0.0
      %1386 = vmatpush1.msra.mxu0 0.0
      %1387 = vmatprep.subr.mxu0 0.0
      %1388 = vmatpush1.msra.mxu0 0.0
      %1389 = vmatprep.subr.mxu0 0.0
      %1390 = vmatpush1.msra.mxu0 0.0
      %1391 = vmatprep.subr.mxu0 0.0
      %1392 = vmatpush1.msra.mxu0 0.0
      %1393 = vmatprep.subr.mxu0 0.0
      %1394 = vmatpush1.msra.mxu0 0.0
      %1395 = vmatprep.subr.mxu0 0.0
      %1396 = vmatpush1.msra.mxu0 0.0
      %1397 = vmatprep.subr.mxu0 0.0
      %1398 = vmatpush1.msra.mxu0 %v1291
      %1399 = vmatprep.subr.mxu0 0.0
      %1400 = vmatpush1.msra.mxu0 %v1282
      %1401 = vmatprep.subr.mxu0 0.0
      %1402 = vmatpush2.msra.mxu0 0.0
      %1403 = vmatprep.subr.mxu0 0.0
      %1404 = vmatpush2.msra.mxu0 0.0
      %1405 = vmatprep.subr.mxu0 0.0
      %1406 = vmatpush2.msra.mxu0 0.0
      %1407 = vmatprep.subr.mxu0 0.0
      %1408 = vmatpush2.msra.mxu0 0.0
      %1409 = vmatprep.subr.mxu0 0.0
      %1410 = vmatpush2.msra.mxu0 0.0
      %1411 = vmatprep.subr.mxu0 0.0
      %1412 = vmatpush2.msra.mxu0 0.0
      %1413 = vmatprep.subr.mxu0 0.0
      %1414 = vmatpush2.msra.mxu0 0.0
      %1415 = vmatprep.subr.mxu0 0.0
      %1416 = vmatpush2.msra.mxu0 0.0
      %1417 = vmatprep.subr.mxu0 0.0
      %1418 = vmatpush2.msra.mxu0 0.0
      %1419 = vmatprep.subr.mxu0 0.0
      %1420 = vmatpush2.msra.mxu0 0.0
      %1421 = vmatprep.subr.mxu0 0.0
      %1422 = vmatpush2.msra.mxu0 0.0
      %1423 = vmatprep.subr.mxu0 0.0
      %1424 = vmatpush2.msra.mxu0 0.0
      %1425 = vmatprep.subr.mxu0 0.0
      %1426 = vmatpush2.msra.mxu0 0.0
      %1427 = vmatprep.subr.mxu0 0.0
      %1428 = vmatpush2.msra.mxu0 0.0
      %1429 = vmatprep.subr.mxu0 0.0
      %1430 = vmatpush2.msra.mxu0 0.0
      %1431 = vmatprep.subr.mxu0 0.0
      %1432 = vmatpush2.msra.mxu0 0.0
      %1433 = vmatprep.mubr.f32.mxu0 0.0
      %1434 = vmatmul.mubr.f32.gmra.mxu0 %v1367
      %v1435 = vpop.f32.mrf.mxu0
      %v1436 = vadd.f32 0.0, %v1435
      %v1437 = vpop.f32.mrf.mxu0
      %1438 = vdwg.mxu0
      %v1439 = vadd.f32 %v1119, %v1436
      %s1440 = scalar_lea.vmem %s5, 8
      %v1441 = vld [vmem:[%s1440] sm:$0xf]
      %v1442 = vrot.slane %v807, 2
      %v1443 = vrot.slane %v808, 2
      %v1444 = vsel %vm1284, %v1442, %v1443
      %v1445 = vsel %vm1129, %v1444, 0
      %v1448 = vsel %vm1132, %v1441, 0
      %1450 = vmatprep.subr.mxu0 0.0
      %1451 = vmatpush1.msra.mxu0 0.0
      %1452 = vmatprep.subr.mxu0 0.0
      %1453 = vmatpush1.msra.mxu0 0.0
      %1454 = vmatprep.subr.mxu0 0.0
      %1455 = vmatpush1.msra.mxu0 0.0
      %1456 = vmatprep.subr.mxu0 0.0
      %1457 = vmatpush1.msra.mxu0 0.0
      %1458 = vmatprep.subr.mxu0 0.0
      %1459 = vmatpush1.msra.mxu0 0.0
      %1460 = vmatprep.subr.mxu0 0.0
      %1461 = vmatpush1.msra.mxu0 0.0
      %1462 = vmatprep.subr.mxu0 0.0
      %1463 = vmatpush1.msra.mxu0 0.0
      %1464 = vmatprep.subr.mxu0 0.0
      %1465 = vmatpush1.msra.mxu0 0.0
      %1466 = vmatprep.subr.mxu0 0.0
      %1467 = vmatpush1.msra.mxu0 0.0
      %1468 = vmatprep.subr.mxu0 0.0
      %1469 = vmatpush1.msra.mxu0 0.0
      %1470 = vmatprep.subr.mxu0 0.0
      %1471 = vmatpush1.msra.mxu0 0.0
      %1472 = vmatprep.subr.mxu0 0.0
      %1473 = vmatpush1.msra.mxu0 0.0
      %1474 = vmatprep.subr.mxu0 0.0
      %1475 = vmatpush1.msra.mxu0 0.0
      %1476 = vmatprep.subr.mxu0 0.0
      %1477 = vmatpush1.msra.mxu0 0.0
      %1478 = vmatprep.subr.mxu0 0.0
      %1479 = vmatpush1.msra.mxu0 0.0
      %1480 = vmatprep.subr.mxu0 0.0
      %1481 = vmatpush1.msra.mxu0 %v1448
      %1482 = vmatprep.subr.mxu0 0.0
      %1483 = vmatpush2.msra.mxu0 0.0
      %1484 = vmatprep.subr.mxu0 0.0
      %1485 = vmatpush2.msra.mxu0 0.0
      %1486 = vmatprep.subr.mxu0 0.0
      %1487 = vmatpush2.msra.mxu0 0.0
      %1488 = vmatprep.subr.mxu0 0.0
      %1489 = vmatpush2.msra.mxu0 0.0
      %1490 = vmatprep.subr.mxu0 0.0
      %1491 = vmatpush2.msra.mxu0 0.0
      %1492 = vmatprep.subr.mxu0 0.0
      %1493 = vmatpush2.msra.mxu0 0.0
      %1494 = vmatprep.subr.mxu0 0.0
      %1495 = vmatpush2.msra.mxu0 0.0
      %1496 = vmatprep.subr.mxu0 0.0
      %1497 = vmatpush2.msra.mxu0 0.0
      %1498 = vmatprep.subr.mxu0 0.0
      %1499 = vmatpush2.msra.mxu0 0.0
      %1500 = vmatprep.subr.mxu0 0.0
      %1501 = vmatpush2.msra.mxu0 0.0
      %1502 = vmatprep.subr.mxu0 0.0
      %1503 = vmatpush2.msra.mxu0 0.0
      %1504 = vmatprep.subr.mxu0 0.0
      %1505 = vmatpush2.msra.mxu0 0.0
      %1506 = vmatprep.subr.mxu0 0.0
      %1507 = vmatpush2.msra.mxu0 0.0
      %1508 = vmatprep.subr.mxu0 0.0
      %1509 = vmatpush2.msra.mxu0 0.0
      %1510 = vmatprep.subr.mxu0 0.0
      %1511 = vmatpush2.msra.mxu0 0.0
      %1512 = vmatprep.subr.mxu0 0.0
      %1513 = vmatpush2.msra.mxu0 0.0
      %1514 = vmatprep.mubr.f32.mxu0 0.0
      %1515 = vmatmul.mubr.f32.gmra.mxu0 %v1445
      %v1516 = vpop.f32.mrf.mxu0
      %v1517 = vadd.f32 0.0, %v1516
      %v1518 = vpop.f32.mrf.mxu0
      %1519 = vdwg.mxu0
      %v1520 = vadd.f32 %v1278, %v1517
      %s1521 = scalar_lea.vmem %s3, 48
      %v1522 = vld [vmem:[%s1521] sm:$0xff]
      %v1523 = vld [vmem:[%s1521 + $0x8] sm:$0x1]
      %vm1524 = vcmask 1044480
      %v1525 = vrot.slane %v803, 3
      %v1526 = vrot.slane %v804, 3
      %v1527 = vsel %vm1524, %v1525, %v1526
      %v1528 = vsel %vm821, %v1527, 0
      %v1531 = vsel %vm824, %v1523, 0
      %1533 = vmatprep.subr.mxu0 0.0
      %1534 = vmatpush1.msra.mxu0 0.0
      %1535 = vmatprep.subr.mxu0 0.0
      %1536 = vmatpush1.msra.mxu0 0.0
      %1537 = vmatprep.subr.mxu0 0.0
      %1538 = vmatpush1.msra.mxu0 0.0
      %1539 = vmatprep.subr.mxu0 0.0
      %1540 = vmatpush1.msra.mxu0 0.0
      %1541 = vmatprep.subr.mxu0 0.0
      %1542 = vmatpush1.msra.mxu0 0.0
      %1543 = vmatprep.subr.mxu0 0.0
      %1544 = vmatpush1.msra.mxu0 0.0
      %1545 = vmatprep.subr.mxu0 0.0
      %1546 = vmatpush1.msra.mxu0 0.0
      %1547 = vmatprep.subr.mxu0 0.0
      %1548 = vmatpush1.msra.mxu0 0.0
      %1549 = vmatprep.subr.mxu0 0.0
      %1550 = vmatpush1.msra.mxu0 0.0
      %1551 = vmatprep.subr.mxu0 0.0
      %1552 = vmatpush1.msra.mxu0 0.0
      %1553 = vmatprep.subr.mxu0 0.0
      %1554 = vmatpush1.msra.mxu0 0.0
      %1555 = vmatprep.subr.mxu0 0.0
      %1556 = vmatpush1.msra.mxu0 0.0
      %1557 = vmatprep.subr.mxu0 0.0
      %1558 = vmatpush1.msra.mxu0 0.0
      %1559 = vmatprep.subr.mxu0 0.0
      %1560 = vmatpush1.msra.mxu0 0.0
      %1561 = vmatprep.subr.mxu0 0.0
      %1562 = vmatpush1.msra.mxu0 %v1531
      %1563 = vmatprep.subr.mxu0 0.0
      %1564 = vmatpush1.msra.mxu0 %v1522
      %1565 = vmatprep.subr.mxu0 0.0
      %1566 = vmatpush2.msra.mxu0 0.0
      %1567 = vmatprep.subr.mxu0 0.0
      %1568 = vmatpush2.msra.mxu0 0.0
      %1569 = vmatprep.subr.mxu0 0.0
      %1570 = vmatpush2.msra.mxu0 0.0
      %1571 = vmatprep.subr.mxu0 0.0
      %1572 = vmatpush2.msra.mxu0 0.0
      %1573 = vmatprep.subr.mxu0 0.0
      %1574 = vmatpush2.msra.mxu0 0.0
      %1575 = vmatprep.subr.mxu0 0.0
      %1576 = vmatpush2.msra.mxu0 0.0
      %1577 = vmatprep.subr.mxu0 0.0
      %1578 = vmatpush2.msra.mxu0 0.0
      %1579 = vmatprep.subr.mxu0 0.0
      %1580 = vmatpush2.msra.mxu0 0.0
      %1581 = vmatprep.subr.mxu0 0.0
      %1582 = vmatpush2.msra.mxu0 0.0
      %1583 = vmatprep.subr.mxu0 0.0
      %1584 = vmatpush2.msra.mxu0 0.0
      %1585 = vmatprep.subr.mxu0 0.0
      %1586 = vmatpush2.msra.mxu0 0.0
      %1587 = vmatprep.subr.mxu0 0.0
      %1588 = vmatpush2.msra.mxu0 0.0
      %1589 = vmatprep.subr.mxu0 0.0
      %1590 = vmatpush2.msra.mxu0 0.0
      %1591 = vmatprep.subr.mxu0 0.0
      %1592 = vmatpush2.msra.mxu0 0.0
      %1593 = vmatprep.subr.mxu0 0.0
      %1594 = vmatpush2.msra.mxu0 0.0
      %1595 = vmatprep.subr.mxu0 0.0
      %1596 = vmatpush2.msra.mxu0 0.0
      %1597 = vmatprep.mubr.f32.mxu0 0.0
      %1598 = vmatmul.mubr.f32.gmra.mxu0 %v1528
      %v1599 = vpop.f32.mrf.mxu0
      %v1600 = vadd.f32 0.0, %v1599
      %v1601 = vpop.f32.mrf.mxu0
      %1602 = vdwg.mxu0
      %v1603 = vadd.f32 %v1363, %v1600
      %v1604 = vrot.slane %v805, 3
      %v1605 = vrot.slane %v806, 3
      %v1606 = vsel %vm1524, %v1604, %v1605
      %v1607 = vsel %vm821, %v1606, 0
      %1609 = vmatprep.subr.mxu0 0.0
      %1610 = vmatpush1.msra.mxu0 0.0
      %1611 = vmatprep.subr.mxu0 0.0
      %1612 = vmatpush1.msra.mxu0 0.0
      %1613 = vmatprep.subr.mxu0 0.0
      %1614 = vmatpush1.msra.mxu0 0.0
      %1615 = vmatprep.subr.mxu0 0.0
      %1616 = vmatpush1.msra.mxu0 0.0
      %1617 = vmatprep.subr.mxu0 0.0
      %1618 = vmatpush1.msra.mxu0 0.0
      %1619 = vmatprep.subr.mxu0 0.0
      %1620 = vmatpush1.msra.mxu0 0.0
      %1621 = vmatprep.subr.mxu0 0.0
      %1622 = vmatpush1.msra.mxu0 0.0
      %1623 = vmatprep.subr.mxu0 0.0
      %1624 = vmatpush1.msra.mxu0 0.0
      %1625 = vmatprep.subr.mxu0 0.0
      %1626 = vmatpush1.msra.mxu0 0.0
      %1627 = vmatprep.subr.mxu0 0.0
      %1628 = vmatpush1.msra.mxu0 0.0
      %1629 = vmatprep.subr.mxu0 0.0
      %1630 = vmatpush1.msra.mxu0 0.0
      %1631 = vmatprep.subr.mxu0 0.0
      %1632 = vmatpush1.msra.mxu0 0.0
      %1633 = vmatprep.subr.mxu0 0.0
      %1634 = vmatpush1.msra.mxu0 0.0
      %1635 = vmatprep.subr.mxu0 0.0
      %1636 = vmatpush1.msra.mxu0 0.0
      %1637 = vmatprep.subr.mxu0 0.0
      %1638 = vmatpush1.msra.mxu0 %v1531
      %1639 = vmatprep.subr.mxu0 0.0
      %1640 = vmatpush1.msra.mxu0 %v1522
      %1641 = vmatprep.subr.mxu0 0.0
      %1642 = vmatpush2.msra.mxu0 0.0
      %1643 = vmatprep.subr.mxu0 0.0
      %1644 = vmatpush2.msra.mxu0 0.0
      %1645 = vmatprep.subr.mxu0 0.0
      %1646 = vmatpush2.msra.mxu0 0.0
      %1647 = vmatprep.subr.mxu0 0.0
      %1648 = vmatpush2.msra.mxu0 0.0
      %1649 = vmatprep.subr.mxu0 0.0
      %1650 = vmatpush2.msra.mxu0 0.0
      %1651 = vmatprep.subr.mxu0 0.0
      %1652 = vmatpush2.msra.mxu0 0.0
      %1653 = vmatprep.subr.mxu0 0.0
      %1654 = vmatpush2.msra.mxu0 0.0
      %1655 = vmatprep.subr.mxu0 0.0
      %1656 = vmatpush2.msra.mxu0 0.0
      %1657 = vmatprep.subr.mxu0 0.0
      %1658 = vmatpush2.msra.mxu0 0.0
      %1659 = vmatprep.subr.mxu0 0.0
      %1660 = vmatpush2.msra.mxu0 0.0
      %1661 = vmatprep.subr.mxu0 0.0
      %1662 = vmatpush2.msra.mxu0 0.0
      %1663 = vmatprep.subr.mxu0 0.0
      %1664 = vmatpush2.msra.mxu0 0.0
      %1665 = vmatprep.subr.mxu0 0.0
      %1666 = vmatpush2.msra.mxu0 0.0
      %1667 = vmatprep.subr.mxu0 0.0
      %1668 = vmatpush2.msra.mxu0 0.0
      %1669 = vmatprep.subr.mxu0 0.0
      %1670 = vmatpush2.msra.mxu0 0.0
      %1671 = vmatprep.subr.mxu0 0.0
      %1672 = vmatpush2.msra.mxu0 0.0
      %1673 = vmatprep.mubr.f32.mxu0 0.0
      %1674 = vmatmul.mubr.f32.gmra.mxu0 %v1607
      %v1675 = vpop.f32.mrf.mxu0
      %v1676 = vadd.f32 0.0, %v1675
      %v1677 = vpop.f32.mrf.mxu0
      %1678 = vdwg.mxu0
      %v1679 = vadd.f32 %v1439, %v1676
      %s1680 = scalar_lea.vmem %s5, 12
      %v1681 = vld [vmem:[%s1680] sm:$0xf]
      %v1682 = vrot.slane %v807, 3
      %v1683 = vrot.slane %v808, 3
      %v1684 = vsel %vm1524, %v1682, %v1683
      %v1685 = vsel %vm1129, %v1684, 0
      %v1688 = vsel %vm1132, %v1681, 0
      %1690 = vmatprep.subr.mxu0 0.0
      %1691 = vmatpush1.msra.mxu0 0.0
      %1692 = vmatprep.subr.mxu0 0.0
      %1693 = vmatpush1.msra.mxu0 0.0
      %1694 = vmatprep.subr.mxu0 0.0
      %1695 = vmatpush1.msra.mxu0 0.0
      %1696 = vmatprep.subr.mxu0 0.0
      %1697 = vmatpush1.msra.mxu0 0.0
      %1698 = vmatprep.subr.mxu0 0.0
      %1699 = vmatpush1.msra.mxu0 0.0
      %1700 = vmatprep.subr.mxu0 0.0
      %1701 = vmatpush1.msra.mxu0 0.0
      %1702 = vmatprep.subr.mxu0 0.0
      %1703 = vmatpush1.msra.mxu0 0.0
      %1704 = vmatprep.subr.mxu0 0.0
      %1705 = vmatpush1.msra.mxu0 0.0
      %1706 = vmatprep.subr.mxu0 0.0
      %1707 = vmatpush1.msra.mxu0 0.0
      %1708 = vmatprep.subr.mxu0 0.0
      %1709 = vmatpush1.msra.mxu0 0.0
      %1710 = vmatprep.subr.mxu0 0.0
      %1711 = vmatpush1.msra.mxu0 0.0
      %1712 = vmatprep.subr.mxu0 0.0
      %1713 = vmatpush1.msra.mxu0 0.0
      %1714 = vmatprep.subr.mxu0 0.0
      %1715 = vmatpush1.msra.mxu0 0.0
      %1716 = vmatprep.subr.mxu0 0.0
      %1717 = vmatpush1.msra.mxu0 0.0
      %1718 = vmatprep.subr.mxu0 0.0
      %1719 = vmatpush1.msra.mxu0 0.0
      %1720 = vmatprep.subr.mxu0 0.0
      %1721 = vmatpush1.msra.mxu0 %v1688
      %1722 = vmatprep.subr.mxu0 0.0
      %1723 = vmatpush2.msra.mxu0 0.0
      %1724 = vmatprep.subr.mxu0 0.0
      %1725 = vmatpush2.msra.mxu0 0.0
      %1726 = vmatprep.subr.mxu0 0.0
      %1727 = vmatpush2.msra.mxu0 0.0
      %1728 = vmatprep.subr.mxu0 0.0
      %1729 = vmatpush2.msra.mxu0 0.0
      %1730 = vmatprep.subr.mxu0 0.0
      %1731 = vmatpush2.msra.mxu0 0.0
      %1732 = vmatprep.subr.mxu0 0.0
      %1733 = vmatpush2.msra.mxu0 0.0
      %1734 = vmatprep.subr.mxu0 0.0
      %1735 = vmatpush2.msra.mxu0 0.0
      %1736 = vmatprep.subr.mxu0 0.0
      %1737 = vmatpush2.msra.mxu0 0.0
      %1738 = vmatprep.subr.mxu0 0.0
      %1739 = vmatpush2.msra.mxu0 0.0
      %1740 = vmatprep.subr.mxu0 0.0
      %1741 = vmatpush2.msra.mxu0 0.0
      %1742 = vmatprep.subr.mxu0 0.0
      %1743 = vmatpush2.msra.mxu0 0.0
      %1744 = vmatprep.subr.mxu0 0.0
      %1745 = vmatpush2.msra.mxu0 0.0
      %1746 = vmatprep.subr.mxu0 0.0
      %1747 = vmatpush2.msra.mxu0 0.0
      %1748 = vmatprep.subr.mxu0 0.0
      %1749 = vmatpush2.msra.mxu0 0.0
      %1750 = vmatprep.subr.mxu0 0.0
      %1751 = vmatpush2.msra.mxu0 0.0
      %1752 = vmatprep.subr.mxu0 0.0
      %1753 = vmatpush2.msra.mxu0 0.0
      %1754 = vmatprep.mubr.f32.mxu0 0.0
      %1755 = vmatmul.mubr.f32.gmra.mxu0 %v1685
      %v1756 = vpop.f32.mrf.mxu0
      %v1757 = vadd.f32 0.0, %v1756
      %v1758 = vpop.f32.mrf.mxu0
      %1759 = vdwg.mxu0
      %v1760 = vadd.f32 %v1520, %v1757
      %s1761 = scalar_lea.vmem %s3, 64
      %v1762 = vld [vmem:[%s1761] sm:$0xff]
      %v1763 = vld [vmem:[%s1761 + $0x8] sm:$0x1]
      %v1764 = vrot.slane %v803, 4
      %v1765 = vrot.slane %v804, 4
      %v1766 = vsel %vm1132, %v1764, %v1765
      %v1767 = vsel %vm821, %v1766, 0
      %v1770 = vsel %vm824, %v1763, 0
      %1772 = vmatprep.subr.mxu0 0.0
      %1773 = vmatpush1.msra.mxu0 0.0
      %1774 = vmatprep.subr.mxu0 0.0
      %1775 = vmatpush1.msra.mxu0 0.0
      %1776 = vmatprep.subr.mxu0 0.0
      %1777 = vmatpush1.msra.mxu0 0.0
      %1778 = vmatprep.subr.mxu0 0.0
      %1779 = vmatpush1.msra.mxu0 0.0
      %1780 = vmatprep.subr.mxu0 0.0
      %1781 = vmatpush1.msra.mxu0 0.0
      %1782 = vmatprep.subr.mxu0 0.0
      %1783 = vmatpush1.msra.mxu0 0.0
      %1784 = vmatprep.subr.mxu0 0.0
      %1785 = vmatpush1.msra.mxu0 0.0
      %1786 = vmatprep.subr.mxu0 0.0
      %1787 = vmatpush1.msra.mxu0 0.0
      %1788 = vmatprep.subr.mxu0 0.0
      %1789 = vmatpush1.msra.mxu0 0.0
      %1790 = vmatprep.subr.mxu0 0.0
      %1791 = vmatpush1.msra.mxu0 0.0
      %1792 = vmatprep.subr.mxu0 0.0
      %1793 = vmatpush1.msra.mxu0 0.0
      %1794 = vmatprep.subr.mxu0 0.0
      %1795 = vmatpush1.msra.mxu0 0.0
      %1796 = vmatprep.subr.mxu0 0.0
      %1797 = vmatpush1.msra.mxu0 0.0
      %1798 = vmatprep.subr.mxu0 0.0
      %1799 = vmatpush1.msra.mxu0 0.0
      %1800 = vmatprep.subr.mxu0 0.0
      %1801 = vmatpush1.msra.mxu0 %v1770
      %1802 = vmatprep.subr.mxu0 0.0
      %1803 = vmatpush1.msra.mxu0 %v1762
      %1804 = vmatprep.subr.mxu0 0.0
      %1805 = vmatpush2.msra.mxu0 0.0
      %1806 = vmatprep.subr.mxu0 0.0
      %1807 = vmatpush2.msra.mxu0 0.0
      %1808 = vmatprep.subr.mxu0 0.0
      %1809 = vmatpush2.msra.mxu0 0.0
      %1810 = vmatprep.subr.mxu0 0.0
      %1811 = vmatpush2.msra.mxu0 0.0
      %1812 = vmatprep.subr.mxu0 0.0
      %1813 = vmatpush2.msra.mxu0 0.0
      %1814 = vmatprep.subr.mxu0 0.0
      %1815 = vmatpush2.msra.mxu0 0.0
      %1816 = vmatprep.subr.mxu0 0.0
      %1817 = vmatpush2.msra.mxu0 0.0
      %1818 = vmatprep.subr.mxu0 0.0
      %1819 = vmatpush2.msra.mxu0 0.0
      %1820 = vmatprep.subr.mxu0 0.0
      %1821 = vmatpush2.msra.mxu0 0.0
      %1822 = vmatprep.subr.mxu0 0.0
      %1823 = vmatpush2.msra.mxu0 0.0
      %1824 = vmatprep.subr.mxu0 0.0
      %1825 = vmatpush2.msra.mxu0 0.0
      %1826 = vmatprep.subr.mxu0 0.0
      %1827 = vmatpush2.msra.mxu0 0.0
      %1828 = vmatprep.subr.mxu0 0.0
      %1829 = vmatpush2.msra.mxu0 0.0
      %1830 = vmatprep.subr.mxu0 0.0
      %1831 = vmatpush2.msra.mxu0 0.0
      %1832 = vmatprep.subr.mxu0 0.0
      %1833 = vmatpush2.msra.mxu0 0.0
      %1834 = vmatprep.subr.mxu0 0.0
      %1835 = vmatpush2.msra.mxu0 0.0
      %1836 = vmatprep.mubr.f32.mxu0 0.0
      %1837 = vmatmul.mubr.f32.gmra.mxu0 %v1767
      %v1838 = vpop.f32.mrf.mxu0
      %v1839 = vadd.f32 0.0, %v1838
      %v1840 = vpop.f32.mrf.mxu0
      %1841 = vdwg.mxu0
      %v1842 = vadd.f32 %v1603, %v1839
      %v1843 = vrot.slane %v805, 4
      %v1844 = vrot.slane %v806, 4
      %v1845 = vsel %vm1132, %v1843, %v1844
      %v1846 = vsel %vm821, %v1845, 0
      %1848 = vmatprep.subr.mxu0 0.0
      %1849 = vmatpush1.msra.mxu0 0.0
      %1850 = vmatprep.subr.mxu0 0.0
      %1851 = vmatpush1.msra.mxu0 0.0
      %1852 = vmatprep.subr.mxu0 0.0
      %1853 = vmatpush1.msra.mxu0 0.0
      %1854 = vmatprep.subr.mxu0 0.0
      %1855 = vmatpush1.msra.mxu0 0.0
      %1856 = vmatprep.subr.mxu0 0.0
      %1857 = vmatpush1.msra.mxu0 0.0
      %1858 = vmatprep.subr.mxu0 0.0
      %1859 = vmatpush1.msra.mxu0 0.0
      %1860 = vmatprep.subr.mxu0 0.0
      %1861 = vmatpush1.msra.mxu0 0.0
      %1862 = vmatprep.subr.mxu0 0.0
      %1863 = vmatpush1.msra.mxu0 0.0
      %1864 = vmatprep.subr.mxu0 0.0
      %1865 = vmatpush1.msra.mxu0 0.0
      %1866 = vmatprep.subr.mxu0 0.0
      %1867 = vmatpush1.msra.mxu0 0.0
      %1868 = vmatprep.subr.mxu0 0.0
      %1869 = vmatpush1.msra.mxu0 0.0
      %1870 = vmatprep.subr.mxu0 0.0
      %1871 = vmatpush1.msra.mxu0 0.0
      %1872 = vmatprep.subr.mxu0 0.0
      %1873 = vmatpush1.msra.mxu0 0.0
      %1874 = vmatprep.subr.mxu0 0.0
      %1875 = vmatpush1.msra.mxu0 0.0
      %1876 = vmatprep.subr.mxu0 0.0
      %1877 = vmatpush1.msra.mxu0 %v1770
      %1878 = vmatprep.subr.mxu0 0.0
      %1879 = vmatpush1.msra.mxu0 %v1762
      %1880 = vmatprep.subr.mxu0 0.0
      %1881 = vmatpush2.msra.mxu0 0.0
      %1882 = vmatprep.subr.mxu0 0.0
      %1883 = vmatpush2.msra.mxu0 0.0
      %1884 = vmatprep.subr.mxu0 0.0
      %1885 = vmatpush2.msra.mxu0 0.0
      %1886 = vmatprep.subr.mxu0 0.0
      %1887 = vmatpush2.msra.mxu0 0.0
      %1888 = vmatprep.subr.mxu0 0.0
      %1889 = vmatpush2.msra.mxu0 0.0
      %1890 = vmatprep.subr.mxu0 0.0
      %1891 = vmatpush2.msra.mxu0 0.0
      %1892 = vmatprep.subr.mxu0 0.0
      %1893 = vmatpush2.msra.mxu0 0.0
      %1894 = vmatprep.subr.mxu0 0.0
      %1895 = vmatpush2.msra.mxu0 0.0
      %1896 = vmatprep.subr.mxu0 0.0
      %1897 = vmatpush2.msra.mxu0 0.0
      %1898 = vmatprep.subr.mxu0 0.0
      %1899 = vmatpush2.msra.mxu0 0.0
      %1900 = vmatprep.subr.mxu0 0.0
      %1901 = vmatpush2.msra.mxu0 0.0
      %1902 = vmatprep.subr.mxu0 0.0
      %1903 = vmatpush2.msra.mxu0 0.0
      %1904 = vmatprep.subr.mxu0 0.0
      %1905 = vmatpush2.msra.mxu0 0.0
      %1906 = vmatprep.subr.mxu0 0.0
      %1907 = vmatpush2.msra.mxu0 0.0
      %1908 = vmatprep.subr.mxu0 0.0
      %1909 = vmatpush2.msra.mxu0 0.0
      %1910 = vmatprep.subr.mxu0 0.0
      %1911 = vmatpush2.msra.mxu0 0.0
      %1912 = vmatprep.mubr.f32.mxu0 0.0
      %1913 = vmatmul.mubr.f32.gmra.mxu0 %v1846
      %v1914 = vpop.f32.mrf.mxu0
      %v1915 = vadd.f32 0.0, %v1914
      %v1916 = vpop.f32.mrf.mxu0
      %1917 = vdwg.mxu0
      %v1918 = vadd.f32 %v1679, %v1915
      %s1919 = scalar_lea.vmem %s5, 16
      %v1920 = vld [vmem:[%s1919] sm:$0xf]
      %v1921 = vrot.slane %v807, 4
      %v1922 = vrot.slane %v808, 4
      %v1923 = vsel %vm1132, %v1921, %v1922
      %v1924 = vsel %vm1129, %v1923, 0
      %v1927 = vsel %vm1132, %v1920, 0
      %1929 = vmatprep.subr.mxu0 0.0
      %1930 = vmatpush1.msra.mxu0 0.0
      %1931 = vmatprep.subr.mxu0 0.0
      %1932 = vmatpush1.msra.mxu0 0.0
      %1933 = vmatprep.subr.mxu0 0.0
      %1934 = vmatpush1.msra.mxu0 0.0
      %1935 = vmatprep.subr.mxu0 0.0
      %1936 = vmatpush1.msra.mxu0 0.0
      %1937 = vmatprep.subr.mxu0 0.0
      %1938 = vmatpush1.msra.mxu0 0.0
      %1939 = vmatprep.subr.mxu0 0.0
      %1940 = vmatpush1.msra.mxu0 0.0
      %1941 = vmatprep.subr.mxu0 0.0
      %1942 = vmatpush1.msra.mxu0 0.0
      %1943 = vmatprep.subr.mxu0 0.0
      %1944 = vmatpush1.msra.mxu0 0.0
      %1945 = vmatprep.subr.mxu0 0.0
      %1946 = vmatpush1.msra.mxu0 0.0
      %1947 = vmatprep.subr.mxu0 0.0
      %1948 = vmatpush1.msra.mxu0 0.0
      %1949 = vmatprep.subr.mxu0 0.0
      %1950 = vmatpush1.msra.mxu0 0.0
      %1951 = vmatprep.subr.mxu0 0.0
      %1952 = vmatpush1.msra.mxu0 0.0
      %1953 = vmatprep.subr.mxu0 0.0
      %1954 = vmatpush1.msra.mxu0 0.0
      %1955 = vmatprep.subr.mxu0 0.0
      %1956 = vmatpush1.msra.mxu0 0.0
      %1957 = vmatprep.subr.mxu0 0.0
      %1958 = vmatpush1.msra.mxu0 0.0
      %1959 = vmatprep.subr.mxu0 0.0
      %1960 = vmatpush1.msra.mxu0 %v1927
      %1961 = vmatprep.subr.mxu0 0.0
      %1962 = vmatpush2.msra.mxu0 0.0
      %1963 = vmatprep.subr.mxu0 0.0
      %1964 = vmatpush2.msra.mxu0 0.0
      %1965 = vmatprep.subr.mxu0 0.0
      %1966 = vmatpush2.msra.mxu0 0.0
      %1967 = vmatprep.subr.mxu0 0.0
      %1968 = vmatpush2.msra.mxu0 0.0
      %1969 = vmatprep.subr.mxu0 0.0
      %1970 = vmatpush2.msra.mxu0 0.0
      %1971 = vmatprep.subr.mxu0 0.0
      %1972 = vmatpush2.msra.mxu0 0.0
      %1973 = vmatprep.subr.mxu0 0.0
      %1974 = vmatpush2.msra.mxu0 0.0
      %1975 = vmatprep.subr.mxu0 0.0
      %1976 = vmatpush2.msra.mxu0 0.0
      %1977 = vmatprep.subr.mxu0 0.0
      %1978 = vmatpush2.msra.mxu0 0.0
      %1979 = vmatprep.subr.mxu0 0.0
      %1980 = vmatpush2.msra.mxu0 0.0
      %1981 = vmatprep.subr.mxu0 0.0
      %1982 = vmatpush2.msra.mxu0 0.0
      %1983 = vmatprep.subr.mxu0 0.0
      %1984 = vmatpush2.msra.mxu0 0.0
      %1985 = vmatprep.subr.mxu0 0.0
      %1986 = vmatpush2.msra.mxu0 0.0
      %1987 = vmatprep.subr.mxu0 0.0
      %1988 = vmatpush2.msra.mxu0 0.0
      %1989 = vmatprep.subr.mxu0 0.0
      %1990 = vmatpush2.msra.mxu0 0.0
      %1991 = vmatprep.subr.mxu0 0.0
      %1992 = vmatpush2.msra.mxu0 0.0
      %1993 = vmatprep.mubr.f32.mxu0 0.0
      %1994 = vmatmul.mubr.f32.gmra.mxu0 %v1924
      %v1995 = vpop.f32.mrf.mxu0
      %v1996 = vadd.f32 0.0, %v1995
      %v1997 = vpop.f32.mrf.mxu0
      %1998 = vdwg.mxu0
      %v1999 = vadd.f32 %v1760, %v1996
      %s2000 = scalar_lea.vmem %s3, 80
      %v2001 = vld [vmem:[%s2000] sm:$0xff]
      %v2002 = vld [vmem:[%s2000 + $0x8] sm:$0x1]
      %vm2003 = vcmask 1042432
      %v2004 = vrot.slane %v803, 5
      %v2005 = vrot.slane %v804, 5
      %v2006 = vsel %vm2003, %v2004, %v2005
      %v2007 = vsel %vm821, %v2006, 0
      %v2010 = vsel %vm824, %v2002, 0
      %2012 = vmatprep.subr.mxu0 0.0
      %2013 = vmatpush1.msra.mxu0 0.0
      %2014 = vmatprep.subr.mxu0 0.0
      %2015 = vmatpush1.msra.mxu0 0.0
      %2016 = vmatprep.subr.mxu0 0.0
      %2017 = vmatpush1.msra.mxu0 0.0
      %2018 = vmatprep.subr.mxu0 0.0
      %2019 = vmatpush1.msra.mxu0 0.0
      %2020 = vmatprep.subr.mxu0 0.0
      %2021 = vmatpush1.msra.mxu0 0.0
      %2022 = vmatprep.subr.mxu0 0.0
      %2023 = vmatpush1.msra.mxu0 0.0
      %2024 = vmatprep.subr.mxu0 0.0
      %2025 = vmatpush1.msra.mxu0 0.0
      %2026 = vmatprep.subr.mxu0 0.0
      %2027 = vmatpush1.msra.mxu0 0.0
      %2028 = vmatprep.subr.mxu0 0.0
      %2029 = vmatpush1.msra.mxu0 0.0
      %2030 = vmatprep.subr.mxu0 0.0
      %2031 = vmatpush1.msra.mxu0 0.0
      %2032 = vmatprep.subr.mxu0 0.0
      %2033 = vmatpush1.msra.mxu0 0.0
      %2034 = vmatprep.subr.mxu0 0.0
      %2035 = vmatpush1.msra.mxu0 0.0
      %2036 = vmatprep.subr.mxu0 0.0
      %2037 = vmatpush1.msra.mxu0 0.0
      %2038 = vmatprep.subr.mxu0 0.0
      %2039 = vmatpush1.msra.mxu0 0.0
      %2040 = vmatprep.subr.mxu0 0.0
      %2041 = vmatpush1.msra.mxu0 %v2010
      %2042 = vmatprep.subr.mxu0 0.0
      %2043 = vmatpush1.msra.mxu0 %v2001
      %2044 = vmatprep.subr.mxu0 0.0
      %2045 = vmatpush2.msra.mxu0 0.0
      %2046 = vmatprep.subr.mxu0 0.0
      %2047 = vmatpush2.msra.mxu0 0.0
      %2048 = vmatprep.subr.mxu0 0.0
      %2049 = vmatpush2.msra.mxu0 0.0
      %2050 = vmatprep.subr.mxu0 0.0
      %2051 = vmatpush2.msra.mxu0 0.0
      %2052 = vmatprep.subr.mxu0 0.0
      %2053 = vmatpush2.msra.mxu0 0.0
      %2054 = vmatprep.subr.mxu0 0.0
      %2055 = vmatpush2.msra.mxu0 0.0
      %2056 = vmatprep.subr.mxu0 0.0
      %2057 = vmatpush2.msra.mxu0 0.0
      %2058 = vmatprep.subr.mxu0 0.0
      %2059 = vmatpush2.msra.mxu0 0.0
      %2060 = vmatprep.subr.mxu0 0.0
      %2061 = vmatpush2.msra.mxu0 0.0
      %2062 = vmatprep.subr.mxu0 0.0
      %2063 = vmatpush2.msra.mxu0 0.0
      %2064 = vmatprep.subr.mxu0 0.0
      %2065 = vmatpush2.msra.mxu0 0.0
      %2066 = vmatprep.subr.mxu0 0.0
      %2067 = vmatpush2.msra.mxu0 0.0
      %2068 = vmatprep.subr.mxu0 0.0
      %2069 = vmatpush2.msra.mxu0 0.0
      %2070 = vmatprep.subr.mxu0 0.0
      %2071 = vmatpush2.msra.mxu0 0.0
      %2072 = vmatprep.subr.mxu0 0.0
      %2073 = vmatpush2.msra.mxu0 0.0
      %2074 = vmatprep.subr.mxu0 0.0
      %2075 = vmatpush2.msra.mxu0 0.0
      %2076 = vmatprep.mubr.f32.mxu0 0.0
      %2077 = vmatmul.mubr.f32.gmra.mxu0 %v2007
      %v2078 = vpop.f32.mrf.mxu0
      %v2079 = vadd.f32 0.0, %v2078
      %v2080 = vpop.f32.mrf.mxu0
      %2081 = vdwg.mxu0
      %v2082 = vadd.f32 %v1842, %v2079
      %v2083 = vrot.slane %v805, 5
      %v2084 = vrot.slane %v806, 5
      %v2085 = vsel %vm2003, %v2083, %v2084
      %v2086 = vsel %vm821, %v2085, 0
      %2088 = vmatprep.subr.mxu0 0.0
      %2089 = vmatpush1.msra.mxu0 0.0
      %2090 = vmatprep.subr.mxu0 0.0
      %2091 = vmatpush1.msra.mxu0 0.0
      %2092 = vmatprep.subr.mxu0 0.0
      %2093 = vmatpush1.msra.mxu0 0.0
      %2094 = vmatprep.subr.mxu0 0.0
      %2095 = vmatpush1.msra.mxu0 0.0
      %2096 = vmatprep.subr.mxu0 0.0
      %2097 = vmatpush1.msra.mxu0 0.0
      %2098 = vmatprep.subr.mxu0 0.0
      %2099 = vmatpush1.msra.mxu0 0.0
      %2100 = vmatprep.subr.mxu0 0.0
      %2101 = vmatpush1.msra.mxu0 0.0
      %2102 = vmatprep.subr.mxu0 0.0
      %2103 = vmatpush1.msra.mxu0 0.0
      %2104 = vmatprep.subr.mxu0 0.0
      %2105 = vmatpush1.msra.mxu0 0.0
      %2106 = vmatprep.subr.mxu0 0.0
      %2107 = vmatpush1.msra.mxu0 0.0
      %2108 = vmatprep.subr.mxu0 0.0
      %2109 = vmatpush1.msra.mxu0 0.0
      %2110 = vmatprep.subr.mxu0 0.0
      %2111 = vmatpush1.msra.mxu0 0.0
      %2112 = vmatprep.subr.mxu0 0.0
      %2113 = vmatpush1.msra.mxu0 0.0
      %2114 = vmatprep.subr.mxu0 0.0
      %2115 = vmatpush1.msra.mxu0 0.0
      %2116 = vmatprep.subr.mxu0 0.0
      %2117 = vmatpush1.msra.mxu0 %v2010
      %2118 = vmatprep.subr.mxu0 0.0
      %2119 = vmatpush1.msra.mxu0 %v2001
      %2120 = vmatprep.subr.mxu0 0.0
      %2121 = vmatpush2.msra.mxu0 0.0
      %2122 = vmatprep.subr.mxu0 0.0
      %2123 = vmatpush2.msra.mxu0 0.0
      %2124 = vmatprep.subr.mxu0 0.0
      %2125 = vmatpush2.msra.mxu0 0.0
      %2126 = vmatprep.subr.mxu0 0.0
      %2127 = vmatpush2.msra.mxu0 0.0
      %2128 = vmatprep.subr.mxu0 0.0
      %2129 = vmatpush2.msra.mxu0 0.0
      %2130 = vmatprep.subr.mxu0 0.0
      %2131 = vmatpush2.msra.mxu0 0.0
      %2132 = vmatprep.subr.mxu0 0.0
      %2133 = vmatpush2.msra.mxu0 0.0
      %2134 = vmatprep.subr.mxu0 0.0
      %2135 = vmatpush2.msra.mxu0 0.0
      %2136 = vmatprep.subr.mxu0 0.0
      %2137 = vmatpush2.msra.mxu0 0.0
      %2138 = vmatprep.subr.mxu0 0.0
      %2139 = vmatpush2.msra.mxu0 0.0
      %2140 = vmatprep.subr.mxu0 0.0
      %2141 = vmatpush2.msra.mxu0 0.0
      %2142 = vmatprep.subr.mxu0 0.0
      %2143 = vmatpush2.msra.mxu0 0.0
      %2144 = vmatprep.subr.mxu0 0.0
      %2145 = vmatpush2.msra.mxu0 0.0
      %2146 = vmatprep.subr.mxu0 0.0
      %2147 = vmatpush2.msra.mxu0 0.0
      %2148 = vmatprep.subr.mxu0 0.0
      %2149 = vmatpush2.msra.mxu0 0.0
      %2150 = vmatprep.subr.mxu0 0.0
      %2151 = vmatpush2.msra.mxu0 0.0
      %2152 = vmatprep.mubr.f32.mxu0 0.0
      %2153 = vmatmul.mubr.f32.gmra.mxu0 %v2086
      %v2154 = vpop.f32.mrf.mxu0
      %v2155 = vadd.f32 0.0, %v2154
      %v2156 = vpop.f32.mrf.mxu0
      %2157 = vdwg.mxu0
      %v2158 = vadd.f32 %v1918, %v2155
      %s2159 = scalar_lea.vmem %s5, 20
      %v2160 = vld [vmem:[%s2159] sm:$0xf]
      %v2161 = vrot.slane %v807, 5
      %v2162 = vrot.slane %v808, 5
      %v2163 = vsel %vm2003, %v2161, %v2162
      %v2164 = vsel %vm1129, %v2163, 0
      %v2167 = vsel %vm1132, %v2160, 0
      %2169 = vmatprep.subr.mxu0 0.0
      %2170 = vmatpush1.msra.mxu0 0.0
      %2171 = vmatprep.subr.mxu0 0.0
      %2172 = vmatpush1.msra.mxu0 0.0
      %2173 = vmatprep.subr.mxu0 0.0
      %2174 = vmatpush1.msra.mxu0 0.0
      %2175 = vmatprep.subr.mxu0 0.0
      %2176 = vmatpush1.msra.mxu0 0.0
      %2177 = vmatprep.subr.mxu0 0.0
      %2178 = vmatpush1.msra.mxu0 0.0
      %2179 = vmatprep.subr.mxu0 0.0
      %2180 = vmatpush1.msra.mxu0 0.0
      %2181 = vmatprep.subr.mxu0 0.0
      %2182 = vmatpush1.msra.mxu0 0.0
      %2183 = vmatprep.subr.mxu0 0.0
      %2184 = vmatpush1.msra.mxu0 0.0
      %2185 = vmatprep.subr.mxu0 0.0
      %2186 = vmatpush1.msra.mxu0 0.0
      %2187 = vmatprep.subr.mxu0 0.0
      %2188 = vmatpush1.msra.mxu0 0.0
      %2189 = vmatprep.subr.mxu0 0.0
      %2190 = vmatpush1.msra.mxu0 0.0
      %2191 = vmatprep.subr.mxu0 0.0
      %2192 = vmatpush1.msra.mxu0 0.0
      %2193 = vmatprep.subr.mxu0 0.0
      %2194 = vmatpush1.msra.mxu0 0.0
      %2195 = vmatprep.subr.mxu0 0.0
      %2196 = vmatpush1.msra.mxu0 0.0
      %2197 = vmatprep.subr.mxu0 0.0
      %2198 = vmatpush1.msra.mxu0 0.0
      %2199 = vmatprep.subr.mxu0 0.0
      %2200 = vmatpush1.msra.mxu0 %v2167
      %2201 = vmatprep.subr.mxu0 0.0
      %2202 = vmatpush2.msra.mxu0 0.0
      %2203 = vmatprep.subr.mxu0 0.0
      %2204 = vmatpush2.msra.mxu0 0.0
      %2205 = vmatprep.subr.mxu0 0.0
      %2206 = vmatpush2.msra.mxu0 0.0
      %2207 = vmatprep.subr.mxu0 0.0
      %2208 = vmatpush2.msra.mxu0 0.0
      %2209 = vmatprep.subr.mxu0 0.0
      %2210 = vmatpush2.msra.mxu0 0.0
      %2211 = vmatprep.subr.mxu0 0.0
      %2212 = vmatpush2.msra.mxu0 0.0
      %2213 = vmatprep.subr.mxu0 0.0
      %2214 = vmatpush2.msra.mxu0 0.0
      %2215 = vmatprep.subr.mxu0 0.0
      %2216 = vmatpush2.msra.mxu0 0.0
      %2217 = vmatprep.subr.mxu0 0.0
      %2218 = vmatpush2.msra.mxu0 0.0
      %2219 = vmatprep.subr.mxu0 0.0
      %2220 = vmatpush2.msra.mxu0 0.0
      %2221 = vmatprep.subr.mxu0 0.0
      %2222 = vmatpush2.msra.mxu0 0.0
      %2223 = vmatprep.subr.mxu0 0.0
      %2224 = vmatpush2.msra.mxu0 0.0
      %2225 = vmatprep.subr.mxu0 0.0
      %2226 = vmatpush2.msra.mxu0 0.0
      %2227 = vmatprep.subr.mxu0 0.0
      %2228 = vmatpush2.msra.mxu0 0.0
      %2229 = vmatprep.subr.mxu0 0.0
      %2230 = vmatpush2.msra.mxu0 0.0
      %2231 = vmatprep.subr.mxu0 0.0
      %2232 = vmatpush2.msra.mxu0 0.0
      %2233 = vmatprep.mubr.f32.mxu0 0.0
      %2234 = vmatmul.mubr.f32.gmra.mxu0 %v2164
      %v2235 = vpop.f32.mrf.mxu0
      %v2236 = vadd.f32 0.0, %v2235
      %v2237 = vpop.f32.mrf.mxu0
      %2238 = vdwg.mxu0
      %v2239 = vadd.f32 %v1999, %v2236
      %s2240 = scalar_lea.vmem %s3, 96
      %v2241 = vld [vmem:[%s2240] sm:$0xff]
      %v2242 = vld [vmem:[%s2240 + $0x8] sm:$0x1]
      %vm2243 = vcmask 1041408
      %v2244 = vrot.slane %v803, 6
      %v2245 = vrot.slane %v804, 6
      %v2246 = vsel %vm2243, %v2244, %v2245
      %v2247 = vsel %vm821, %v2246, 0
      %v2250 = vsel %vm824, %v2242, 0
      %2252 = vmatprep.subr.mxu0 0.0
      %2253 = vmatpush1.msra.mxu0 0.0
      %2254 = vmatprep.subr.mxu0 0.0
      %2255 = vmatpush1.msra.mxu0 0.0
      %2256 = vmatprep.subr.mxu0 0.0
      %2257 = vmatpush1.msra.mxu0 0.0
      %2258 = vmatprep.subr.mxu0 0.0
      %2259 = vmatpush1.msra.mxu0 0.0
      %2260 = vmatprep.subr.mxu0 0.0
      %2261 = vmatpush1.msra.mxu0 0.0
      %2262 = vmatprep.subr.mxu0 0.0
      %2263 = vmatpush1.msra.mxu0 0.0
      %2264 = vmatprep.subr.mxu0 0.0
      %2265 = vmatpush1.msra.mxu0 0.0
      %2266 = vmatprep.subr.mxu0 0.0
      %2267 = vmatpush1.msra.mxu0 0.0
      %2268 = vmatprep.subr.mxu0 0.0
      %2269 = vmatpush1.msra.mxu0 0.0
      %2270 = vmatprep.subr.mxu0 0.0
      %2271 = vmatpush1.msra.mxu0 0.0
      %2272 = vmatprep.subr.mxu0 0.0
      %2273 = vmatpush1.msra.mxu0 0.0
      %2274 = vmatprep.subr.mxu0 0.0
      %2275 = vmatpush1.msra.mxu0 0.0
      %2276 = vmatprep.subr.mxu0 0.0
      %2277 = vmatpush1.msra.mxu0 0.0
      %2278 = vmatprep.subr.mxu0 0.0
      %2279 = vmatpush1.msra.mxu0 0.0
      %2280 = vmatprep.subr.mxu0 0.0
      %2281 = vmatpush1.msra.mxu0 %v2250
      %2282 = vmatprep.subr.mxu0 0.0
      %2283 = vmatpush1.msra.mxu0 %v2241
      %2284 = vmatprep.subr.mxu0 0.0
      %2285 = vmatpush2.msra.mxu0 0.0
      %2286 = vmatprep.subr.mxu0 0.0
      %2287 = vmatpush2.msra.mxu0 0.0
      %2288 = vmatprep.subr.mxu0 0.0
      %2289 = vmatpush2.msra.mxu0 0.0
      %2290 = vmatprep.subr.mxu0 0.0
      %2291 = vmatpush2.msra.mxu0 0.0
      %2292 = vmatprep.subr.mxu0 0.0
      %2293 = vmatpush2.msra.mxu0 0.0
      %2294 = vmatprep.subr.mxu0 0.0
      %2295 = vmatpush2.msra.mxu0 0.0
      %2296 = vmatprep.subr.mxu0 0.0
      %2297 = vmatpush2.msra.mxu0 0.0
      %2298 = vmatprep.subr.mxu0 0.0
      %2299 = vmatpush2.msra.mxu0 0.0
      %2300 = vmatprep.subr.mxu0 0.0
      %2301 = vmatpush2.msra.mxu0 0.0
      %2302 = vmatprep.subr.mxu0 0.0
      %2303 = vmatpush2.msra.mxu0 0.0
      %2304 = vmatprep.subr.mxu0 0.0
      %2305 = vmatpush2.msra.mxu0 0.0
      %2306 = vmatprep.subr.mxu0 0.0
      %2307 = vmatpush2.msra.mxu0 0.0
      %2308 = vmatprep.subr.mxu0 0.0
      %2309 = vmatpush2.msra.mxu0 0.0
      %2310 = vmatprep.subr.mxu0 0.0
      %2311 = vmatpush2.msra.mxu0 0.0
      %2312 = vmatprep.subr.mxu0 0.0
      %2313 = vmatpush2.msra.mxu0 0.0
      %2314 = vmatprep.subr.mxu0 0.0
      %2315 = vmatpush2.msra.mxu0 0.0
      %2316 = vmatprep.mubr.f32.mxu0 0.0
      %2317 = vmatmul.mubr.f32.gmra.mxu0 %v2247
      %v2318 = vpop.f32.mrf.mxu0
      %v2319 = vadd.f32 0.0, %v2318
      %v2320 = vpop.f32.mrf.mxu0
      %2321 = vdwg.mxu0
      %v2322 = vadd.f32 %v2082, %v2319
      %v2323 = vrot.slane %v805, 6
      %v2324 = vrot.slane %v806, 6
      %v2325 = vsel %vm2243, %v2323, %v2324
      %v2326 = vsel %vm821, %v2325, 0
      %2328 = vmatprep.subr.mxu0 0.0
      %2329 = vmatpush1.msra.mxu0 0.0
      %2330 = vmatprep.subr.mxu0 0.0
      %2331 = vmatpush1.msra.mxu0 0.0
      %2332 = vmatprep.subr.mxu0 0.0
      %2333 = vmatpush1.msra.mxu0 0.0
      %2334 = vmatprep.subr.mxu0 0.0
      %2335 = vmatpush1.msra.mxu0 0.0
      %2336 = vmatprep.subr.mxu0 0.0
      %2337 = vmatpush1.msra.mxu0 0.0
      %2338 = vmatprep.subr.mxu0 0.0
      %2339 = vmatpush1.msra.mxu0 0.0
      %2340 = vmatprep.subr.mxu0 0.0
      %2341 = vmatpush1.msra.mxu0 0.0
      %2342 = vmatprep.subr.mxu0 0.0
      %2343 = vmatpush1.msra.mxu0 0.0
      %2344 = vmatprep.subr.mxu0 0.0
      %2345 = vmatpush1.msra.mxu0 0.0
      %2346 = vmatprep.subr.mxu0 0.0
      %2347 = vmatpush1.msra.mxu0 0.0
      %2348 = vmatprep.subr.mxu0 0.0
      %2349 = vmatpush1.msra.mxu0 0.0
      %2350 = vmatprep.subr.mxu0 0.0
      %2351 = vmatpush1.msra.mxu0 0.0
      %2352 = vmatprep.subr.mxu0 0.0
      %2353 = vmatpush1.msra.mxu0 0.0
      %2354 = vmatprep.subr.mxu0 0.0
      %2355 = vmatpush1.msra.mxu0 0.0
      %2356 = vmatprep.subr.mxu0 0.0
      %2357 = vmatpush1.msra.mxu0 %v2250
      %2358 = vmatprep.subr.mxu0 0.0
      %2359 = vmatpush1.msra.mxu0 %v2241
      %2360 = vmatprep.subr.mxu0 0.0
      %2361 = vmatpush2.msra.mxu0 0.0
      %2362 = vmatprep.subr.mxu0 0.0
      %2363 = vmatpush2.msra.mxu0 0.0
      %2364 = vmatprep.subr.mxu0 0.0
      %2365 = vmatpush2.msra.mxu0 0.0
      %2366 = vmatprep.subr.mxu0 0.0
      %2367 = vmatpush2.msra.mxu0 0.0
      %2368 = vmatprep.subr.mxu0 0.0
      %2369 = vmatpush2.msra.mxu0 0.0
      %2370 = vmatprep.subr.mxu0 0.0
      %2371 = vmatpush2.msra.mxu0 0.0
      %2372 = vmatprep.subr.mxu0 0.0
      %2373 = vmatpush2.msra.mxu0 0.0
      %2374 = vmatprep.subr.mxu0 0.0
      %2375 = vmatpush2.msra.mxu0 0.0
      %2376 = vmatprep.subr.mxu0 0.0
      %2377 = vmatpush2.msra.mxu0 0.0
      %2378 = vmatprep.subr.mxu0 0.0
      %2379 = vmatpush2.msra.mxu0 0.0
      %2380 = vmatprep.subr.mxu0 0.0
      %2381 = vmatpush2.msra.mxu0 0.0
      %2382 = vmatprep.subr.mxu0 0.0
      %2383 = vmatpush2.msra.mxu0 0.0
      %2384 = vmatprep.subr.mxu0 0.0
      %2385 = vmatpush2.msra.mxu0 0.0
      %2386 = vmatprep.subr.mxu0 0.0
      %2387 = vmatpush2.msra.mxu0 0.0
      %2388 = vmatprep.subr.mxu0 0.0
      %2389 = vmatpush2.msra.mxu0 0.0
      %2390 = vmatprep.subr.mxu0 0.0
      %2391 = vmatpush2.msra.mxu0 0.0
      %2392 = vmatprep.mubr.f32.mxu0 0.0
      %2393 = vmatmul.mubr.f32.gmra.mxu0 %v2326
      %v2394 = vpop.f32.mrf.mxu0
      %v2395 = vadd.f32 0.0, %v2394
      %v2396 = vpop.f32.mrf.mxu0
      %2397 = vdwg.mxu0
      %v2398 = vadd.f32 %v2158, %v2395
      %s2399 = scalar_lea.vmem %s5, 24
      %v2400 = vld [vmem:[%s2399] sm:$0xf]
      %v2401 = vrot.slane %v807, 6
      %v2402 = vrot.slane %v808, 6
      %v2403 = vsel %vm2243, %v2401, %v2402
      %v2404 = vsel %vm1129, %v2403, 0
      %v2407 = vsel %vm1132, %v2400, 0
      %2409 = vmatprep.subr.mxu0 0.0
      %2410 = vmatpush1.msra.mxu0 0.0
      %2411 = vmatprep.subr.mxu0 0.0
      %2412 = vmatpush1.msra.mxu0 0.0
      %2413 = vmatprep.subr.mxu0 0.0
      %2414 = vmatpush1.msra.mxu0 0.0
      %2415 = vmatprep.subr.mxu0 0.0
      %2416 = vmatpush1.msra.mxu0 0.0
      %2417 = vmatprep.subr.mxu0 0.0
      %2418 = vmatpush1.msra.mxu0 0.0
      %2419 = vmatprep.subr.mxu0 0.0
      %2420 = vmatpush1.msra.mxu0 0.0
      %2421 = vmatprep.subr.mxu0 0.0
      %2422 = vmatpush1.msra.mxu0 0.0
      %2423 = vmatprep.subr.mxu0 0.0
      %2424 = vmatpush1.msra.mxu0 0.0
      %2425 = vmatprep.subr.mxu0 0.0
      %2426 = vmatpush1.msra.mxu0 0.0
      %2427 = vmatprep.subr.mxu0 0.0
      %2428 = vmatpush1.msra.mxu0 0.0
      %2429 = vmatprep.subr.mxu0 0.0
      %2430 = vmatpush1.msra.mxu0 0.0
      %2431 = vmatprep.subr.mxu0 0.0
      %2432 = vmatpush1.msra.mxu0 0.0
      %2433 = vmatprep.subr.mxu0 0.0
      %2434 = vmatpush1.msra.mxu0 0.0
      %2435 = vmatprep.subr.mxu0 0.0
      %2436 = vmatpush1.msra.mxu0 0.0
      %2437 = vmatprep.subr.mxu0 0.0
      %2438 = vmatpush1.msra.mxu0 0.0
      %2439 = vmatprep.subr.mxu0 0.0
      %2440 = vmatpush1.msra.mxu0 %v2407
      %2441 = vmatprep.subr.mxu0 0.0
      %2442 = vmatpush2.msra.mxu0 0.0
      %2443 = vmatprep.subr.mxu0 0.0
      %2444 = vmatpush2.msra.mxu0 0.0
      %2445 = vmatprep.subr.mxu0 0.0
      %2446 = vmatpush2.msra.mxu0 0.0
      %2447 = vmatprep.subr.mxu0 0.0
      %2448 = vmatpush2.msra.mxu0 0.0
      %2449 = vmatprep.subr.mxu0 0.0
      %2450 = vmatpush2.msra.mxu0 0.0
      %2451 = vmatprep.subr.mxu0 0.0
      %2452 = vmatpush2.msra.mxu0 0.0
      %2453 = vmatprep.subr.mxu0 0.0
      %2454 = vmatpush2.msra.mxu0 0.0
      %2455 = vmatprep.subr.mxu0 0.0
      %2456 = vmatpush2.msra.mxu0 0.0
      %2457 = vmatprep.subr.mxu0 0.0
      %2458 = vmatpush2.msra.mxu0 0.0
      %2459 = vmatprep.subr.mxu0 0.0
      %2460 = vmatpush2.msra.mxu0 0.0
      %2461 = vmatprep.subr.mxu0 0.0
      %2462 = vmatpush2.msra.mxu0 0.0
      %2463 = vmatprep.subr.mxu0 0.0
      %2464 = vmatpush2.msra.mxu0 0.0
      %2465 = vmatprep.subr.mxu0 0.0
      %2466 = vmatpush2.msra.mxu0 0.0
      %2467 = vmatprep.subr.mxu0 0.0
      %2468 = vmatpush2.msra.mxu0 0.0
      %2469 = vmatprep.subr.mxu0 0.0
      %2470 = vmatpush2.msra.mxu0 0.0
      %2471 = vmatprep.subr.mxu0 0.0
      %2472 = vmatpush2.msra.mxu0 0.0
      %2473 = vmatprep.mubr.f32.mxu0 0.0
      %2474 = vmatmul.mubr.f32.gmra.mxu0 %v2404
      %v2475 = vpop.f32.mrf.mxu0
      %v2476 = vadd.f32 0.0, %v2475
      %v2477 = vpop.f32.mrf.mxu0
      %2478 = vdwg.mxu0
      %v2479 = vadd.f32 %v2239, %v2476
      %v2480 = vld [vmem:[%s4] sm:$0x1]
      %v2482 = vlaneseq
      %v2483 = vshrl.u32 %v2482, 7
      %v2484 = vsub.s32 0, %v2483
      %v2485 = vrot.slane %v2480, %v2484
      %v2487 = vadd.f32 %v2322, %v2485
      %v2488 = vadd.f32 %v2398, %v2485
      %v2489 = vld [vmem:[%s6] sm:$0x1]
      %v2491 = vlaneseq
      %v2492 = vshrl.u32 %v2491, 7
      %v2493 = vsub.s32 0, %v2492
      %v2494 = vrot.slane %v2489, %v2493
      %v2496 = vadd.f32 %v2479, %v2494
      %v2497 = vld [vmem:[%s7] sm:$0x1f]
      %v2498 = vlaneseq
      %v2499 = vshrl.u32 %v2498, 7
      %v2500 = vsub.s32 3, %v2499
      %v2501 = vrot.slane %v803, %v2500
      %2503 = vbcast.lane.b32.xlu0 %v2501, 256
      %v2504 = vpop.permute.xlu0 %2503
      %s2506 = sor.u32 256, 8
      %2507 = vbcast.lane.b32.xlu0 %v2501, %s2506
      %v2508 = vpop.permute.xlu0 %2507
      %v2509 = vlaneseq
      %v2510 = vshrl.u32 %v2509, 7
      %v2511 = vsub.s32 4, %v2510
      %v2512 = vrot.slane %v803, %v2511
      %2514 = vbcast.lane.b32.xlu0 %v2512, 256
      %v2515 = vpop.permute.xlu0 %2514
      %s2517 = sor.u32 256, 8
      %2518 = vbcast.lane.b32.xlu0 %v2512, %s2517
      %v2519 = vpop.permute.xlu0 %2518
      %v2520 = vlaneseq
      %v2521 = vshrl.u32 %v2520, 7
      %v2522 = vsub.s32 5, %v2521
      %v2523 = vrot.slane %v803, %v2522
      %2525 = vbcast.lane.b32.xlu0 %v2523, 256
      %v2526 = vpop.permute.xlu0 %2525
      %s2528 = sor.u32 256, 8
      %2529 = vbcast.lane.b32.xlu0 %v2523, %s2528
      %v2530 = vpop.permute.xlu0 %2529
      %v2531 = vlaneseq
      %v2532 = vshrl.u32 %v2531, 7
      %v2533 = vsub.s32 6, %v2532
      %v2534 = vrot.slane %v803, %v2533
      %2536 = vbcast.lane.b32.xlu0 %v2534, 256
      %v2537 = vpop.permute.xlu0 %2536
      %s2539 = sor.u32 256, 8
      %2540 = vbcast.lane.b32.xlu0 %v2534, %s2539
      %v2541 = vpop.permute.xlu0 %2540
      %v2542 = vlaneseq
      %v2543 = vshrl.u32 %v2542, 7
      %v2544 = vsub.s32 7, %v2543
      %v2545 = vrot.slane %v803, %v2544
      %2547 = vbcast.lane.b32.xlu0 %v2545, 256
      %v2548 = vpop.permute.xlu0 %2547
      %s2550 = sor.u32 256, 8
      %2551 = vbcast.lane.b32.xlu0 %v2545, %s2550
      %v2552 = vpop.permute.xlu0 %2551
      %v2553 = vlaneseq
      %v2554 = vshrl.u32 %v2553, 7
      %v2555 = vsub.s32 0, %v2554
      %v2556 = vrot.slane %v804, %v2555
      %2558 = vbcast.lane.b32.xlu0 %v2556, 256
      %v2559 = vpop.permute.xlu0 %2558
      %s2561 = sor.u32 256, 8
      %2562 = vbcast.lane.b32.xlu0 %v2556, %s2561
      %v2563 = vpop.permute.xlu0 %2562
      %v2564 = vlaneseq
      %v2565 = vshrl.u32 %v2564, 7
      %v2566 = vsub.s32 1, %v2565
      %v2567 = vrot.slane %v804, %v2566
      %2569 = vbcast.lane.b32.xlu0 %v2567, 256
      %v2570 = vpop.permute.xlu0 %2569
      %s2572 = sor.u32 256, 8
      %2573 = vbcast.lane.b32.xlu0 %v2567, %s2572
      %v2574 = vpop.permute.xlu0 %2573
      %v2575 = vlaneseq
      %v2576 = vshrl.u32 %v2575, 7
      %v2577 = vsub.s32 2, %v2576
      %v2578 = vrot.slane %v804, %v2577
      %2580 = vbcast.lane.b32.xlu0 %v2578, 256
      %v2581 = vpop.permute.xlu0 %2580
      %s2583 = sor.u32 256, 8
      %2584 = vbcast.lane.b32.xlu0 %v2578, %s2583
      %v2585 = vpop.permute.xlu0 %2584
      %v2586 = vlaneseq
      %v2587 = vshrl.u32 %v2586, 7
      %v2588 = vsub.s32 0, %v2587
      %v2589 = vrot.slane %v2497, %v2588
      %v2590 = vmul.f32 %v2504, %v2589
      %v2591 = vmul.f32 %v2508, %v2589
      %v2592 = vmul.f32 %v2515, %v2589
      %v2593 = vmul.f32 %v2519, %v2589
      %v2594 = vmul.f32 %v2526, %v2589
      %v2595 = vmul.f32 %v2530, %v2589
      %v2596 = vmul.f32 %v2537, %v2589
      %v2597 = vmul.f32 %v2541, %v2589
      %v2598 = vmul.f32 %v2548, %v2589
      %v2599 = vmul.f32 %v2552, %v2589
      %v2600 = vmul.f32 %v2559, %v2589
      %v2601 = vmul.f32 %v2563, %v2589
      %v2602 = vmul.f32 %v2570, %v2589
      %v2603 = vmul.f32 %v2574, %v2589
      %v2604 = vmul.f32 %v2581, %v2589
      %v2605 = vmul.f32 %v2585, %v2589
      %v2606 = vlaneseq
      %v2607 = vshrl.u32 %v2606, 7
      %v2608 = vsub.s32 3, %v2607
      %v2609 = vrot.slane %v805, %v2608
      %2611 = vbcast.lane.b32.xlu0 %v2609, 256
      %v2612 = vpop.permute.xlu0 %2611
      %s2614 = sor.u32 256, 8
      %2615 = vbcast.lane.b32.xlu0 %v2609, %s2614
      %v2616 = vpop.permute.xlu0 %2615
      %v2617 = vlaneseq
      %v2618 = vshrl.u32 %v2617, 7
      %v2619 = vsub.s32 4, %v2618
      %v2620 = vrot.slane %v805, %v2619
      %2622 = vbcast.lane.b32.xlu0 %v2620, 256
      %v2623 = vpop.permute.xlu0 %2622
      %s2625 = sor.u32 256, 8
      %2626 = vbcast.lane.b32.xlu0 %v2620, %s2625
      %v2627 = vpop.permute.xlu0 %2626
      %v2628 = vlaneseq
      %v2629 = vshrl.u32 %v2628, 7
      %v2630 = vsub.s32 5, %v2629
      %v2631 = vrot.slane %v805, %v2630
      %2633 = vbcast.lane.b32.xlu0 %v2631, 256
      %v2634 = vpop.permute.xlu0 %2633
      %s2636 = sor.u32 256, 8
      %2637 = vbcast.lane.b32.xlu0 %v2631, %s2636
      %v2638 = vpop.permute.xlu0 %2637
      %v2639 = vlaneseq
      %v2640 = vshrl.u32 %v2639, 7
      %v2641 = vsub.s32 6, %v2640
      %v2642 = vrot.slane %v805, %v2641
      %2644 = vbcast.lane.b32.xlu0 %v2642, 256
      %v2645 = vpop.permute.xlu0 %2644
      %s2647 = sor.u32 256, 8
      %2648 = vbcast.lane.b32.xlu0 %v2642, %s2647
      %v2649 = vpop.permute.xlu0 %2648
      %v2650 = vlaneseq
      %v2651 = vshrl.u32 %v2650, 7
      %v2652 = vsub.s32 7, %v2651
      %v2653 = vrot.slane %v805, %v2652
      %2655 = vbcast.lane.b32.xlu0 %v2653, 256
      %v2656 = vpop.permute.xlu0 %2655
      %s2658 = sor.u32 256, 8
      %2659 = vbcast.lane.b32.xlu0 %v2653, %s2658
      %v2660 = vpop.permute.xlu0 %2659
      %v2661 = vlaneseq
      %v2662 = vshrl.u32 %v2661, 7
      %v2663 = vsub.s32 0, %v2662
      %v2664 = vrot.slane %v806, %v2663
      %2666 = vbcast.lane.b32.xlu0 %v2664, 256
      %v2667 = vpop.permute.xlu0 %2666
      %s2669 = sor.u32 256, 8
      %2670 = vbcast.lane.b32.xlu0 %v2664, %s2669
      %v2671 = vpop.permute.xlu0 %2670
      %v2672 = vlaneseq
      %v2673 = vshrl.u32 %v2672, 7
      %v2674 = vsub.s32 1, %v2673
      %v2675 = vrot.slane %v806, %v2674
      %2677 = vbcast.lane.b32.xlu0 %v2675, 256
      %v2678 = vpop.permute.xlu0 %2677
      %s2680 = sor.u32 256, 8
      %2681 = vbcast.lane.b32.xlu0 %v2675, %s2680
      %v2682 = vpop.permute.xlu0 %2681
      %v2683 = vlaneseq
      %v2684 = vshrl.u32 %v2683, 7
      %v2685 = vsub.s32 2, %v2684
      %v2686 = vrot.slane %v806, %v2685
      %2688 = vbcast.lane.b32.xlu0 %v2686, 256
      %v2689 = vpop.permute.xlu0 %2688
      %s2691 = sor.u32 256, 8
      %2692 = vbcast.lane.b32.xlu0 %v2686, %s2691
      %v2693 = vpop.permute.xlu0 %2692
      %v2694 = vlaneseq
      %v2695 = vshrl.u32 %v2694, 7
      %v2696 = vsub.s32 1, %v2695
      %v2697 = vrot.slane %v2497, %v2696
      %v2698 = vmul.f32 %v2612, %v2697
      %v2699 = vmul.f32 %v2616, %v2697
      %v2700 = vmul.f32 %v2623, %v2697
      %v2701 = vmul.f32 %v2627, %v2697
      %v2702 = vmul.f32 %v2634, %v2697
      %v2703 = vmul.f32 %v2638, %v2697
      %v2704 = vmul.f32 %v2645, %v2697
      %v2705 = vmul.f32 %v2649, %v2697
      %v2706 = vmul.f32 %v2656, %v2697
      %v2707 = vmul.f32 %v2660, %v2697
      %v2708 = vmul.f32 %v2667, %v2697
      %v2709 = vmul.f32 %v2671, %v2697
      %v2710 = vmul.f32 %v2678, %v2697
      %v2711 = vmul.f32 %v2682, %v2697
      %v2712 = vmul.f32 %v2689, %v2697
      %v2713 = vmul.f32 %v2693, %v2697
      %v2714 = vadd.f32 %v2590, %v2698
      %v2715 = vadd.f32 %v2591, %v2699
      %v2716 = vadd.f32 %v2592, %v2700
      %v2717 = vadd.f32 %v2593, %v2701
      %v2718 = vadd.f32 %v2594, %v2702
      %v2719 = vadd.f32 %v2595, %v2703
      %v2720 = vadd.f32 %v2596, %v2704
      %v2721 = vadd.f32 %v2597, %v2705
      %v2722 = vadd.f32 %v2598, %v2706
      %v2723 = vadd.f32 %v2599, %v2707
      %v2724 = vadd.f32 %v2600, %v2708
      %v2725 = vadd.f32 %v2601, %v2709
      %v2726 = vadd.f32 %v2602, %v2710
      %v2727 = vadd.f32 %v2603, %v2711
      %v2728 = vadd.f32 %v2604, %v2712
      %v2729 = vadd.f32 %v2605, %v2713
      %v2730 = vlaneseq
      %v2731 = vshrl.u32 %v2730, 7
      %v2732 = vsub.s32 0, %v2731
      %v2733 = vrot.slane %v2487, %v2732
      %2735 = vbcast.lane.b32.xlu0 %v2733, 256
      %v2736 = vpop.permute.xlu0 %2735
      %s2738 = sor.u32 256, 8
      %2739 = vbcast.lane.b32.xlu0 %v2733, %s2738
      %v2740 = vpop.permute.xlu0 %2739
      %v2741 = vlaneseq
      %v2742 = vshrl.u32 %v2741, 7
      %v2743 = vsub.s32 1, %v2742
      %v2744 = vrot.slane %v2487, %v2743
      %2746 = vbcast.lane.b32.xlu0 %v2744, 256
      %v2747 = vpop.permute.xlu0 %2746
      %s2749 = sor.u32 256, 8
      %2750 = vbcast.lane.b32.xlu0 %v2744, %s2749
      %v2751 = vpop.permute.xlu0 %2750
      %v2752 = vlaneseq
      %v2753 = vshrl.u32 %v2752, 7
      %v2754 = vsub.s32 2, %v2753
      %v2755 = vrot.slane %v2487, %v2754
      %2757 = vbcast.lane.b32.xlu0 %v2755, 256
      %v2758 = vpop.permute.xlu0 %2757
      %s2760 = sor.u32 256, 8
      %2761 = vbcast.lane.b32.xlu0 %v2755, %s2760
      %v2762 = vpop.permute.xlu0 %2761
      %v2763 = vlaneseq
      %v2764 = vshrl.u32 %v2763, 7
      %v2765 = vsub.s32 3, %v2764
      %v2766 = vrot.slane %v2487, %v2765
      %2768 = vbcast.lane.b32.xlu0 %v2766, 256
      %v2769 = vpop.permute.xlu0 %2768
      %s2771 = sor.u32 256, 8
      %2772 = vbcast.lane.b32.xlu0 %v2766, %s2771
      %v2773 = vpop.permute.xlu0 %2772
      %v2774 = vlaneseq
      %v2775 = vshrl.u32 %v2774, 7
      %v2776 = vsub.s32 4, %v2775
      %v2777 = vrot.slane %v2487, %v2776
      %2779 = vbcast.lane.b32.xlu0 %v2777, 256
      %v2780 = vpop.permute.xlu0 %2779
      %s2782 = sor.u32 256, 8
      %2783 = vbcast.lane.b32.xlu0 %v2777, %s2782
      %v2784 = vpop.permute.xlu0 %2783
      %v2785 = vlaneseq
      %v2786 = vshrl.u32 %v2785, 7
      %v2787 = vsub.s32 5, %v2786
      %v2788 = vrot.slane %v2487, %v2787
      %2790 = vbcast.lane.b32.xlu0 %v2788, 256
      %v2791 = vpop.permute.xlu0 %2790
      %s2793 = sor.u32 256, 8
      %2794 = vbcast.lane.b32.xlu0 %v2788, %s2793
      %v2795 = vpop.permute.xlu0 %2794
      %v2796 = vlaneseq
      %v2797 = vshrl.u32 %v2796, 7
      %v2798 = vsub.s32 6, %v2797
      %v2799 = vrot.slane %v2487, %v2798
      %2801 = vbcast.lane.b32.xlu0 %v2799, 256
      %v2802 = vpop.permute.xlu0 %2801
      %s2804 = sor.u32 256, 8
      %2805 = vbcast.lane.b32.xlu0 %v2799, %s2804
      %v2806 = vpop.permute.xlu0 %2805
      %v2807 = vlaneseq
      %v2808 = vshrl.u32 %v2807, 7
      %v2809 = vsub.s32 7, %v2808
      %v2810 = vrot.slane %v2487, %v2809
      %2812 = vbcast.lane.b32.xlu0 %v2810, 256
      %v2813 = vpop.permute.xlu0 %2812
      %s2815 = sor.u32 256, 8
      %2816 = vbcast.lane.b32.xlu0 %v2810, %s2815
      %v2817 = vpop.permute.xlu0 %2816
      %v2818 = vlaneseq
      %v2819 = vshrl.u32 %v2818, 7
      %v2820 = vsub.s32 2, %v2819
      %v2821 = vrot.slane %v2497, %v2820
      %v2822 = vmul.f32 %v2736, %v2821
      %v2823 = vmul.f32 %v2740, %v2821
      %v2824 = vmul.f32 %v2747, %v2821
      %v2825 = vmul.f32 %v2751, %v2821
      %v2826 = vmul.f32 %v2758, %v2821
      %v2827 = vmul.f32 %v2762, %v2821
      %v2828 = vmul.f32 %v2769, %v2821
      %v2829 = vmul.f32 %v2773, %v2821
      %v2830 = vmul.f32 %v2780, %v2821
      %v2831 = vmul.f32 %v2784, %v2821
      %v2832 = vmul.f32 %v2791, %v2821
      %v2833 = vmul.f32 %v2795, %v2821
      %v2834 = vmul.f32 %v2802, %v2821
      %v2835 = vmul.f32 %v2806, %v2821
      %v2836 = vmul.f32 %v2813, %v2821
      %v2837 = vmul.f32 %v2817, %v2821
      %v2838 = vadd.f32 %v2714, %v2822
      %v2839 = vadd.f32 %v2715, %v2823
      %v2840 = vadd.f32 %v2716, %v2824
      %v2841 = vadd.f32 %v2717, %v2825
      %v2842 = vadd.f32 %v2718, %v2826
      %v2843 = vadd.f32 %v2719, %v2827
      %v2844 = vadd.f32 %v2720, %v2828
      %v2845 = vadd.f32 %v2721, %v2829
      %v2846 = vadd.f32 %v2722, %v2830
      %v2847 = vadd.f32 %v2723, %v2831
      %v2848 = vadd.f32 %v2724, %v2832
      %v2849 = vadd.f32 %v2725, %v2833
      %v2850 = vadd.f32 %v2726, %v2834
      %v2851 = vadd.f32 %v2727, %v2835
      %v2852 = vadd.f32 %v2728, %v2836
      %v2853 = vadd.f32 %v2729, %v2837
      %v2854 = vlaneseq
      %v2855 = vshrl.u32 %v2854, 7
      %v2856 = vsub.s32 0, %v2855
      %v2857 = vrot.slane %v2488, %v2856
      %2859 = vbcast.lane.b32.xlu0 %v2857, 256
      %v2860 = vpop.permute.xlu0 %2859
      %s2862 = sor.u32 256, 8
      %2863 = vbcast.lane.b32.xlu0 %v2857, %s2862
      %v2864 = vpop.permute.xlu0 %2863
      %v2865 = vlaneseq
      %v2866 = vshrl.u32 %v2865, 7
      %v2867 = vsub.s32 1, %v2866
      %v2868 = vrot.slane %v2488, %v2867
      %2870 = vbcast.lane.b32.xlu0 %v2868, 256
      %v2871 = vpop.permute.xlu0 %2870
      %s2873 = sor.u32 256, 8
      %2874 = vbcast.lane.b32.xlu0 %v2868, %s2873
      %v2875 = vpop.permute.xlu0 %2874
      %v2876 = vlaneseq
      %v2877 = vshrl.u32 %v2876, 7
      %v2878 = vsub.s32 2, %v2877
      %v2879 = vrot.slane %v2488, %v2878
      %2881 = vbcast.lane.b32.xlu0 %v2879, 256
      %v2882 = vpop.permute.xlu0 %2881
      %s2884 = sor.u32 256, 8
      %2885 = vbcast.lane.b32.xlu0 %v2879, %s2884
      %v2886 = vpop.permute.xlu0 %2885
      %v2887 = vlaneseq
      %v2888 = vshrl.u32 %v2887, 7
      %v2889 = vsub.s32 3, %v2888
      %v2890 = vrot.slane %v2488, %v2889
      %2892 = vbcast.lane.b32.xlu0 %v2890, 256
      %v2893 = vpop.permute.xlu0 %2892
      %s2895 = sor.u32 256, 8
      %2896 = vbcast.lane.b32.xlu0 %v2890, %s2895
      %v2897 = vpop.permute.xlu0 %2896
      %v2898 = vlaneseq
      %v2899 = vshrl.u32 %v2898, 7
      %v2900 = vsub.s32 4, %v2899
      %v2901 = vrot.slane %v2488, %v2900
      %2903 = vbcast.lane.b32.xlu0 %v2901, 256
      %v2904 = vpop.permute.xlu0 %2903
      %s2906 = sor.u32 256, 8
      %2907 = vbcast.lane.b32.xlu0 %v2901, %s2906
      %v2908 = vpop.permute.xlu0 %2907
      %v2909 = vlaneseq
      %v2910 = vshrl.u32 %v2909, 7
      %v2911 = vsub.s32 5, %v2910
      %v2912 = vrot.slane %v2488, %v2911
      %2914 = vbcast.lane.b32.xlu0 %v2912, 256
      %v2915 = vpop.permute.xlu0 %2914
      %s2917 = sor.u32 256, 8
      %2918 = vbcast.lane.b32.xlu0 %v2912, %s2917
      %v2919 = vpop.permute.xlu0 %2918
      %v2920 = vlaneseq
      %v2921 = vshrl.u32 %v2920, 7
      %v2922 = vsub.s32 6, %v2921
      %v2923 = vrot.slane %v2488, %v2922
      %2925 = vbcast.lane.b32.xlu0 %v2923, 256
      %v2926 = vpop.permute.xlu0 %2925
      %s2928 = sor.u32 256, 8
      %2929 = vbcast.lane.b32.xlu0 %v2923, %s2928
      %v2930 = vpop.permute.xlu0 %2929
      %v2931 = vlaneseq
      %v2932 = vshrl.u32 %v2931, 7
      %v2933 = vsub.s32 7, %v2932
      %v2934 = vrot.slane %v2488, %v2933
      %2936 = vbcast.lane.b32.xlu0 %v2934, 256
      %v2937 = vpop.permute.xlu0 %2936
      %s2939 = sor.u32 256, 8
      %2940 = vbcast.lane.b32.xlu0 %v2934, %s2939
      %v2941 = vpop.permute.xlu0 %2940
      %v2942 = vlaneseq
      %v2943 = vshrl.u32 %v2942, 7
      %v2944 = vsub.s32 3, %v2943
      %v2945 = vrot.slane %v2497, %v2944
      %v2946 = vmul.f32 %v2860, %v2945
      %v2947 = vmul.f32 %v2864, %v2945
      %v2948 = vmul.f32 %v2871, %v2945
      %v2949 = vmul.f32 %v2875, %v2945
      %v2950 = vmul.f32 %v2882, %v2945
      %v2951 = vmul.f32 %v2886, %v2945
      %v2952 = vmul.f32 %v2893, %v2945
      %v2953 = vmul.f32 %v2897, %v2945
      %v2954 = vmul.f32 %v2904, %v2945
      %v2955 = vmul.f32 %v2908, %v2945
      %v2956 = vmul.f32 %v2915, %v2945
      %v2957 = vmul.f32 %v2919, %v2945
      %v2958 = vmul.f32 %v2926, %v2945
      %v2959 = vmul.f32 %v2930, %v2945
      %v2960 = vmul.f32 %v2937, %v2945
      %v2961 = vmul.f32 %v2941, %v2945
      %v2962 = vadd.f32 %v2838, %v2946
      %v2963 = vadd.f32 %v2839, %v2947
      %v2964 = vadd.f32 %v2840, %v2948
      %v2965 = vadd.f32 %v2841, %v2949
      %v2966 = vadd.f32 %v2842, %v2950
      %v2967 = vadd.f32 %v2843, %v2951
      %v2968 = vadd.f32 %v2844, %v2952
      %v2969 = vadd.f32 %v2845, %v2953
      %v2970 = vadd.f32 %v2846, %v2954
      %v2971 = vadd.f32 %v2847, %v2955
      %v2972 = vadd.f32 %v2848, %v2956
      %v2973 = vadd.f32 %v2849, %v2957
      %v2974 = vadd.f32 %v2850, %v2958
      %v2975 = vadd.f32 %v2851, %v2959
      %v2976 = vadd.f32 %v2852, %v2960
      %v2977 = vadd.f32 %v2853, %v2961
      %v2978 = vlaneseq
      %v2979 = vshrl.u32 %v2978, 7
      %v2980 = vsub.s32 0, %v2979
      %v2981 = vrot.slane %v2496, %v2980
      %2983 = vbcast.lane.b32.xlu0 %v2981, 256
      %v2984 = vpop.permute.xlu0 %2983
      %s2986 = sor.u32 256, 8
      %2987 = vbcast.lane.b32.xlu0 %v2981, %s2986
      %v2988 = vpop.permute.xlu0 %2987
      %v2989 = vlaneseq
      %v2990 = vshrl.u32 %v2989, 7
      %v2991 = vsub.s32 1, %v2990
      %v2992 = vrot.slane %v2496, %v2991
      %2994 = vbcast.lane.b32.xlu0 %v2992, 256
      %v2995 = vpop.permute.xlu0 %2994
      %s2997 = sor.u32 256, 8
      %2998 = vbcast.lane.b32.xlu0 %v2992, %s2997
      %v2999 = vpop.permute.xlu0 %2998
      %v3000 = vlaneseq
      %v3001 = vshrl.u32 %v3000, 7
      %v3002 = vsub.s32 2, %v3001
      %v3003 = vrot.slane %v2496, %v3002
      %3005 = vbcast.lane.b32.xlu0 %v3003, 256
      %v3006 = vpop.permute.xlu0 %3005
      %s3008 = sor.u32 256, 8
      %3009 = vbcast.lane.b32.xlu0 %v3003, %s3008
      %v3010 = vpop.permute.xlu0 %3009
      %v3011 = vlaneseq
      %v3012 = vshrl.u32 %v3011, 7
      %v3013 = vsub.s32 3, %v3012
      %v3014 = vrot.slane %v2496, %v3013
      %3016 = vbcast.lane.b32.xlu0 %v3014, 256
      %v3017 = vpop.permute.xlu0 %3016
      %s3019 = sor.u32 256, 8
      %3020 = vbcast.lane.b32.xlu0 %v3014, %s3019
      %v3021 = vpop.permute.xlu0 %3020
      %v3022 = vlaneseq
      %v3023 = vshrl.u32 %v3022, 7
      %v3024 = vsub.s32 4, %v3023
      %v3025 = vrot.slane %v2496, %v3024
      %3027 = vbcast.lane.b32.xlu0 %v3025, 256
      %v3028 = vpop.permute.xlu0 %3027
      %s3030 = sor.u32 256, 8
      %3031 = vbcast.lane.b32.xlu0 %v3025, %s3030
      %v3032 = vpop.permute.xlu0 %3031
      %v3033 = vlaneseq
      %v3034 = vshrl.u32 %v3033, 7
      %v3035 = vsub.s32 5, %v3034
      %v3036 = vrot.slane %v2496, %v3035
      %3038 = vbcast.lane.b32.xlu0 %v3036, 256
      %v3039 = vpop.permute.xlu0 %3038
      %s3041 = sor.u32 256, 8
      %3042 = vbcast.lane.b32.xlu0 %v3036, %s3041
      %v3043 = vpop.permute.xlu0 %3042
      %v3044 = vlaneseq
      %v3045 = vshrl.u32 %v3044, 7
      %v3046 = vsub.s32 6, %v3045
      %v3047 = vrot.slane %v2496, %v3046
      %3049 = vbcast.lane.b32.xlu0 %v3047, 256
      %v3050 = vpop.permute.xlu0 %3049
      %s3052 = sor.u32 256, 8
      %3053 = vbcast.lane.b32.xlu0 %v3047, %s3052
      %v3054 = vpop.permute.xlu0 %3053
      %v3055 = vlaneseq
      %v3056 = vshrl.u32 %v3055, 7
      %v3057 = vsub.s32 7, %v3056
      %v3058 = vrot.slane %v2496, %v3057
      %3060 = vbcast.lane.b32.xlu0 %v3058, 256
      %v3061 = vpop.permute.xlu0 %3060
      %s3063 = sor.u32 256, 8
      %3064 = vbcast.lane.b32.xlu0 %v3058, %s3063
      %v3065 = vpop.permute.xlu0 %3064
      %v3066 = vlaneseq
      %v3067 = vshrl.u32 %v3066, 7
      %v3068 = vsub.s32 4, %v3067
      %v3069 = vrot.slane %v2497, %v3068
      %v3070 = vmul.f32 %v2984, %v3069
      %v3071 = vmul.f32 %v2988, %v3069
      %v3072 = vmul.f32 %v2995, %v3069
      %v3073 = vmul.f32 %v2999, %v3069
      %v3074 = vmul.f32 %v3006, %v3069
      %v3075 = vmul.f32 %v3010, %v3069
      %v3076 = vmul.f32 %v3017, %v3069
      %v3077 = vmul.f32 %v3021, %v3069
      %v3078 = vmul.f32 %v3028, %v3069
      %v3079 = vmul.f32 %v3032, %v3069
      %v3080 = vmul.f32 %v3039, %v3069
      %v3081 = vmul.f32 %v3043, %v3069
      %v3082 = vmul.f32 %v3050, %v3069
      %v3083 = vmul.f32 %v3054, %v3069
      %v3084 = vmul.f32 %v3061, %v3069
      %v3085 = vmul.f32 %v3065, %v3069
      %v3086 = vadd.f32 %v2962, %v3070
      %v3087 = vadd.f32 %v2963, %v3071
      %v3088 = vadd.f32 %v2964, %v3072
      %v3089 = vadd.f32 %v2965, %v3073
      %v3090 = vadd.f32 %v2966, %v3074
      %v3091 = vadd.f32 %v2967, %v3075
      %v3092 = vadd.f32 %v2968, %v3076
      %v3093 = vadd.f32 %v2969, %v3077
      %v3094 = vadd.f32 %v2970, %v3078
      %v3095 = vadd.f32 %v2971, %v3079
      %v3096 = vadd.f32 %v2972, %v3080
      %v3097 = vadd.f32 %v2973, %v3081
      %v3098 = vadd.f32 %v2974, %v3082
      %v3099 = vadd.f32 %v2975, %v3083
      %v3100 = vadd.f32 %v2976, %v3084
      %v3101 = vadd.f32 %v2977, %v3085
      %v3102 = vld [vmem:[%s8] sm:$0x1]
      %v3103 = vld [vmem:[%s9] sm:$0x1]
      %vm3104 = vcmask 130048
      %v3105 = vsel %vm3104, %v3086, 0.0
      %3106 = vadd.xlane.f32.xlu0 %v3105
      %v3107 = vpop.xlane.xlu0 %3106
      %vm3108 = vcmask 122880
      %v3109 = vsel %vm3108, %v3087, 0.0
      %3110 = vadd.xlane.f32.xlu0 %v3109
      %v3111 = vpop.xlane.xlu0 %3110
      %v3112 = vsel %vm3104, %v3088, 0.0
      %3113 = vadd.xlane.f32.xlu0 %v3112
      %v3114 = vpop.xlane.xlu0 %3113
      %v3115 = vsel %vm3108, %v3089, 0.0
      %3116 = vadd.xlane.f32.xlu0 %v3115
      %v3117 = vpop.xlane.xlu0 %3116
      %v3118 = vsel %vm3104, %v3090, 0.0
      %3119 = vadd.xlane.f32.xlu0 %v3118
      %v3120 = vpop.xlane.xlu0 %3119
      %v3121 = vsel %vm3108, %v3091, 0.0
      %3122 = vadd.xlane.f32.xlu0 %v3121
      %v3123 = vpop.xlane.xlu0 %3122
      %v3124 = vsel %vm3104, %v3092, 0.0
      %3125 = vadd.xlane.f32.xlu0 %v3124
      %v3126 = vpop.xlane.xlu0 %3125
      %v3127 = vsel %vm3108, %v3093, 0.0
      %3128 = vadd.xlane.f32.xlu0 %v3127
      %v3129 = vpop.xlane.xlu0 %3128
      %v3130 = vsel %vm3104, %v3094, 0.0
      %3131 = vadd.xlane.f32.xlu0 %v3130
      %v3132 = vpop.xlane.xlu0 %3131
      %v3133 = vsel %vm3108, %v3095, 0.0
      %3134 = vadd.xlane.f32.xlu0 %v3133
      %v3135 = vpop.xlane.xlu0 %3134
      %v3136 = vsel %vm3104, %v3096, 0.0
      %3137 = vadd.xlane.f32.xlu0 %v3136
      %v3138 = vpop.xlane.xlu0 %3137
      %v3139 = vsel %vm3108, %v3097, 0.0
      %3140 = vadd.xlane.f32.xlu0 %v3139
      %v3141 = vpop.xlane.xlu0 %3140
      %v3142 = vsel %vm3104, %v3098, 0.0
      %3143 = vadd.xlane.f32.xlu0 %v3142
      %v3144 = vpop.xlane.xlu0 %3143
      %v3145 = vsel %vm3108, %v3099, 0.0
      %3146 = vadd.xlane.f32.xlu0 %v3145
      %v3147 = vpop.xlane.xlu0 %3146
      %v3148 = vsel %vm3104, %v3100, 0.0
      %3149 = vadd.xlane.f32.xlu0 %v3148
      %v3150 = vpop.xlane.xlu0 %3149
      %v3151 = vsel %vm3108, %v3101, 0.0
      %3152 = vadd.xlane.f32.xlu0 %v3151
      %v3153 = vpop.xlane.xlu0 %3152
      %v3154 = vrcp.pop 16.0
      %v3155 = vmul.f32 %v3107, %v3154
      %v3156 = vmul.f32 %v3111, %v3154
      %v3157 = vmul.f32 %v3114, %v3154
      %v3158 = vmul.f32 %v3117, %v3154
      %v3159 = vmul.f32 %v3120, %v3154
      %v3160 = vmul.f32 %v3123, %v3154
      %v3161 = vmul.f32 %v3126, %v3154
      %v3162 = vmul.f32 %v3129, %v3154
      %v3163 = vmul.f32 %v3132, %v3154
      %v3164 = vmul.f32 %v3135, %v3154
      %v3165 = vmul.f32 %v3138, %v3154
      %v3166 = vmul.f32 %v3141, %v3154
      %v3167 = vmul.f32 %v3144, %v3154
      %v3168 = vmul.f32 %v3147, %v3154
      %v3169 = vmul.f32 %v3150, %v3154
      %v3170 = vmul.f32 %v3153, %v3154
      %v3171 = vsub.f32 %v3086, %v3155
      %v3172 = vsub.f32 %v3087, %v3156
      %v3173 = vsub.f32 %v3088, %v3157
      %v3174 = vsub.f32 %v3089, %v3158
      %v3175 = vsub.f32 %v3090, %v3159
      %v3176 = vsub.f32 %v3091, %v3160
      %v3177 = vsub.f32 %v3092, %v3161
      %v3178 = vsub.f32 %v3093, %v3162
      %v3179 = vsub.f32 %v3094, %v3163
      %v3180 = vsub.f32 %v3095, %v3164
      %v3181 = vsub.f32 %v3096, %v3165
      %v3182 = vsub.f32 %v3097, %v3166
      %v3183 = vsub.f32 %v3098, %v3167
      %v3184 = vsub.f32 %v3099, %v3168
      %v3185 = vsub.f32 %v3100, %v3169
      %v3186 = vsub.f32 %v3101, %v3170
      %v3187 = vmul.f32 %v3171, %v3171
      %v3188 = vmul.f32 %v3172, %v3172
      %v3189 = vmul.f32 %v3173, %v3173
      %v3190 = vmul.f32 %v3174, %v3174
      %v3191 = vmul.f32 %v3175, %v3175
      %v3192 = vmul.f32 %v3176, %v3176
      %v3193 = vmul.f32 %v3177, %v3177
      %v3194 = vmul.f32 %v3178, %v3178
      %v3195 = vmul.f32 %v3179, %v3179
      %v3196 = vmul.f32 %v3180, %v3180
      %v3197 = vmul.f32 %v3181, %v3181
      %v3198 = vmul.f32 %v3182, %v3182
      %v3199 = vmul.f32 %v3183, %v3183
      %v3200 = vmul.f32 %v3184, %v3184
      %v3201 = vmul.f32 %v3185, %v3185
      %v3202 = vmul.f32 %v3186, %v3186
      %v3203 = vsel %vm3104, %v3187, 0.0
      %3204 = vadd.xlane.f32.xlu0 %v3203
      %v3205 = vpop.xlane.xlu0 %3204
      %v3206 = vsel %vm3108, %v3188, 0.0
      %3207 = vadd.xlane.f32.xlu0 %v3206
      %v3208 = vpop.xlane.xlu0 %3207
      %v3209 = vsel %vm3104, %v3189, 0.0
      %3210 = vadd.xlane.f32.xlu0 %v3209
      %v3211 = vpop.xlane.xlu0 %3210
      %v3212 = vsel %vm3108, %v3190, 0.0
      %3213 = vadd.xlane.f32.xlu0 %v3212
      %v3214 = vpop.xlane.xlu0 %3213
      %v3215 = vsel %vm3104, %v3191, 0.0
      %3216 = vadd.xlane.f32.xlu0 %v3215
      %v3217 = vpop.xlane.xlu0 %3216
      %v3218 = vsel %vm3108, %v3192, 0.0
      %3219 = vadd.xlane.f32.xlu0 %v3218
      %v3220 = vpop.xlane.xlu0 %3219
      %v3221 = vsel %vm3104, %v3193, 0.0
      %3222 = vadd.xlane.f32.xlu0 %v3221
      %v3223 = vpop.xlane.xlu0 %3222
      %v3224 = vsel %vm3108, %v3194, 0.0
      %3225 = vadd.xlane.f32.xlu0 %v3224
      %v3226 = vpop.xlane.xlu0 %3225
      %v3227 = vsel %vm3104, %v3195, 0.0
      %3228 = vadd.xlane.f32.xlu0 %v3227
      %v3229 = vpop.xlane.xlu0 %3228
      %v3230 = vsel %vm3108, %v3196, 0.0
      %3231 = vadd.xlane.f32.xlu0 %v3230
      %v3232 = vpop.xlane.xlu0 %3231
      %v3233 = vsel %vm3104, %v3197, 0.0
      %3234 = vadd.xlane.f32.xlu0 %v3233
      %v3235 = vpop.xlane.xlu0 %3234
      %v3236 = vsel %vm3108, %v3198, 0.0
      %3237 = vadd.xlane.f32.xlu0 %v3236
      %v3238 = vpop.xlane.xlu0 %3237
      %v3239 = vsel %vm3104, %v3199, 0.0
      %3240 = vadd.xlane.f32.xlu0 %v3239
      %v3241 = vpop.xlane.xlu0 %3240
      %v3242 = vsel %vm3108, %v3200, 0.0
      %3243 = vadd.xlane.f32.xlu0 %v3242
      %v3244 = vpop.xlane.xlu0 %3243
      %v3245 = vsel %vm3104, %v3201, 0.0
      %3246 = vadd.xlane.f32.xlu0 %v3245
      %v3247 = vpop.xlane.xlu0 %3246
      %v3248 = vsel %vm3108, %v3202, 0.0
      %3249 = vadd.xlane.f32.xlu0 %v3248
      %v3250 = vpop.xlane.xlu0 %3249
      %v3251 = vmul.f32 %v3205, %v3154
      %v3252 = vmul.f32 %v3208, %v3154
      %v3253 = vmul.f32 %v3211, %v3154
      %v3254 = vmul.f32 %v3214, %v3154
      %v3255 = vmul.f32 %v3217, %v3154
      %v3256 = vmul.f32 %v3220, %v3154
      %v3257 = vmul.f32 %v3223, %v3154
      %v3258 = vmul.f32 %v3226, %v3154
      %v3259 = vmul.f32 %v3229, %v3154
      %v3260 = vmul.f32 %v3232, %v3154
      %v3261 = vmul.f32 %v3235, %v3154
      %v3262 = vmul.f32 %v3238, %v3154
      %v3263 = vmul.f32 %v3241, %v3154
      %v3264 = vmul.f32 %v3244, %v3154
      %v3265 = vmul.f32 %v3247, %v3154
      %v3266 = vmul.f32 %v3250, %v3154
      %v3267 = vadd.f32 %v3251, 1e-06
      %v3268 = vadd.f32 %v3252, 1e-06
      %v3269 = vadd.f32 %v3253, 1e-06
      %v3270 = vadd.f32 %v3254, 1e-06
      %v3271 = vadd.f32 %v3255, 1e-06
      %v3272 = vadd.f32 %v3256, 1e-06
      %v3273 = vadd.f32 %v3257, 1e-06
      %v3274 = vadd.f32 %v3258, 1e-06
      %v3275 = vadd.f32 %v3259, 1e-06
      %v3276 = vadd.f32 %v3260, 1e-06
      %v3277 = vadd.f32 %v3261, 1e-06
      %v3278 = vadd.f32 %v3262, 1e-06
      %v3279 = vadd.f32 %v3263, 1e-06
      %v3280 = vadd.f32 %v3264, 1e-06
      %v3281 = vadd.f32 %v3265, 1e-06
      %v3282 = vadd.f32 %v3266, 1e-06
      %v3283 = vrsqrt.pop %v3267
      %v3284 = vrsqrt.pop %v3268
      %v3285 = vrsqrt.pop %v3269
      %v3286 = vrsqrt.pop %v3270
      %v3287 = vrsqrt.pop %v3271
      %v3288 = vrsqrt.pop %v3272
      %v3289 = vrsqrt.pop %v3273
      %v3290 = vrsqrt.pop %v3274
      %v3291 = vrsqrt.pop %v3275
      %v3292 = vrsqrt.pop %v3276
      %v3293 = vrsqrt.pop %v3277
      %v3294 = vrsqrt.pop %v3278
      %v3295 = vrsqrt.pop %v3279
      %v3296 = vrsqrt.pop %v3280
      %v3297 = vrsqrt.pop %v3281
      %v3298 = vrsqrt.pop %v3282
      %v3299 = vmul.f32 %v3171, %v3283
      %v3300 = vmul.f32 %v3172, %v3284
      %v3301 = vmul.f32 %v3173, %v3285
      %v3302 = vmul.f32 %v3174, %v3286
      %v3303 = vmul.f32 %v3175, %v3287
      %v3304 = vmul.f32 %v3176, %v3288
      %v3305 = vmul.f32 %v3177, %v3289
      %v3306 = vmul.f32 %v3178, %v3290
      %v3307 = vmul.f32 %v3179, %v3291
      %v3308 = vmul.f32 %v3180, %v3292
      %v3309 = vmul.f32 %v3181, %v3293
      %v3310 = vmul.f32 %v3182, %v3294
      %v3311 = vmul.f32 %v3183, %v3295
      %v3312 = vmul.f32 %v3184, %v3296
      %v3313 = vmul.f32 %v3185, %v3297
      %v3314 = vmul.f32 %v3186, %v3298
      %v3316 = vlaneseq
      %v3317 = vshrl.u32 %v3316, 7
      %v3318 = vsub.s32 0, %v3317
      %v3319 = vrot.slane %v3102, %v3318
      %v3321 = vmul.f32 %v3299, %v3319
      %v3322 = vmul.f32 %v3300, %v3319
      %v3323 = vmul.f32 %v3301, %v3319
      %v3324 = vmul.f32 %v3302, %v3319
      %v3325 = vmul.f32 %v3303, %v3319
      %v3326 = vmul.f32 %v3304, %v3319
      %v3327 = vmul.f32 %v3305, %v3319
      %v3328 = vmul.f32 %v3306, %v3319
      %v3329 = vmul.f32 %v3307, %v3319
      %v3330 = vmul.f32 %v3308, %v3319
      %v3331 = vmul.f32 %v3309, %v3319
      %v3332 = vmul.f32 %v3310, %v3319
      %v3333 = vmul.f32 %v3311, %v3319
      %v3334 = vmul.f32 %v3312, %v3319
      %v3335 = vmul.f32 %v3313, %v3319
      %v3336 = vmul.f32 %v3314, %v3319
      %v3338 = vlaneseq
      %v3339 = vshrl.u32 %v3338, 7
      %v3340 = vsub.s32 0, %v3339
      %v3341 = vrot.slane %v3103, %v3340
      %v3343 = vadd.f32 %v3321, %v3341
      %v3344 = vadd.f32 %v3322, %v3341
      %v3345 = vadd.f32 %v3323, %v3341
      %v3346 = vadd.f32 %v3324, %v3341
      %v3347 = vadd.f32 %v3325, %v3341
      %v3348 = vadd.f32 %v3326, %v3341
      %v3349 = vadd.f32 %v3327, %v3341
      %v3350 = vadd.f32 %v3328, %v3341
      %v3351 = vadd.f32 %v3329, %v3341
      %v3352 = vadd.f32 %v3330, %v3341
      %v3353 = vadd.f32 %v3331, %v3341
      %v3354 = vadd.f32 %v3332, %v3341
      %v3355 = vadd.f32 %v3333, %v3341
      %v3356 = vadd.f32 %v3334, %v3341
      %v3357 = vadd.f32 %v3335, %v3341
      %v3358 = vadd.f32 %v3336, %v3341
      %3359 = vst.msk [vmem:[#allocation2] sm:$0xff] %vm3104, 0.0
      %vm3360 = vcmask 124928
      %3361 = vst.msk [vmem:[#allocation2 + $0x8] sm:$0x7] %vm3360, 0.0
      %3362 = vst.msk [vmem:[#allocation2 + $0x10] sm:$0xff] %vm3104, 0.0
      %3363 = vst.msk [vmem:[#allocation2 + $0x18] sm:$0x7] %vm3360, 0.0
      %3364 = vst.msk [vmem:[#allocation2 + $0x20] sm:$0xff] %vm3104, 0.0
      %3365 = vst.msk [vmem:[#allocation2 + $0x28] sm:$0x7] %vm3360, 0.0
      %3366 = vst.msk [vmem:[#allocation2 + $0x30] sm:$0xff] %vm3104, 0.0
      %3367 = vst.msk [vmem:[#allocation2 + $0x38] sm:$0x7] %vm3360, 0.0
      %3368 = vst.msk [vmem:[#allocation2 + $0x40] sm:$0xff] %vm3104, 0.0
      %3369 = vst.msk [vmem:[#allocation2 + $0x48] sm:$0x7] %vm3360, 0.0
      %3370 = vst.msk [vmem:[#allocation2 + $0x50] sm:$0xff] %vm3104, 0.0
      %3371 = vst.msk [vmem:[#allocation2 + $0x58] sm:$0x7] %vm3360, 0.0
      %3372 = vst.msk [vmem:[#allocation2 + $0x60] sm:$0xff] %vm3104, 0.0
      %3373 = vst.msk [vmem:[#allocation2 + $0x68] sm:$0x7] %vm3360, 0.0
      %3374 = vst.msk [vmem:[#allocation2 + $0x70] sm:$0xff] %vm3104, 0.0
      %3375 = vst.msk [vmem:[#allocation2 + $0x78] sm:$0x7] %vm3360, 0.0
      %3376 = vst.msk [vmem:[#allocation2 + $0x80] sm:$0xff] %vm3104, 0.0
      %3377 = vst.msk [vmem:[#allocation2 + $0x88] sm:$0x7] %vm3360, 0.0
      %3378 = vst.msk [vmem:[#allocation2 + $0x90] sm:$0xff] %vm3104, 0.0
      %3379 = vst.msk [vmem:[#allocation2 + $0x98] sm:$0x7] %vm3360, 0.0
      %s3380 = scalar_lea.vmem [#allocation2], 16
      %3381 = vst.msk [vmem:[%s3380 + $0x1] sm:$0xff] %vm3104, %v3343
      %3382 = vst.msk [vmem:[%s3380 + $0x9] sm:$0x1] %vm3108, %v3344
      %3383 = vst.msk [vmem:[%s3380 + $0x11] sm:$0xff] %vm3104, %v3345
      %3384 = vst.msk [vmem:[%s3380 + $0x19] sm:$0x1] %vm3108, %v3346
      %3385 = vst.msk [vmem:[%s3380 + $0x21] sm:$0xff] %vm3104, %v3347
      %3386 = vst.msk [vmem:[%s3380 + $0x29] sm:$0x1] %vm3108, %v3348
      %3387 = vst.msk [vmem:[%s3380 + $0x31] sm:$0xff] %vm3104, %v3349
      %3388 = vst.msk [vmem:[%s3380 + $0x39] sm:$0x1] %vm3108, %v3350
      %3389 = vst.msk [vmem:[%s3380 + $0x41] sm:$0xff] %vm3104, %v3351
      %3390 = vst.msk [vmem:[%s3380 + $0x49] sm:$0x1] %vm3108, %v3352
      %3391 = vst.msk [vmem:[%s3380 + $0x51] sm:$0xff] %vm3104, %v3353
      %3392 = vst.msk [vmem:[%s3380 + $0x59] sm:$0x1] %vm3108, %v3354
      %3393 = vst.msk [vmem:[%s3380 + $0x61] sm:$0xff] %vm3104, %v3355
      %3394 = vst.msk [vmem:[%s3380 + $0x69] sm:$0x1] %vm3108, %v3356
      %3395 = vst.msk [vmem:[%s3380 + $0x71] sm:$0xff] %vm3104, %v3357
      %3396 = vst.msk [vmem:[%s3380 + $0x79] sm:$0x1] %vm3108, %v3358
      %v3397 = vld [vmem:[#allocation2] sm:$0xff]
      %v3398 = vld [vmem:[#allocation2 + $0x8] sm:$0x7]
      %v3399 = vld [vmem:[#allocation2 + $0x10] sm:$0xff]
      %v3400 = vld [vmem:[#allocation2 + $0x18] sm:$0x7]
      %v3401 = vld [vmem:[#allocation2 + $0x20] sm:$0xff]
      %v3402 = vld [vmem:[#allocation2 + $0x28] sm:$0x7]
      %v3403 = vld [vmem:[#allocation2 + $0x30] sm:$0xff]
      %v3404 = vld [vmem:[#allocation2 + $0x38] sm:$0x7]
      %v3405 = vld [vmem:[#allocation2 + $0x40] sm:$0xff]
      %v3406 = vld [vmem:[#allocation2 + $0x48] sm:$0x7]
      %v3407 = vld [vmem:[#allocation2 + $0x50] sm:$0xff]
      %v3408 = vld [vmem:[#allocation2 + $0x58] sm:$0x7]
      %v3409 = vld [vmem:[#allocation2 + $0x60] sm:$0xff]
      %v3410 = vld [vmem:[#allocation2 + $0x68] sm:$0x7]
      %v3411 = vld [vmem:[#allocation2 + $0x70] sm:$0xff]
      %v3412 = vld [vmem:[#allocation2 + $0x78] sm:$0x7]
      %v3413 = vld [vmem:[#allocation2 + $0x80] sm:$0xff]
      %v3414 = vld [vmem:[#allocation2 + $0x88] sm:$0x7]
      %v3415 = vld [vmem:[#allocation2 + $0x90] sm:$0xff]
      %v3416 = vld [vmem:[#allocation2 + $0x98] sm:$0x7]
      %v3417 = vld [vmem:[%s10] sm:$0xff]
      %v3418 = vld [vmem:[%s10 + $0x8] sm:$0x1]
      %v3419 = vlaneseq
      %v3420 = vshrl.u32 %v3419, 7
      %v3421 = vsub.s32 0, %v3420
      %v3422 = vrot.slane %v3417, %v3421
      %v3423 = vmul.f32 %v3397, %v3422
      %v3424 = vmul.f32 %v3398, %v3422
      %v3425 = vmul.f32 %v3399, %v3422
      %v3426 = vmul.f32 %v3400, %v3422
      %v3427 = vmul.f32 %v3401, %v3422
      %v3428 = vmul.f32 %v3402, %v3422
      %v3429 = vmul.f32 %v3403, %v3422
      %v3430 = vmul.f32 %v3404, %v3422
      %v3431 = vmul.f32 %v3405, %v3422
      %v3432 = vmul.f32 %v3406, %v3422
      %v3433 = vmul.f32 %v3407, %v3422
      %v3434 = vmul.f32 %v3408, %v3422
      %v3435 = vmul.f32 %v3409, %v3422
      %v3436 = vmul.f32 %v3410, %v3422
      %v3437 = vmul.f32 %v3411, %v3422
      %v3438 = vmul.f32 %v3412, %v3422
      %v3439 = vadd.f32 %v3423, 0.0
      %v3440 = vadd.f32 %v3424, 0.0
      %v3441 = vadd.f32 %v3425, 0.0
      %v3442 = vadd.f32 %v3426, 0.0
      %v3443 = vadd.f32 %v3427, 0.0
      %v3444 = vadd.f32 %v3428, 0.0
      %v3445 = vadd.f32 %v3429, 0.0
      %v3446 = vadd.f32 %v3430, 0.0
      %v3447 = vadd.f32 %v3431, 0.0
      %v3448 = vadd.f32 %v3432, 0.0
      %v3449 = vadd.f32 %v3433, 0.0
      %v3450 = vadd.f32 %v3434, 0.0
      %v3451 = vadd.f32 %v3435, 0.0
      %v3452 = vadd.f32 %v3436, 0.0
      %v3453 = vadd.f32 %v3437, 0.0
      %v3454 = vadd.f32 %v3438, 0.0
      %v3455 = vlaneseq
      %v3456 = vshrl.u32 %v3455, 7
      %v3457 = vsub.s32 1, %v3456
      %v3458 = vrot.slane %v3417, %v3457
      %v3459 = vmul.f32 %v3399, %v3458
      %v3460 = vmul.f32 %v3400, %v3458
      %v3461 = vmul.f32 %v3401, %v3458
      %v3462 = vmul.f32 %v3402, %v3458
      %v3463 = vmul.f32 %v3403, %v3458
      %v3464 = vmul.f32 %v3404, %v3458
      %v3465 = vmul.f32 %v3405, %v3458
      %v3466 = vmul.f32 %v3406, %v3458
      %v3467 = vmul.f32 %v3407, %v3458
      %v3468 = vmul.f32 %v3408, %v3458
      %v3469 = vmul.f32 %v3409, %v3458
      %v3470 = vmul.f32 %v3410, %v3458
      %v3471 = vmul.f32 %v3411, %v3458
      %v3472 = vmul.f32 %v3412, %v3458
      %v3473 = vmul.f32 %v3413, %v3458
      %v3474 = vmul.f32 %v3414, %v3458
      %v3475 = vadd.f32 %v3439, %v3459
      %v3476 = vadd.f32 %v3440, %v3460
      %v3477 = vadd.f32 %v3441, %v3461
      %v3478 = vadd.f32 %v3442, %v3462
      %v3479 = vadd.f32 %v3443, %v3463
      %v3480 = vadd.f32 %v3444, %v3464
      %v3481 = vadd.f32 %v3445, %v3465
      %v3482 = vadd.f32 %v3446, %v3466
      %v3483 = vadd.f32 %v3447, %v3467
      %v3484 = vadd.f32 %v3448, %v3468
      %v3485 = vadd.f32 %v3449, %v3469
      %v3486 = vadd.f32 %v3450, %v3470
      %v3487 = vadd.f32 %v3451, %v3471
      %v3488 = vadd.f32 %v3452, %v3472
      %v3489 = vadd.f32 %v3453, %v3473
      %v3490 = vadd.f32 %v3454, %v3474
      %v3491 = vlaneseq
      %v3492 = vshrl.u32 %v3491, 7
      %v3493 = vsub.s32 2, %v3492
      %v3494 = vrot.slane %v3417, %v3493
      %v3495 = vmul.f32 %v3401, %v3494
      %v3496 = vmul.f32 %v3402, %v3494
      %v3497 = vmul.f32 %v3403, %v3494
      %v3498 = vmul.f32 %v3404, %v3494
      %v3499 = vmul.f32 %v3405, %v3494
      %v3500 = vmul.f32 %v3406, %v3494
      %v3501 = vmul.f32 %v3407, %v3494
      %v3502 = vmul.f32 %v3408, %v3494
      %v3503 = vmul.f32 %v3409, %v3494
      %v3504 = vmul.f32 %v3410, %v3494
      %v3505 = vmul.f32 %v3411, %v3494
      %v3506 = vmul.f32 %v3412, %v3494
      %v3507 = vmul.f32 %v3413, %v3494
      %v3508 = vmul.f32 %v3414, %v3494
      %v3509 = vmul.f32 %v3415, %v3494
      %v3510 = vmul.f32 %v3416, %v3494
      %v3511 = vadd.f32 %v3475, %v3495
      %v3512 = vadd.f32 %v3476, %v3496
      %v3513 = vadd.f32 %v3477, %v3497
      %v3514 = vadd.f32 %v3478, %v3498
      %v3515 = vadd.f32 %v3479, %v3499
      %v3516 = vadd.f32 %v3480, %v3500
      %v3517 = vadd.f32 %v3481, %v3501
      %v3518 = vadd.f32 %v3482, %v3502
      %v3519 = vadd.f32 %v3483, %v3503
      %v3520 = vadd.f32 %v3484, %v3504
      %v3521 = vadd.f32 %v3485, %v3505
      %v3522 = vadd.f32 %v3486, %v3506
      %v3523 = vadd.f32 %v3487, %v3507
      %v3524 = vadd.f32 %v3488, %v3508
      %v3525 = vadd.f32 %v3489, %v3509
      %v3526 = vadd.f32 %v3490, %v3510
      %v3527 = vlaneseq
      %v3528 = vshrl.u32 %v3527, 7
      %v3529 = vsub.s32 3, %v3528
      %v3530 = vrot.slane %v3417, %v3529
      %v3531 = vmul.f32 %v3397, %v3530
      %v3532 = vmul.f32 %v3398, %v3530
      %v3533 = vmul.f32 %v3399, %v3530
      %v3534 = vmul.f32 %v3400, %v3530
      %v3535 = vmul.f32 %v3401, %v3530
      %v3536 = vmul.f32 %v3402, %v3530
      %v3537 = vmul.f32 %v3403, %v3530
      %v3538 = vmul.f32 %v3404, %v3530
      %v3539 = vmul.f32 %v3405, %v3530
      %v3540 = vmul.f32 %v3406, %v3530
      %v3541 = vmul.f32 %v3407, %v3530
      %v3542 = vmul.f32 %v3408, %v3530
      %v3543 = vmul.f32 %v3409, %v3530
      %v3544 = vmul.f32 %v3410, %v3530
      %v3545 = vmul.f32 %v3411, %v3530
      %v3546 = vmul.f32 %v3412, %v3530
      %v3563 = vrot.slane %v3531, 1
      %v3564 = vrot.slane %v3532, 1
      %v3565 = vsel %vm817, %v3563, %v3564
      %v3566 = vrot.slane %v3533, 1
      %v3567 = vrot.slane %v3534, 1
      %v3568 = vsel %vm817, %v3566, %v3567
      %v3569 = vrot.slane %v3535, 1
      %v3570 = vrot.slane %v3536, 1
      %v3571 = vsel %vm817, %v3569, %v3570
      %v3572 = vrot.slane %v3537, 1
      %v3573 = vrot.slane %v3538, 1
      %v3574 = vsel %vm817, %v3572, %v3573
      %v3575 = vrot.slane %v3539, 1
      %v3576 = vrot.slane %v3540, 1
      %v3577 = vsel %vm817, %v3575, %v3576
      %v3578 = vrot.slane %v3541, 1
      %v3579 = vrot.slane %v3542, 1
      %v3580 = vsel %vm817, %v3578, %v3579
      %v3581 = vrot.slane %v3543, 1
      %v3582 = vrot.slane %v3544, 1
      %v3583 = vsel %vm817, %v3581, %v3582
      %v3584 = vrot.slane %v3545, 1
      %v3585 = vrot.slane %v3546, 1
      %v3586 = vsel %vm817, %v3584, %v3585
      %v3603 = vadd.f32 %v3511, %v3565
      %v3604 = vadd.f32 %v3512, %v3564
      %v3605 = vadd.f32 %v3513, %v3568
      %v3606 = vadd.f32 %v3514, %v3567
      %v3607 = vadd.f32 %v3515, %v3571
      %v3608 = vadd.f32 %v3516, %v3570
      %v3609 = vadd.f32 %v3517, %v3574
      %v3610 = vadd.f32 %v3518, %v3573
      %v3611 = vadd.f32 %v3519, %v3577
      %v3612 = vadd.f32 %v3520, %v3576
      %v3613 = vadd.f32 %v3521, %v3580
      %v3614 = vadd.f32 %v3522, %v3579
      %v3615 = vadd.f32 %v3523, %v3583
      %v3616 = vadd.f32 %v3524, %v3582
      %v3617 = vadd.f32 %v3525, %v3586
      %v3618 = vadd.f32 %v3526, %v3585
      %v3619 = vlaneseq
      %v3620 = vshrl.u32 %v3619, 7
      %v3621 = vsub.s32 4, %v3620
      %v3622 = vrot.slane %v3417, %v3621
      %v3623 = vmul.f32 %v3399, %v3622
      %v3624 = vmul.f32 %v3400, %v3622
      %v3625 = vmul.f32 %v3401, %v3622
      %v3626 = vmul.f32 %v3402, %v3622
      %v3627 = vmul.f32 %v3403, %v3622
      %v3628 = vmul.f32 %v3404, %v3622
      %v3629 = vmul.f32 %v3405, %v3622
      %v3630 = vmul.f32 %v3406, %v3622
      %v3631 = vmul.f32 %v3407, %v3622
      %v3632 = vmul.f32 %v3408, %v3622
      %v3633 = vmul.f32 %v3409, %v3622
      %v3634 = vmul.f32 %v3410, %v3622
      %v3635 = vmul.f32 %v3411, %v3622
      %v3636 = vmul.f32 %v3412, %v3622
      %v3637 = vmul.f32 %v3413, %v3622
      %v3638 = vmul.f32 %v3414, %v3622
      %v3655 = vrot.slane %v3623, 1
      %v3656 = vrot.slane %v3624, 1
      %v3657 = vsel %vm817, %v3655, %v3656
      %v3658 = vrot.slane %v3625, 1
      %v3659 = vrot.slane %v3626, 1
      %v3660 = vsel %vm817, %v3658, %v3659
      %v3661 = vrot.slane %v3627, 1
      %v3662 = vrot.slane %v3628, 1
      %v3663 = vsel %vm817, %v3661, %v3662
      %v3664 = vrot.slane %v3629, 1
      %v3665 = vrot.slane %v3630, 1
      %v3666 = vsel %vm817, %v3664, %v3665
      %v3667 = vrot.slane %v3631, 1
      %v3668 = vrot.slane %v3632, 1
      %v3669 = vsel %vm817, %v3667, %v3668
      %v3670 = vrot.slane %v3633, 1
      %v3671 = vrot.slane %v3634, 1
      %v3672 = vsel %vm817, %v3670, %v3671
      %v3673 = vrot.slane %v3635, 1
      %v3674 = vrot.slane %v3636, 1
      %v3675 = vsel %vm817, %v3673, %v3674
      %v3676 = vrot.slane %v3637, 1
      %v3677 = vrot.slane %v3638, 1
      %v3678 = vsel %vm817, %v3676, %v3677
      %v3695 = vadd.f32 %v3603, %v3657
      %v3696 = vadd.f32 %v3604, %v3656
      %v3697 = vadd.f32 %v3605, %v3660
      %v3698 = vadd.f32 %v3606, %v3659
      %v3699 = vadd.f32 %v3607, %v3663
      %v3700 = vadd.f32 %v3608, %v3662
      %v3701 = vadd.f32 %v3609, %v3666
      %v3702 = vadd.f32 %v3610, %v3665
      %v3703 = vadd.f32 %v3611, %v3669
      %v3704 = vadd.f32 %v3612, %v3668
      %v3705 = vadd.f32 %v3613, %v3672
      %v3706 = vadd.f32 %v3614, %v3671
      %v3707 = vadd.f32 %v3615, %v3675
      %v3708 = vadd.f32 %v3616, %v3674
      %v3709 = vadd.f32 %v3617, %v3678
      %v3710 = vadd.f32 %v3618, %v3677
      %v3711 = vlaneseq
      %v3712 = vshrl.u32 %v3711, 7
      %v3713 = vsub.s32 5, %v3712
      %v3714 = vrot.slane %v3417, %v3713
      %v3715 = vmul.f32 %v3401, %v3714
      %v3716 = vmul.f32 %v3402, %v3714
      %v3717 = vmul.f32 %v3403, %v3714
      %v3718 = vmul.f32 %v3404, %v3714
      %v3719 = vmul.f32 %v3405, %v3714
      %v3720 = vmul.f32 %v3406, %v3714
      %v3721 = vmul.f32 %v3407, %v3714
      %v3722 = vmul.f32 %v3408, %v3714
      %v3723 = vmul.f32 %v3409, %v3714
      %v3724 = vmul.f32 %v3410, %v3714
      %v3725 = vmul.f32 %v3411, %v3714
      %v3726 = vmul.f32 %v3412, %v3714
      %v3727 = vmul.f32 %v3413, %v3714
      %v3728 = vmul.f32 %v3414, %v3714
      %v3729 = vmul.f32 %v3415, %v3714
      %v3730 = vmul.f32 %v3416, %v3714
      %v3747 = vrot.slane %v3715, 1
      %v3748 = vrot.slane %v3716, 1
      %v3749 = vsel %vm817, %v3747, %v3748
      %v3750 = vrot.slane %v3717, 1
      %v3751 = vrot.slane %v3718, 1
      %v3752 = vsel %vm817, %v3750, %v3751
      %v3753 = vrot.slane %v3719, 1
      %v3754 = vrot.slane %v3720, 1
      %v3755 = vsel %vm817, %v3753, %v3754
      %v3756 = vrot.slane %v3721, 1
      %v3757 = vrot.slane %v3722, 1
      %v3758 = vsel %vm817, %v3756, %v3757
      %v3759 = vrot.slane %v3723, 1
      %v3760 = vrot.slane %v3724, 1
      %v3761 = vsel %vm817, %v3759, %v3760
      %v3762 = vrot.slane %v3725, 1
      %v3763 = vrot.slane %v3726, 1
      %v3764 = vsel %vm817, %v3762, %v3763
      %v3765 = vrot.slane %v3727, 1
      %v3766 = vrot.slane %v3728, 1
      %v3767 = vsel %vm817, %v3765, %v3766
      %v3768 = vrot.slane %v3729, 1
      %v3769 = vrot.slane %v3730, 1
      %v3770 = vsel %vm817, %v3768, %v3769
      %v3787 = vadd.f32 %v3695, %v3749
      %v3788 = vadd.f32 %v3696, %v3748
      %v3789 = vadd.f32 %v3697, %v3752
      %v3790 = vadd.f32 %v3698, %v3751
      %v3791 = vadd.f32 %v3699, %v3755
      %v3792 = vadd.f32 %v3700, %v3754
      %v3793 = vadd.f32 %v3701, %v3758
      %v3794 = vadd.f32 %v3702, %v3757
      %v3795 = vadd.f32 %v3703, %v3761
      %v3796 = vadd.f32 %v3704, %v3760
      %v3797 = vadd.f32 %v3705, %v3764
      %v3798 = vadd.f32 %v3706, %v3763
      %v3799 = vadd.f32 %v3707, %v3767
      %v3800 = vadd.f32 %v3708, %v3766
      %v3801 = vadd.f32 %v3709, %v3770
      %v3802 = vadd.f32 %v3710, %v3769
      %v3803 = vlaneseq
      %v3804 = vshrl.u32 %v3803, 7
      %v3805 = vsub.s32 6, %v3804
      %v3806 = vrot.slane %v3417, %v3805
      %v3807 = vmul.f32 %v3397, %v3806
      %v3808 = vmul.f32 %v3398, %v3806
      %v3809 = vmul.f32 %v3399, %v3806
      %v3810 = vmul.f32 %v3400, %v3806
      %v3811 = vmul.f32 %v3401, %v3806
      %v3812 = vmul.f32 %v3402, %v3806
      %v3813 = vmul.f32 %v3403, %v3806
      %v3814 = vmul.f32 %v3404, %v3806
      %v3815 = vmul.f32 %v3405, %v3806
      %v3816 = vmul.f32 %v3406, %v3806
      %v3817 = vmul.f32 %v3407, %v3806
      %v3818 = vmul.f32 %v3408, %v3806
      %v3819 = vmul.f32 %v3409, %v3806
      %v3820 = vmul.f32 %v3410, %v3806
      %v3821 = vmul.f32 %v3411, %v3806
      %v3822 = vmul.f32 %v3412, %v3806
      %v3839 = vrot.slane %v3807, 2
      %v3840 = vrot.slane %v3808, 2
      %v3841 = vsel %vm1284, %v3839, %v3840
      %v3842 = vrot.slane %v3809, 2
      %v3843 = vrot.slane %v3810, 2
      %v3844 = vsel %vm1284, %v3842, %v3843
      %v3845 = vrot.slane %v3811, 2
      %v3846 = vrot.slane %v3812, 2
      %v3847 = vsel %vm1284, %v3845, %v3846
      %v3848 = vrot.slane %v3813, 2
      %v3849 = vrot.slane %v3814, 2
      %v3850 = vsel %vm1284, %v3848, %v3849
      %v3851 = vrot.slane %v3815, 2
      %v3852 = vrot.slane %v3816, 2
      %v3853 = vsel %vm1284, %v3851, %v3852
      %v3854 = vrot.slane %v3817, 2
      %v3855 = vrot.slane %v3818, 2
      %v3856 = vsel %vm1284, %v3854, %v3855
      %v3857 = vrot.slane %v3819, 2
      %v3858 = vrot.slane %v3820, 2
      %v3859 = vsel %vm1284, %v3857, %v3858
      %v3860 = vrot.slane %v3821, 2
      %v3861 = vrot.slane %v3822, 2
      %v3862 = vsel %vm1284, %v3860, %v3861
      %v3879 = vadd.f32 %v3787, %v3841
      %v3880 = vadd.f32 %v3788, %v3840
      %v3881 = vadd.f32 %v3789, %v3844
      %v3882 = vadd.f32 %v3790, %v3843
      %v3883 = vadd.f32 %v3791, %v3847
      %v3884 = vadd.f32 %v3792, %v3846
      %v3885 = vadd.f32 %v3793, %v3850
      %v3886 = vadd.f32 %v3794, %v3849
      %v3887 = vadd.f32 %v3795, %v3853
      %v3888 = vadd.f32 %v3796, %v3852
      %v3889 = vadd.f32 %v3797, %v3856
      %v3890 = vadd.f32 %v3798, %v3855
      %v3891 = vadd.f32 %v3799, %v3859
      %v3892 = vadd.f32 %v3800, %v3858
      %v3893 = vadd.f32 %v3801, %v3862
      %v3894 = vadd.f32 %v3802, %v3861
      %v3895 = vlaneseq
      %v3896 = vshrl.u32 %v3895, 7
      %v3897 = vsub.s32 7, %v3896
      %v3898 = vrot.slane %v3417, %v3897
      %v3899 = vmul.f32 %v3399, %v3898
      %v3900 = vmul.f32 %v3400, %v3898
      %v3901 = vmul.f32 %v3401, %v3898
      %v3902 = vmul.f32 %v3402, %v3898
      %v3903 = vmul.f32 %v3403, %v3898
      %v3904 = vmul.f32 %v3404, %v3898
      %v3905 = vmul.f32 %v3405, %v3898
      %v3906 = vmul.f32 %v3406, %v3898
      %v3907 = vmul.f32 %v3407, %v3898
      %v3908 = vmul.f32 %v3408, %v3898
      %v3909 = vmul.f32 %v3409, %v3898
      %v3910 = vmul.f32 %v3410, %v3898
      %v3911 = vmul.f32 %v3411, %v3898
      %v3912 = vmul.f32 %v3412, %v3898
      %v3913 = vmul.f32 %v3413, %v3898
      %v3914 = vmul.f32 %v3414, %v3898
      %v3931 = vrot.slane %v3899, 2
      %v3932 = vrot.slane %v3900, 2
      %v3933 = vsel %vm1284, %v3931, %v3932
      %v3934 = vrot.slane %v3901, 2
      %v3935 = vrot.slane %v3902, 2
      %v3936 = vsel %vm1284, %v3934, %v3935
      %v3937 = vrot.slane %v3903, 2
      %v3938 = vrot.slane %v3904, 2
      %v3939 = vsel %vm1284, %v3937, %v3938
      %v3940 = vrot.slane %v3905, 2
      %v3941 = vrot.slane %v3906, 2
      %v3942 = vsel %vm1284, %v3940, %v3941
      %v3943 = vrot.slane %v3907, 2
      %v3944 = vrot.slane %v3908, 2
      %v3945 = vsel %vm1284, %v3943, %v3944
      %v3946 = vrot.slane %v3909, 2
      %v3947 = vrot.slane %v3910, 2
      %v3948 = vsel %vm1284, %v3946, %v3947
      %v3949 = vrot.slane %v3911, 2
      %v3950 = vrot.slane %v3912, 2
      %v3951 = vsel %vm1284, %v3949, %v3950
      %v3952 = vrot.slane %v3913, 2
      %v3953 = vrot.slane %v3914, 2
      %v3954 = vsel %vm1284, %v3952, %v3953
      %v3971 = vadd.f32 %v3879, %v3933
      %v3972 = vadd.f32 %v3880, %v3932
      %v3973 = vadd.f32 %v3881, %v3936
      %v3974 = vadd.f32 %v3882, %v3935
      %v3975 = vadd.f32 %v3883, %v3939
      %v3976 = vadd.f32 %v3884, %v3938
      %v3977 = vadd.f32 %v3885, %v3942
      %v3978 = vadd.f32 %v3886, %v3941
      %v3979 = vadd.f32 %v3887, %v3945
      %v3980 = vadd.f32 %v3888, %v3944
      %v3981 = vadd.f32 %v3889, %v3948
      %v3982 = vadd.f32 %v3890, %v3947
      %v3983 = vadd.f32 %v3891, %v3951
      %v3984 = vadd.f32 %v3892, %v3950
      %v3985 = vadd.f32 %v3893, %v3954
      %v3986 = vadd.f32 %v3894, %v3953
      %v3987 = vlaneseq
      %v3988 = vshrl.u32 %v3987, 7
      %v3989 = vsub.s32 0, %v3988
      %v3990 = vrot.slane %v3418, %v3989
      %v3991 = vmul.f32 %v3401, %v3990
      %v3992 = vmul.f32 %v3402, %v3990
      %v3993 = vmul.f32 %v3403, %v3990
      %v3994 = vmul.f32 %v3404, %v3990
      %v3995 = vmul.f32 %v3405, %v3990
      %v3996 = vmul.f32 %v3406, %v3990
      %v3997 = vmul.f32 %v3407, %v3990
      %v3998 = vmul.f32 %v3408, %v3990
      %v3999 = vmul.f32 %v3409, %v3990
      %v4000 = vmul.f32 %v3410, %v3990
      %v4001 = vmul.f32 %v3411, %v3990
      %v4002 = vmul.f32 %v3412, %v3990
      %v4003 = vmul.f32 %v3413, %v3990
      %v4004 = vmul.f32 %v3414, %v3990
      %v4005 = vmul.f32 %v3415, %v3990
      %v4006 = vmul.f32 %v3416, %v3990
      %v4023 = vrot.slane %v3991, 2
      %v4024 = vrot.slane %v3992, 2
      %v4025 = vsel %vm1284, %v4023, %v4024
      %v4026 = vrot.slane %v3993, 2
      %v4027 = vrot.slane %v3994, 2
      %v4028 = vsel %vm1284, %v4026, %v4027
      %v4029 = vrot.slane %v3995, 2
      %v4030 = vrot.slane %v3996, 2
      %v4031 = vsel %vm1284, %v4029, %v4030
      %v4032 = vrot.slane %v3997, 2
      %v4033 = vrot.slane %v3998, 2
      %v4034 = vsel %vm1284, %v4032, %v4033
      %v4035 = vrot.slane %v3999, 2
      %v4036 = vrot.slane %v4000, 2
      %v4037 = vsel %vm1284, %v4035, %v4036
      %v4038 = vrot.slane %v4001, 2
      %v4039 = vrot.slane %v4002, 2
      %v4040 = vsel %vm1284, %v4038, %v4039
      %v4041 = vrot.slane %v4003, 2
      %v4042 = vrot.slane %v4004, 2
      %v4043 = vsel %vm1284, %v4041, %v4042
      %v4044 = vrot.slane %v4005, 2
      %v4045 = vrot.slane %v4006, 2
      %v4046 = vsel %vm1284, %v4044, %v4045
      %v4063 = vadd.f32 %v3971, %v4025
      %v4064 = vadd.f32 %v3972, %v4024
      %v4065 = vadd.f32 %v3973, %v4028
      %v4066 = vadd.f32 %v3974, %v4027
      %v4067 = vadd.f32 %v3975, %v4031
      %v4068 = vadd.f32 %v3976, %v4030
      %v4069 = vadd.f32 %v3977, %v4034
      %v4070 = vadd.f32 %v3978, %v4033
      %v4071 = vadd.f32 %v3979, %v4037
      %v4072 = vadd.f32 %v3980, %v4036
      %v4073 = vadd.f32 %v3981, %v4040
      %v4074 = vadd.f32 %v3982, %v4039
      %v4075 = vadd.f32 %v3983, %v4043
      %v4076 = vadd.f32 %v3984, %v4042
      %v4077 = vadd.f32 %v3985, %v4046
      %v4078 = vadd.f32 %v3986, %v4045
      %v4079 = vld [vmem:[%s11] sm:$0x1]
      %v4081 = vlaneseq
      %v4082 = vshrl.u32 %v4081, 7
      %v4083 = vsub.s32 0, %v4082
      %v4084 = vrot.slane %v4079, %v4083
      %v4086 = vadd.f32 %v4063, %v4084
      %v4087 = vadd.f32 %v4064, %v4084
      %v4088 = vadd.f32 %v4065, %v4084
      %v4089 = vadd.f32 %v4066, %v4084
      %v4090 = vadd.f32 %v4067, %v4084
      %v4091 = vadd.f32 %v4068, %v4084
      %v4092 = vadd.f32 %v4069, %v4084
      %v4093 = vadd.f32 %v4070, %v4084
      %v4094 = vadd.f32 %v4071, %v4084
      %v4095 = vadd.f32 %v4072, %v4084
      %v4096 = vadd.f32 %v4073, %v4084
      %v4097 = vadd.f32 %v4074, %v4084
      %v4098 = vadd.f32 %v4075, %v4084
      %v4099 = vadd.f32 %v4076, %v4084
      %v4100 = vadd.f32 %v4077, %v4084
      %v4101 = vadd.f32 %v4078, %v4084
      %v4102 = vld [vmem:[%s12] sm:$0x1]
      %v4103 = vld [vmem:[%s13] sm:$0x1]
      %v4104 = vsel %vm3104, %v4086, 0.0
      %4105 = vadd.xlane.f32.xlu0 %v4104
      %v4106 = vpop.xlane.xlu0 %4105
      %v4107 = vsel %vm3108, %v4087, 0.0
      %4108 = vadd.xlane.f32.xlu0 %v4107
      %v4109 = vpop.xlane.xlu0 %4108
      %v4110 = vsel %vm3104, %v4088, 0.0
      %4111 = vadd.xlane.f32.xlu0 %v4110
      %v4112 = vpop.xlane.xlu0 %4111
      %v4113 = vsel %vm3108, %v4089, 0.0
      %4114 = vadd.xlane.f32.xlu0 %v4113
      %v4115 = vpop.xlane.xlu0 %4114
      %v4116 = vsel %vm3104, %v4090, 0.0
      %4117 = vadd.xlane.f32.xlu0 %v4116
      %v4118 = vpop.xlane.xlu0 %4117
      %v4119 = vsel %vm3108, %v4091, 0.0
      %4120 = vadd.xlane.f32.xlu0 %v4119
      %v4121 = vpop.xlane.xlu0 %4120
      %v4122 = vsel %vm3104, %v4092, 0.0
      %4123 = vadd.xlane.f32.xlu0 %v4122
      %v4124 = vpop.xlane.xlu0 %4123
      %v4125 = vsel %vm3108, %v4093, 0.0
      %4126 = vadd.xlane.f32.xlu0 %v4125
      %v4127 = vpop.xlane.xlu0 %4126
      %v4128 = vsel %vm3104, %v4094, 0.0
      %4129 = vadd.xlane.f32.xlu0 %v4128
      %v4130 = vpop.xlane.xlu0 %4129
      %v4131 = vsel %vm3108, %v4095, 0.0
      %4132 = vadd.xlane.f32.xlu0 %v4131
      %v4133 = vpop.xlane.xlu0 %4132
      %v4134 = vsel %vm3104, %v4096, 0.0
      %4135 = vadd.xlane.f32.xlu0 %v4134
      %v4136 = vpop.xlane.xlu0 %4135
      %v4137 = vsel %vm3108, %v4097, 0.0
      %4138 = vadd.xlane.f32.xlu0 %v4137
      %v4139 = vpop.xlane.xlu0 %4138
      %v4140 = vsel %vm3104, %v4098, 0.0
      %4141 = vadd.xlane.f32.xlu0 %v4140
      %v4142 = vpop.xlane.xlu0 %4141
      %v4143 = vsel %vm3108, %v4099, 0.0
      %4144 = vadd.xlane.f32.xlu0 %v4143
      %v4145 = vpop.xlane.xlu0 %4144
      %v4146 = vsel %vm3104, %v4100, 0.0
      %4147 = vadd.xlane.f32.xlu0 %v4146
      %v4148 = vpop.xlane.xlu0 %4147
      %v4149 = vsel %vm3108, %v4101, 0.0
      %4150 = vadd.xlane.f32.xlu0 %v4149
      %v4151 = vpop.xlane.xlu0 %4150
      %v4152 = vmul.f32 %v4106, %v3154
      %v4153 = vmul.f32 %v4109, %v3154
      %v4154 = vmul.f32 %v4112, %v3154
      %v4155 = vmul.f32 %v4115, %v3154
      %v4156 = vmul.f32 %v4118, %v3154
      %v4157 = vmul.f32 %v4121, %v3154
      %v4158 = vmul.f32 %v4124, %v3154
      %v4159 = vmul.f32 %v4127, %v3154
      %v4160 = vmul.f32 %v4130, %v3154
      %v4161 = vmul.f32 %v4133, %v3154
      %v4162 = vmul.f32 %v4136, %v3154
      %v4163 = vmul.f32 %v4139, %v3154
      %v4164 = vmul.f32 %v4142, %v3154
      %v4165 = vmul.f32 %v4145, %v3154
      %v4166 = vmul.f32 %v4148, %v3154
      %v4167 = vmul.f32 %v4151, %v3154
      %v4168 = vsub.f32 %v4086, %v4152
      %v4169 = vsub.f32 %v4087, %v4153
      %v4170 = vsub.f32 %v4088, %v4154
      %v4171 = vsub.f32 %v4089, %v4155
      %v4172 = vsub.f32 %v4090, %v4156
      %v4173 = vsub.f32 %v4091, %v4157
      %v4174 = vsub.f32 %v4092, %v4158
      %v4175 = vsub.f32 %v4093, %v4159
      %v4176 = vsub.f32 %v4094, %v4160
      %v4177 = vsub.f32 %v4095, %v4161
      %v4178 = vsub.f32 %v4096, %v4162
      %v4179 = vsub.f32 %v4097, %v4163
      %v4180 = vsub.f32 %v4098, %v4164
      %v4181 = vsub.f32 %v4099, %v4165
      %v4182 = vsub.f32 %v4100, %v4166
      %v4183 = vsub.f32 %v4101, %v4167
      %v4184 = vmul.f32 %v4168, %v4168
      %v4185 = vmul.f32 %v4169, %v4169
      %v4186 = vmul.f32 %v4170, %v4170
      %v4187 = vmul.f32 %v4171, %v4171
      %v4188 = vmul.f32 %v4172, %v4172
      %v4189 = vmul.f32 %v4173, %v4173
      %v4190 = vmul.f32 %v4174, %v4174
      %v4191 = vmul.f32 %v4175, %v4175
      %v4192 = vmul.f32 %v4176, %v4176
      %v4193 = vmul.f32 %v4177, %v4177
      %v4194 = vmul.f32 %v4178, %v4178
      %v4195 = vmul.f32 %v4179, %v4179
      %v4196 = vmul.f32 %v4180, %v4180
      %v4197 = vmul.f32 %v4181, %v4181
      %v4198 = vmul.f32 %v4182, %v4182
      %v4199 = vmul.f32 %v4183, %v4183
      %v4200 = vsel %vm3104, %v4184, 0.0
      %4201 = vadd.xlane.f32.xlu0 %v4200
      %v4202 = vpop.xlane.xlu0 %4201
      %v4203 = vsel %vm3108, %v4185, 0.0
      %4204 = vadd.xlane.f32.xlu0 %v4203
      %v4205 = vpop.xlane.xlu0 %4204
      %v4206 = vsel %vm3104, %v4186, 0.0
      %4207 = vadd.xlane.f32.xlu0 %v4206
      %v4208 = vpop.xlane.xlu0 %4207
      %v4209 = vsel %vm3108, %v4187, 0.0
      %4210 = vadd.xlane.f32.xlu0 %v4209
      %v4211 = vpop.xlane.xlu0 %4210
      %v4212 = vsel %vm3104, %v4188, 0.0
      %4213 = vadd.xlane.f32.xlu0 %v4212
      %v4214 = vpop.xlane.xlu0 %4213
      %v4215 = vsel %vm3108, %v4189, 0.0
      %4216 = vadd.xlane.f32.xlu0 %v4215
      %v4217 = vpop.xlane.xlu0 %4216
      %v4218 = vsel %vm3104, %v4190, 0.0
      %4219 = vadd.xlane.f32.xlu0 %v4218
      %v4220 = vpop.xlane.xlu0 %4219
      %v4221 = vsel %vm3108, %v4191, 0.0
      %4222 = vadd.xlane.f32.xlu0 %v4221
      %v4223 = vpop.xlane.xlu0 %4222
      %v4224 = vsel %vm3104, %v4192, 0.0
      %4225 = vadd.xlane.f32.xlu0 %v4224
      %v4226 = vpop.xlane.xlu0 %4225
      %v4227 = vsel %vm3108, %v4193, 0.0
      %4228 = vadd.xlane.f32.xlu0 %v4227
      %v4229 = vpop.xlane.xlu0 %4228
      %v4230 = vsel %vm3104, %v4194, 0.0
      %4231 = vadd.xlane.f32.xlu0 %v4230
      %v4232 = vpop.xlane.xlu0 %4231
      %v4233 = vsel %vm3108, %v4195, 0.0
      %4234 = vadd.xlane.f32.xlu0 %v4233
      %v4235 = vpop.xlane.xlu0 %4234
      %v4236 = vsel %vm3104, %v4196, 0.0
      %4237 = vadd.xlane.f32.xlu0 %v4236
      %v4238 = vpop.xlane.xlu0 %4237
      %v4239 = vsel %vm3108, %v4197, 0.0
      %4240 = vadd.xlane.f32.xlu0 %v4239
      %v4241 = vpop.xlane.xlu0 %4240
      %v4242 = vsel %vm3104, %v4198, 0.0
      %4243 = vadd.xlane.f32.xlu0 %v4242
      %v4244 = vpop.xlane.xlu0 %4243
      %v4245 = vsel %vm3108, %v4199, 0.0
      %4246 = vadd.xlane.f32.xlu0 %v4245
      %v4247 = vpop.xlane.xlu0 %4246
      %v4248 = vmul.f32 %v4202, %v3154
      %v4249 = vmul.f32 %v4205, %v3154
      %v4250 = vmul.f32 %v4208, %v3154
      %v4251 = vmul.f32 %v4211, %v3154
      %v4252 = vmul.f32 %v4214, %v3154
      %v4253 = vmul.f32 %v4217, %v3154
      %v4254 = vmul.f32 %v4220, %v3154
      %v4255 = vmul.f32 %v4223, %v3154
      %v4256 = vmul.f32 %v4226, %v3154
      %v4257 = vmul.f32 %v4229, %v3154
      %v4258 = vmul.f32 %v4232, %v3154
      %v4259 = vmul.f32 %v4235, %v3154
      %v4260 = vmul.f32 %v4238, %v3154
      %v4261 = vmul.f32 %v4241, %v3154
      %v4262 = vmul.f32 %v4244, %v3154
      %v4263 = vmul.f32 %v4247, %v3154
      %v4264 = vadd.f32 %v4248, 1e-06
      %v4265 = vadd.f32 %v4249, 1e-06
      %v4266 = vadd.f32 %v4250, 1e-06
      %v4267 = vadd.f32 %v4251, 1e-06
      %v4268 = vadd.f32 %v4252, 1e-06
      %v4269 = vadd.f32 %v4253, 1e-06
      %v4270 = vadd.f32 %v4254, 1e-06
      %v4271 = vadd.f32 %v4255, 1e-06
      %v4272 = vadd.f32 %v4256, 1e-06
      %v4273 = vadd.f32 %v4257, 1e-06
      %v4274 = vadd.f32 %v4258, 1e-06
      %v4275 = vadd.f32 %v4259, 1e-06
      %v4276 = vadd.f32 %v4260, 1e-06
      %v4277 = vadd.f32 %v4261, 1e-06
      %v4278 = vadd.f32 %v4262, 1e-06
      %v4279 = vadd.f32 %v4263, 1e-06
      %v4280 = vrsqrt.pop %v4264
      %v4281 = vrsqrt.pop %v4265
      %v4282 = vrsqrt.pop %v4266
      %v4283 = vrsqrt.pop %v4267
      %v4284 = vrsqrt.pop %v4268
      %v4285 = vrsqrt.pop %v4269
      %v4286 = vrsqrt.pop %v4270
      %v4287 = vrsqrt.pop %v4271
      %v4288 = vrsqrt.pop %v4272
      %v4289 = vrsqrt.pop %v4273
      %v4290 = vrsqrt.pop %v4274
      %v4291 = vrsqrt.pop %v4275
      %v4292 = vrsqrt.pop %v4276
      %v4293 = vrsqrt.pop %v4277
      %v4294 = vrsqrt.pop %v4278
      %v4295 = vrsqrt.pop %v4279
      %v4296 = vmul.f32 %v4168, %v4280
      %v4297 = vmul.f32 %v4169, %v4281
      %v4298 = vmul.f32 %v4170, %v4282
      %v4299 = vmul.f32 %v4171, %v4283
      %v4300 = vmul.f32 %v4172, %v4284
      %v4301 = vmul.f32 %v4173, %v4285
      %v4302 = vmul.f32 %v4174, %v4286
      %v4303 = vmul.f32 %v4175, %v4287
      %v4304 = vmul.f32 %v4176, %v4288
      %v4305 = vmul.f32 %v4177, %v4289
      %v4306 = vmul.f32 %v4178, %v4290
      %v4307 = vmul.f32 %v4179, %v4291
      %v4308 = vmul.f32 %v4180, %v4292
      %v4309 = vmul.f32 %v4181, %v4293
      %v4310 = vmul.f32 %v4182, %v4294
      %v4311 = vmul.f32 %v4183, %v4295
      %v4313 = vlaneseq
      %v4314 = vshrl.u32 %v4313, 7
      %v4315 = vsub.s32 0, %v4314
      %v4316 = vrot.slane %v4102, %v4315
      %v4318 = vmul.f32 %v4296, %v4316
      %v4319 = vmul.f32 %v4297, %v4316
      %v4320 = vmul.f32 %v4298, %v4316
      %v4321 = vmul.f32 %v4299, %v4316
      %v4322 = vmul.f32 %v4300, %v4316
      %v4323 = vmul.f32 %v4301, %v4316
      %v4324 = vmul.f32 %v4302, %v4316
      %v4325 = vmul.f32 %v4303, %v4316
      %v4326 = vmul.f32 %v4304, %v4316
      %v4327 = vmul.f32 %v4305, %v4316
      %v4328 = vmul.f32 %v4306, %v4316
      %v4329 = vmul.f32 %v4307, %v4316
      %v4330 = vmul.f32 %v4308, %v4316
      %v4331 = vmul.f32 %v4309, %v4316
      %v4332 = vmul.f32 %v4310, %v4316
      %v4333 = vmul.f32 %v4311, %v4316
      %v4335 = vlaneseq
      %v4336 = vshrl.u32 %v4335, 7
      %v4337 = vsub.s32 0, %v4336
      %v4338 = vrot.slane %v4103, %v4337
      %v4340 = vadd.f32 %v4318, %v4338
      %v4341 = vadd.f32 %v4319, %v4338
      %v4342 = vadd.f32 %v4320, %v4338
      %v4343 = vadd.f32 %v4321, %v4338
      %v4344 = vadd.f32 %v4322, %v4338
      %v4345 = vadd.f32 %v4323, %v4338
      %v4346 = vadd.f32 %v4324, %v4338
      %v4347 = vadd.f32 %v4325, %v4338
      %v4348 = vadd.f32 %v4326, %v4338
      %v4349 = vadd.f32 %v4327, %v4338
      %v4350 = vadd.f32 %v4328, %v4338
      %v4351 = vadd.f32 %v4329, %v4338
      %v4352 = vadd.f32 %v4330, %v4338
      %v4353 = vadd.f32 %v4331, %v4338
      %v4354 = vadd.f32 %v4332, %v4338
      %v4355 = vadd.f32 %v4333, %v4338
      %v4372 = vcombine.high %v4340, %v4340
      %v4374 = vunpack.c.l.s4 1966171168
      %v4375 = vunpack.c.0.s8 %v4374
      %v4376 = vlaneseq
      %v4377 = vshrl.u32 %v4376, 7
      %v4378 = vsub.s32 %v4375, %v4377
      %v4379 = vrot.slane %v4340, %v4378
      %v4381 = vunpack.c.l.s4 1966171168
      %v4382 = vunpack.c.0.s8 %v4381
      %v4383 = vlaneseq
      %v4384 = vshrl.u32 %v4383, 7
      %v4385 = vsub.s32 %v4382, %v4384
      %v4386 = vrot.slane %v4372, %v4385
      %v4387 = vcombine.high %v4379, %v4379
      %v4388 = vcombine.high %v4386, %v4386
      %v4390 = vunpack.c.l.s4 1966171168
      %v4391 = vunpack.c.0.s8 %v4390
      %v4392 = vlaneseq
      %v4393 = vshrl.u32 %v4392, 7
      %v4394 = vsub.s32 %v4391, %v4393
      %v4395 = vrot.slane %v4379, %v4394
      %v4397 = vunpack.c.l.s4 1966171168
      %v4398 = vunpack.c.0.s8 %v4397
      %v4399 = vlaneseq
      %v4400 = vshrl.u32 %v4399, 7
      %v4401 = vsub.s32 %v4398, %v4400
      %v4402 = vrot.slane %v4386, %v4401
      %v4404 = vunpack.c.l.s4 1966171168
      %v4405 = vunpack.c.0.s8 %v4404
      %v4406 = vlaneseq
      %v4407 = vshrl.u32 %v4406, 7
      %v4408 = vsub.s32 %v4405, %v4407
      %v4409 = vrot.slane %v4387, %v4408
      %v4411 = vunpack.c.l.s4 1966171168
      %v4412 = vunpack.c.0.s8 %v4411
      %v4413 = vlaneseq
      %v4414 = vshrl.u32 %v4413, 7
      %v4415 = vsub.s32 %v4412, %v4414
      %v4416 = vrot.slane %v4388, %v4415
      %v4417 = vcombine.high %v4395, %v4395
      %v4418 = vcombine.high %v4402, %v4402
      %v4419 = vcombine.high %v4409, %v4409
      %v4420 = vcombine.high %v4416, %v4416
      %v4422 = vunpack.c.l.s4 1966171168
      %v4423 = vunpack.c.0.s8 %v4422
      %v4424 = vlaneseq
      %v4425 = vshrl.u32 %v4424, 7
      %v4426 = vsub.s32 %v4423, %v4425
      %v4427 = vrot.slane %v4341, %v4426
      %v4429 = vunpack.c.l.s4 1966171168
      %v4430 = vunpack.c.0.s8 %v4429
      %v4431 = vlaneseq
      %v4432 = vshrl.u32 %v4431, 7
      %v4433 = vsub.s32 %v4430, %v4432
      %v4434 = vrot.slane %v4427, %v4433
      %v4435 = vcombine.high %v4342, %v4342
      %v4437 = vunpack.c.l.s4 1966171168
      %v4438 = vunpack.c.0.s8 %v4437
      %v4439 = vlaneseq
      %v4440 = vshrl.u32 %v4439, 7
      %v4441 = vsub.s32 %v4438, %v4440
      %v4442 = vrot.slane %v4342, %v4441
      %v4444 = vunpack.c.l.s4 1966171168
      %v4445 = vunpack.c.0.s8 %v4444
      %v4446 = vlaneseq
      %v4447 = vshrl.u32 %v4446, 7
      %v4448 = vsub.s32 %v4445, %v4447
      %v4449 = vrot.slane %v4435, %v4448
      %v4450 = vcombine.high %v4442, %v4442
      %v4451 = vcombine.high %v4449, %v4449
      %v4453 = vunpack.c.l.s4 1966171168
      %v4454 = vunpack.c.0.s8 %v4453
      %v4455 = vlaneseq
      %v4456 = vshrl.u32 %v4455, 7
      %v4457 = vsub.s32 %v4454, %v4456
      %v4458 = vrot.slane %v4442, %v4457
      %v4460 = vunpack.c.l.s4 1966171168
      %v4461 = vunpack.c.0.s8 %v4460
      %v4462 = vlaneseq
      %v4463 = vshrl.u32 %v4462, 7
      %v4464 = vsub.s32 %v4461, %v4463
      %v4465 = vrot.slane %v4449, %v4464
      %v4467 = vunpack.c.l.s4 1966171168
      %v4468 = vunpack.c.0.s8 %v4467
      %v4469 = vlaneseq
      %v4470 = vshrl.u32 %v4469, 7
      %v4471 = vsub.s32 %v4468, %v4470
      %v4472 = vrot.slane %v4450, %v4471
      %v4474 = vunpack.c.l.s4 1966171168
      %v4475 = vunpack.c.0.s8 %v4474
      %v4476 = vlaneseq
      %v4477 = vshrl.u32 %v4476, 7
      %v4478 = vsub.s32 %v4475, %v4477
      %v4479 = vrot.slane %v4451, %v4478
      %v4480 = vcombine.high %v4458, %v4458
      %v4481 = vcombine.high %v4465, %v4465
      %v4482 = vcombine.high %v4472, %v4472
      %v4483 = vcombine.high %v4479, %v4479
      %v4485 = vunpack.c.l.s4 1966171168
      %v4486 = vunpack.c.0.s8 %v4485
      %v4487 = vlaneseq
      %v4488 = vshrl.u32 %v4487, 7
      %v4489 = vsub.s32 %v4486, %v4488
      %v4490 = vrot.slane %v4343, %v4489
      %v4492 = vunpack.c.l.s4 1966171168
      %v4493 = vunpack.c.0.s8 %v4492
      %v4494 = vlaneseq
      %v4495 = vshrl.u32 %v4494, 7
      %v4496 = vsub.s32 %v4493, %v4495
      %v4497 = vrot.slane %v4490, %v4496
      %v4498 = vcombine.high %v4344, %v4344
      %v4500 = vunpack.c.l.s4 1966171168
      %v4501 = vunpack.c.0.s8 %v4500
      %v4502 = vlaneseq
      %v4503 = vshrl.u32 %v4502, 7
      %v4504 = vsub.s32 %v4501, %v4503
      %v4505 = vrot.slane %v4344, %v4504
      %v4507 = vunpack.c.l.s4 1966171168
      %v4508 = vunpack.c.0.s8 %v4507
      %v4509 = vlaneseq
      %v4510 = vshrl.u32 %v4509, 7
      %v4511 = vsub.s32 %v4508, %v4510
      %v4512 = vrot.slane %v4498, %v4511
      %v4513 = vcombine.high %v4505, %v4505
      %v4514 = vcombine.high %v4512, %v4512
      %v4516 = vunpack.c.l.s4 1966171168
      %v4517 = vunpack.c.0.s8 %v4516
      %v4518 = vlaneseq
      %v4519 = vshrl.u32 %v4518, 7
      %v4520 = vsub.s32 %v4517, %v4519
      %v4521 = vrot.slane %v4505, %v4520
      %v4523 = vunpack.c.l.s4 1966171168
      %v4524 = vunpack.c.0.s8 %v4523
      %v4525 = vlaneseq
      %v4526 = vshrl.u32 %v4525, 7
      %v4527 = vsub.s32 %v4524, %v4526
      %v4528 = vrot.slane %v4512, %v4527
      %v4530 = vunpack.c.l.s4 1966171168
      %v4531 = vunpack.c.0.s8 %v4530
      %v4532 = vlaneseq
      %v4533 = vshrl.u32 %v4532, 7
      %v4534 = vsub.s32 %v4531, %v4533
      %v4535 = vrot.slane %v4513, %v4534
      %v4537 = vunpack.c.l.s4 1966171168
      %v4538 = vunpack.c.0.s8 %v4537
      %v4539 = vlaneseq
      %v4540 = vshrl.u32 %v4539, 7
      %v4541 = vsub.s32 %v4538, %v4540
      %v4542 = vrot.slane %v4514, %v4541
      %v4543 = vcombine.high %v4521, %v4521
      %v4544 = vcombine.high %v4528, %v4528
      %v4545 = vcombine.high %v4535, %v4535
      %v4546 = vcombine.high %v4542, %v4542
      %v4548 = vunpack.c.l.s4 1966171168
      %v4549 = vunpack.c.0.s8 %v4548
      %v4550 = vlaneseq
      %v4551 = vshrl.u32 %v4550, 7
      %v4552 = vsub.s32 %v4549, %v4551
      %v4553 = vrot.slane %v4345, %v4552
      %v4555 = vunpack.c.l.s4 1966171168
      %v4556 = vunpack.c.0.s8 %v4555
      %v4557 = vlaneseq
      %v4558 = vshrl.u32 %v4557, 7
      %v4559 = vsub.s32 %v4556, %v4558
      %v4560 = vrot.slane %v4553, %v4559
      %v4561 = vcombine.high %v4346, %v4346
      %v4563 = vunpack.c.l.s4 1966171168
      %v4564 = vunpack.c.0.s8 %v4563
      %v4565 = vlaneseq
      %v4566 = vshrl.u32 %v4565, 7
      %v4567 = vsub.s32 %v4564, %v4566
      %v4568 = vrot.slane %v4346, %v4567
      %v4570 = vunpack.c.l.s4 1966171168
      %v4571 = vunpack.c.0.s8 %v4570
      %v4572 = vlaneseq
      %v4573 = vshrl.u32 %v4572, 7
      %v4574 = vsub.s32 %v4571, %v4573
      %v4575 = vrot.slane %v4561, %v4574
      %v4576 = vcombine.high %v4568, %v4568
      %v4577 = vcombine.high %v4575, %v4575
      %v4579 = vunpack.c.l.s4 1966171168
      %v4580 = vunpack.c.0.s8 %v4579
      %v4581 = vlaneseq
      %v4582 = vshrl.u32 %v4581, 7
      %v4583 = vsub.s32 %v4580, %v4582
      %v4584 = vrot.slane %v4568, %v4583
      %v4586 = vunpack.c.l.s4 1966171168
      %v4587 = vunpack.c.0.s8 %v4586
      %v4588 = vlaneseq
      %v4589 = vshrl.u32 %v4588, 7
      %v4590 = vsub.s32 %v4587, %v4589
      %v4591 = vrot.slane %v4575, %v4590
      %v4593 = vunpack.c.l.s4 1966171168
      %v4594 = vunpack.c.0.s8 %v4593
      %v4595 = vlaneseq
      %v4596 = vshrl.u32 %v4595, 7
      %v4597 = vsub.s32 %v4594, %v4596
      %v4598 = vrot.slane %v4576, %v4597
      %v4600 = vunpack.c.l.s4 1966171168
      %v4601 = vunpack.c.0.s8 %v4600
      %v4602 = vlaneseq
      %v4603 = vshrl.u32 %v4602, 7
      %v4604 = vsub.s32 %v4601, %v4603
      %v4605 = vrot.slane %v4577, %v4604
      %v4606 = vcombine.high %v4584, %v4584
      %v4607 = vcombine.high %v4591, %v4591
      %v4608 = vcombine.high %v4598, %v4598
      %v4609 = vcombine.high %v4605, %v4605
      %v4611 = vunpack.c.l.s4 1966171168
      %v4612 = vunpack.c.0.s8 %v4611
      %v4613 = vlaneseq
      %v4614 = vshrl.u32 %v4613, 7
      %v4615 = vsub.s32 %v4612, %v4614
      %v4616 = vrot.slane %v4347, %v4615
      %v4618 = vunpack.c.l.s4 1966171168
      %v4619 = vunpack.c.0.s8 %v4618
      %v4620 = vlaneseq
      %v4621 = vshrl.u32 %v4620, 7
      %v4622 = vsub.s32 %v4619, %v4621
      %v4623 = vrot.slane %v4616, %v4622
      %v4624 = vcombine.high %v4348, %v4348
      %v4626 = vunpack.c.l.s4 1966171168
      %v4627 = vunpack.c.0.s8 %v4626
      %v4628 = vlaneseq
      %v4629 = vshrl.u32 %v4628, 7
      %v4630 = vsub.s32 %v4627, %v4629
      %v4631 = vrot.slane %v4348, %v4630
      %v4633 = vunpack.c.l.s4 1966171168
      %v4634 = vunpack.c.0.s8 %v4633
      %v4635 = vlaneseq
      %v4636 = vshrl.u32 %v4635, 7
      %v4637 = vsub.s32 %v4634, %v4636
      %v4638 = vrot.slane %v4624, %v4637
      %v4639 = vcombine.high %v4631, %v4631
      %v4640 = vcombine.high %v4638, %v4638
      %v4642 = vunpack.c.l.s4 1966171168
      %v4643 = vunpack.c.0.s8 %v4642
      %v4644 = vlaneseq
      %v4645 = vshrl.u32 %v4644, 7
      %v4646 = vsub.s32 %v4643, %v4645
      %v4647 = vrot.slane %v4631, %v4646
      %v4649 = vunpack.c.l.s4 1966171168
      %v4650 = vunpack.c.0.s8 %v4649
      %v4651 = vlaneseq
      %v4652 = vshrl.u32 %v4651, 7
      %v4653 = vsub.s32 %v4650, %v4652
      %v4654 = vrot.slane %v4638, %v4653
      %v4656 = vunpack.c.l.s4 1966171168
      %v4657 = vunpack.c.0.s8 %v4656
      %v4658 = vlaneseq
      %v4659 = vshrl.u32 %v4658, 7
      %v4660 = vsub.s32 %v4657, %v4659
      %v4661 = vrot.slane %v4639, %v4660
      %v4663 = vunpack.c.l.s4 1966171168
      %v4664 = vunpack.c.0.s8 %v4663
      %v4665 = vlaneseq
      %v4666 = vshrl.u32 %v4665, 7
      %v4667 = vsub.s32 %v4664, %v4666
      %v4668 = vrot.slane %v4640, %v4667
      %v4669 = vcombine.high %v4647, %v4647
      %v4670 = vcombine.high %v4654, %v4654
      %v4671 = vcombine.high %v4661, %v4661
      %v4672 = vcombine.high %v4668, %v4668
      %v4674 = vunpack.c.l.s4 1966171168
      %v4675 = vunpack.c.0.s8 %v4674
      %v4676 = vlaneseq
      %v4677 = vshrl.u32 %v4676, 7
      %v4678 = vsub.s32 %v4675, %v4677
      %v4679 = vrot.slane %v4349, %v4678
      %v4681 = vunpack.c.l.s4 1966171168
      %v4682 = vunpack.c.0.s8 %v4681
      %v4683 = vlaneseq
      %v4684 = vshrl.u32 %v4683, 7
      %v4685 = vsub.s32 %v4682, %v4684
      %v4686 = vrot.slane %v4679, %v4685
      %v4687 = vcombine.high %v4350, %v4350
      %v4689 = vunpack.c.l.s4 1966171168
      %v4690 = vunpack.c.0.s8 %v4689
      %v4691 = vlaneseq
      %v4692 = vshrl.u32 %v4691, 7
      %v4693 = vsub.s32 %v4690, %v4692
      %v4694 = vrot.slane %v4350, %v4693
      %v4696 = vunpack.c.l.s4 1966171168
      %v4697 = vunpack.c.0.s8 %v4696
      %v4698 = vlaneseq
      %v4699 = vshrl.u32 %v4698, 7
      %v4700 = vsub.s32 %v4697, %v4699
      %v4701 = vrot.slane %v4687, %v4700
      %v4702 = vcombine.high %v4694, %v4694
      %v4703 = vcombine.high %v4701, %v4701
      %v4705 = vunpack.c.l.s4 1966171168
      %v4706 = vunpack.c.0.s8 %v4705
      %v4707 = vlaneseq
      %v4708 = vshrl.u32 %v4707, 7
      %v4709 = vsub.s32 %v4706, %v4708
      %v4710 = vrot.slane %v4694, %v4709
      %v4712 = vunpack.c.l.s4 1966171168
      %v4713 = vunpack.c.0.s8 %v4712
      %v4714 = vlaneseq
      %v4715 = vshrl.u32 %v4714, 7
      %v4716 = vsub.s32 %v4713, %v4715
      %v4717 = vrot.slane %v4701, %v4716
      %v4719 = vunpack.c.l.s4 1966171168
      %v4720 = vunpack.c.0.s8 %v4719
      %v4721 = vlaneseq
      %v4722 = vshrl.u32 %v4721, 7
      %v4723 = vsub.s32 %v4720, %v4722
      %v4724 = vrot.slane %v4702, %v4723
      %v4726 = vunpack.c.l.s4 1966171168
      %v4727 = vunpack.c.0.s8 %v4726
      %v4728 = vlaneseq
      %v4729 = vshrl.u32 %v4728, 7
      %v4730 = vsub.s32 %v4727, %v4729
      %v4731 = vrot.slane %v4703, %v4730
      %v4732 = vcombine.high %v4710, %v4710
      %v4733 = vcombine.high %v4717, %v4717
      %v4734 = vcombine.high %v4724, %v4724
      %v4735 = vcombine.high %v4731, %v4731
      %v4737 = vunpack.c.l.s4 1966171168
      %v4738 = vunpack.c.0.s8 %v4737
      %v4739 = vlaneseq
      %v4740 = vshrl.u32 %v4739, 7
      %v4741 = vsub.s32 %v4738, %v4740
      %v4742 = vrot.slane %v4351, %v4741
      %v4744 = vunpack.c.l.s4 1966171168
      %v4745 = vunpack.c.0.s8 %v4744
      %v4746 = vlaneseq
      %v4747 = vshrl.u32 %v4746, 7
      %v4748 = vsub.s32 %v4745, %v4747
      %v4749 = vrot.slane %v4742, %v4748
      %v4750 = vcombine.high %v4352, %v4352
      %v4752 = vunpack.c.l.s4 1966171168
      %v4753 = vunpack.c.0.s8 %v4752
      %v4754 = vlaneseq
      %v4755 = vshrl.u32 %v4754, 7
      %v4756 = vsub.s32 %v4753, %v4755
      %v4757 = vrot.slane %v4352, %v4756
      %v4759 = vunpack.c.l.s4 1966171168
      %v4760 = vunpack.c.0.s8 %v4759
      %v4761 = vlaneseq
      %v4762 = vshrl.u32 %v4761, 7
      %v4763 = vsub.s32 %v4760, %v4762
      %v4764 = vrot.slane %v4750, %v4763
      %v4765 = vcombine.high %v4757, %v4757
      %v4766 = vcombine.high %v4764, %v4764
      %v4768 = vunpack.c.l.s4 1966171168
      %v4769 = vunpack.c.0.s8 %v4768
      %v4770 = vlaneseq
      %v4771 = vshrl.u32 %v4770, 7
      %v4772 = vsub.s32 %v4769, %v4771
      %v4773 = vrot.slane %v4757, %v4772
      %v4775 = vunpack.c.l.s4 1966171168
      %v4776 = vunpack.c.0.s8 %v4775
      %v4777 = vlaneseq
      %v4778 = vshrl.u32 %v4777, 7
      %v4779 = vsub.s32 %v4776, %v4778
      %v4780 = vrot.slane %v4764, %v4779
      %v4782 = vunpack.c.l.s4 1966171168
      %v4783 = vunpack.c.0.s8 %v4782
      %v4784 = vlaneseq
      %v4785 = vshrl.u32 %v4784, 7
      %v4786 = vsub.s32 %v4783, %v4785
      %v4787 = vrot.slane %v4765, %v4786
      %v4789 = vunpack.c.l.s4 1966171168
      %v4790 = vunpack.c.0.s8 %v4789
      %v4791 = vlaneseq
      %v4792 = vshrl.u32 %v4791, 7
      %v4793 = vsub.s32 %v4790, %v4792
      %v4794 = vrot.slane %v4766, %v4793
      %v4795 = vcombine.high %v4773, %v4773
      %v4796 = vcombine.high %v4780, %v4780
      %v4797 = vcombine.high %v4787, %v4787
      %v4798 = vcombine.high %v4794, %v4794
      %v4800 = vunpack.c.l.s4 1966171168
      %v4801 = vunpack.c.0.s8 %v4800
      %v4802 = vlaneseq
      %v4803 = vshrl.u32 %v4802, 7
      %v4804 = vsub.s32 %v4801, %v4803
      %v4805 = vrot.slane %v4353, %v4804
      %v4807 = vunpack.c.l.s4 1966171168
      %v4808 = vunpack.c.0.s8 %v4807
      %v4809 = vlaneseq
      %v4810 = vshrl.u32 %v4809, 7
      %v4811 = vsub.s32 %v4808, %v4810
      %v4812 = vrot.slane %v4805, %v4811
      %v4813 = vcombine.high %v4354, %v4354
      %v4815 = vunpack.c.l.s4 1966171168
      %v4816 = vunpack.c.0.s8 %v4815
      %v4817 = vlaneseq
      %v4818 = vshrl.u32 %v4817, 7
      %v4819 = vsub.s32 %v4816, %v4818
      %v4820 = vrot.slane %v4354, %v4819
      %v4822 = vunpack.c.l.s4 1966171168
      %v4823 = vunpack.c.0.s8 %v4822
      %v4824 = vlaneseq
      %v4825 = vshrl.u32 %v4824, 7
      %v4826 = vsub.s32 %v4823, %v4825
      %v4827 = vrot.slane %v4813, %v4826
      %v4828 = vcombine.high %v4820, %v4820
      %v4829 = vcombine.high %v4827, %v4827
      %v4831 = vunpack.c.l.s4 1966171168
      %v4832 = vunpack.c.0.s8 %v4831
      %v4833 = vlaneseq
      %v4834 = vshrl.u32 %v4833, 7
      %v4835 = vsub.s32 %v4832, %v4834
      %v4836 = vrot.slane %v4820, %v4835
      %v4838 = vunpack.c.l.s4 1966171168
      %v4839 = vunpack.c.0.s8 %v4838
      %v4840 = vlaneseq
      %v4841 = vshrl.u32 %v4840, 7
      %v4842 = vsub.s32 %v4839, %v4841
      %v4843 = vrot.slane %v4827, %v4842
      %v4845 = vunpack.c.l.s4 1966171168
      %v4846 = vunpack.c.0.s8 %v4845
      %v4847 = vlaneseq
      %v4848 = vshrl.u32 %v4847, 7
      %v4849 = vsub.s32 %v4846, %v4848
      %v4850 = vrot.slane %v4828, %v4849
      %v4852 = vunpack.c.l.s4 1966171168
      %v4853 = vunpack.c.0.s8 %v4852
      %v4854 = vlaneseq
      %v4855 = vshrl.u32 %v4854, 7
      %v4856 = vsub.s32 %v4853, %v4855
      %v4857 = vrot.slane %v4829, %v4856
      %v4858 = vcombine.high %v4836, %v4836
      %v4859 = vcombine.high %v4843, %v4843
      %v4860 = vcombine.high %v4850, %v4850
      %v4861 = vcombine.high %v4857, %v4857
      %v4863 = vunpack.c.l.s4 1966171168
      %v4864 = vunpack.c.0.s8 %v4863
      %v4865 = vlaneseq
      %v4866 = vshrl.u32 %v4865, 7
      %v4867 = vsub.s32 %v4864, %v4866
      %v4868 = vrot.slane %v4355, %v4867
      %v4870 = vunpack.c.l.s4 1966171168
      %v4871 = vunpack.c.0.s8 %v4870
      %v4872 = vlaneseq
      %v4873 = vshrl.u32 %v4872, 7
      %v4874 = vsub.s32 %v4871, %v4873
      %v4875 = vrot.slane %v4868, %v4874
      %v4876 = vld [vmem:[%s14] sm:$0xff]
      %v4877 = vld [vmem:[%s14 + $0x8] sm:$0xff]
      %v4878 = vld [vmem:[%s15] sm:$0x1]
      %v4880 = vlaneseq
      %v4881 = vshrl.u32 %v4880, 7
      %v4882 = vsub.s32 0, %v4881
      %v4883 = vrot.slane %v4878, %v4882
      %v4885 = vcombine.low %v4395, %v4409
      %v4886 = vcombine.low %v4417, %v4419
      %v4887 = vcombine.low %v4402, %v4416
      %v4888 = vcombine.low %v4418, %v4420
      %v4890 = vunpack.c.l.s4 1966171168
      %v4891 = vunpack.c.0.s8 %v4890
      %v4892 = vlaneseq
      %v4893 = vshrl.u32 %v4892, 7
      %v4894 = vsub.s32 %v4891, %v4893
      %v4895 = vrot.slane %v4885, %v4894
      %v4897 = vunpack.c.l.s4 1966171168
      %v4898 = vunpack.c.0.s8 %v4897
      %v4899 = vlaneseq
      %v4900 = vshrl.u32 %v4899, 7
      %v4901 = vsub.s32 %v4898, %v4900
      %v4902 = vrot.slane %v4886, %v4901
      %v4904 = vunpack.c.l.s4 1966171168
      %v4905 = vunpack.c.0.s8 %v4904
      %v4906 = vlaneseq
      %v4907 = vshrl.u32 %v4906, 7
      %v4908 = vsub.s32 %v4905, %v4907
      %v4909 = vrot.slane %v4887, %v4908
      %v4911 = vunpack.c.l.s4 1966171168
      %v4912 = vunpack.c.0.s8 %v4911
      %v4913 = vlaneseq
      %v4914 = vshrl.u32 %v4913, 7
      %v4915 = vsub.s32 %v4912, %v4914
      %v4916 = vrot.slane %v4888, %v4915
      %v4917 = vcombine.low %v4895, %v4902
      %v4918 = vcombine.low %v4909, %v4916
      %v4920 = vunpack.c.l.s4 1966171168
      %v4921 = vunpack.c.0.s8 %v4920
      %v4922 = vlaneseq
      %v4923 = vshrl.u32 %v4922, 7
      %v4924 = vsub.s32 %v4921, %v4923
      %v4925 = vrot.slane %v4917, %v4924
      %v4927 = vunpack.c.l.s4 1966171168
      %v4928 = vunpack.c.0.s8 %v4927
      %v4929 = vlaneseq
      %v4930 = vshrl.u32 %v4929, 7
      %v4931 = vsub.s32 %v4928, %v4930
      %v4932 = vrot.slane %v4918, %v4931
      %v4933 = vcombine.low %v4925, %v4932
      %v4934 = vcombine.low %v4434, %v4458
      %v4935 = vcombine.low %v4472, %v4480
      %v4936 = vcombine.low %v4482, %v4465
      %v4937 = vcombine.low %v4479, %v4481
      %v4939 = vunpack.c.l.s4 1966171168
      %v4940 = vunpack.c.0.s8 %v4939
      %v4941 = vlaneseq
      %v4942 = vshrl.u32 %v4941, 7
      %v4943 = vsub.s32 %v4940, %v4942
      %v4944 = vrot.slane %v4934, %v4943
      %v4946 = vunpack.c.l.s4 1966171168
      %v4947 = vunpack.c.0.s8 %v4946
      %v4948 = vlaneseq
      %v4949 = vshrl.u32 %v4948, 7
      %v4950 = vsub.s32 %v4947, %v4949
      %v4951 = vrot.slane %v4935, %v4950
      %v4953 = vunpack.c.l.s4 1966171168
      %v4954 = vunpack.c.0.s8 %v4953
      %v4955 = vlaneseq
      %v4956 = vshrl.u32 %v4955, 7
      %v4957 = vsub.s32 %v4954, %v4956
      %v4958 = vrot.slane %v4936, %v4957
      %v4960 = vunpack.c.l.s4 1966171168
      %v4961 = vunpack.c.0.s8 %v4960
      %v4962 = vlaneseq
      %v4963 = vshrl.u32 %v4962, 7
      %v4964 = vsub.s32 %v4961, %v4963
      %v4965 = vrot.slane %v4937, %v4964
      %v4966 = vcombine.low %v4944, %v4951
      %v4967 = vcombine.low %v4958, %v4965
      %v4969 = vunpack.c.l.s4 1966171168
      %v4970 = vunpack.c.0.s8 %v4969
      %v4971 = vlaneseq
      %v4972 = vshrl.u32 %v4971, 7
      %v4973 = vsub.s32 %v4970, %v4972
      %v4974 = vrot.slane %v4966, %v4973
      %v4976 = vunpack.c.l.s4 1966171168
      %v4977 = vunpack.c.0.s8 %v4976
      %v4978 = vlaneseq
      %v4979 = vshrl.u32 %v4978, 7
      %v4980 = vsub.s32 %v4977, %v4979
      %v4981 = vrot.slane %v4967, %v4980
      %v4982 = vcombine.low %v4974, %v4981
      %v4983 = vcombine.low %v4483, %v4497
      %v4984 = vcombine.low %v4521, %v4535
      %v4985 = vcombine.low %v4543, %v4545
      %v4986 = vcombine.low %v4528, %v4542
      %v4988 = vunpack.c.l.s4 1966171168
      %v4989 = vunpack.c.0.s8 %v4988
      %v4990 = vlaneseq
      %v4991 = vshrl.u32 %v4990, 7
      %v4992 = vsub.s32 %v4989, %v4991
      %v4993 = vrot.slane %v4983, %v4992
      %v4995 = vunpack.c.l.s4 1966171168
      %v4996 = vunpack.c.0.s8 %v4995
      %v4997 = vlaneseq
      %v4998 = vshrl.u32 %v4997, 7
      %v4999 = vsub.s32 %v4996, %v4998
      %v5000 = vrot.slane %v4984, %v4999
      %v5002 = vunpack.c.l.s4 1966171168
      %v5003 = vunpack.c.0.s8 %v5002
      %v5004 = vlaneseq
      %v5005 = vshrl.u32 %v5004, 7
      %v5006 = vsub.s32 %v5003, %v5005
      %v5007 = vrot.slane %v4985, %v5006
      %v5009 = vunpack.c.l.s4 1966171168
      %v5010 = vunpack.c.0.s8 %v5009
      %v5011 = vlaneseq
      %v5012 = vshrl.u32 %v5011, 7
      %v5013 = vsub.s32 %v5010, %v5012
      %v5014 = vrot.slane %v4986, %v5013
      %v5015 = vcombine.low %v4993, %v5000
      %v5016 = vcombine.low %v5007, %v5014
      %v5018 = vunpack.c.l.s4 1966171168
      %v5019 = vunpack.c.0.s8 %v5018
      %v5020 = vlaneseq
      %v5021 = vshrl.u32 %v5020, 7
      %v5022 = vsub.s32 %v5019, %v5021
      %v5023 = vrot.slane %v5015, %v5022
      %v5025 = vunpack.c.l.s4 1966171168
      %v5026 = vunpack.c.0.s8 %v5025
      %v5027 = vlaneseq
      %v5028 = vshrl.u32 %v5027, 7
      %v5029 = vsub.s32 %v5026, %v5028
      %v5030 = vrot.slane %v5016, %v5029
      %v5031 = vcombine.low %v5023, %v5030
      %v5032 = vcombine.low %v4544, %v4546
      %v5033 = vcombine.low %v4560, %v4584
      %v5034 = vcombine.low %v4598, %v4606
      %v5035 = vcombine.low %v4608, %v4591
      %v5037 = vunpack.c.l.s4 1966171168
      %v5038 = vunpack.c.0.s8 %v5037
      %v5039 = vlaneseq
      %v5040 = vshrl.u32 %v5039, 7
      %v5041 = vsub.s32 %v5038, %v5040
      %v5042 = vrot.slane %v5032, %v5041
      %v5044 = vunpack.c.l.s4 1966171168
      %v5045 = vunpack.c.0.s8 %v5044
      %v5046 = vlaneseq
      %v5047 = vshrl.u32 %v5046, 7
      %v5048 = vsub.s32 %v5045, %v5047
      %v5049 = vrot.slane %v5033, %v5048
      %v5051 = vunpack.c.l.s4 1966171168
      %v5052 = vunpack.c.0.s8 %v5051
      %v5053 = vlaneseq
      %v5054 = vshrl.u32 %v5053, 7
      %v5055 = vsub.s32 %v5052, %v5054
      %v5056 = vrot.slane %v5034, %v5055
      %v5058 = vunpack.c.l.s4 1966171168
      %v5059 = vunpack.c.0.s8 %v5058
      %v5060 = vlaneseq
      %v5061 = vshrl.u32 %v5060, 7
      %v5062 = vsub.s32 %v5059, %v5061
      %v5063 = vrot.slane %v5035, %v5062
      %v5064 = vcombine.low %v5042, %v5049
      %v5065 = vcombine.low %v5056, %v5063
      %v5067 = vunpack.c.l.s4 1966171168
      %v5068 = vunpack.c.0.s8 %v5067
      %v5069 = vlaneseq
      %v5070 = vshrl.u32 %v5069, 7
      %v5071 = vsub.s32 %v5068, %v5070
      %v5072 = vrot.slane %v5064, %v5071
      %v5074 = vunpack.c.l.s4 1966171168
      %v5075 = vunpack.c.0.s8 %v5074
      %v5076 = vlaneseq
      %v5077 = vshrl.u32 %v5076, 7
      %v5078 = vsub.s32 %v5075, %v5077
      %v5079 = vrot.slane %v5065, %v5078
      %v5080 = vcombine.low %v5072, %v5079
      %v5081 = vcombine.low %v4605, %v4607
      %v5082 = vcombine.low %v4609, %v4623
      %v5083 = vcombine.low %v4647, %v4661
      %v5084 = vcombine.low %v4669, %v4671
      %v5086 = vunpack.c.l.s4 1966171168
      %v5087 = vunpack.c.0.s8 %v5086
      %v5088 = vlaneseq
      %v5089 = vshrl.u32 %v5088, 7
      %v5090 = vsub.s32 %v5087, %v5089
      %v5091 = vrot.slane %v5081, %v5090
      %v5093 = vunpack.c.l.s4 1966171168
      %v5094 = vunpack.c.0.s8 %v5093
      %v5095 = vlaneseq
      %v5096 = vshrl.u32 %v5095, 7
      %v5097 = vsub.s32 %v5094, %v5096
      %v5098 = vrot.slane %v5082, %v5097
      %v5100 = vunpack.c.l.s4 1966171168
      %v5101 = vunpack.c.0.s8 %v5100
      %v5102 = vlaneseq
      %v5103 = vshrl.u32 %v5102, 7
      %v5104 = vsub.s32 %v5101, %v5103
      %v5105 = vrot.slane %v5083, %v5104
      %v5107 = vunpack.c.l.s4 1966171168
      %v5108 = vunpack.c.0.s8 %v5107
      %v5109 = vlaneseq
      %v5110 = vshrl.u32 %v5109, 7
      %v5111 = vsub.s32 %v5108, %v5110
      %v5112 = vrot.slane %v5084, %v5111
      %v5113 = vcombine.low %v5091, %v5098
      %v5114 = vcombine.low %v5105, %v5112
      %v5116 = vunpack.c.l.s4 1966171168
      %v5117 = vunpack.c.0.s8 %v5116
      %v5118 = vlaneseq
      %v5119 = vshrl.u32 %v5118, 7
      %v5120 = vsub.s32 %v5117, %v5119
      %v5121 = vrot.slane %v5113, %v5120
      %v5123 = vunpack.c.l.s4 1966171168
      %v5124 = vunpack.c.0.s8 %v5123
      %v5125 = vlaneseq
      %v5126 = vshrl.u32 %v5125, 7
      %v5127 = vsub.s32 %v5124, %v5126
      %v5128 = vrot.slane %v5114, %v5127
      %v5129 = vcombine.low %v5121, %v5128
      %v5130 = vcombine.low %v4654, %v4668
      %v5131 = vcombine.low %v4670, %v4672
      %v5132 = vcombine.low %v4686, %v4710
      %v5133 = vcombine.low %v4724, %v4732
      %v5135 = vunpack.c.l.s4 1966171168
      %v5136 = vunpack.c.0.s8 %v5135
      %v5137 = vlaneseq
      %v5138 = vshrl.u32 %v5137, 7
      %v5139 = vsub.s32 %v5136, %v5138
      %v5140 = vrot.slane %v5130, %v5139
      %v5142 = vunpack.c.l.s4 1966171168
      %v5143 = vunpack.c.0.s8 %v5142
      %v5144 = vlaneseq
      %v5145 = vshrl.u32 %v5144, 7
      %v5146 = vsub.s32 %v5143, %v5145
      %v5147 = vrot.slane %v5131, %v5146
      %v5149 = vunpack.c.l.s4 1966171168
      %v5150 = vunpack.c.0.s8 %v5149
      %v5151 = vlaneseq
      %v5152 = vshrl.u32 %v5151, 7
      %v5153 = vsub.s32 %v5150, %v5152
      %v5154 = vrot.slane %v5132, %v5153
      %v5156 = vunpack.c.l.s4 1966171168
      %v5157 = vunpack.c.0.s8 %v5156
      %v5158 = vlaneseq
      %v5159 = vshrl.u32 %v5158, 7
      %v5160 = vsub.s32 %v5157, %v5159
      %v5161 = vrot.slane %v5133, %v5160
      %v5162 = vcombine.low %v5140, %v5147
      %v5163 = vcombine.low %v5154, %v5161
      %v5165 = vunpack.c.l.s4 1966171168
      %v5166 = vunpack.c.0.s8 %v5165
      %v5167 = vlaneseq
      %v5168 = vshrl.u32 %v5167, 7
      %v5169 = vsub.s32 %v5166, %v5168
      %v5170 = vrot.slane %v5162, %v5169
      %v5172 = vunpack.c.l.s4 1966171168
      %v5173 = vunpack.c.0.s8 %v5172
      %v5174 = vlaneseq
      %v5175 = vshrl.u32 %v5174, 7
      %v5176 = vsub.s32 %v5173, %v5175
      %v5177 = vrot.slane %v5163, %v5176
      %v5178 = vcombine.low %v5170, %v5177
      %v5179 = vcombine.low %v4734, %v4717
      %v5180 = vcombine.low %v4731, %v4733
      %v5181 = vcombine.low %v4735, %v4749
      %v5182 = vcombine.low %v4773, %v4787
      %v5184 = vunpack.c.l.s4 1966171168
      %v5185 = vunpack.c.0.s8 %v5184
      %v5186 = vlaneseq
      %v5187 = vshrl.u32 %v5186, 7
      %v5188 = vsub.s32 %v5185, %v5187
      %v5189 = vrot.slane %v5179, %v5188
      %v5191 = vunpack.c.l.s4 1966171168
      %v5192 = vunpack.c.0.s8 %v5191
      %v5193 = vlaneseq
      %v5194 = vshrl.u32 %v5193, 7
      %v5195 = vsub.s32 %v5192, %v5194
      %v5196 = vrot.slane %v5180, %v5195
      %v5198 = vunpack.c.l.s4 1966171168
      %v5199 = vunpack.c.0.s8 %v5198
      %v5200 = vlaneseq
      %v5201 = vshrl.u32 %v5200, 7
      %v5202 = vsub.s32 %v5199, %v5201
      %v5203 = vrot.slane %v5181, %v5202
      %v5205 = vunpack.c.l.s4 1966171168
      %v5206 = vunpack.c.0.s8 %v5205
      %v5207 = vlaneseq
      %v5208 = vshrl.u32 %v5207, 7
      %v5209 = vsub.s32 %v5206, %v5208
      %v5210 = vrot.slane %v5182, %v5209
      %v5211 = vcombine.low %v5189, %v5196
      %v5212 = vcombine.low %v5203, %v5210
      %v5214 = vunpack.c.l.s4 1966171168
      %v5215 = vunpack.c.0.s8 %v5214
      %v5216 = vlaneseq
      %v5217 = vshrl.u32 %v5216, 7
      %v5218 = vsub.s32 %v5215, %v5217
      %v5219 = vrot.slane %v5211, %v5218
      %v5221 = vunpack.c.l.s4 1966171168
      %v5222 = vunpack.c.0.s8 %v5221
      %v5223 = vlaneseq
      %v5224 = vshrl.u32 %v5223, 7
      %v5225 = vsub.s32 %v5222, %v5224
      %v5226 = vrot.slane %v5212, %v5225
      %v5227 = vcombine.low %v5219, %v5226
      %v5228 = vcombine.low %v4795, %v4797
      %v5229 = vcombine.low %v4780, %v4794
      %v5230 = vcombine.low %v4796, %v4798
      %v5231 = vcombine.low %v4812, %v4836
      %v5233 = vunpack.c.l.s4 1966171168
      %v5234 = vunpack.c.0.s8 %v5233
      %v5235 = vlaneseq
      %v5236 = vshrl.u32 %v5235, 7
      %v5237 = vsub.s32 %v5234, %v5236
      %v5238 = vrot.slane %v5228, %v5237
      %v5240 = vunpack.c.l.s4 1966171168
      %v5241 = vunpack.c.0.s8 %v5240
      %v5242 = vlaneseq
      %v5243 = vshrl.u32 %v5242, 7
      %v5244 = vsub.s32 %v5241, %v5243
      %v5245 = vrot.slane %v5229, %v5244
      %v5247 = vunpack.c.l.s4 1966171168
      %v5248 = vunpack.c.0.s8 %v5247
      %v5249 = vlaneseq
      %v5250 = vshrl.u32 %v5249, 7
      %v5251 = vsub.s32 %v5248, %v5250
      %v5252 = vrot.slane %v5230, %v5251
      %v5254 = vunpack.c.l.s4 1966171168
      %v5255 = vunpack.c.0.s8 %v5254
      %v5256 = vlaneseq
      %v5257 = vshrl.u32 %v5256, 7
      %v5258 = vsub.s32 %v5255, %v5257
      %v5259 = vrot.slane %v5231, %v5258
      %v5260 = vcombine.low %v5238, %v5245
      %v5261 = vcombine.low %v5252, %v5259
      %v5263 = vunpack.c.l.s4 1966171168
      %v5264 = vunpack.c.0.s8 %v5263
      %v5265 = vlaneseq
      %v5266 = vshrl.u32 %v5265, 7
      %v5267 = vsub.s32 %v5264, %v5266
      %v5268 = vrot.slane %v5260, %v5267
      %v5270 = vunpack.c.l.s4 1966171168
      %v5271 = vunpack.c.0.s8 %v5270
      %v5272 = vlaneseq
      %v5273 = vshrl.u32 %v5272, 7
      %v5274 = vsub.s32 %v5271, %v5273
      %v5275 = vrot.slane %v5261, %v5274
      %v5276 = vcombine.low %v5268, %v5275
      %v5277 = vcombine.low %v4850, %v4858
      %v5278 = vcombine.low %v4860, %v4843
      %v5279 = vcombine.low %v4857, %v4859
      %v5280 = vcombine.low %v4861, %v4875
      %v5282 = vunpack.c.l.s4 1966171168
      %v5283 = vunpack.c.0.s8 %v5282
      %v5284 = vlaneseq
      %v5285 = vshrl.u32 %v5284, 7
      %v5286 = vsub.s32 %v5283, %v5285
      %v5287 = vrot.slane %v5277, %v5286
      %v5289 = vunpack.c.l.s4 1966171168
      %v5290 = vunpack.c.0.s8 %v5289
      %v5291 = vlaneseq
      %v5292 = vshrl.u32 %v5291, 7
      %v5293 = vsub.s32 %v5290, %v5292
      %v5294 = vrot.slane %v5278, %v5293
      %v5296 = vunpack.c.l.s4 1966171168
      %v5297 = vunpack.c.0.s8 %v5296
      %v5298 = vlaneseq
      %v5299 = vshrl.u32 %v5298, 7
      %v5300 = vsub.s32 %v5297, %v5299
      %v5301 = vrot.slane %v5279, %v5300
      %v5303 = vunpack.c.l.s4 1966171168
      %v5304 = vunpack.c.0.s8 %v5303
      %v5305 = vlaneseq
      %v5306 = vshrl.u32 %v5305, 7
      %v5307 = vsub.s32 %v5304, %v5306
      %v5308 = vrot.slane %v5280, %v5307
      %v5309 = vcombine.low %v5287, %v5294
      %v5310 = vcombine.low %v5301, %v5308
      %v5312 = vunpack.c.l.s4 1966171168
      %v5313 = vunpack.c.0.s8 %v5312
      %v5314 = vlaneseq
      %v5315 = vshrl.u32 %v5314, 7
      %v5316 = vsub.s32 %v5313, %v5315
      %v5317 = vrot.slane %v5309, %v5316
      %v5319 = vunpack.c.l.s4 1966171168
      %v5320 = vunpack.c.0.s8 %v5319
      %v5321 = vlaneseq
      %v5322 = vshrl.u32 %v5321, 7
      %v5323 = vsub.s32 %v5320, %v5322
      %v5324 = vrot.slane %v5310, %v5323
      %v5325 = vcombine.low %v5317, %v5324
      %v5326 = vsel %vm3104, %v4933, 0
      %v5328 = vsel %vm3104, %v4982, 0
      %v5330 = vsel %vm3104, %v5031, 0
      %v5332 = vsel %vm3104, %v5080, 0
      %v5334 = vsel %vm3104, %v5129, 0
      %v5336 = vsel %vm3104, %v5178, 0
      %v5338 = vsel %vm3104, %v5227, 0
      %v5340 = vsel %vm3104, %v5276, 0
      %v5342 = vsel %vm3104, %v5325, 0
      %5344 = vmatprep.subr.mxu0 0.0
      %5345 = vmatpush1.msra.mxu0 0.0
      %5346 = vmatprep.subr.mxu0 0.0
      %5347 = vmatpush1.msra.mxu0 0.0
      %5348 = vmatprep.subr.mxu0 0.0
      %5349 = vmatpush1.msra.mxu0 0.0
      %5350 = vmatprep.subr.mxu0 0.0
      %5351 = vmatpush1.msra.mxu0 0.0
      %5352 = vmatprep.subr.mxu0 0.0
      %5353 = vmatpush1.msra.mxu0 0.0
      %5354 = vmatprep.subr.mxu0 0.0
      %5355 = vmatpush1.msra.mxu0 0.0
      %5356 = vmatprep.subr.mxu0 0.0
      %5357 = vmatpush1.msra.mxu0 0.0
      %5358 = vmatprep.subr.mxu0 0.0
      %5359 = vmatpush1.msra.mxu0 0.0
      %5360 = vmatprep.subr.mxu0 0.0
      %5361 = vmatpush1.msra.mxu0 0.0
      %5362 = vmatprep.subr.mxu0 0.0
      %5363 = vmatpush1.msra.mxu0 0.0
      %5364 = vmatprep.subr.mxu0 0.0
      %5365 = vmatpush1.msra.mxu0 0.0
      %5366 = vmatprep.subr.mxu0 0.0
      %5367 = vmatpush1.msra.mxu0 0.0
      %5368 = vmatprep.subr.mxu0 0.0
      %5369 = vmatpush1.msra.mxu0 0.0
      %5370 = vmatprep.subr.mxu0 0.0
      %5371 = vmatpush1.msra.mxu0 0.0
      %5372 = vmatprep.subr.mxu0 0.0
      %5373 = vmatpush1.msra.mxu0 %v4877
      %5374 = vmatprep.subr.mxu0 0.0
      %5375 = vmatpush1.msra.mxu0 %v4876
      %5376 = vmatprep.subr.mxu0 0.0
      %5377 = vmatpush2.msra.mxu0 0.0
      %5378 = vmatprep.subr.mxu0 0.0
      %5379 = vmatpush2.msra.mxu0 0.0
      %5380 = vmatprep.subr.mxu0 0.0
      %5381 = vmatpush2.msra.mxu0 0.0
      %5382 = vmatprep.subr.mxu0 0.0
      %5383 = vmatpush2.msra.mxu0 0.0
      %5384 = vmatprep.subr.mxu0 0.0
      %5385 = vmatpush2.msra.mxu0 0.0
      %5386 = vmatprep.subr.mxu0 0.0
      %5387 = vmatpush2.msra.mxu0 0.0
      %5388 = vmatprep.subr.mxu0 0.0
      %5389 = vmatpush2.msra.mxu0 0.0
      %5390 = vmatprep.subr.mxu0 0.0
      %5391 = vmatpush2.msra.mxu0 0.0
      %5392 = vmatprep.subr.mxu0 0.0
      %5393 = vmatpush2.msra.mxu0 0.0
      %5394 = vmatprep.subr.mxu0 0.0
      %5395 = vmatpush2.msra.mxu0 0.0
      %5396 = vmatprep.subr.mxu0 0.0
      %5397 = vmatpush2.msra.mxu0 0.0
      %5398 = vmatprep.subr.mxu0 0.0
      %5399 = vmatpush2.msra.mxu0 0.0
      %5400 = vmatprep.subr.mxu0 0.0
      %5401 = vmatpush2.msra.mxu0 0.0
      %5402 = vmatprep.subr.mxu0 0.0
      %5403 = vmatpush2.msra.mxu0 0.0
      %5404 = vmatprep.subr.mxu0 0.0
      %5405 = vmatpush2.msra.mxu0 0.0
      %5406 = vmatprep.subr.mxu0 0.0
      %5407 = vmatpush2.msra.mxu0 0.0
      %5408 = vmatprep.mubr.f32.mxu0 0.0
      %5409 = vmatmul.mubr.f32.gmra.mxu0 %v5326
      %v5410 = vpop.f32.mrf.mxu0
      %v5411 = vadd.f32 %v4883, %v5410
      %v5412 = vpop.f32.mrf.mxu0
      %5413 = vmatprep.mubr.f32.mxu0 0.0
      %5414 = vmatmul.mubr.f32.gmra.mxu0 %v5328
      %v5415 = vpop.f32.mrf.mxu0
      %v5416 = vadd.f32 %v4883, %v5415
      %v5417 = vpop.f32.mrf.mxu0
      %5418 = vmatprep.mubr.f32.mxu0 0.0
      %5419 = vmatmul.mubr.f32.gmra.mxu0 %v5330
      %v5420 = vpop.f32.mrf.mxu0
      %v5421 = vadd.f32 %v4883, %v5420
      %v5422 = vpop.f32.mrf.mxu0
      %5423 = vmatprep.mubr.f32.mxu0 0.0
      %5424 = vmatmul.mubr.f32.gmra.mxu0 %v5332
      %v5425 = vpop.f32.mrf.mxu0
      %v5426 = vadd.f32 %v4883, %v5425
      %v5427 = vpop.f32.mrf.mxu0
      %5428 = vmatprep.mubr.f32.mxu0 0.0
      %5429 = vmatmul.mubr.f32.gmra.mxu0 %v5334
      %v5430 = vpop.f32.mrf.mxu0
      %v5431 = vadd.f32 %v4883, %v5430
      %v5432 = vpop.f32.mrf.mxu0
      %5433 = vmatprep.mubr.f32.mxu0 0.0
      %5434 = vmatmul.mubr.f32.gmra.mxu0 %v5336
      %v5435 = vpop.f32.mrf.mxu0
      %v5436 = vadd.f32 %v4883, %v5435
      %v5437 = vpop.f32.mrf.mxu0
      %5438 = vmatprep.mubr.f32.mxu0 0.0
      %5439 = vmatmul.mubr.f32.gmra.mxu0 %v5338
      %v5440 = vpop.f32.mrf.mxu0
      %v5441 = vadd.f32 %v4883, %v5440
      %v5442 = vpop.f32.mrf.mxu0
      %5443 = vmatprep.mubr.f32.mxu0 0.0
      %5444 = vmatmul.mubr.f32.gmra.mxu0 %v5340
      %v5445 = vpop.f32.mrf.mxu0
      %v5446 = vadd.f32 %v4883, %v5445
      %v5447 = vpop.f32.mrf.mxu0
      %5448 = vmatprep.mubr.f32.mxu0 0.0
      %5449 = vmatmul.mubr.f32.gmra.mxu0 %v5342
      %v5450 = vpop.f32.mrf.mxu0
      %v5451 = vadd.f32 %v4883, %v5450
      %v5452 = vpop.f32.mrf.mxu0
      %5453 = vdwg.mxu0
      %v5454 = vmul.f32 %v5411, %v5411
      %v5455 = vmul.f32 %v5416, %v5416
      %v5456 = vmul.f32 %v5421, %v5421
      %v5457 = vmul.f32 %v5426, %v5426
      %v5458 = vmul.f32 %v5431, %v5431
      %v5459 = vmul.f32 %v5436, %v5436
      %v5460 = vmul.f32 %v5441, %v5441
      %v5461 = vmul.f32 %v5446, %v5446
      %v5462 = vmul.f32 %v5451, %v5451
      %v5463 = vmul.f32 %v5411, %v5454
      %v5464 = vmul.f32 %v5416, %v5455
      %v5465 = vmul.f32 %v5421, %v5456
      %v5466 = vmul.f32 %v5426, %v5457
      %v5467 = vmul.f32 %v5431, %v5458
      %v5468 = vmul.f32 %v5436, %v5459
      %v5469 = vmul.f32 %v5441, %v5460
      %v5470 = vmul.f32 %v5446, %v5461
      %v5471 = vmul.f32 %v5451, %v5462
      %v5472 = vmul.f32 %v5463, 0.044715
      %v5473 = vmul.f32 %v5464, 0.044715
      %v5474 = vmul.f32 %v5465, 0.044715
      %v5475 = vmul.f32 %v5466, 0.044715
      %v5476 = vmul.f32 %v5467, 0.044715
      %v5477 = vmul.f32 %v5468, 0.044715
      %v5478 = vmul.f32 %v5469, 0.044715
      %v5479 = vmul.f32 %v5470, 0.044715
      %v5480 = vmul.f32 %v5471, 0.044715
      %v5481 = vadd.f32 %v5411, %v5472
      %v5482 = vadd.f32 %v5416, %v5473
      %v5483 = vadd.f32 %v5421, %v5474
      %v5484 = vadd.f32 %v5426, %v5475
      %v5485 = vadd.f32 %v5431, %v5476
      %v5486 = vadd.f32 %v5436, %v5477
      %v5487 = vadd.f32 %v5441, %v5478
      %v5488 = vadd.f32 %v5446, %v5479
      %v5489 = vadd.f32 %v5451, %v5480
      %v5490 = vmul.f32 %v5481, 0.7978846
      %v5491 = vmul.f32 %v5482, 0.7978846
      %v5492 = vmul.f32 %v5483, 0.7978846
      %v5493 = vmul.f32 %v5484, 0.7978846
      %v5494 = vmul.f32 %v5485, 0.7978846
      %v5495 = vmul.f32 %v5486, 0.7978846
      %v5496 = vmul.f32 %v5487, 0.7978846
      %v5497 = vmul.f32 %v5488, 0.7978846
      %v5498 = vmul.f32 %v5489, 0.7978846
      %v5499 = vtanh.pop %v5490
      %v5500 = vtanh.pop %v5491
      %v5501 = vtanh.pop %v5492
      %v5502 = vtanh.pop %v5493
      %v5503 = vtanh.pop %v5494
      %v5504 = vtanh.pop %v5495
      %v5505 = vtanh.pop %v5496
      %v5506 = vtanh.pop %v5497
      %v5507 = vtanh.pop %v5498
      %v5508 = vadd.f32 %v5499, 1.0
      %v5509 = vadd.f32 %v5500, 1.0
      %v5510 = vadd.f32 %v5501, 1.0
      %v5511 = vadd.f32 %v5502, 1.0
      %v5512 = vadd.f32 %v5503, 1.0
      %v5513 = vadd.f32 %v5504, 1.0
      %v5514 = vadd.f32 %v5505, 1.0
      %v5515 = vadd.f32 %v5506, 1.0
      %v5516 = vadd.f32 %v5507, 1.0
      %v5517 = vmul.f32 %v5508, 0.5
      %v5518 = vmul.f32 %v5509, 0.5
      %v5519 = vmul.f32 %v5510, 0.5
      %v5520 = vmul.f32 %v5511, 0.5
      %v5521 = vmul.f32 %v5512, 0.5
      %v5522 = vmul.f32 %v5513, 0.5
      %v5523 = vmul.f32 %v5514, 0.5
      %v5524 = vmul.f32 %v5515, 0.5
      %v5525 = vmul.f32 %v5516, 0.5
      %v5526 = vmul.f32 %v5411, %v5517
      %v5527 = vmul.f32 %v5416, %v5518
      %v5528 = vmul.f32 %v5421, %v5519
      %v5529 = vmul.f32 %v5426, %v5520
      %v5530 = vmul.f32 %v5431, %v5521
      %v5531 = vmul.f32 %v5436, %v5522
      %v5532 = vmul.f32 %v5441, %v5523
      %v5533 = vmul.f32 %v5446, %v5524
      %v5534 = vmul.f32 %v5451, %v5525
      %v5535 = vld [vmem:[%s16] sm:$0xff]
      %v5536 = vld [vmem:[%s16 + $0x8] sm:$0xff]
      %v5537 = vld [vmem:[%s16 + $0x10] sm:$0xff]
      %v5538 = vld [vmem:[%s16 + $0x18] sm:$0xff]
      %v5539 = vld [vmem:[%s17] sm:$0x1]
      %v5541 = vlaneseq
      %v5542 = vshrl.u32 %v5541, 7
      %v5543 = vsub.s32 0, %v5542
      %v5544 = vrot.slane %v5539, %v5543
      %vm5546 = vcmask 261120
      %v5548 = vsel %vm5546, %v5526, 0
      %v5551 = vsel %vm5546, %v5527, 0
      %v5554 = vsel %vm5546, %v5528, 0
      %v5557 = vsel %vm5546, %v5529, 0
      %v5560 = vsel %vm5546, %v5530, 0
      %v5563 = vsel %vm5546, %v5531, 0
      %v5566 = vsel %vm5546, %v5532, 0
      %v5569 = vsel %vm5546, %v5533, 0
      %v5572 = vsel %vm5546, %v5534, 0
      %5574 = vmatprep.subr.mxu0 0.0
      %5575 = vmatpush1.msra.mxu0 0.0
      %5576 = vmatprep.subr.mxu0 0.0
      %5577 = vmatpush1.msra.mxu0 0.0
      %5578 = vmatprep.subr.mxu0 0.0
      %5579 = vmatpush1.msra.mxu0 0.0
      %5580 = vmatprep.subr.mxu0 0.0
      %5581 = vmatpush1.msra.mxu0 0.0
      %5582 = vmatprep.subr.mxu0 0.0
      %5583 = vmatpush1.msra.mxu0 0.0
      %5584 = vmatprep.subr.mxu0 0.0
      %5585 = vmatpush1.msra.mxu0 0.0
      %5586 = vmatprep.subr.mxu0 0.0
      %5587 = vmatpush1.msra.mxu0 0.0
      %5588 = vmatprep.subr.mxu0 0.0
      %5589 = vmatpush1.msra.mxu0 0.0
      %5590 = vmatprep.subr.mxu0 0.0
      %5591 = vmatpush1.msra.mxu0 0.0
      %5592 = vmatprep.subr.mxu0 0.0
      %5593 = vmatpush1.msra.mxu0 0.0
      %5594 = vmatprep.subr.mxu0 0.0
      %5595 = vmatpush1.msra.mxu0 0.0
      %5596 = vmatprep.subr.mxu0 0.0
      %5597 = vmatpush1.msra.mxu0 0.0
      %5598 = vmatprep.subr.mxu0 0.0
      %5599 = vmatpush1.msra.mxu0 %v5538
      %5600 = vmatprep.subr.mxu0 0.0
      %5601 = vmatpush1.msra.mxu0 %v5537
      %5602 = vmatprep.subr.mxu0 0.0
      %5603 = vmatpush1.msra.mxu0 %v5536
      %5604 = vmatprep.subr.mxu0 0.0
      %5605 = vmatpush1.msra.mxu0 %v5535
      %5606 = vmatprep.subr.mxu0 0.0
      %5607 = vmatpush2.msra.mxu0 0.0
      %5608 = vmatprep.subr.mxu0 0.0
      %5609 = vmatpush2.msra.mxu0 0.0
      %5610 = vmatprep.subr.mxu0 0.0
      %5611 = vmatpush2.msra.mxu0 0.0
      %5612 = vmatprep.subr.mxu0 0.0
      %5613 = vmatpush2.msra.mxu0 0.0
      %5614 = vmatprep.subr.mxu0 0.0
      %5615 = vmatpush2.msra.mxu0 0.0
      %5616 = vmatprep.subr.mxu0 0.0
      %5617 = vmatpush2.msra.mxu0 0.0
      %5618 = vmatprep.subr.mxu0 0.0
      %5619 = vmatpush2.msra.mxu0 0.0
      %5620 = vmatprep.subr.mxu0 0.0
      %5621 = vmatpush2.msra.mxu0 0.0
      %5622 = vmatprep.subr.mxu0 0.0
      %5623 = vmatpush2.msra.mxu0 0.0
      %5624 = vmatprep.subr.mxu0 0.0
      %5625 = vmatpush2.msra.mxu0 0.0
      %5626 = vmatprep.subr.mxu0 0.0
      %5627 = vmatpush2.msra.mxu0 0.0
      %5628 = vmatprep.subr.mxu0 0.0
      %5629 = vmatpush2.msra.mxu0 0.0
      %5630 = vmatprep.subr.mxu0 0.0
      %5631 = vmatpush2.msra.mxu0 0.0
      %5632 = vmatprep.subr.mxu0 0.0
      %5633 = vmatpush2.msra.mxu0 0.0
      %5634 = vmatprep.subr.mxu0 0.0
      %5635 = vmatpush2.msra.mxu0 0.0
      %5636 = vmatprep.subr.mxu0 0.0
      %5637 = vmatpush2.msra.mxu0 0.0
      %5638 = vmatprep.mubr.f32.mxu0 0.0
      %5639 = vmatmul.mubr.f32.gmra.mxu0 %v5548
      %v5640 = vpop.f32.mrf.mxu0
      %v5641 = vadd.f32 %v5544, %v5640
      %v5642 = vpop.f32.mrf.mxu0
      %5643 = vmatprep.mubr.f32.mxu0 0.0
      %5644 = vmatmul.mubr.f32.gmra.mxu0 %v5551
      %v5645 = vpop.f32.mrf.mxu0
      %v5646 = vadd.f32 %v5544, %v5645
      %v5647 = vpop.f32.mrf.mxu0
      %5648 = vmatprep.mubr.f32.mxu0 0.0
      %5649 = vmatmul.mubr.f32.gmra.mxu0 %v5554
      %v5650 = vpop.f32.mrf.mxu0
      %v5651 = vadd.f32 %v5544, %v5650
      %v5652 = vpop.f32.mrf.mxu0
      %5653 = vmatprep.mubr.f32.mxu0 0.0
      %5654 = vmatmul.mubr.f32.gmra.mxu0 %v5557
      %v5655 = vpop.f32.mrf.mxu0
      %v5656 = vadd.f32 %v5544, %v5655
      %v5657 = vpop.f32.mrf.mxu0
      %5658 = vmatprep.mubr.f32.mxu0 0.0
      %5659 = vmatmul.mubr.f32.gmra.mxu0 %v5560
      %v5660 = vpop.f32.mrf.mxu0
      %v5661 = vadd.f32 %v5544, %v5660
      %v5662 = vpop.f32.mrf.mxu0
      %5663 = vmatprep.mubr.f32.mxu0 0.0
      %5664 = vmatmul.mubr.f32.gmra.mxu0 %v5563
      %v5665 = vpop.f32.mrf.mxu0
      %v5666 = vadd.f32 %v5544, %v5665
      %v5667 = vpop.f32.mrf.mxu0
      %5668 = vmatprep.mubr.f32.mxu0 0.0
      %5669 = vmatmul.mubr.f32.gmra.mxu0 %v5566
      %v5670 = vpop.f32.mrf.mxu0
      %v5671 = vadd.f32 %v5544, %v5670
      %v5672 = vpop.f32.mrf.mxu0
      %5673 = vmatprep.mubr.f32.mxu0 0.0
      %5674 = vmatmul.mubr.f32.gmra.mxu0 %v5569
      %v5675 = vpop.f32.mrf.mxu0
      %v5676 = vadd.f32 %v5544, %v5675
      %v5677 = vpop.f32.mrf.mxu0
      %5678 = vmatprep.mubr.f32.mxu0 0.0
      %5679 = vmatmul.mubr.f32.gmra.mxu0 %v5572
      %v5680 = vpop.f32.mrf.mxu0
      %v5681 = vadd.f32 %v5544, %v5680
      %v5682 = vpop.f32.mrf.mxu0
      %5683 = vdwg.mxu0
      %v5684 = vld [vmem:[%s18] sm:$0x1]
      %v5686 = vlaneseq
      %v5687 = vshrl.u32 %v5686, 7
      %v5688 = vsub.s32 0, %v5687
      %v5689 = vrot.slane %v5684, %v5688
      %v5691 = vmul.f32 %v5641, %v5689
      %v5692 = vmul.f32 %v5646, %v5689
      %v5693 = vmul.f32 %v5651, %v5689
      %v5694 = vmul.f32 %v5656, %v5689
      %v5695 = vmul.f32 %v5661, %v5689
      %v5696 = vmul.f32 %v5666, %v5689
      %v5697 = vmul.f32 %v5671, %v5689
      %v5698 = vmul.f32 %v5676, %v5689
      %v5699 = vmul.f32 %v5681, %v5689
      %v5709 = vcombine.high %v5691, %v5691
      %v5711 = vunpack.c.l.s4 1966171168
      %v5712 = vunpack.c.0.s8 %v5711
      %v5713 = vlaneseq
      %v5714 = vshrl.u32 %v5713, 7
      %v5715 = vsub.s32 %v5712, %v5714
      %v5716 = vrot.slane %v5691, %v5715
      %v5718 = vunpack.c.l.s4 1966171168
      %v5719 = vunpack.c.0.s8 %v5718
      %v5720 = vlaneseq
      %v5721 = vshrl.u32 %v5720, 7
      %v5722 = vsub.s32 %v5719, %v5721
      %v5723 = vrot.slane %v5709, %v5722
      %v5724 = vcombine.high %v5716, %v5716
      %v5725 = vcombine.high %v5723, %v5723
      %v5727 = vunpack.c.l.s4 1966171168
      %v5728 = vunpack.c.0.s8 %v5727
      %v5729 = vlaneseq
      %v5730 = vshrl.u32 %v5729, 7
      %v5731 = vsub.s32 %v5728, %v5730
      %v5732 = vrot.slane %v5716, %v5731
      %v5734 = vunpack.c.l.s4 1966171168
      %v5735 = vunpack.c.0.s8 %v5734
      %v5736 = vlaneseq
      %v5737 = vshrl.u32 %v5736, 7
      %v5738 = vsub.s32 %v5735, %v5737
      %v5739 = vrot.slane %v5723, %v5738
      %v5741 = vunpack.c.l.s4 1966171168
      %v5742 = vunpack.c.0.s8 %v5741
      %v5743 = vlaneseq
      %v5744 = vshrl.u32 %v5743, 7
      %v5745 = vsub.s32 %v5742, %v5744
      %v5746 = vrot.slane %v5724, %v5745
      %v5748 = vunpack.c.l.s4 1966171168
      %v5749 = vunpack.c.0.s8 %v5748
      %v5750 = vlaneseq
      %v5751 = vshrl.u32 %v5750, 7
      %v5752 = vsub.s32 %v5749, %v5751
      %v5753 = vrot.slane %v5725, %v5752
      %v5754 = vcombine.high %v5732, %v5732
      %v5755 = vcombine.high %v5739, %v5739
      %v5756 = vcombine.high %v5746, %v5746
      %v5757 = vcombine.high %v5753, %v5753
      %v5758 = vcombine.high %v5692, %v5692
      %v5760 = vunpack.c.l.s4 1966171168
      %v5761 = vunpack.c.0.s8 %v5760
      %v5762 = vlaneseq
      %v5763 = vshrl.u32 %v5762, 7
      %v5764 = vsub.s32 %v5761, %v5763
      %v5765 = vrot.slane %v5692, %v5764
      %v5767 = vunpack.c.l.s4 1966171168
      %v5768 = vunpack.c.0.s8 %v5767
      %v5769 = vlaneseq
      %v5770 = vshrl.u32 %v5769, 7
      %v5771 = vsub.s32 %v5768, %v5770
      %v5772 = vrot.slane %v5758, %v5771
      %v5773 = vcombine.high %v5765, %v5765
      %v5774 = vcombine.high %v5772, %v5772
      %v5776 = vunpack.c.l.s4 1966171168
      %v5777 = vunpack.c.0.s8 %v5776
      %v5778 = vlaneseq
      %v5779 = vshrl.u32 %v5778, 7
      %v5780 = vsub.s32 %v5777, %v5779
      %v5781 = vrot.slane %v5765, %v5780
      %v5783 = vunpack.c.l.s4 1966171168
      %v5784 = vunpack.c.0.s8 %v5783
      %v5785 = vlaneseq
      %v5786 = vshrl.u32 %v5785, 7
      %v5787 = vsub.s32 %v5784, %v5786
      %v5788 = vrot.slane %v5772, %v5787
      %v5790 = vunpack.c.l.s4 1966171168
      %v5791 = vunpack.c.0.s8 %v5790
      %v5792 = vlaneseq
      %v5793 = vshrl.u32 %v5792, 7
      %v5794 = vsub.s32 %v5791, %v5793
      %v5795 = vrot.slane %v5773, %v5794
      %v5797 = vunpack.c.l.s4 1966171168
      %v5798 = vunpack.c.0.s8 %v5797
      %v5799 = vlaneseq
      %v5800 = vshrl.u32 %v5799, 7
      %v5801 = vsub.s32 %v5798, %v5800
      %v5802 = vrot.slane %v5774, %v5801
      %v5803 = vcombine.high %v5781, %v5781
      %v5804 = vcombine.high %v5788, %v5788
      %v5805 = vcombine.high %v5795, %v5795
      %v5806 = vcombine.high %v5802, %v5802
      %v5807 = vcombine.high %v5693, %v5693
      %v5809 = vunpack.c.l.s4 1966171168
      %v5810 = vunpack.c.0.s8 %v5809
      %v5811 = vlaneseq
      %v5812 = vshrl.u32 %v5811, 7
      %v5813 = vsub.s32 %v5810, %v5812
      %v5814 = vrot.slane %v5693, %v5813
      %v5816 = vunpack.c.l.s4 1966171168
      %v5817 = vunpack.c.0.s8 %v5816
      %v5818 = vlaneseq
      %v5819 = vshrl.u32 %v5818, 7
      %v5820 = vsub.s32 %v5817, %v5819
      %v5821 = vrot.slane %v5807, %v5820
      %v5822 = vcombine.high %v5814, %v5814
      %v5823 = vcombine.high %v5821, %v5821
      %v5825 = vunpack.c.l.s4 1966171168
      %v5826 = vunpack.c.0.s8 %v5825
      %v5827 = vlaneseq
      %v5828 = vshrl.u32 %v5827, 7
      %v5829 = vsub.s32 %v5826, %v5828
      %v5830 = vrot.slane %v5814, %v5829
      %v5832 = vunpack.c.l.s4 1966171168
      %v5833 = vunpack.c.0.s8 %v5832
      %v5834 = vlaneseq
      %v5835 = vshrl.u32 %v5834, 7
      %v5836 = vsub.s32 %v5833, %v5835
      %v5837 = vrot.slane %v5821, %v5836
      %v5839 = vunpack.c.l.s4 1966171168
      %v5840 = vunpack.c.0.s8 %v5839
      %v5841 = vlaneseq
      %v5842 = vshrl.u32 %v5841, 7
      %v5843 = vsub.s32 %v5840, %v5842
      %v5844 = vrot.slane %v5822, %v5843
      %v5846 = vunpack.c.l.s4 1966171168
      %v5847 = vunpack.c.0.s8 %v5846
      %v5848 = vlaneseq
      %v5849 = vshrl.u32 %v5848, 7
      %v5850 = vsub.s32 %v5847, %v5849
      %v5851 = vrot.slane %v5823, %v5850
      %v5852 = vcombine.high %v5830, %v5830
      %v5853 = vcombine.high %v5837, %v5837
      %v5854 = vcombine.high %v5844, %v5844
      %v5855 = vcombine.high %v5851, %v5851
      %v5856 = vcombine.high %v5694, %v5694
      %v5858 = vunpack.c.l.s4 1966171168
      %v5859 = vunpack.c.0.s8 %v5858
      %v5860 = vlaneseq
      %v5861 = vshrl.u32 %v5860, 7
      %v5862 = vsub.s32 %v5859, %v5861
      %v5863 = vrot.slane %v5694, %v5862
      %v5865 = vunpack.c.l.s4 1966171168
      %v5866 = vunpack.c.0.s8 %v5865
      %v5867 = vlaneseq
      %v5868 = vshrl.u32 %v5867, 7
      %v5869 = vsub.s32 %v5866, %v5868
      %v5870 = vrot.slane %v5856, %v5869
      %v5871 = vcombine.high %v5863, %v5863
      %v5872 = vcombine.high %v5870, %v5870
      %v5874 = vunpack.c.l.s4 1966171168
      %v5875 = vunpack.c.0.s8 %v5874
      %v5876 = vlaneseq
      %v5877 = vshrl.u32 %v5876, 7
      %v5878 = vsub.s32 %v5875, %v5877
      %v5879 = vrot.slane %v5863, %v5878
      %v5881 = vunpack.c.l.s4 1966171168
      %v5882 = vunpack.c.0.s8 %v5881
      %v5883 = vlaneseq
      %v5884 = vshrl.u32 %v5883, 7
      %v5885 = vsub.s32 %v5882, %v5884
      %v5886 = vrot.slane %v5870, %v5885
      %v5888 = vunpack.c.l.s4 1966171168
      %v5889 = vunpack.c.0.s8 %v5888
      %v5890 = vlaneseq
      %v5891 = vshrl.u32 %v5890, 7
      %v5892 = vsub.s32 %v5889, %v5891
      %v5893 = vrot.slane %v5871, %v5892
      %v5895 = vunpack.c.l.s4 1966171168
      %v5896 = vunpack.c.0.s8 %v5895
      %v5897 = vlaneseq
      %v5898 = vshrl.u32 %v5897, 7
      %v5899 = vsub.s32 %v5896, %v5898
      %v5900 = vrot.slane %v5872, %v5899
      %v5901 = vcombine.high %v5879, %v5879
      %v5902 = vcombine.high %v5886, %v5886
      %v5903 = vcombine.high %v5893, %v5893
      %v5904 = vcombine.high %v5900, %v5900
      %v5905 = vcombine.high %v5695, %v5695
      %v5907 = vunpack.c.l.s4 1966171168
      %v5908 = vunpack.c.0.s8 %v5907
      %v5909 = vlaneseq
      %v5910 = vshrl.u32 %v5909, 7
      %v5911 = vsub.s32 %v5908, %v5910
      %v5912 = vrot.slane %v5695, %v5911
      %v5914 = vunpack.c.l.s4 1966171168
      %v5915 = vunpack.c.0.s8 %v5914
      %v5916 = vlaneseq
      %v5917 = vshrl.u32 %v5916, 7
      %v5918 = vsub.s32 %v5915, %v5917
      %v5919 = vrot.slane %v5905, %v5918
      %v5920 = vcombine.high %v5912, %v5912
      %v5921 = vcombine.high %v5919, %v5919
      %v5923 = vunpack.c.l.s4 1966171168
      %v5924 = vunpack.c.0.s8 %v5923
      %v5925 = vlaneseq
      %v5926 = vshrl.u32 %v5925, 7
      %v5927 = vsub.s32 %v5924, %v5926
      %v5928 = vrot.slane %v5912, %v5927
      %v5930 = vunpack.c.l.s4 1966171168
      %v5931 = vunpack.c.0.s8 %v5930
      %v5932 = vlaneseq
      %v5933 = vshrl.u32 %v5932, 7
      %v5934 = vsub.s32 %v5931, %v5933
      %v5935 = vrot.slane %v5919, %v5934
      %v5937 = vunpack.c.l.s4 1966171168
      %v5938 = vunpack.c.0.s8 %v5937
      %v5939 = vlaneseq
      %v5940 = vshrl.u32 %v5939, 7
      %v5941 = vsub.s32 %v5938, %v5940
      %v5942 = vrot.slane %v5920, %v5941
      %v5944 = vunpack.c.l.s4 1966171168
      %v5945 = vunpack.c.0.s8 %v5944
      %v5946 = vlaneseq
      %v5947 = vshrl.u32 %v5946, 7
      %v5948 = vsub.s32 %v5945, %v5947
      %v5949 = vrot.slane %v5921, %v5948
      %v5950 = vcombine.high %v5928, %v5928
      %v5951 = vcombine.high %v5935, %v5935
      %v5952 = vcombine.high %v5942, %v5942
      %v5953 = vcombine.high %v5949, %v5949
      %v5954 = vcombine.high %v5696, %v5696
      %v5956 = vunpack.c.l.s4 1966171168
      %v5957 = vunpack.c.0.s8 %v5956
      %v5958 = vlaneseq
      %v5959 = vshrl.u32 %v5958, 7
      %v5960 = vsub.s32 %v5957, %v5959
      %v5961 = vrot.slane %v5696, %v5960
      %v5963 = vunpack.c.l.s4 1966171168
      %v5964 = vunpack.c.0.s8 %v5963
      %v5965 = vlaneseq
      %v5966 = vshrl.u32 %v5965, 7
      %v5967 = vsub.s32 %v5964, %v5966
      %v5968 = vrot.slane %v5954, %v5967
      %v5969 = vcombine.high %v5961, %v5961
      %v5970 = vcombine.high %v5968, %v5968
      %v5972 = vunpack.c.l.s4 1966171168
      %v5973 = vunpack.c.0.s8 %v5972
      %v5974 = vlaneseq
      %v5975 = vshrl.u32 %v5974, 7
      %v5976 = vsub.s32 %v5973, %v5975
      %v5977 = vrot.slane %v5961, %v5976
      %v5979 = vunpack.c.l.s4 1966171168
      %v5980 = vunpack.c.0.s8 %v5979
      %v5981 = vlaneseq
      %v5982 = vshrl.u32 %v5981, 7
      %v5983 = vsub.s32 %v5980, %v5982
      %v5984 = vrot.slane %v5968, %v5983
      %v5986 = vunpack.c.l.s4 1966171168
      %v5987 = vunpack.c.0.s8 %v5986
      %v5988 = vlaneseq
      %v5989 = vshrl.u32 %v5988, 7
      %v5990 = vsub.s32 %v5987, %v5989
      %v5991 = vrot.slane %v5969, %v5990
      %v5993 = vunpack.c.l.s4 1966171168
      %v5994 = vunpack.c.0.s8 %v5993
      %v5995 = vlaneseq
      %v5996 = vshrl.u32 %v5995, 7
      %v5997 = vsub.s32 %v5994, %v5996
      %v5998 = vrot.slane %v5970, %v5997
      %v5999 = vcombine.high %v5977, %v5977
      %v6000 = vcombine.high %v5984, %v5984
      %v6001 = vcombine.high %v5991, %v5991
      %v6002 = vcombine.high %v5998, %v5998
      %v6003 = vcombine.high %v5697, %v5697
      %v6005 = vunpack.c.l.s4 1966171168
      %v6006 = vunpack.c.0.s8 %v6005
      %v6007 = vlaneseq
      %v6008 = vshrl.u32 %v6007, 7
      %v6009 = vsub.s32 %v6006, %v6008
      %v6010 = vrot.slane %v5697, %v6009
      %v6012 = vunpack.c.l.s4 1966171168
      %v6013 = vunpack.c.0.s8 %v6012
      %v6014 = vlaneseq
      %v6015 = vshrl.u32 %v6014, 7
      %v6016 = vsub.s32 %v6013, %v6015
      %v6017 = vrot.slane %v6003, %v6016
      %v6018 = vcombine.high %v6010, %v6010
      %v6019 = vcombine.high %v6017, %v6017
      %v6021 = vunpack.c.l.s4 1966171168
      %v6022 = vunpack.c.0.s8 %v6021
      %v6023 = vlaneseq
      %v6024 = vshrl.u32 %v6023, 7
      %v6025 = vsub.s32 %v6022, %v6024
      %v6026 = vrot.slane %v6010, %v6025
      %v6028 = vunpack.c.l.s4 1966171168
      %v6029 = vunpack.c.0.s8 %v6028
      %v6030 = vlaneseq
      %v6031 = vshrl.u32 %v6030, 7
      %v6032 = vsub.s32 %v6029, %v6031
      %v6033 = vrot.slane %v6017, %v6032
      %v6035 = vunpack.c.l.s4 1966171168
      %v6036 = vunpack.c.0.s8 %v6035
      %v6037 = vlaneseq
      %v6038 = vshrl.u32 %v6037, 7
      %v6039 = vsub.s32 %v6036, %v6038
      %v6040 = vrot.slane %v6018, %v6039
      %v6042 = vunpack.c.l.s4 1966171168
      %v6043 = vunpack.c.0.s8 %v6042
      %v6044 = vlaneseq
      %v6045 = vshrl.u32 %v6044, 7
      %v6046 = vsub.s32 %v6043, %v6045
      %v6047 = vrot.slane %v6019, %v6046
      %v6048 = vcombine.high %v6026, %v6026
      %v6049 = vcombine.high %v6033, %v6033
      %v6050 = vcombine.high %v6040, %v6040
      %v6051 = vcombine.high %v6047, %v6047
      %v6052 = vcombine.high %v5698, %v5698
      %v6054 = vunpack.c.l.s4 1966171168
      %v6055 = vunpack.c.0.s8 %v6054
      %v6056 = vlaneseq
      %v6057 = vshrl.u32 %v6056, 7
      %v6058 = vsub.s32 %v6055, %v6057
      %v6059 = vrot.slane %v5698, %v6058
      %v6061 = vunpack.c.l.s4 1966171168
      %v6062 = vunpack.c.0.s8 %v6061
      %v6063 = vlaneseq
      %v6064 = vshrl.u32 %v6063, 7
      %v6065 = vsub.s32 %v6062, %v6064
      %v6066 = vrot.slane %v6052, %v6065
      %v6067 = vcombine.high %v6059, %v6059
      %v6068 = vcombine.high %v6066, %v6066
      %v6070 = vunpack.c.l.s4 1966171168
      %v6071 = vunpack.c.0.s8 %v6070
      %v6072 = vlaneseq
      %v6073 = vshrl.u32 %v6072, 7
      %v6074 = vsub.s32 %v6071, %v6073
      %v6075 = vrot.slane %v6059, %v6074
      %v6077 = vunpack.c.l.s4 1966171168
      %v6078 = vunpack.c.0.s8 %v6077
      %v6079 = vlaneseq
      %v6080 = vshrl.u32 %v6079, 7
      %v6081 = vsub.s32 %v6078, %v6080
      %v6082 = vrot.slane %v6066, %v6081
      %v6084 = vunpack.c.l.s4 1966171168
      %v6085 = vunpack.c.0.s8 %v6084
      %v6086 = vlaneseq
      %v6087 = vshrl.u32 %v6086, 7
      %v6088 = vsub.s32 %v6085, %v6087
      %v6089 = vrot.slane %v6067, %v6088
      %v6091 = vunpack.c.l.s4 1966171168
      %v6092 = vunpack.c.0.s8 %v6091
      %v6093 = vlaneseq
      %v6094 = vshrl.u32 %v6093, 7
      %v6095 = vsub.s32 %v6092, %v6094
      %v6096 = vrot.slane %v6068, %v6095
      %v6097 = vcombine.high %v6075, %v6075
      %v6098 = vcombine.high %v6082, %v6082
      %v6099 = vcombine.high %v6089, %v6089
      %v6100 = vcombine.high %v6096, %v6096
      %v6101 = vcombine.high %v5699, %v5699
      %v6103 = vunpack.c.l.s4 1966171168
      %v6104 = vunpack.c.0.s8 %v6103
      %v6105 = vlaneseq
      %v6106 = vshrl.u32 %v6105, 7
      %v6107 = vsub.s32 %v6104, %v6106
      %v6108 = vrot.slane %v5699, %v6107
      %v6110 = vunpack.c.l.s4 1966171168
      %v6111 = vunpack.c.0.s8 %v6110
      %v6112 = vlaneseq
      %v6113 = vshrl.u32 %v6112, 7
      %v6114 = vsub.s32 %v6111, %v6113
      %v6115 = vrot.slane %v6101, %v6114
      %v6116 = vcombine.high %v6108, %v6108
      %v6117 = vcombine.high %v6115, %v6115
      %v6119 = vunpack.c.l.s4 1966171168
      %v6120 = vunpack.c.0.s8 %v6119
      %v6121 = vlaneseq
      %v6122 = vshrl.u32 %v6121, 7
      %v6123 = vsub.s32 %v6120, %v6122
      %v6124 = vrot.slane %v6108, %v6123
      %v6126 = vunpack.c.l.s4 1966171168
      %v6127 = vunpack.c.0.s8 %v6126
      %v6128 = vlaneseq
      %v6129 = vshrl.u32 %v6128, 7
      %v6130 = vsub.s32 %v6127, %v6129
      %v6131 = vrot.slane %v6115, %v6130
      %v6133 = vunpack.c.l.s4 1966171168
      %v6134 = vunpack.c.0.s8 %v6133
      %v6135 = vlaneseq
      %v6136 = vshrl.u32 %v6135, 7
      %v6137 = vsub.s32 %v6134, %v6136
      %v6138 = vrot.slane %v6116, %v6137
      %v6140 = vunpack.c.l.s4 1966171168
      %v6141 = vunpack.c.0.s8 %v6140
      %v6142 = vlaneseq
      %v6143 = vshrl.u32 %v6142, 7
      %v6144 = vsub.s32 %v6141, %v6143
      %v6145 = vrot.slane %v6117, %v6144
      %v6146 = vcombine.high %v6124, %v6124
      %v6147 = vcombine.high %v6131, %v6131
      %v6148 = vcombine.high %v6138, %v6138
      %v6149 = vcombine.high %v6145, %v6145
      %v6150 = vcombine.low %v5732, %v5746
      %v6151 = vcombine.low %v5754, %v5756
      %v6152 = vcombine.low %v5739, %v5753
      %v6153 = vcombine.low %v5755, %v5757
      %v6155 = vunpack.c.l.s4 1966171168
      %v6156 = vunpack.c.0.s8 %v6155
      %v6157 = vlaneseq
      %v6158 = vshrl.u32 %v6157, 7
      %v6159 = vsub.s32 %v6156, %v6158
      %v6160 = vrot.slane %v6150, %v6159
      %v6162 = vunpack.c.l.s4 1966171168
      %v6163 = vunpack.c.0.s8 %v6162
      %v6164 = vlaneseq
      %v6165 = vshrl.u32 %v6164, 7
      %v6166 = vsub.s32 %v6163, %v6165
      %v6167 = vrot.slane %v6151, %v6166
      %v6169 = vunpack.c.l.s4 1966171168
      %v6170 = vunpack.c.0.s8 %v6169
      %v6171 = vlaneseq
      %v6172 = vshrl.u32 %v6171, 7
      %v6173 = vsub.s32 %v6170, %v6172
      %v6174 = vrot.slane %v6152, %v6173
      %v6176 = vunpack.c.l.s4 1966171168
      %v6177 = vunpack.c.0.s8 %v6176
      %v6178 = vlaneseq
      %v6179 = vshrl.u32 %v6178, 7
      %v6180 = vsub.s32 %v6177, %v6179
      %v6181 = vrot.slane %v6153, %v6180
      %v6182 = vcombine.low %v6160, %v6167
      %v6183 = vcombine.low %v6174, %v6181
      %v6185 = vunpack.c.l.s4 1966171168
      %v6186 = vunpack.c.0.s8 %v6185
      %v6187 = vlaneseq
      %v6188 = vshrl.u32 %v6187, 7
      %v6189 = vsub.s32 %v6186, %v6188
      %v6190 = vrot.slane %v6182, %v6189
      %v6192 = vunpack.c.l.s4 1966171168
      %v6193 = vunpack.c.0.s8 %v6192
      %v6194 = vlaneseq
      %v6195 = vshrl.u32 %v6194, 7
      %v6196 = vsub.s32 %v6193, %v6195
      %v6197 = vrot.slane %v6183, %v6196
      %v6198 = vcombine.low %v6190, %v6197
      %v6200 = vunpack.c.l.s4 1966171168
      %v6201 = vunpack.c.0.s8 %v6200
      %v6202 = vlaneseq
      %v6203 = vshrl.u32 %v6202, 7
      %v6204 = vsub.s32 %v6201, %v6203
      %v6205 = vrot.slane %v5781, %v6204
      %v6207 = vunpack.c.l.s4 1966171168
      %v6208 = vunpack.c.0.s8 %v6207
      %v6209 = vlaneseq
      %v6210 = vshrl.u32 %v6209, 7
      %v6211 = vsub.s32 %v6208, %v6210
      %v6212 = vrot.slane %v6205, %v6211
      %v6213 = vcombine.low %v5795, %v5803
      %v6214 = vcombine.low %v5805, %v5788
      %v6215 = vcombine.low %v5802, %v5804
      %v6216 = vcombine.low %v5806, %v5830
      %v6218 = vunpack.c.l.s4 1966171168
      %v6219 = vunpack.c.0.s8 %v6218
      %v6220 = vlaneseq
      %v6221 = vshrl.u32 %v6220, 7
      %v6222 = vsub.s32 %v6219, %v6221
      %v6223 = vrot.slane %v6213, %v6222
      %v6225 = vunpack.c.l.s4 1966171168
      %v6226 = vunpack.c.0.s8 %v6225
      %v6227 = vlaneseq
      %v6228 = vshrl.u32 %v6227, 7
      %v6229 = vsub.s32 %v6226, %v6228
      %v6230 = vrot.slane %v6214, %v6229
      %v6232 = vunpack.c.l.s4 1966171168
      %v6233 = vunpack.c.0.s8 %v6232
      %v6234 = vlaneseq
      %v6235 = vshrl.u32 %v6234, 7
      %v6236 = vsub.s32 %v6233, %v6235
      %v6237 = vrot.slane %v6215, %v6236
      %v6239 = vunpack.c.l.s4 1966171168
      %v6240 = vunpack.c.0.s8 %v6239
      %v6241 = vlaneseq
      %v6242 = vshrl.u32 %v6241, 7
      %v6243 = vsub.s32 %v6240, %v6242
      %v6244 = vrot.slane %v6216, %v6243
      %v6245 = vcombine.low %v6223, %v6230
      %v6246 = vcombine.low %v6237, %v6244
      %v6248 = vunpack.c.l.s4 1966171168
      %v6249 = vunpack.c.0.s8 %v6248
      %v6250 = vlaneseq
      %v6251 = vshrl.u32 %v6250, 7
      %v6252 = vsub.s32 %v6249, %v6251
      %v6253 = vrot.slane %v6245, %v6252
      %v6255 = vunpack.c.l.s4 1966171168
      %v6256 = vunpack.c.0.s8 %v6255
      %v6257 = vlaneseq
      %v6258 = vshrl.u32 %v6257, 7
      %v6259 = vsub.s32 %v6256, %v6258
      %v6260 = vrot.slane %v6246, %v6259
      %v6261 = vcombine.low %v6253, %v6260
      %v6263 = vunpack.c.l.s4 1966171168
      %v6264 = vunpack.c.0.s8 %v6263
      %v6265 = vlaneseq
      %v6266 = vshrl.u32 %v6265, 7
      %v6267 = vsub.s32 %v6264, %v6266
      %v6268 = vrot.slane %v5844, %v6267
      %v6270 = vunpack.c.l.s4 1966171168
      %v6271 = vunpack.c.0.s8 %v6270
      %v6272 = vlaneseq
      %v6273 = vshrl.u32 %v6272, 7
      %v6274 = vsub.s32 %v6271, %v6273
      %v6275 = vrot.slane %v6268, %v6274
      %v6276 = vcombine.low %v5852, %v5854
      %v6277 = vcombine.low %v5837, %v5851
      %v6278 = vcombine.low %v5853, %v5855
      %v6279 = vcombine.low %v5879, %v5893
      %v6281 = vunpack.c.l.s4 1966171168
      %v6282 = vunpack.c.0.s8 %v6281
      %v6283 = vlaneseq
      %v6284 = vshrl.u32 %v6283, 7
      %v6285 = vsub.s32 %v6282, %v6284
      %v6286 = vrot.slane %v6276, %v6285
      %v6288 = vunpack.c.l.s4 1966171168
      %v6289 = vunpack.c.0.s8 %v6288
      %v6290 = vlaneseq
      %v6291 = vshrl.u32 %v6290, 7
      %v6292 = vsub.s32 %v6289, %v6291
      %v6293 = vrot.slane %v6277, %v6292
      %v6295 = vunpack.c.l.s4 1966171168
      %v6296 = vunpack.c.0.s8 %v6295
      %v6297 = vlaneseq
      %v6298 = vshrl.u32 %v6297, 7
      %v6299 = vsub.s32 %v6296, %v6298
      %v6300 = vrot.slane %v6278, %v6299
      %v6302 = vunpack.c.l.s4 1966171168
      %v6303 = vunpack.c.0.s8 %v6302
      %v6304 = vlaneseq
      %v6305 = vshrl.u32 %v6304, 7
      %v6306 = vsub.s32 %v6303, %v6305
      %v6307 = vrot.slane %v6279, %v6306
      %v6308 = vcombine.low %v6286, %v6293
      %v6309 = vcombine.low %v6300, %v6307
      %v6311 = vunpack.c.l.s4 1966171168
      %v6312 = vunpack.c.0.s8 %v6311
      %v6313 = vlaneseq
      %v6314 = vshrl.u32 %v6313, 7
      %v6315 = vsub.s32 %v6312, %v6314
      %v6316 = vrot.slane %v6308, %v6315
      %v6318 = vunpack.c.l.s4 1966171168
      %v6319 = vunpack.c.0.s8 %v6318
      %v6320 = vlaneseq
      %v6321 = vshrl.u32 %v6320, 7
      %v6322 = vsub.s32 %v6319, %v6321
      %v6323 = vrot.slane %v6309, %v6322
      %v6324 = vcombine.low %v6316, %v6323
      %v6326 = vunpack.c.l.s4 1966171168
      %v6327 = vunpack.c.0.s8 %v6326
      %v6328 = vlaneseq
      %v6329 = vshrl.u32 %v6328, 7
      %v6330 = vsub.s32 %v6327, %v6329
      %v6331 = vrot.slane %v5901, %v6330
      %v6333 = vunpack.c.l.s4 1966171168
      %v6334 = vunpack.c.0.s8 %v6333
      %v6335 = vlaneseq
      %v6336 = vshrl.u32 %v6335, 7
      %v6337 = vsub.s32 %v6334, %v6336
      %v6338 = vrot.slane %v6331, %v6337
      %v6339 = vcombine.low %v5903, %v5886
      %v6340 = vcombine.low %v5900, %v5902
      %v6341 = vcombine.low %v5904, %v5928
      %v6342 = vcombine.low %v5942, %v5950
      %v6344 = vunpack.c.l.s4 1966171168
      %v6345 = vunpack.c.0.s8 %v6344
      %v6346 = vlaneseq
      %v6347 = vshrl.u32 %v6346, 7
      %v6348 = vsub.s32 %v6345, %v6347
      %v6349 = vrot.slane %v6339, %v6348
      %v6351 = vunpack.c.l.s4 1966171168
      %v6352 = vunpack.c.0.s8 %v6351
      %v6353 = vlaneseq
      %v6354 = vshrl.u32 %v6353, 7
      %v6355 = vsub.s32 %v6352, %v6354
      %v6356 = vrot.slane %v6340, %v6355
      %v6358 = vunpack.c.l.s4 1966171168
      %v6359 = vunpack.c.0.s8 %v6358
      %v6360 = vlaneseq
      %v6361 = vshrl.u32 %v6360, 7
      %v6362 = vsub.s32 %v6359, %v6361
      %v6363 = vrot.slane %v6341, %v6362
      %v6365 = vunpack.c.l.s4 1966171168
      %v6366 = vunpack.c.0.s8 %v6365
      %v6367 = vlaneseq
      %v6368 = vshrl.u32 %v6367, 7
      %v6369 = vsub.s32 %v6366, %v6368
      %v6370 = vrot.slane %v6342, %v6369
      %v6371 = vcombine.low %v6349, %v6356
      %v6372 = vcombine.low %v6363, %v6370
      %v6374 = vunpack.c.l.s4 1966171168
      %v6375 = vunpack.c.0.s8 %v6374
      %v6376 = vlaneseq
      %v6377 = vshrl.u32 %v6376, 7
      %v6378 = vsub.s32 %v6375, %v6377
      %v6379 = vrot.slane %v6371, %v6378
      %v6381 = vunpack.c.l.s4 1966171168
      %v6382 = vunpack.c.0.s8 %v6381
      %v6383 = vlaneseq
      %v6384 = vshrl.u32 %v6383, 7
      %v6385 = vsub.s32 %v6382, %v6384
      %v6386 = vrot.slane %v6372, %v6385
      %v6387 = vcombine.low %v6379, %v6386
      %v6389 = vunpack.c.l.s4 1966171168
      %v6390 = vunpack.c.0.s8 %v6389
      %v6391 = vlaneseq
      %v6392 = vshrl.u32 %v6391, 7
      %v6393 = vsub.s32 %v6390, %v6392
      %v6394 = vrot.slane %v5952, %v6393
      %v6396 = vunpack.c.l.s4 1966171168
      %v6397 = vunpack.c.0.s8 %v6396
      %v6398 = vlaneseq
      %v6399 = vshrl.u32 %v6398, 7
      %v6400 = vsub.s32 %v6397, %v6399
      %v6401 = vrot.slane %v6394, %v6400
      %v6402 = vcombine.low %v5935, %v5949
      %v6403 = vcombine.low %v5951, %v5953
      %v6404 = vcombine.low %v5977, %v5991
      %v6405 = vcombine.low %v5999, %v6001
      %v6407 = vunpack.c.l.s4 1966171168
      %v6408 = vunpack.c.0.s8 %v6407
      %v6409 = vlaneseq
      %v6410 = vshrl.u32 %v6409, 7
      %v6411 = vsub.s32 %v6408, %v6410
      %v6412 = vrot.slane %v6402, %v6411
      %v6414 = vunpack.c.l.s4 1966171168
      %v6415 = vunpack.c.0.s8 %v6414
      %v6416 = vlaneseq
      %v6417 = vshrl.u32 %v6416, 7
      %v6418 = vsub.s32 %v6415, %v6417
      %v6419 = vrot.slane %v6403, %v6418
      %v6421 = vunpack.c.l.s4 1966171168
      %v6422 = vunpack.c.0.s8 %v6421
      %v6423 = vlaneseq
      %v6424 = vshrl.u32 %v6423, 7
      %v6425 = vsub.s32 %v6422, %v6424
      %v6426 = vrot.slane %v6404, %v6425
      %v6428 = vunpack.c.l.s4 1966171168
      %v6429 = vunpack.c.0.s8 %v6428
      %v6430 = vlaneseq
      %v6431 = vshrl.u32 %v6430, 7
      %v6432 = vsub.s32 %v6429, %v6431
      %v6433 = vrot.slane %v6405, %v6432
      %v6434 = vcombine.low %v6412, %v6419
      %v6435 = vcombine.low %v6426, %v6433
      %v6437 = vunpack.c.l.s4 1966171168
      %v6438 = vunpack.c.0.s8 %v6437
      %v6439 = vlaneseq
      %v6440 = vshrl.u32 %v6439, 7
      %v6441 = vsub.s32 %v6438, %v6440
      %v6442 = vrot.slane %v6434, %v6441
      %v6444 = vunpack.c.l.s4 1966171168
      %v6445 = vunpack.c.0.s8 %v6444
      %v6446 = vlaneseq
      %v6447 = vshrl.u32 %v6446, 7
      %v6448 = vsub.s32 %v6445, %v6447
      %v6449 = vrot.slane %v6435, %v6448
      %v6450 = vcombine.low %v6442, %v6449
      %v6452 = vunpack.c.l.s4 1966171168
      %v6453 = vunpack.c.0.s8 %v6452
      %v6454 = vlaneseq
      %v6455 = vshrl.u32 %v6454, 7
      %v6456 = vsub.s32 %v6453, %v6455
      %v6457 = vrot.slane %v5984, %v6456
      %v6459 = vunpack.c.l.s4 1966171168
      %v6460 = vunpack.c.0.s8 %v6459
      %v6461 = vlaneseq
      %v6462 = vshrl.u32 %v6461, 7
      %v6463 = vsub.s32 %v6460, %v6462
      %v6464 = vrot.slane %v6457, %v6463
      %v6465 = vcombine.low %v5998, %v6000
      %v6466 = vcombine.low %v6002, %v6026
      %v6467 = vcombine.low %v6040, %v6048
      %v6468 = vcombine.low %v6050, %v6033
      %v6470 = vunpack.c.l.s4 1966171168
      %v6471 = vunpack.c.0.s8 %v6470
      %v6472 = vlaneseq
      %v6473 = vshrl.u32 %v6472, 7
      %v6474 = vsub.s32 %v6471, %v6473
      %v6475 = vrot.slane %v6465, %v6474
      %v6477 = vunpack.c.l.s4 1966171168
      %v6478 = vunpack.c.0.s8 %v6477
      %v6479 = vlaneseq
      %v6480 = vshrl.u32 %v6479, 7
      %v6481 = vsub.s32 %v6478, %v6480
      %v6482 = vrot.slane %v6466, %v6481
      %v6484 = vunpack.c.l.s4 1966171168
      %v6485 = vunpack.c.0.s8 %v6484
      %v6486 = vlaneseq
      %v6487 = vshrl.u32 %v6486, 7
      %v6488 = vsub.s32 %v6485, %v6487
      %v6489 = vrot.slane %v6467, %v6488
      %v6491 = vunpack.c.l.s4 1966171168
      %v6492 = vunpack.c.0.s8 %v6491
      %v6493 = vlaneseq
      %v6494 = vshrl.u32 %v6493, 7
      %v6495 = vsub.s32 %v6492, %v6494
      %v6496 = vrot.slane %v6468, %v6495
      %v6497 = vcombine.low %v6475, %v6482
      %v6498 = vcombine.low %v6489, %v6496
      %v6500 = vunpack.c.l.s4 1966171168
      %v6501 = vunpack.c.0.s8 %v6500
      %v6502 = vlaneseq
      %v6503 = vshrl.u32 %v6502, 7
      %v6504 = vsub.s32 %v6501, %v6503
      %v6505 = vrot.slane %v6497, %v6504
      %v6507 = vunpack.c.l.s4 1966171168
      %v6508 = vunpack.c.0.s8 %v6507
      %v6509 = vlaneseq
      %v6510 = vshrl.u32 %v6509, 7
      %v6511 = vsub.s32 %v6508, %v6510
      %v6512 = vrot.slane %v6498, %v6511
      %v6513 = vcombine.low %v6505, %v6512
      %v6515 = vunpack.c.l.s4 1966171168
      %v6516 = vunpack.c.0.s8 %v6515
      %v6517 = vlaneseq
      %v6518 = vshrl.u32 %v6517, 7
      %v6519 = vsub.s32 %v6516, %v6518
      %v6520 = vrot.slane %v6047, %v6519
      %v6522 = vunpack.c.l.s4 1966171168
      %v6523 = vunpack.c.0.s8 %v6522
      %v6524 = vlaneseq
      %v6525 = vshrl.u32 %v6524, 7
      %v6526 = vsub.s32 %v6523, %v6525
      %v6527 = vrot.slane %v6520, %v6526
      %v6528 = vcombine.low %v6049, %v6051
      %v6529 = vcombine.low %v6075, %v6089
      %v6530 = vcombine.low %v6097, %v6099
      %v6531 = vcombine.low %v6082, %v6096
      %v6533 = vunpack.c.l.s4 1966171168
      %v6534 = vunpack.c.0.s8 %v6533
      %v6535 = vlaneseq
      %v6536 = vshrl.u32 %v6535, 7
      %v6537 = vsub.s32 %v6534, %v6536
      %v6538 = vrot.slane %v6528, %v6537
      %v6540 = vunpack.c.l.s4 1966171168
      %v6541 = vunpack.c.0.s8 %v6540
      %v6542 = vlaneseq
      %v6543 = vshrl.u32 %v6542, 7
      %v6544 = vsub.s32 %v6541, %v6543
      %v6545 = vrot.slane %v6529, %v6544
      %v6547 = vunpack.c.l.s4 1966171168
      %v6548 = vunpack.c.0.s8 %v6547
      %v6549 = vlaneseq
      %v6550 = vshrl.u32 %v6549, 7
      %v6551 = vsub.s32 %v6548, %v6550
      %v6552 = vrot.slane %v6530, %v6551
      %v6554 = vunpack.c.l.s4 1966171168
      %v6555 = vunpack.c.0.s8 %v6554
      %v6556 = vlaneseq
      %v6557 = vshrl.u32 %v6556, 7
      %v6558 = vsub.s32 %v6555, %v6557
      %v6559 = vrot.slane %v6531, %v6558
      %v6560 = vcombine.low %v6538, %v6545
      %v6561 = vcombine.low %v6552, %v6559
      %v6563 = vunpack.c.l.s4 1966171168
      %v6564 = vunpack.c.0.s8 %v6563
      %v6565 = vlaneseq
      %v6566 = vshrl.u32 %v6565, 7
      %v6567 = vsub.s32 %v6564, %v6566
      %v6568 = vrot.slane %v6560, %v6567
      %v6570 = vunpack.c.l.s4 1966171168
      %v6571 = vunpack.c.0.s8 %v6570
      %v6572 = vlaneseq
      %v6573 = vshrl.u32 %v6572, 7
      %v6574 = vsub.s32 %v6571, %v6573
      %v6575 = vrot.slane %v6561, %v6574
      %v6576 = vcombine.low %v6568, %v6575
      %v6578 = vunpack.c.l.s4 1966171168
      %v6579 = vunpack.c.0.s8 %v6578
      %v6580 = vlaneseq
      %v6581 = vshrl.u32 %v6580, 7
      %v6582 = vsub.s32 %v6579, %v6581
      %v6583 = vrot.slane %v6098, %v6582
      %v6585 = vunpack.c.l.s4 1966171168
      %v6586 = vunpack.c.0.s8 %v6585
      %v6587 = vlaneseq
      %v6588 = vshrl.u32 %v6587, 7
      %v6589 = vsub.s32 %v6586, %v6588
      %v6590 = vrot.slane %v6583, %v6589
      %v6591 = vcombine.low %v6100, %v6124
      %v6592 = vcombine.low %v6138, %v6146
      %v6593 = vcombine.low %v6148, %v6131
      %v6594 = vcombine.low %v6145, %v6147
      %v6596 = vunpack.c.l.s4 1966171168
      %v6597 = vunpack.c.0.s8 %v6596
      %v6598 = vlaneseq
      %v6599 = vshrl.u32 %v6598, 7
      %v6600 = vsub.s32 %v6597, %v6599
      %v6601 = vrot.slane %v6591, %v6600
      %v6603 = vunpack.c.l.s4 1966171168
      %v6604 = vunpack.c.0.s8 %v6603
      %v6605 = vlaneseq
      %v6606 = vshrl.u32 %v6605, 7
      %v6607 = vsub.s32 %v6604, %v6606
      %v6608 = vrot.slane %v6592, %v6607
      %v6610 = vunpack.c.l.s4 1966171168
      %v6611 = vunpack.c.0.s8 %v6610
      %v6612 = vlaneseq
      %v6613 = vshrl.u32 %v6612, 7
      %v6614 = vsub.s32 %v6611, %v6613
      %v6615 = vrot.slane %v6593, %v6614
      %v6617 = vunpack.c.l.s4 1966171168
      %v6618 = vunpack.c.0.s8 %v6617
      %v6619 = vlaneseq
      %v6620 = vshrl.u32 %v6619, 7
      %v6621 = vsub.s32 %v6618, %v6620
      %v6622 = vrot.slane %v6594, %v6621
      %v6623 = vcombine.low %v6601, %v6608
      %v6624 = vcombine.low %v6615, %v6622
      %v6626 = vunpack.c.l.s4 1966171168
      %v6627 = vunpack.c.0.s8 %v6626
      %v6628 = vlaneseq
      %v6629 = vshrl.u32 %v6628, 7
      %v6630 = vsub.s32 %v6627, %v6629
      %v6631 = vrot.slane %v6623, %v6630
      %v6633 = vunpack.c.l.s4 1966171168
      %v6634 = vunpack.c.0.s8 %v6633
      %v6635 = vlaneseq
      %v6636 = vshrl.u32 %v6635, 7
      %v6637 = vsub.s32 %v6634, %v6636
      %v6638 = vrot.slane %v6624, %v6637
      %v6639 = vcombine.low %v6631, %v6638
      %v6641 = vunpack.c.l.s4 1966171168
      %v6642 = vunpack.c.0.s8 %v6641
      %v6643 = vlaneseq
      %v6644 = vshrl.u32 %v6643, 7
      %v6645 = vsub.s32 %v6642, %v6644
      %v6646 = vrot.slane %v6149, %v6645
      %v6648 = vunpack.c.l.s4 1966171168
      %v6649 = vunpack.c.0.s8 %v6648
      %v6650 = vlaneseq
      %v6651 = vshrl.u32 %v6650, 7
      %v6652 = vsub.s32 %v6649, %v6651
      %v6653 = vrot.slane %v6646, %v6652
      %v6670 = vadd.f32 %v3343, %v6198
      %v6671 = vadd.f32 %v3344, %v6212
      %v6672 = vadd.f32 %v3345, %v6261
      %v6673 = vadd.f32 %v3346, %v6275
      %v6674 = vadd.f32 %v3347, %v6324
      %v6675 = vadd.f32 %v3348, %v6338
      %v6676 = vadd.f32 %v3349, %v6387
      %v6677 = vadd.f32 %v3350, %v6401
      %v6678 = vadd.f32 %v3351, %v6450
      %v6679 = vadd.f32 %v3352, %v6464
      %v6680 = vadd.f32 %v3353, %v6513
      %v6681 = vadd.f32 %v3354, %v6527
      %v6682 = vadd.f32 %v3355, %v6576
      %v6683 = vadd.f32 %v3356, %v6590
      %v6684 = vadd.f32 %v3357, %v6639
      %v6685 = vadd.f32 %v3358, %v6653
      %6686 = vst.msk [vmem:[%s3380 + $0x1] sm:$0xff] %vm3104, %v6670
      %6687 = vst.msk [vmem:[%s3380 + $0x9] sm:$0x1] %vm3108, %v6671
      %6688 = vst.msk [vmem:[%s3380 + $0x11] sm:$0xff] %vm3104, %v6672
      %6689 = vst.msk [vmem:[%s3380 + $0x19] sm:$0x1] %vm3108, %v6673
      %6690 = vst.msk [vmem:[%s3380 + $0x21] sm:$0xff] %vm3104, %v6674
      %6691 = vst.msk [vmem:[%s3380 + $0x29] sm:$0x1] %vm3108, %v6675
      %6692 = vst.msk [vmem:[%s3380 + $0x31] sm:$0xff] %vm3104, %v6676
      %6693 = vst.msk [vmem:[%s3380 + $0x39] sm:$0x1] %vm3108, %v6677
      %6694 = vst.msk [vmem:[%s3380 + $0x41] sm:$0xff] %vm3104, %v6678
      %6695 = vst.msk [vmem:[%s3380 + $0x49] sm:$0x1] %vm3108, %v6679
      %6696 = vst.msk [vmem:[%s3380 + $0x51] sm:$0xff] %vm3104, %v6680
      %6697 = vst.msk [vmem:[%s3380 + $0x59] sm:$0x1] %vm3108, %v6681
      %6698 = vst.msk [vmem:[%s3380 + $0x61] sm:$0xff] %vm3104, %v6682
      %6699 = vst.msk [vmem:[%s3380 + $0x69] sm:$0x1] %vm3108, %v6683
      %6700 = vst.msk [vmem:[%s3380 + $0x71] sm:$0xff] %vm3104, %v6684
      %6701 = vst.msk [vmem:[%s3380 + $0x79] sm:$0x1] %vm3108, %v6685
      %v6702 = vld [vmem:[#allocation2] sm:$0xff]
      %v6703 = vld [vmem:[#allocation2 + $0x8] sm:$0x7]
      %v6704 = vld [vmem:[#allocation2 + $0x10] sm:$0xff]
      %v6705 = vld [vmem:[#allocation2 + $0x18] sm:$0x7]
      %v6706 = vld [vmem:[#allocation2 + $0x20] sm:$0xff]
      %v6707 = vld [vmem:[#allocation2 + $0x28] sm:$0x7]
      %v6708 = vld [vmem:[#allocation2 + $0x30] sm:$0xff]
      %v6709 = vld [vmem:[#allocation2 + $0x38] sm:$0x7]
      %v6710 = vld [vmem:[#allocation2 + $0x40] sm:$0xff]
      %v6711 = vld [vmem:[#allocation2 + $0x48] sm:$0x7]
      %v6712 = vld [vmem:[#allocation2 + $0x50] sm:$0xff]
      %v6713 = vld [vmem:[#allocation2 + $0x58] sm:$0x7]
      %v6714 = vld [vmem:[#allocation2 + $0x60] sm:$0xff]
      %v6715 = vld [vmem:[#allocation2 + $0x68] sm:$0x7]
      %v6716 = vld [vmem:[#allocation2 + $0x70] sm:$0xff]
      %v6717 = vld [vmem:[#allocation2 + $0x78] sm:$0x7]
      %v6718 = vld [vmem:[#allocation2 + $0x80] sm:$0xff]
      %v6719 = vld [vmem:[#allocation2 + $0x88] sm:$0x7]
      %v6720 = vld [vmem:[#allocation2 + $0x90] sm:$0xff]
      %v6721 = vld [vmem:[#allocation2 + $0x98] sm:$0x7]
      %s6722 = scalar_lea.vmem %s10, 16
      %v6723 = vld [vmem:[%s6722] sm:$0xff]
      %v6724 = vld [vmem:[%s6722 + $0x8] sm:$0x1]
      %v6725 = vlaneseq
      %v6726 = vshrl.u32 %v6725, 7
      %v6727 = vsub.s32 0, %v6726
      %v6728 = vrot.slane %v6723, %v6727
      %v6729 = vmul.f32 %v6702, %v6728
      %v6730 = vmul.f32 %v6703, %v6728
      %v6731 = vmul.f32 %v6704, %v6728
      %v6732 = vmul.f32 %v6705, %v6728
      %v6733 = vmul.f32 %v6706, %v6728
      %v6734 = vmul.f32 %v6707, %v6728
      %v6735 = vmul.f32 %v6708, %v6728
      %v6736 = vmul.f32 %v6709, %v6728
      %v6737 = vmul.f32 %v6710, %v6728
      %v6738 = vmul.f32 %v6711, %v6728
      %v6739 = vmul.f32 %v6712, %v6728
      %v6740 = vmul.f32 %v6713, %v6728
      %v6741 = vmul.f32 %v6714, %v6728
      %v6742 = vmul.f32 %v6715, %v6728
      %v6743 = vmul.f32 %v6716, %v6728
      %v6744 = vmul.f32 %v6717, %v6728
      %v6745 = vadd.f32 %v6729, 0.0
      %v6746 = vadd.f32 %v6730, 0.0
      %v6747 = vadd.f32 %v6731, 0.0
      %v6748 = vadd.f32 %v6732, 0.0
      %v6749 = vadd.f32 %v6733, 0.0
      %v6750 = vadd.f32 %v6734, 0.0
      %v6751 = vadd.f32 %v6735, 0.0
      %v6752 = vadd.f32 %v6736, 0.0
      %v6753 = vadd.f32 %v6737, 0.0
      %v6754 = vadd.f32 %v6738, 0.0
      %v6755 = vadd.f32 %v6739, 0.0
      %v6756 = vadd.f32 %v6740, 0.0
      %v6757 = vadd.f32 %v6741, 0.0
      %v6758 = vadd.f32 %v6742, 0.0
      %v6759 = vadd.f32 %v6743, 0.0
      %v6760 = vadd.f32 %v6744, 0.0
      %v6761 = vlaneseq
      %v6762 = vshrl.u32 %v6761, 7
      %v6763 = vsub.s32 1, %v6762
      %v6764 = vrot.slane %v6723, %v6763
      %v6765 = vmul.f32 %v6704, %v6764
      %v6766 = vmul.f32 %v6705, %v6764
      %v6767 = vmul.f32 %v6706, %v6764
      %v6768 = vmul.f32 %v6707, %v6764
      %v6769 = vmul.f32 %v6708, %v6764
      %v6770 = vmul.f32 %v6709, %v6764
      %v6771 = vmul.f32 %v6710, %v6764
      %v6772 = vmul.f32 %v6711, %v6764
      %v6773 = vmul.f32 %v6712, %v6764
      %v6774 = vmul.f32 %v6713, %v6764
      %v6775 = vmul.f32 %v6714, %v6764
      %v6776 = vmul.f32 %v6715, %v6764
      %v6777 = vmul.f32 %v6716, %v6764
      %v6778 = vmul.f32 %v6717, %v6764
      %v6779 = vmul.f32 %v6718, %v6764
      %v6780 = vmul.f32 %v6719, %v6764
      %v6781 = vadd.f32 %v6745, %v6765
      %v6782 = vadd.f32 %v6746, %v6766
      %v6783 = vadd.f32 %v6747, %v6767
      %v6784 = vadd.f32 %v6748, %v6768
      %v6785 = vadd.f32 %v6749, %v6769
      %v6786 = vadd.f32 %v6750, %v6770
      %v6787 = vadd.f32 %v6751, %v6771
      %v6788 = vadd.f32 %v6752, %v6772
      %v6789 = vadd.f32 %v6753, %v6773
      %v6790 = vadd.f32 %v6754, %v6774
      %v6791 = vadd.f32 %v6755, %v6775
      %v6792 = vadd.f32 %v6756, %v6776
      %v6793 = vadd.f32 %v6757, %v6777
      %v6794 = vadd.f32 %v6758, %v6778
      %v6795 = vadd.f32 %v6759, %v6779
      %v6796 = vadd.f32 %v6760, %v6780
      %v6797 = vlaneseq
      %v6798 = vshrl.u32 %v6797, 7
      %v6799 = vsub.s32 2, %v6798
      %v6800 = vrot.slane %v6723, %v6799
      %v6801 = vmul.f32 %v6706, %v6800
      %v6802 = vmul.f32 %v6707, %v6800
      %v6803 = vmul.f32 %v6708, %v6800
      %v6804 = vmul.f32 %v6709, %v6800
      %v6805 = vmul.f32 %v6710, %v6800
      %v6806 = vmul.f32 %v6711, %v6800
      %v6807 = vmul.f32 %v6712, %v6800
      %v6808 = vmul.f32 %v6713, %v6800
      %v6809 = vmul.f32 %v6714, %v6800
      %v6810 = vmul.f32 %v6715, %v6800
      %v6811 = vmul.f32 %v6716, %v6800
      %v6812 = vmul.f32 %v6717, %v6800
      %v6813 = vmul.f32 %v6718, %v6800
      %v6814 = vmul.f32 %v6719, %v6800
      %v6815 = vmul.f32 %v6720, %v6800
      %v6816 = vmul.f32 %v6721, %v6800
      %v6817 = vadd.f32 %v6781, %v6801
      %v6818 = vadd.f32 %v6782, %v6802
      %v6819 = vadd.f32 %v6783, %v6803
      %v6820 = vadd.f32 %v6784, %v6804
      %v6821 = vadd.f32 %v6785, %v6805
      %v6822 = vadd.f32 %v6786, %v6806
      %v6823 = vadd.f32 %v6787, %v6807
      %v6824 = vadd.f32 %v6788, %v6808
      %v6825 = vadd.f32 %v6789, %v6809
      %v6826 = vadd.f32 %v6790, %v6810
      %v6827 = vadd.f32 %v6791, %v6811
      %v6828 = vadd.f32 %v6792, %v6812
      %v6829 = vadd.f32 %v6793, %v6813
      %v6830 = vadd.f32 %v6794, %v6814
      %v6831 = vadd.f32 %v6795, %v6815
      %v6832 = vadd.f32 %v6796, %v6816
      %v6833 = vlaneseq
      %v6834 = vshrl.u32 %v6833, 7
      %v6835 = vsub.s32 3, %v6834
      %v6836 = vrot.slane %v6723, %v6835
      %v6837 = vmul.f32 %v6702, %v6836
      %v6838 = vmul.f32 %v6703, %v6836
      %v6839 = vmul.f32 %v6704, %v6836
      %v6840 = vmul.f32 %v6705, %v6836
      %v6841 = vmul.f32 %v6706, %v6836
      %v6842 = vmul.f32 %v6707, %v6836
      %v6843 = vmul.f32 %v6708, %v6836
      %v6844 = vmul.f32 %v6709, %v6836
      %v6845 = vmul.f32 %v6710, %v6836
      %v6846 = vmul.f32 %v6711, %v6836
      %v6847 = vmul.f32 %v6712, %v6836
      %v6848 = vmul.f32 %v6713, %v6836
      %v6849 = vmul.f32 %v6714, %v6836
      %v6850 = vmul.f32 %v6715, %v6836
      %v6851 = vmul.f32 %v6716, %v6836
      %v6852 = vmul.f32 %v6717, %v6836
      %v6869 = vrot.slane %v6837, 1
      %v6870 = vrot.slane %v6838, 1
      %v6871 = vsel %vm817, %v6869, %v6870
      %v6872 = vrot.slane %v6839, 1
      %v6873 = vrot.slane %v6840, 1
      %v6874 = vsel %vm817, %v6872, %v6873
      %v6875 = vrot.slane %v6841, 1
      %v6876 = vrot.slane %v6842, 1
      %v6877 = vsel %vm817, %v6875, %v6876
      %v6878 = vrot.slane %v6843, 1
      %v6879 = vrot.slane %v6844, 1
      %v6880 = vsel %vm817, %v6878, %v6879
      %v6881 = vrot.slane %v6845, 1
      %v6882 = vrot.slane %v6846, 1
      %v6883 = vsel %vm817, %v6881, %v6882
      %v6884 = vrot.slane %v6847, 1
      %v6885 = vrot.slane %v6848, 1
      %v6886 = vsel %vm817, %v6884, %v6885
      %v6887 = vrot.slane %v6849, 1
      %v6888 = vrot.slane %v6850, 1
      %v6889 = vsel %vm817, %v6887, %v6888
      %v6890 = vrot.slane %v6851, 1
      %v6891 = vrot.slane %v6852, 1
      %v6892 = vsel %vm817, %v6890, %v6891
      %v6909 = vadd.f32 %v6817, %v6871
      %v6910 = vadd.f32 %v6818, %v6870
      %v6911 = vadd.f32 %v6819, %v6874
      %v6912 = vadd.f32 %v6820, %v6873
      %v6913 = vadd.f32 %v6821, %v6877
      %v6914 = vadd.f32 %v6822, %v6876
      %v6915 = vadd.f32 %v6823, %v6880
      %v6916 = vadd.f32 %v6824, %v6879
      %v6917 = vadd.f32 %v6825, %v6883
      %v6918 = vadd.f32 %v6826, %v6882
      %v6919 = vadd.f32 %v6827, %v6886
      %v6920 = vadd.f32 %v6828, %v6885
      %v6921 = vadd.f32 %v6829, %v6889
      %v6922 = vadd.f32 %v6830, %v6888
      %v6923 = vadd.f32 %v6831, %v6892
      %v6924 = vadd.f32 %v6832, %v6891
      %v6925 = vlaneseq
      %v6926 = vshrl.u32 %v6925, 7
      %v6927 = vsub.s32 4, %v6926
      %v6928 = vrot.slane %v6723, %v6927
      %v6929 = vmul.f32 %v6704, %v6928
      %v6930 = vmul.f32 %v6705, %v6928
      %v6931 = vmul.f32 %v6706, %v6928
      %v6932 = vmul.f32 %v6707, %v6928
      %v6933 = vmul.f32 %v6708, %v6928
      %v6934 = vmul.f32 %v6709, %v6928
      %v6935 = vmul.f32 %v6710, %v6928
      %v6936 = vmul.f32 %v6711, %v6928
      %v6937 = vmul.f32 %v6712, %v6928
      %v6938 = vmul.f32 %v6713, %v6928
      %v6939 = vmul.f32 %v6714, %v6928
      %v6940 = vmul.f32 %v6715, %v6928
      %v6941 = vmul.f32 %v6716, %v6928
      %v6942 = vmul.f32 %v6717, %v6928
      %v6943 = vmul.f32 %v6718, %v6928
      %v6944 = vmul.f32 %v6719, %v6928
      %v6961 = vrot.slane %v6929, 1
      %v6962 = vrot.slane %v6930, 1
      %v6963 = vsel %vm817, %v6961, %v6962
      %v6964 = vrot.slane %v6931, 1
      %v6965 = vrot.slane %v6932, 1
      %v6966 = vsel %vm817, %v6964, %v6965
      %v6967 = vrot.slane %v6933, 1
      %v6968 = vrot.slane %v6934, 1
      %v6969 = vsel %vm817, %v6967, %v6968
      %v6970 = vrot.slane %v6935, 1
      %v6971 = vrot.slane %v6936, 1
      %v6972 = vsel %vm817, %v6970, %v6971
      %v6973 = vrot.slane %v6937, 1
      %v6974 = vrot.slane %v6938, 1
      %v6975 = vsel %vm817, %v6973, %v6974
      %v6976 = vrot.slane %v6939, 1
      %v6977 = vrot.slane %v6940, 1
      %v6978 = vsel %vm817, %v6976, %v6977
      %v6979 = vrot.slane %v6941, 1
      %v6980 = vrot.slane %v6942, 1
      %v6981 = vsel %vm817, %v6979, %v6980
      %v6982 = vrot.slane %v6943, 1
      %v6983 = vrot.slane %v6944, 1
      %v6984 = vsel %vm817, %v6982, %v6983
      %v7001 = vadd.f32 %v6909, %v6963
      %v7002 = vadd.f32 %v6910, %v6962
      %v7003 = vadd.f32 %v6911, %v6966
      %v7004 = vadd.f32 %v6912, %v6965
      %v7005 = vadd.f32 %v6913, %v6969
      %v7006 = vadd.f32 %v6914, %v6968
      %v7007 = vadd.f32 %v6915, %v6972
      %v7008 = vadd.f32 %v6916, %v6971
      %v7009 = vadd.f32 %v6917, %v6975
      %v7010 = vadd.f32 %v6918, %v6974
      %v7011 = vadd.f32 %v6919, %v6978
      %v7012 = vadd.f32 %v6920, %v6977
      %v7013 = vadd.f32 %v6921, %v6981
      %v7014 = vadd.f32 %v6922, %v6980
      %v7015 = vadd.f32 %v6923, %v6984
      %v7016 = vadd.f32 %v6924, %v6983
      %v7017 = vlaneseq
      %v7018 = vshrl.u32 %v7017, 7
      %v7019 = vsub.s32 5, %v7018
      %v7020 = vrot.slane %v6723, %v7019
      %v7021 = vmul.f32 %v6706, %v7020
      %v7022 = vmul.f32 %v6707, %v7020
      %v7023 = vmul.f32 %v6708, %v7020
      %v7024 = vmul.f32 %v6709, %v7020
      %v7025 = vmul.f32 %v6710, %v7020
      %v7026 = vmul.f32 %v6711, %v7020
      %v7027 = vmul.f32 %v6712, %v7020
      %v7028 = vmul.f32 %v6713, %v7020
      %v7029 = vmul.f32 %v6714, %v7020
      %v7030 = vmul.f32 %v6715, %v7020
      %v7031 = vmul.f32 %v6716, %v7020
      %v7032 = vmul.f32 %v6717, %v7020
      %v7033 = vmul.f32 %v6718, %v7020
      %v7034 = vmul.f32 %v6719, %v7020
      %v7035 = vmul.f32 %v6720, %v7020
      %v7036 = vmul.f32 %v6721, %v7020
      %v7053 = vrot.slane %v7021, 1
      %v7054 = vrot.slane %v7022, 1
      %v7055 = vsel %vm817, %v7053, %v7054
      %v7056 = vrot.slane %v7023, 1
      %v7057 = vrot.slane %v7024, 1
      %v7058 = vsel %vm817, %v7056, %v7057
      %v7059 = vrot.slane %v7025, 1
      %v7060 = vrot.slane %v7026, 1
      %v7061 = vsel %vm817, %v7059, %v7060
      %v7062 = vrot.slane %v7027, 1
      %v7063 = vrot.slane %v7028, 1
      %v7064 = vsel %vm817, %v7062, %v7063
      %v7065 = vrot.slane %v7029, 1
      %v7066 = vrot.slane %v7030, 1
      %v7067 = vsel %vm817, %v7065, %v7066
      %v7068 = vrot.slane %v7031, 1
      %v7069 = vrot.slane %v7032, 1
      %v7070 = vsel %vm817, %v7068, %v7069
      %v7071 = vrot.slane %v7033, 1
      %v7072 = vrot.slane %v7034, 1
      %v7073 = vsel %vm817, %v7071, %v7072
      %v7074 = vrot.slane %v7035, 1
      %v7075 = vrot.slane %v7036, 1
      %v7076 = vsel %vm817, %v7074, %v7075
      %v7093 = vadd.f32 %v7001, %v7055
      %v7094 = vadd.f32 %v7002, %v7054
      %v7095 = vadd.f32 %v7003, %v7058
      %v7096 = vadd.f32 %v7004, %v7057
      %v7097 = vadd.f32 %v7005, %v7061
      %v7098 = vadd.f32 %v7006, %v7060
      %v7099 = vadd.f32 %v7007, %v7064
      %v7100 = vadd.f32 %v7008, %v7063
      %v7101 = vadd.f32 %v7009, %v7067
      %v7102 = vadd.f32 %v7010, %v7066
      %v7103 = vadd.f32 %v7011, %v7070
      %v7104 = vadd.f32 %v7012, %v7069
      %v7105 = vadd.f32 %v7013, %v7073
      %v7106 = vadd.f32 %v7014, %v7072
      %v7107 = vadd.f32 %v7015, %v7076
      %v7108 = vadd.f32 %v7016, %v7075
      %v7109 = vlaneseq
      %v7110 = vshrl.u32 %v7109, 7
      %v7111 = vsub.s32 6, %v7110
      %v7112 = vrot.slane %v6723, %v7111
      %v7113 = vmul.f32 %v6702, %v7112
      %v7114 = vmul.f32 %v6703, %v7112
      %v7115 = vmul.f32 %v6704, %v7112
      %v7116 = vmul.f32 %v6705, %v7112
      %v7117 = vmul.f32 %v6706, %v7112
      %v7118 = vmul.f32 %v6707, %v7112
      %v7119 = vmul.f32 %v6708, %v7112
      %v7120 = vmul.f32 %v6709, %v7112
      %v7121 = vmul.f32 %v6710, %v7112
      %v7122 = vmul.f32 %v6711, %v7112
      %v7123 = vmul.f32 %v6712, %v7112
      %v7124 = vmul.f32 %v6713, %v7112
      %v7125 = vmul.f32 %v6714, %v7112
      %v7126 = vmul.f32 %v6715, %v7112
      %v7127 = vmul.f32 %v6716, %v7112
      %v7128 = vmul.f32 %v6717, %v7112
      %v7145 = vrot.slane %v7113, 2
      %v7146 = vrot.slane %v7114, 2
      %v7147 = vsel %vm1284, %v7145, %v7146
      %v7148 = vrot.slane %v7115, 2
      %v7149 = vrot.slane %v7116, 2
      %v7150 = vsel %vm1284, %v7148, %v7149
      %v7151 = vrot.slane %v7117, 2
      %v7152 = vrot.slane %v7118, 2
      %v7153 = vsel %vm1284, %v7151, %v7152
      %v7154 = vrot.slane %v7119, 2
      %v7155 = vrot.slane %v7120, 2
      %v7156 = vsel %vm1284, %v7154, %v7155
      %v7157 = vrot.slane %v7121, 2
      %v7158 = vrot.slane %v7122, 2
      %v7159 = vsel %vm1284, %v7157, %v7158
      %v7160 = vrot.slane %v7123, 2
      %v7161 = vrot.slane %v7124, 2
      %v7162 = vsel %vm1284, %v7160, %v7161
      %v7163 = vrot.slane %v7125, 2
      %v7164 = vrot.slane %v7126, 2
      %v7165 = vsel %vm1284, %v7163, %v7164
      %v7166 = vrot.slane %v7127, 2
      %v7167 = vrot.slane %v7128, 2
      %v7168 = vsel %vm1284, %v7166, %v7167
      %v7185 = vadd.f32 %v7093, %v7147
      %v7186 = vadd.f32 %v7094, %v7146
      %v7187 = vadd.f32 %v7095, %v7150
      %v7188 = vadd.f32 %v7096, %v7149
      %v7189 = vadd.f32 %v7097, %v7153
      %v7190 = vadd.f32 %v7098, %v7152
      %v7191 = vadd.f32 %v7099, %v7156
      %v7192 = vadd.f32 %v7100, %v7155
      %v7193 = vadd.f32 %v7101, %v7159
      %v7194 = vadd.f32 %v7102, %v7158
      %v7195 = vadd.f32 %v7103, %v7162
      %v7196 = vadd.f32 %v7104, %v7161
      %v7197 = vadd.f32 %v7105, %v7165
      %v7198 = vadd.f32 %v7106, %v7164
      %v7199 = vadd.f32 %v7107, %v7168
      %v7200 = vadd.f32 %v7108, %v7167
      %v7201 = vlaneseq
      %v7202 = vshrl.u32 %v7201, 7
      %v7203 = vsub.s32 7, %v7202
      %v7204 = vrot.slane %v6723, %v7203
      %v7205 = vmul.f32 %v6704, %v7204
      %v7206 = vmul.f32 %v6705, %v7204
      %v7207 = vmul.f32 %v6706, %v7204
      %v7208 = vmul.f32 %v6707, %v7204
      %v7209 = vmul.f32 %v6708, %v7204
      %v7210 = vmul.f32 %v6709, %v7204
      %v7211 = vmul.f32 %v6710, %v7204
      %v7212 = vmul.f32 %v6711, %v7204
      %v7213 = vmul.f32 %v6712, %v7204
      %v7214 = vmul.f32 %v6713, %v7204
      %v7215 = vmul.f32 %v6714, %v7204
      %v7216 = vmul.f32 %v6715, %v7204
      %v7217 = vmul.f32 %v6716, %v7204
      %v7218 = vmul.f32 %v6717, %v7204
      %v7219 = vmul.f32 %v6718, %v7204
      %v7220 = vmul.f32 %v6719, %v7204
      %v7237 = vrot.slane %v7205, 2
      %v7238 = vrot.slane %v7206, 2
      %v7239 = vsel %vm1284, %v7237, %v7238
      %v7240 = vrot.slane %v7207, 2
      %v7241 = vrot.slane %v7208, 2
      %v7242 = vsel %vm1284, %v7240, %v7241
      %v7243 = vrot.slane %v7209, 2
      %v7244 = vrot.slane %v7210, 2
      %v7245 = vsel %vm1284, %v7243, %v7244
      %v7246 = vrot.slane %v7211, 2
      %v7247 = vrot.slane %v7212, 2
      %v7248 = vsel %vm1284, %v7246, %v7247
      %v7249 = vrot.slane %v7213, 2
      %v7250 = vrot.slane %v7214, 2
      %v7251 = vsel %vm1284, %v7249, %v7250
      %v7252 = vrot.slane %v7215, 2
      %v7253 = vrot.slane %v7216, 2
      %v7254 = vsel %vm1284, %v7252, %v7253
      %v7255 = vrot.slane %v7217, 2
      %v7256 = vrot.slane %v7218, 2
      %v7257 = vsel %vm1284, %v7255, %v7256
      %v7258 = vrot.slane %v7219, 2
      %v7259 = vrot.slane %v7220, 2
      %v7260 = vsel %vm1284, %v7258, %v7259
      %v7277 = vadd.f32 %v7185, %v7239
      %v7278 = vadd.f32 %v7186, %v7238
      %v7279 = vadd.f32 %v7187, %v7242
      %v7280 = vadd.f32 %v7188, %v7241
      %v7281 = vadd.f32 %v7189, %v7245
      %v7282 = vadd.f32 %v7190, %v7244
      %v7283 = vadd.f32 %v7191, %v7248
      %v7284 = vadd.f32 %v7192, %v7247
      %v7285 = vadd.f32 %v7193, %v7251
      %v7286 = vadd.f32 %v7194, %v7250
      %v7287 = vadd.f32 %v7195, %v7254
      %v7288 = vadd.f32 %v7196, %v7253
      %v7289 = vadd.f32 %v7197, %v7257
      %v7290 = vadd.f32 %v7198, %v7256
      %v7291 = vadd.f32 %v7199, %v7260
      %v7292 = vadd.f32 %v7200, %v7259
      %v7293 = vlaneseq
      %v7294 = vshrl.u32 %v7293, 7
      %v7295 = vsub.s32 0, %v7294
      %v7296 = vrot.slane %v6724, %v7295
      %v7297 = vmul.f32 %v6706, %v7296
      %v7298 = vmul.f32 %v6707, %v7296
      %v7299 = vmul.f32 %v6708, %v7296
      %v7300 = vmul.f32 %v6709, %v7296
      %v7301 = vmul.f32 %v6710, %v7296
      %v7302 = vmul.f32 %v6711, %v7296
      %v7303 = vmul.f32 %v6712, %v7296
      %v7304 = vmul.f32 %v6713, %v7296
      %v7305 = vmul.f32 %v6714, %v7296
      %v7306 = vmul.f32 %v6715, %v7296
      %v7307 = vmul.f32 %v6716, %v7296
      %v7308 = vmul.f32 %v6717, %v7296
      %v7309 = vmul.f32 %v6718, %v7296
      %v7310 = vmul.f32 %v6719, %v7296
      %v7311 = vmul.f32 %v6720, %v7296
      %v7312 = vmul.f32 %v6721, %v7296
      %v7329 = vrot.slane %v7297, 2
      %v7330 = vrot.slane %v7298, 2
      %v7331 = vsel %vm1284, %v7329, %v7330
      %v7332 = vrot.slane %v7299, 2
      %v7333 = vrot.slane %v7300, 2
      %v7334 = vsel %vm1284, %v7332, %v7333
      %v7335 = vrot.slane %v7301, 2
      %v7336 = vrot.slane %v7302, 2
      %v7337 = vsel %vm1284, %v7335, %v7336
      %v7338 = vrot.slane %v7303, 2
      %v7339 = vrot.slane %v7304, 2
      %v7340 = vsel %vm1284, %v7338, %v7339
      %v7341 = vrot.slane %v7305, 2
      %v7342 = vrot.slane %v7306, 2
      %v7343 = vsel %vm1284, %v7341, %v7342
      %v7344 = vrot.slane %v7307, 2
      %v7345 = vrot.slane %v7308, 2
      %v7346 = vsel %vm1284, %v7344, %v7345
      %v7347 = vrot.slane %v7309, 2
      %v7348 = vrot.slane %v7310, 2
      %v7349 = vsel %vm1284, %v7347, %v7348
      %v7350 = vrot.slane %v7311, 2
      %v7351 = vrot.slane %v7312, 2
      %v7352 = vsel %vm1284, %v7350, %v7351
      %v7369 = vadd.f32 %v7277, %v7331
      %v7370 = vadd.f32 %v7278, %v7330
      %v7371 = vadd.f32 %v7279, %v7334
      %v7372 = vadd.f32 %v7280, %v7333
      %v7373 = vadd.f32 %v7281, %v7337
      %v7374 = vadd.f32 %v7282, %v7336
      %v7375 = vadd.f32 %v7283, %v7340
      %v7376 = vadd.f32 %v7284, %v7339
      %v7377 = vadd.f32 %v7285, %v7343
      %v7378 = vadd.f32 %v7286, %v7342
      %v7379 = vadd.f32 %v7287, %v7346
      %v7380 = vadd.f32 %v7288, %v7345
      %v7381 = vadd.f32 %v7289, %v7349
      %v7382 = vadd.f32 %v7290, %v7348
      %v7383 = vadd.f32 %v7291, %v7352
      %v7384 = vadd.f32 %v7292, %v7351
      %s7385 = scalar_lea.vmem %s11, 1
      %v7386 = vld [vmem:[%s7385] sm:$0x1]
      %v7388 = vlaneseq
      %v7389 = vshrl.u32 %v7388, 7
      %v7390 = vsub.s32 0, %v7389
      %v7391 = vrot.slane %v7386, %v7390
      %v7393 = vadd.f32 %v7369, %v7391
      %v7394 = vadd.f32 %v7370, %v7391
      %v7395 = vadd.f32 %v7371, %v7391
      %v7396 = vadd.f32 %v7372, %v7391
      %v7397 = vadd.f32 %v7373, %v7391
      %v7398 = vadd.f32 %v7374, %v7391
      %v7399 = vadd.f32 %v7375, %v7391
      %v7400 = vadd.f32 %v7376, %v7391
      %v7401 = vadd.f32 %v7377, %v7391
      %v7402 = vadd.f32 %v7378, %v7391
      %v7403 = vadd.f32 %v7379, %v7391
      %v7404 = vadd.f32 %v7380, %v7391
      %v7405 = vadd.f32 %v7381, %v7391
      %v7406 = vadd.f32 %v7382, %v7391
      %v7407 = vadd.f32 %v7383, %v7391
      %v7408 = vadd.f32 %v7384, %v7391
      %s7409 = scalar_lea.vmem %s12, 1
      %v7410 = vld [vmem:[%s7409] sm:$0x1]
      %s7411 = scalar_lea.vmem %s13, 1
      %v7412 = vld [vmem:[%s7411] sm:$0x1]
      %v7413 = vsel %vm3104, %v7393, 0.0
      %7414 = vadd.xlane.f32.xlu0 %v7413
      %v7415 = vpop.xlane.xlu0 %7414
      %v7416 = vsel %vm3108, %v7394, 0.0
      %7417 = vadd.xlane.f32.xlu0 %v7416
      %v7418 = vpop.xlane.xlu0 %7417
      %v7419 = vsel %vm3104, %v7395, 0.0
      %7420 = vadd.xlane.f32.xlu0 %v7419
      %v7421 = vpop.xlane.xlu0 %7420
      %v7422 = vsel %vm3108, %v7396, 0.0
      %7423 = vadd.xlane.f32.xlu0 %v7422
      %v7424 = vpop.xlane.xlu0 %7423
      %v7425 = vsel %vm3104, %v7397, 0.0
      %7426 = vadd.xlane.f32.xlu0 %v7425
      %v7427 = vpop.xlane.xlu0 %7426
      %v7428 = vsel %vm3108, %v7398, 0.0
      %7429 = vadd.xlane.f32.xlu0 %v7428
      %v7430 = vpop.xlane.xlu0 %7429
      %v7431 = vsel %vm3104, %v7399, 0.0
      %7432 = vadd.xlane.f32.xlu0 %v7431
      %v7433 = vpop.xlane.xlu0 %7432
      %v7434 = vsel %vm3108, %v7400, 0.0
      %7435 = vadd.xlane.f32.xlu0 %v7434
      %v7436 = vpop.xlane.xlu0 %7435
      %v7437 = vsel %vm3104, %v7401, 0.0
      %7438 = vadd.xlane.f32.xlu0 %v7437
      %v7439 = vpop.xlane.xlu0 %7438
      %v7440 = vsel %vm3108, %v7402, 0.0
      %7441 = vadd.xlane.f32.xlu0 %v7440
      %v7442 = vpop.xlane.xlu0 %7441
      %v7443 = vsel %vm3104, %v7403, 0.0
      %7444 = vadd.xlane.f32.xlu0 %v7443
      %v7445 = vpop.xlane.xlu0 %7444
      %v7446 = vsel %vm3108, %v7404, 0.0
      %7447 = vadd.xlane.f32.xlu0 %v7446
      %v7448 = vpop.xlane.xlu0 %7447
      %v7449 = vsel %vm3104, %v7405, 0.0
      %7450 = vadd.xlane.f32.xlu0 %v7449
      %v7451 = vpop.xlane.xlu0 %7450
      %v7452 = vsel %vm3108, %v7406, 0.0
      %7453 = vadd.xlane.f32.xlu0 %v7452
      %v7454 = vpop.xlane.xlu0 %7453
      %v7455 = vsel %vm3104, %v7407, 0.0
      %7456 = vadd.xlane.f32.xlu0 %v7455
      %v7457 = vpop.xlane.xlu0 %7456
      %v7458 = vsel %vm3108, %v7408, 0.0
      %7459 = vadd.xlane.f32.xlu0 %v7458
      %v7460 = vpop.xlane.xlu0 %7459
      %v7461 = vmul.f32 %v7415, %v3154
      %v7462 = vmul.f32 %v7418, %v3154
      %v7463 = vmul.f32 %v7421, %v3154
      %v7464 = vmul.f32 %v7424, %v3154
      %v7465 = vmul.f32 %v7427, %v3154
      %v7466 = vmul.f32 %v7430, %v3154
      %v7467 = vmul.f32 %v7433, %v3154
      %v7468 = vmul.f32 %v7436, %v3154
      %v7469 = vmul.f32 %v7439, %v3154
      %v7470 = vmul.f32 %v7442, %v3154
      %v7471 = vmul.f32 %v7445, %v3154
      %v7472 = vmul.f32 %v7448, %v3154
      %v7473 = vmul.f32 %v7451, %v3154
      %v7474 = vmul.f32 %v7454, %v3154
      %v7475 = vmul.f32 %v7457, %v3154
      %v7476 = vmul.f32 %v7460, %v3154
      %v7477 = vsub.f32 %v7393, %v7461
      %v7478 = vsub.f32 %v7394, %v7462
      %v7479 = vsub.f32 %v7395, %v7463
      %v7480 = vsub.f32 %v7396, %v7464
      %v7481 = vsub.f32 %v7397, %v7465
      %v7482 = vsub.f32 %v7398, %v7466
      %v7483 = vsub.f32 %v7399, %v7467
      %v7484 = vsub.f32 %v7400, %v7468
      %v7485 = vsub.f32 %v7401, %v7469
      %v7486 = vsub.f32 %v7402, %v7470
      %v7487 = vsub.f32 %v7403, %v7471
      %v7488 = vsub.f32 %v7404, %v7472
      %v7489 = vsub.f32 %v7405, %v7473
      %v7490 = vsub.f32 %v7406, %v7474
      %v7491 = vsub.f32 %v7407, %v7475
      %v7492 = vsub.f32 %v7408, %v7476
      %v7493 = vmul.f32 %v7477, %v7477
      %v7494 = vmul.f32 %v7478, %v7478
      %v7495 = vmul.f32 %v7479, %v7479
      %v7496 = vmul.f32 %v7480, %v7480
      %v7497 = vmul.f32 %v7481, %v7481
      %v7498 = vmul.f32 %v7482, %v7482
      %v7499 = vmul.f32 %v7483, %v7483
      %v7500 = vmul.f32 %v7484, %v7484
      %v7501 = vmul.f32 %v7485, %v7485
      %v7502 = vmul.f32 %v7486, %v7486
      %v7503 = vmul.f32 %v7487, %v7487
      %v7504 = vmul.f32 %v7488, %v7488
      %v7505 = vmul.f32 %v7489, %v7489
      %v7506 = vmul.f32 %v7490, %v7490
      %v7507 = vmul.f32 %v7491, %v7491
      %v7508 = vmul.f32 %v7492, %v7492
      %v7509 = vsel %vm3104, %v7493, 0.0
      %7510 = vadd.xlane.f32.xlu0 %v7509
      %v7511 = vpop.xlane.xlu0 %7510
      %v7512 = vsel %vm3108, %v7494, 0.0
      %7513 = vadd.xlane.f32.xlu0 %v7512
      %v7514 = vpop.xlane.xlu0 %7513
      %v7515 = vsel %vm3104, %v7495, 0.0
      %7516 = vadd.xlane.f32.xlu0 %v7515
      %v7517 = vpop.xlane.xlu0 %7516
      %v7518 = vsel %vm3108, %v7496, 0.0
      %7519 = vadd.xlane.f32.xlu0 %v7518
      %v7520 = vpop.xlane.xlu0 %7519
      %v7521 = vsel %vm3104, %v7497, 0.0
      %7522 = vadd.xlane.f32.xlu0 %v7521
      %v7523 = vpop.xlane.xlu0 %7522
      %v7524 = vsel %vm3108, %v7498, 0.0
      %7525 = vadd.xlane.f32.xlu0 %v7524
      %v7526 = vpop.xlane.xlu0 %7525
      %v7527 = vsel %vm3104, %v7499, 0.0
      %7528 = vadd.xlane.f32.xlu0 %v7527
      %v7529 = vpop.xlane.xlu0 %7528
      %v7530 = vsel %vm3108, %v7500, 0.0
      %7531 = vadd.xlane.f32.xlu0 %v7530
      %v7532 = vpop.xlane.xlu0 %7531
      %v7533 = vsel %vm3104, %v7501, 0.0
      %7534 = vadd.xlane.f32.xlu0 %v7533
      %v7535 = vpop.xlane.xlu0 %7534
      %v7536 = vsel %vm3108, %v7502, 0.0
      %7537 = vadd.xlane.f32.xlu0 %v7536
      %v7538 = vpop.xlane.xlu0 %7537
      %v7539 = vsel %vm3104, %v7503, 0.0
      %7540 = vadd.xlane.f32.xlu0 %v7539
      %v7541 = vpop.xlane.xlu0 %7540
      %v7542 = vsel %vm3108, %v7504, 0.0
      %7543 = vadd.xlane.f32.xlu0 %v7542
      %v7544 = vpop.xlane.xlu0 %7543
      %v7545 = vsel %vm3104, %v7505, 0.0
      %7546 = vadd.xlane.f32.xlu0 %v7545
      %v7547 = vpop.xlane.xlu0 %7546
      %v7548 = vsel %vm3108, %v7506, 0.0
      %7549 = vadd.xlane.f32.xlu0 %v7548
      %v7550 = vpop.xlane.xlu0 %7549
      %v7551 = vsel %vm3104, %v7507, 0.0
      %7552 = vadd.xlane.f32.xlu0 %v7551
      %v7553 = vpop.xlane.xlu0 %7552
      %v7554 = vsel %vm3108, %v7508, 0.0
      %7555 = vadd.xlane.f32.xlu0 %v7554
      %v7556 = vpop.xlane.xlu0 %7555
      %v7557 = vmul.f32 %v7511, %v3154
      %v7558 = vmul.f32 %v7514, %v3154
      %v7559 = vmul.f32 %v7517, %v3154
      %v7560 = vmul.f32 %v7520, %v3154
      %v7561 = vmul.f32 %v7523, %v3154
      %v7562 = vmul.f32 %v7526, %v3154
      %v7563 = vmul.f32 %v7529, %v3154
      %v7564 = vmul.f32 %v7532, %v3154
      %v7565 = vmul.f32 %v7535, %v3154
      %v7566 = vmul.f32 %v7538, %v3154
      %v7567 = vmul.f32 %v7541, %v3154
      %v7568 = vmul.f32 %v7544, %v3154
      %v7569 = vmul.f32 %v7547, %v3154
      %v7570 = vmul.f32 %v7550, %v3154
      %v7571 = vmul.f32 %v7553, %v3154
      %v7572 = vmul.f32 %v7556, %v3154
      %v7573 = vadd.f32 %v7557, 1e-06
      %v7574 = vadd.f32 %v7558, 1e-06
      %v7575 = vadd.f32 %v7559, 1e-06
      %v7576 = vadd.f32 %v7560, 1e-06
      %v7577 = vadd.f32 %v7561, 1e-06
      %v7578 = vadd.f32 %v7562, 1e-06
      %v7579 = vadd.f32 %v7563, 1e-06
      %v7580 = vadd.f32 %v7564, 1e-06
      %v7581 = vadd.f32 %v7565, 1e-06
      %v7582 = vadd.f32 %v7566, 1e-06
      %v7583 = vadd.f32 %v7567, 1e-06
      %v7584 = vadd.f32 %v7568, 1e-06
      %v7585 = vadd.f32 %v7569, 1e-06
      %v7586 = vadd.f32 %v7570, 1e-06
      %v7587 = vadd.f32 %v7571, 1e-06
      %v7588 = vadd.f32 %v7572, 1e-06
      %v7589 = vrsqrt.pop %v7573
      %v7590 = vrsqrt.pop %v7574
      %v7591 = vrsqrt.pop %v7575
      %v7592 = vrsqrt.pop %v7576
      %v7593 = vrsqrt.pop %v7577
      %v7594 = vrsqrt.pop %v7578
      %v7595 = vrsqrt.pop %v7579
      %v7596 = vrsqrt.pop %v7580
      %v7597 = vrsqrt.pop %v7581
      %v7598 = vrsqrt.pop %v7582
      %v7599 = vrsqrt.pop %v7583
      %v7600 = vrsqrt.pop %v7584
      %v7601 = vrsqrt.pop %v7585
      %v7602 = vrsqrt.pop %v7586
      %v7603 = vrsqrt.pop %v7587
      %v7604 = vrsqrt.pop %v7588
      %v7605 = vmul.f32 %v7477, %v7589
      %v7606 = vmul.f32 %v7478, %v7590
      %v7607 = vmul.f32 %v7479, %v7591
      %v7608 = vmul.f32 %v7480, %v7592
      %v7609 = vmul.f32 %v7481, %v7593
      %v7610 = vmul.f32 %v7482, %v7594
      %v7611 = vmul.f32 %v7483, %v7595
      %v7612 = vmul.f32 %v7484, %v7596
      %v7613 = vmul.f32 %v7485, %v7597
      %v7614 = vmul.f32 %v7486, %v7598
      %v7615 = vmul.f32 %v7487, %v7599
      %v7616 = vmul.f32 %v7488, %v7600
      %v7617 = vmul.f32 %v7489, %v7601
      %v7618 = vmul.f32 %v7490, %v7602
      %v7619 = vmul.f32 %v7491, %v7603
      %v7620 = vmul.f32 %v7492, %v7604
      %v7622 = vlaneseq
      %v7623 = vshrl.u32 %v7622, 7
      %v7624 = vsub.s32 0, %v7623
      %v7625 = vrot.slane %v7410, %v7624
      %v7627 = vmul.f32 %v7605, %v7625
      %v7628 = vmul.f32 %v7606, %v7625
      %v7629 = vmul.f32 %v7607, %v7625
      %v7630 = vmul.f32 %v7608, %v7625
      %v7631 = vmul.f32 %v7609, %v7625
      %v7632 = vmul.f32 %v7610, %v7625
      %v7633 = vmul.f32 %v7611, %v7625
      %v7634 = vmul.f32 %v7612, %v7625
      %v7635 = vmul.f32 %v7613, %v7625
      %v7636 = vmul.f32 %v7614, %v7625
      %v7637 = vmul.f32 %v7615, %v7625
      %v7638 = vmul.f32 %v7616, %v7625
      %v7639 = vmul.f32 %v7617, %v7625
      %v7640 = vmul.f32 %v7618, %v7625
      %v7641 = vmul.f32 %v7619, %v7625
      %v7642 = vmul.f32 %v7620, %v7625
      %v7644 = vlaneseq
      %v7645 = vshrl.u32 %v7644, 7
      %v7646 = vsub.s32 0, %v7645
      %v7647 = vrot.slane %v7412, %v7646
      %v7649 = vadd.f32 %v7627, %v7647
      %v7650 = vadd.f32 %v7628, %v7647
      %v7651 = vadd.f32 %v7629, %v7647
      %v7652 = vadd.f32 %v7630, %v7647
      %v7653 = vadd.f32 %v7631, %v7647
      %v7654 = vadd.f32 %v7632, %v7647
      %v7655 = vadd.f32 %v7633, %v7647
      %v7656 = vadd.f32 %v7634, %v7647
      %v7657 = vadd.f32 %v7635, %v7647
      %v7658 = vadd.f32 %v7636, %v7647
      %v7659 = vadd.f32 %v7637, %v7647
      %v7660 = vadd.f32 %v7638, %v7647
      %v7661 = vadd.f32 %v7639, %v7647
      %v7662 = vadd.f32 %v7640, %v7647
      %v7663 = vadd.f32 %v7641, %v7647
      %v7664 = vadd.f32 %v7642, %v7647
      %v7681 = vcombine.high %v7649, %v7649
      %v7683 = vunpack.c.l.s4 1966171168
      %v7684 = vunpack.c.0.s8 %v7683
      %v7685 = vlaneseq
      %v7686 = vshrl.u32 %v7685, 7
      %v7687 = vsub.s32 %v7684, %v7686
      %v7688 = vrot.slane %v7649, %v7687
      %v7690 = vunpack.c.l.s4 1966171168
      %v7691 = vunpack.c.0.s8 %v7690
      %v7692 = vlaneseq
      %v7693 = vshrl.u32 %v7692, 7
      %v7694 = vsub.s32 %v7691, %v7693
      %v7695 = vrot.slane %v7681, %v7694
      %v7696 = vcombine.high %v7688, %v7688
      %v7697 = vcombine.high %v7695, %v7695
      %v7699 = vunpack.c.l.s4 1966171168
      %v7700 = vunpack.c.0.s8 %v7699
      %v7701 = vlaneseq
      %v7702 = vshrl.u32 %v7701, 7
      %v7703 = vsub.s32 %v7700, %v7702
      %v7704 = vrot.slane %v7688, %v7703
      %v7706 = vunpack.c.l.s4 1966171168
      %v7707 = vunpack.c.0.s8 %v7706
      %v7708 = vlaneseq
      %v7709 = vshrl.u32 %v7708, 7
      %v7710 = vsub.s32 %v7707, %v7709
      %v7711 = vrot.slane %v7695, %v7710
      %v7713 = vunpack.c.l.s4 1966171168
      %v7714 = vunpack.c.0.s8 %v7713
      %v7715 = vlaneseq
      %v7716 = vshrl.u32 %v7715, 7
      %v7717 = vsub.s32 %v7714, %v7716
      %v7718 = vrot.slane %v7696, %v7717
      %v7720 = vunpack.c.l.s4 1966171168
      %v7721 = vunpack.c.0.s8 %v7720
      %v7722 = vlaneseq
      %v7723 = vshrl.u32 %v7722, 7
      %v7724 = vsub.s32 %v7721, %v7723
      %v7725 = vrot.slane %v7697, %v7724
      %v7726 = vcombine.high %v7704, %v7704
      %v7727 = vcombine.high %v7711, %v7711
      %v7728 = vcombine.high %v7718, %v7718
      %v7729 = vcombine.high %v7725, %v7725
      %v7731 = vunpack.c.l.s4 1966171168
      %v7732 = vunpack.c.0.s8 %v7731
      %v7733 = vlaneseq
      %v7734 = vshrl.u32 %v7733, 7
      %v7735 = vsub.s32 %v7732, %v7734
      %v7736 = vrot.slane %v7650, %v7735
      %v7738 = vunpack.c.l.s4 1966171168
      %v7739 = vunpack.c.0.s8 %v7738
      %v7740 = vlaneseq
      %v7741 = vshrl.u32 %v7740, 7
      %v7742 = vsub.s32 %v7739, %v7741
      %v7743 = vrot.slane %v7736, %v7742
      %v7744 = vcombine.high %v7651, %v7651
      %v7746 = vunpack.c.l.s4 1966171168
      %v7747 = vunpack.c.0.s8 %v7746
      %v7748 = vlaneseq
      %v7749 = vshrl.u32 %v7748, 7
      %v7750 = vsub.s32 %v7747, %v7749
      %v7751 = vrot.slane %v7651, %v7750
      %v7753 = vunpack.c.l.s4 1966171168
      %v7754 = vunpack.c.0.s8 %v7753
      %v7755 = vlaneseq
      %v7756 = vshrl.u32 %v7755, 7
      %v7757 = vsub.s32 %v7754, %v7756
      %v7758 = vrot.slane %v7744, %v7757
      %v7759 = vcombine.high %v7751, %v7751
      %v7760 = vcombine.high %v7758, %v7758
      %v7762 = vunpack.c.l.s4 1966171168
      %v7763 = vunpack.c.0.s8 %v7762
      %v7764 = vlaneseq
      %v7765 = vshrl.u32 %v7764, 7
      %v7766 = vsub.s32 %v7763, %v7765
      %v7767 = vrot.slane %v7751, %v7766
      %v7769 = vunpack.c.l.s4 1966171168
      %v7770 = vunpack.c.0.s8 %v7769
      %v7771 = vlaneseq
      %v7772 = vshrl.u32 %v7771, 7
      %v7773 = vsub.s32 %v7770, %v7772
      %v7774 = vrot.slane %v7758, %v7773
      %v7776 = vunpack.c.l.s4 1966171168
      %v7777 = vunpack.c.0.s8 %v7776
      %v7778 = vlaneseq
      %v7779 = vshrl.u32 %v7778, 7
      %v7780 = vsub.s32 %v7777, %v7779
      %v7781 = vrot.slane %v7759, %v7780
      %v7783 = vunpack.c.l.s4 1966171168
      %v7784 = vunpack.c.0.s8 %v7783
      %v7785 = vlaneseq
      %v7786 = vshrl.u32 %v7785, 7
      %v7787 = vsub.s32 %v7784, %v7786
      %v7788 = vrot.slane %v7760, %v7787
      %v7789 = vcombine.high %v7767, %v7767
      %v7790 = vcombine.high %v7774, %v7774
      %v7791 = vcombine.high %v7781, %v7781
      %v7792 = vcombine.high %v7788, %v7788
      %v7794 = vunpack.c.l.s4 1966171168
      %v7795 = vunpack.c.0.s8 %v7794
      %v7796 = vlaneseq
      %v7797 = vshrl.u32 %v7796, 7
      %v7798 = vsub.s32 %v7795, %v7797
      %v7799 = vrot.slane %v7652, %v7798
      %v7801 = vunpack.c.l.s4 1966171168
      %v7802 = vunpack.c.0.s8 %v7801
      %v7803 = vlaneseq
      %v7804 = vshrl.u32 %v7803, 7
      %v7805 = vsub.s32 %v7802, %v7804
      %v7806 = vrot.slane %v7799, %v7805
      %v7807 = vcombine.high %v7653, %v7653
      %v7809 = vunpack.c.l.s4 1966171168
      %v7810 = vunpack.c.0.s8 %v7809
      %v7811 = vlaneseq
      %v7812 = vshrl.u32 %v7811, 7
      %v7813 = vsub.s32 %v7810, %v7812
      %v7814 = vrot.slane %v7653, %v7813
      %v7816 = vunpack.c.l.s4 1966171168
      %v7817 = vunpack.c.0.s8 %v7816
      %v7818 = vlaneseq
      %v7819 = vshrl.u32 %v7818, 7
      %v7820 = vsub.s32 %v7817, %v7819
      %v7821 = vrot.slane %v7807, %v7820
      %v7822 = vcombine.high %v7814, %v7814
      %v7823 = vcombine.high %v7821, %v7821
      %v7825 = vunpack.c.l.s4 1966171168
      %v7826 = vunpack.c.0.s8 %v7825
      %v7827 = vlaneseq
      %v7828 = vshrl.u32 %v7827, 7
      %v7829 = vsub.s32 %v7826, %v7828
      %v7830 = vrot.slane %v7814, %v7829
      %v7832 = vunpack.c.l.s4 1966171168
      %v7833 = vunpack.c.0.s8 %v7832
      %v7834 = vlaneseq
      %v7835 = vshrl.u32 %v7834, 7
      %v7836 = vsub.s32 %v7833, %v7835
      %v7837 = vrot.slane %v7821, %v7836
      %v7839 = vunpack.c.l.s4 1966171168
      %v7840 = vunpack.c.0.s8 %v7839
      %v7841 = vlaneseq
      %v7842 = vshrl.u32 %v7841, 7
      %v7843 = vsub.s32 %v7840, %v7842
      %v7844 = vrot.slane %v7822, %v7843
      %v7846 = vunpack.c.l.s4 1966171168
      %v7847 = vunpack.c.0.s8 %v7846
      %v7848 = vlaneseq
      %v7849 = vshrl.u32 %v7848, 7
      %v7850 = vsub.s32 %v7847, %v7849
      %v7851 = vrot.slane %v7823, %v7850
      %v7852 = vcombine.high %v7830, %v7830
      %v7853 = vcombine.high %v7837, %v7837
      %v7854 = vcombine.high %v7844, %v7844
      %v7855 = vcombine.high %v7851, %v7851
      %v7857 = vunpack.c.l.s4 1966171168
      %v7858 = vunpack.c.0.s8 %v7857
      %v7859 = vlaneseq
      %v7860 = vshrl.u32 %v7859, 7
      %v7861 = vsub.s32 %v7858, %v7860
      %v7862 = vrot.slane %v7654, %v7861
      %v7864 = vunpack.c.l.s4 1966171168
      %v7865 = vunpack.c.0.s8 %v7864
      %v7866 = vlaneseq
      %v7867 = vshrl.u32 %v7866, 7
      %v7868 = vsub.s32 %v7865, %v7867
      %v7869 = vrot.slane %v7862, %v7868
      %v7870 = vcombine.high %v7655, %v7655
      %v7872 = vunpack.c.l.s4 1966171168
      %v7873 = vunpack.c.0.s8 %v7872
      %v7874 = vlaneseq
      %v7875 = vshrl.u32 %v7874, 7
      %v7876 = vsub.s32 %v7873, %v7875
      %v7877 = vrot.slane %v7655, %v7876
      %v7879 = vunpack.c.l.s4 1966171168
      %v7880 = vunpack.c.0.s8 %v7879
      %v7881 = vlaneseq
      %v7882 = vshrl.u32 %v7881, 7
      %v7883 = vsub.s32 %v7880, %v7882
      %v7884 = vrot.slane %v7870, %v7883
      %v7885 = vcombine.high %v7877, %v7877
      %v7886 = vcombine.high %v7884, %v7884
      %v7888 = vunpack.c.l.s4 1966171168
      %v7889 = vunpack.c.0.s8 %v7888
      %v7890 = vlaneseq
      %v7891 = vshrl.u32 %v7890, 7
      %v7892 = vsub.s32 %v7889, %v7891
      %v7893 = vrot.slane %v7877, %v7892
      %v7895 = vunpack.c.l.s4 1966171168
      %v7896 = vunpack.c.0.s8 %v7895
      %v7897 = vlaneseq
      %v7898 = vshrl.u32 %v7897, 7
      %v7899 = vsub.s32 %v7896, %v7898
      %v7900 = vrot.slane %v7884, %v7899
      %v7902 = vunpack.c.l.s4 1966171168
      %v7903 = vunpack.c.0.s8 %v7902
      %v7904 = vlaneseq
      %v7905 = vshrl.u32 %v7904, 7
      %v7906 = vsub.s32 %v7903, %v7905
      %v7907 = vrot.slane %v7885, %v7906
      %v7909 = vunpack.c.l.s4 1966171168
      %v7910 = vunpack.c.0.s8 %v7909
      %v7911 = vlaneseq
      %v7912 = vshrl.u32 %v7911, 7
      %v7913 = vsub.s32 %v7910, %v7912
      %v7914 = vrot.slane %v7886, %v7913
      %v7915 = vcombine.high %v7893, %v7893
      %v7916 = vcombine.high %v7900, %v7900
      %v7917 = vcombine.high %v7907, %v7907
      %v7918 = vcombine.high %v7914, %v7914
      %v7920 = vunpack.c.l.s4 1966171168
      %v7921 = vunpack.c.0.s8 %v7920
      %v7922 = vlaneseq
      %v7923 = vshrl.u32 %v7922, 7
      %v7924 = vsub.s32 %v7921, %v7923
      %v7925 = vrot.slane %v7656, %v7924
      %v7927 = vunpack.c.l.s4 1966171168
      %v7928 = vunpack.c.0.s8 %v7927
      %v7929 = vlaneseq
      %v7930 = vshrl.u32 %v7929, 7
      %v7931 = vsub.s32 %v7928, %v7930
      %v7932 = vrot.slane %v7925, %v7931
      %v7933 = vcombine.high %v7657, %v7657
      %v7935 = vunpack.c.l.s4 1966171168
      %v7936 = vunpack.c.0.s8 %v7935
      %v7937 = vlaneseq
      %v7938 = vshrl.u32 %v7937, 7
      %v7939 = vsub.s32 %v7936, %v7938
      %v7940 = vrot.slane %v7657, %v7939
      %v7942 = vunpack.c.l.s4 1966171168
      %v7943 = vunpack.c.0.s8 %v7942
      %v7944 = vlaneseq
      %v7945 = vshrl.u32 %v7944, 7
      %v7946 = vsub.s32 %v7943, %v7945
      %v7947 = vrot.slane %v7933, %v7946
      %v7948 = vcombine.high %v7940, %v7940
      %v7949 = vcombine.high %v7947, %v7947
      %v7951 = vunpack.c.l.s4 1966171168
      %v7952 = vunpack.c.0.s8 %v7951
      %v7953 = vlaneseq
      %v7954 = vshrl.u32 %v7953, 7
      %v7955 = vsub.s32 %v7952, %v7954
      %v7956 = vrot.slane %v7940, %v7955
      %v7958 = vunpack.c.l.s4 1966171168
      %v7959 = vunpack.c.0.s8 %v7958
      %v7960 = vlaneseq
      %v7961 = vshrl.u32 %v7960, 7
      %v7962 = vsub.s32 %v7959, %v7961
      %v7963 = vrot.slane %v7947, %v7962
      %v7965 = vunpack.c.l.s4 1966171168
      %v7966 = vunpack.c.0.s8 %v7965
      %v7967 = vlaneseq
      %v7968 = vshrl.u32 %v7967, 7
      %v7969 = vsub.s32 %v7966, %v7968
      %v7970 = vrot.slane %v7948, %v7969
      %v7972 = vunpack.c.l.s4 1966171168
      %v7973 = vunpack.c.0.s8 %v7972
      %v7974 = vlaneseq
      %v7975 = vshrl.u32 %v7974, 7
      %v7976 = vsub.s32 %v7973, %v7975
      %v7977 = vrot.slane %v7949, %v7976
      %v7978 = vcombine.high %v7956, %v7956
      %v7979 = vcombine.high %v7963, %v7963
      %v7980 = vcombine.high %v7970, %v7970
      %v7981 = vcombine.high %v7977, %v7977
      %v7983 = vunpack.c.l.s4 1966171168
      %v7984 = vunpack.c.0.s8 %v7983
      %v7985 = vlaneseq
      %v7986 = vshrl.u32 %v7985, 7
      %v7987 = vsub.s32 %v7984, %v7986
      %v7988 = vrot.slane %v7658, %v7987
      %v7990 = vunpack.c.l.s4 1966171168
      %v7991 = vunpack.c.0.s8 %v7990
      %v7992 = vlaneseq
      %v7993 = vshrl.u32 %v7992, 7
      %v7994 = vsub.s32 %v7991, %v7993
      %v7995 = vrot.slane %v7988, %v7994
      %v7996 = vcombine.high %v7659, %v7659
      %v7998 = vunpack.c.l.s4 1966171168
      %v7999 = vunpack.c.0.s8 %v7998
      %v8000 = vlaneseq
      %v8001 = vshrl.u32 %v8000, 7
      %v8002 = vsub.s32 %v7999, %v8001
      %v8003 = vrot.slane %v7659, %v8002
      %v8005 = vunpack.c.l.s4 1966171168
      %v8006 = vunpack.c.0.s8 %v8005
      %v8007 = vlaneseq
      %v8008 = vshrl.u32 %v8007, 7
      %v8009 = vsub.s32 %v8006, %v8008
      %v8010 = vrot.slane %v7996, %v8009
      %v8011 = vcombine.high %v8003, %v8003
      %v8012 = vcombine.high %v8010, %v8010
      %v8014 = vunpack.c.l.s4 1966171168
      %v8015 = vunpack.c.0.s8 %v8014
      %v8016 = vlaneseq
      %v8017 = vshrl.u32 %v8016, 7
      %v8018 = vsub.s32 %v8015, %v8017
      %v8019 = vrot.slane %v8003, %v8018
      %v8021 = vunpack.c.l.s4 1966171168
      %v8022 = vunpack.c.0.s8 %v8021
      %v8023 = vlaneseq
      %v8024 = vshrl.u32 %v8023, 7
      %v8025 = vsub.s32 %v8022, %v8024
      %v8026 = vrot.slane %v8010, %v8025
      %v8028 = vunpack.c.l.s4 1966171168
      %v8029 = vunpack.c.0.s8 %v8028
      %v8030 = vlaneseq
      %v8031 = vshrl.u32 %v8030, 7
      %v8032 = vsub.s32 %v8029, %v8031
      %v8033 = vrot.slane %v8011, %v8032
      %v8035 = vunpack.c.l.s4 1966171168
      %v8036 = vunpack.c.0.s8 %v8035
      %v8037 = vlaneseq
      %v8038 = vshrl.u32 %v8037, 7
      %v8039 = vsub.s32 %v8036, %v8038
      %v8040 = vrot.slane %v8012, %v8039
      %v8041 = vcombine.high %v8019, %v8019
      %v8042 = vcombine.high %v8026, %v8026
      %v8043 = vcombine.high %v8033, %v8033
      %v8044 = vcombine.high %v8040, %v8040
      %v8046 = vunpack.c.l.s4 1966171168
      %v8047 = vunpack.c.0.s8 %v8046
      %v8048 = vlaneseq
      %v8049 = vshrl.u32 %v8048, 7
      %v8050 = vsub.s32 %v8047, %v8049
      %v8051 = vrot.slane %v7660, %v8050
      %v8053 = vunpack.c.l.s4 1966171168
      %v8054 = vunpack.c.0.s8 %v8053
      %v8055 = vlaneseq
      %v8056 = vshrl.u32 %v8055, 7
      %v8057 = vsub.s32 %v8054, %v8056
      %v8058 = vrot.slane %v8051, %v8057
      %v8059 = vcombine.high %v7661, %v7661
      %v8061 = vunpack.c.l.s4 1966171168
      %v8062 = vunpack.c.0.s8 %v8061
      %v8063 = vlaneseq
      %v8064 = vshrl.u32 %v8063, 7
      %v8065 = vsub.s32 %v8062, %v8064
      %v8066 = vrot.slane %v7661, %v8065
      %v8068 = vunpack.c.l.s4 1966171168
      %v8069 = vunpack.c.0.s8 %v8068
      %v8070 = vlaneseq
      %v8071 = vshrl.u32 %v8070, 7
      %v8072 = vsub.s32 %v8069, %v8071
      %v8073 = vrot.slane %v8059, %v8072
      %v8074 = vcombine.high %v8066, %v8066
      %v8075 = vcombine.high %v8073, %v8073
      %v8077 = vunpack.c.l.s4 1966171168
      %v8078 = vunpack.c.0.s8 %v8077
      %v8079 = vlaneseq
      %v8080 = vshrl.u32 %v8079, 7
      %v8081 = vsub.s32 %v8078, %v8080
      %v8082 = vrot.slane %v8066, %v8081
      %v8084 = vunpack.c.l.s4 1966171168
      %v8085 = vunpack.c.0.s8 %v8084
      %v8086 = vlaneseq
      %v8087 = vshrl.u32 %v8086, 7
      %v8088 = vsub.s32 %v8085, %v8087
      %v8089 = vrot.slane %v8073, %v8088
      %v8091 = vunpack.c.l.s4 1966171168
      %v8092 = vunpack.c.0.s8 %v8091
      %v8093 = vlaneseq
      %v8094 = vshrl.u32 %v8093, 7
      %v8095 = vsub.s32 %v8092, %v8094
      %v8096 = vrot.slane %v8074, %v8095
      %v8098 = vunpack.c.l.s4 1966171168
      %v8099 = vunpack.c.0.s8 %v8098
      %v8100 = vlaneseq
      %v8101 = vshrl.u32 %v8100, 7
      %v8102 = vsub.s32 %v8099, %v8101
      %v8103 = vrot.slane %v8075, %v8102
      %v8104 = vcombine.high %v8082, %v8082
      %v8105 = vcombine.high %v8089, %v8089
      %v8106 = vcombine.high %v8096, %v8096
      %v8107 = vcombine.high %v8103, %v8103
      %v8109 = vunpack.c.l.s4 1966171168
      %v8110 = vunpack.c.0.s8 %v8109
      %v8111 = vlaneseq
      %v8112 = vshrl.u32 %v8111, 7
      %v8113 = vsub.s32 %v8110, %v8112
      %v8114 = vrot.slane %v7662, %v8113
      %v8116 = vunpack.c.l.s4 1966171168
      %v8117 = vunpack.c.0.s8 %v8116
      %v8118 = vlaneseq
      %v8119 = vshrl.u32 %v8118, 7
      %v8120 = vsub.s32 %v8117, %v8119
      %v8121 = vrot.slane %v8114, %v8120
      %v8122 = vcombine.high %v7663, %v7663
      %v8124 = vunpack.c.l.s4 1966171168
      %v8125 = vunpack.c.0.s8 %v8124
      %v8126 = vlaneseq
      %v8127 = vshrl.u32 %v8126, 7
      %v8128 = vsub.s32 %v8125, %v8127
      %v8129 = vrot.slane %v7663, %v8128
      %v8131 = vunpack.c.l.s4 1966171168
      %v8132 = vunpack.c.0.s8 %v8131
      %v8133 = vlaneseq
      %v8134 = vshrl.u32 %v8133, 7
      %v8135 = vsub.s32 %v8132, %v8134
      %v8136 = vrot.slane %v8122, %v8135
      %v8137 = vcombine.high %v8129, %v8129
      %v8138 = vcombine.high %v8136, %v8136
      %v8140 = vunpack.c.l.s4 1966171168
      %v8141 = vunpack.c.0.s8 %v8140
      %v8142 = vlaneseq
      %v8143 = vshrl.u32 %v8142, 7
      %v8144 = vsub.s32 %v8141, %v8143
      %v8145 = vrot.slane %v8129, %v8144
      %v8147 = vunpack.c.l.s4 1966171168
      %v8148 = vunpack.c.0.s8 %v8147
      %v8149 = vlaneseq
      %v8150 = vshrl.u32 %v8149, 7
      %v8151 = vsub.s32 %v8148, %v8150
      %v8152 = vrot.slane %v8136, %v8151
      %v8154 = vunpack.c.l.s4 1966171168
      %v8155 = vunpack.c.0.s8 %v8154
      %v8156 = vlaneseq
      %v8157 = vshrl.u32 %v8156, 7
      %v8158 = vsub.s32 %v8155, %v8157
      %v8159 = vrot.slane %v8137, %v8158
      %v8161 = vunpack.c.l.s4 1966171168
      %v8162 = vunpack.c.0.s8 %v8161
      %v8163 = vlaneseq
      %v8164 = vshrl.u32 %v8163, 7
      %v8165 = vsub.s32 %v8162, %v8164
      %v8166 = vrot.slane %v8138, %v8165
      %v8167 = vcombine.high %v8145, %v8145
      %v8168 = vcombine.high %v8152, %v8152
      %v8169 = vcombine.high %v8159, %v8159
      %v8170 = vcombine.high %v8166, %v8166
      %v8172 = vunpack.c.l.s4 1966171168
      %v8173 = vunpack.c.0.s8 %v8172
      %v8174 = vlaneseq
      %v8175 = vshrl.u32 %v8174, 7
      %v8176 = vsub.s32 %v8173, %v8175
      %v8177 = vrot.slane %v7664, %v8176
      %v8179 = vunpack.c.l.s4 1966171168
      %v8180 = vunpack.c.0.s8 %v8179
      %v8181 = vlaneseq
      %v8182 = vshrl.u32 %v8181, 7
      %v8183 = vsub.s32 %v8180, %v8182
      %v8184 = vrot.slane %v8177, %v8183
      %s8185 = scalar_lea.vmem %s14, 16
      %v8186 = vld [vmem:[%s8185] sm:$0xff]
      %v8187 = vld [vmem:[%s8185 + $0x8] sm:$0xff]
      %s8188 = scalar_lea.vmem %s15, 1
      %v8189 = vld [vmem:[%s8188] sm:$0x1]
      %v8191 = vlaneseq
      %v8192 = vshrl.u32 %v8191, 7
      %v8193 = vsub.s32 0, %v8192
      %v8194 = vrot.slane %v8189, %v8193
      %v8196 = vcombine.low %v7704, %v7718
      %v8197 = vcombine.low %v7726, %v7728
      %v8198 = vcombine.low %v7711, %v7725
      %v8199 = vcombine.low %v7727, %v7729
      %v8201 = vunpack.c.l.s4 1966171168
      %v8202 = vunpack.c.0.s8 %v8201
      %v8203 = vlaneseq
      %v8204 = vshrl.u32 %v8203, 7
      %v8205 = vsub.s32 %v8202, %v8204
      %v8206 = vrot.slane %v8196, %v8205
      %v8208 = vunpack.c.l.s4 1966171168
      %v8209 = vunpack.c.0.s8 %v8208
      %v8210 = vlaneseq
      %v8211 = vshrl.u32 %v8210, 7
      %v8212 = vsub.s32 %v8209, %v8211
      %v8213 = vrot.slane %v8197, %v8212
      %v8215 = vunpack.c.l.s4 1966171168
      %v8216 = vunpack.c.0.s8 %v8215
      %v8217 = vlaneseq
      %v8218 = vshrl.u32 %v8217, 7
      %v8219 = vsub.s32 %v8216, %v8218
      %v8220 = vrot.slane %v8198, %v8219
      %v8222 = vunpack.c.l.s4 1966171168
      %v8223 = vunpack.c.0.s8 %v8222
      %v8224 = vlaneseq
      %v8225 = vshrl.u32 %v8224, 7
      %v8226 = vsub.s32 %v8223, %v8225
      %v8227 = vrot.slane %v8199, %v8226
      %v8228 = vcombine.low %v8206, %v8213
      %v8229 = vcombine.low %v8220, %v8227
      %v8231 = vunpack.c.l.s4 1966171168
      %v8232 = vunpack.c.0.s8 %v8231
      %v8233 = vlaneseq
      %v8234 = vshrl.u32 %v8233, 7
      %v8235 = vsub.s32 %v8232, %v8234
      %v8236 = vrot.slane %v8228, %v8235
      %v8238 = vunpack.c.l.s4 1966171168
      %v8239 = vunpack.c.0.s8 %v8238
      %v8240 = vlaneseq
      %v8241 = vshrl.u32 %v8240, 7
      %v8242 = vsub.s32 %v8239, %v8241
      %v8243 = vrot.slane %v8229, %v8242
      %v8244 = vcombine.low %v8236, %v8243
      %v8245 = vcombine.low %v7743, %v7767
      %v8246 = vcombine.low %v7781, %v7789
      %v8247 = vcombine.low %v7791, %v7774
      %v8248 = vcombine.low %v7788, %v7790
      %v8250 = vunpack.c.l.s4 1966171168
      %v8251 = vunpack.c.0.s8 %v8250
      %v8252 = vlaneseq
      %v8253 = vshrl.u32 %v8252, 7
      %v8254 = vsub.s32 %v8251, %v8253
      %v8255 = vrot.slane %v8245, %v8254
      %v8257 = vunpack.c.l.s4 1966171168
      %v8258 = vunpack.c.0.s8 %v8257
      %v8259 = vlaneseq
      %v8260 = vshrl.u32 %v8259, 7
      %v8261 = vsub.s32 %v8258, %v8260
      %v8262 = vrot.slane %v8246, %v8261
      %v8264 = vunpack.c.l.s4 1966171168
      %v8265 = vunpack.c.0.s8 %v8264
      %v8266 = vlaneseq
      %v8267 = vshrl.u32 %v8266, 7
      %v8268 = vsub.s32 %v8265, %v8267
      %v8269 = vrot.slane %v8247, %v8268
      %v8271 = vunpack.c.l.s4 1966171168
      %v8272 = vunpack.c.0.s8 %v8271
      %v8273 = vlaneseq
      %v8274 = vshrl.u32 %v8273, 7
      %v8275 = vsub.s32 %v8272, %v8274
      %v8276 = vrot.slane %v8248, %v8275
      %v8277 = vcombine.low %v8255, %v8262
      %v8278 = vcombine.low %v8269, %v8276
      %v8280 = vunpack.c.l.s4 1966171168
      %v8281 = vunpack.c.0.s8 %v8280
      %v8282 = vlaneseq
      %v8283 = vshrl.u32 %v8282, 7
      %v8284 = vsub.s32 %v8281, %v8283
      %v8285 = vrot.slane %v8277, %v8284
      %v8287 = vunpack.c.l.s4 1966171168
      %v8288 = vunpack.c.0.s8 %v8287
      %v8289 = vlaneseq
      %v8290 = vshrl.u32 %v8289, 7
      %v8291 = vsub.s32 %v8288, %v8290
      %v8292 = vrot.slane %v8278, %v8291
      %v8293 = vcombine.low %v8285, %v8292
      %v8294 = vcombine.low %v7792, %v7806
      %v8295 = vcombine.low %v7830, %v7844
      %v8296 = vcombine.low %v7852, %v7854
      %v8297 = vcombine.low %v7837, %v7851
      %v8299 = vunpack.c.l.s4 1966171168
      %v8300 = vunpack.c.0.s8 %v8299
      %v8301 = vlaneseq
      %v8302 = vshrl.u32 %v8301, 7
      %v8303 = vsub.s32 %v8300, %v8302
      %v8304 = vrot.slane %v8294, %v8303
      %v8306 = vunpack.c.l.s4 1966171168
      %v8307 = vunpack.c.0.s8 %v8306
      %v8308 = vlaneseq
      %v8309 = vshrl.u32 %v8308, 7
      %v8310 = vsub.s32 %v8307, %v8309
      %v8311 = vrot.slane %v8295, %v8310
      %v8313 = vunpack.c.l.s4 1966171168
      %v8314 = vunpack.c.0.s8 %v8313
      %v8315 = vlaneseq
      %v8316 = vshrl.u32 %v8315, 7
      %v8317 = vsub.s32 %v8314, %v8316
      %v8318 = vrot.slane %v8296, %v8317
      %v8320 = vunpack.c.l.s4 1966171168
      %v8321 = vunpack.c.0.s8 %v8320
      %v8322 = vlaneseq
      %v8323 = vshrl.u32 %v8322, 7
      %v8324 = vsub.s32 %v8321, %v8323
      %v8325 = vrot.slane %v8297, %v8324
      %v8326 = vcombine.low %v8304, %v8311
      %v8327 = vcombine.low %v8318, %v8325
      %v8329 = vunpack.c.l.s4 1966171168
      %v8330 = vunpack.c.0.s8 %v8329
      %v8331 = vlaneseq
      %v8332 = vshrl.u32 %v8331, 7
      %v8333 = vsub.s32 %v8330, %v8332
      %v8334 = vrot.slane %v8326, %v8333
      %v8336 = vunpack.c.l.s4 1966171168
      %v8337 = vunpack.c.0.s8 %v8336
      %v8338 = vlaneseq
      %v8339 = vshrl.u32 %v8338, 7
      %v8340 = vsub.s32 %v8337, %v8339
      %v8341 = vrot.slane %v8327, %v8340
      %v8342 = vcombine.low %v8334, %v8341
      %v8343 = vcombine.low %v7853, %v7855
      %v8344 = vcombine.low %v7869, %v7893
      %v8345 = vcombine.low %v7907, %v7915
      %v8346 = vcombine.low %v7917, %v7900
      %v8348 = vunpack.c.l.s4 1966171168
      %v8349 = vunpack.c.0.s8 %v8348
      %v8350 = vlaneseq
      %v8351 = vshrl.u32 %v8350, 7
      %v8352 = vsub.s32 %v8349, %v8351
      %v8353 = vrot.slane %v8343, %v8352
      %v8355 = vunpack.c.l.s4 1966171168
      %v8356 = vunpack.c.0.s8 %v8355
      %v8357 = vlaneseq
      %v8358 = vshrl.u32 %v8357, 7
      %v8359 = vsub.s32 %v8356, %v8358
      %v8360 = vrot.slane %v8344, %v8359
      %v8362 = vunpack.c.l.s4 1966171168
      %v8363 = vunpack.c.0.s8 %v8362
      %v8364 = vlaneseq
      %v8365 = vshrl.u32 %v8364, 7
      %v8366 = vsub.s32 %v8363, %v8365
      %v8367 = vrot.slane %v8345, %v8366
      %v8369 = vunpack.c.l.s4 1966171168
      %v8370 = vunpack.c.0.s8 %v8369
      %v8371 = vlaneseq
      %v8372 = vshrl.u32 %v8371, 7
      %v8373 = vsub.s32 %v8370, %v8372
      %v8374 = vrot.slane %v8346, %v8373
      %v8375 = vcombine.low %v8353, %v8360
      %v8376 = vcombine.low %v8367, %v8374
      %v8378 = vunpack.c.l.s4 1966171168
      %v8379 = vunpack.c.0.s8 %v8378
      %v8380 = vlaneseq
      %v8381 = vshrl.u32 %v8380, 7
      %v8382 = vsub.s32 %v8379, %v8381
      %v8383 = vrot.slane %v8375, %v8382
      %v8385 = vunpack.c.l.s4 1966171168
      %v8386 = vunpack.c.0.s8 %v8385
      %v8387 = vlaneseq
      %v8388 = vshrl.u32 %v8387, 7
      %v8389 = vsub.s32 %v8386, %v8388
      %v8390 = vrot.slane %v8376, %v8389
      %v8391 = vcombine.low %v8383, %v8390
      %v8392 = vcombine.low %v7914, %v7916
      %v8393 = vcombine.low %v7918, %v7932
      %v8394 = vcombine.low %v7956, %v7970
      %v8395 = vcombine.low %v7978, %v7980
      %v8397 = vunpack.c.l.s4 1966171168
      %v8398 = vunpack.c.0.s8 %v8397
      %v8399 = vlaneseq
      %v8400 = vshrl.u32 %v8399, 7
      %v8401 = vsub.s32 %v8398, %v8400
      %v8402 = vrot.slane %v8392, %v8401
      %v8404 = vunpack.c.l.s4 1966171168
      %v8405 = vunpack.c.0.s8 %v8404
      %v8406 = vlaneseq
      %v8407 = vshrl.u32 %v8406, 7
      %v8408 = vsub.s32 %v8405, %v8407
      %v8409 = vrot.slane %v8393, %v8408
      %v8411 = vunpack.c.l.s4 1966171168
      %v8412 = vunpack.c.0.s8 %v8411
      %v8413 = vlaneseq
      %v8414 = vshrl.u32 %v8413, 7
      %v8415 = vsub.s32 %v8412, %v8414
      %v8416 = vrot.slane %v8394, %v8415
      %v8418 = vunpack.c.l.s4 1966171168
      %v8419 = vunpack.c.0.s8 %v8418
      %v8420 = vlaneseq
      %v8421 = vshrl.u32 %v8420, 7
      %v8422 = vsub.s32 %v8419, %v8421
      %v8423 = vrot.slane %v8395, %v8422
      %v8424 = vcombine.low %v8402, %v8409
      %v8425 = vcombine.low %v8416, %v8423
      %v8427 = vunpack.c.l.s4 1966171168
      %v8428 = vunpack.c.0.s8 %v8427
      %v8429 = vlaneseq
      %v8430 = vshrl.u32 %v8429, 7
      %v8431 = vsub.s32 %v8428, %v8430
      %v8432 = vrot.slane %v8424, %v8431
      %v8434 = vunpack.c.l.s4 1966171168
      %v8435 = vunpack.c.0.s8 %v8434
      %v8436 = vlaneseq
      %v8437 = vshrl.u32 %v8436, 7
      %v8438 = vsub.s32 %v8435, %v8437
      %v8439 = vrot.slane %v8425, %v8438
      %v8440 = vcombine.low %v8432, %v8439
      %v8441 = vcombine.low %v7963, %v7977
      %v8442 = vcombine.low %v7979, %v7981
      %v8443 = vcombine.low %v7995, %v8019
      %v8444 = vcombine.low %v8033, %v8041
      %v8446 = vunpack.c.l.s4 1966171168
      %v8447 = vunpack.c.0.s8 %v8446
      %v8448 = vlaneseq
      %v8449 = vshrl.u32 %v8448, 7
      %v8450 = vsub.s32 %v8447, %v8449
      %v8451 = vrot.slane %v8441, %v8450
      %v8453 = vunpack.c.l.s4 1966171168
      %v8454 = vunpack.c.0.s8 %v8453
      %v8455 = vlaneseq
      %v8456 = vshrl.u32 %v8455, 7
      %v8457 = vsub.s32 %v8454, %v8456
      %v8458 = vrot.slane %v8442, %v8457
      %v8460 = vunpack.c.l.s4 1966171168
      %v8461 = vunpack.c.0.s8 %v8460
      %v8462 = vlaneseq
      %v8463 = vshrl.u32 %v8462, 7
      %v8464 = vsub.s32 %v8461, %v8463
      %v8465 = vrot.slane %v8443, %v8464
      %v8467 = vunpack.c.l.s4 1966171168
      %v8468 = vunpack.c.0.s8 %v8467
      %v8469 = vlaneseq
      %v8470 = vshrl.u32 %v8469, 7
      %v8471 = vsub.s32 %v8468, %v8470
      %v8472 = vrot.slane %v8444, %v8471
      %v8473 = vcombine.low %v8451, %v8458
      %v8474 = vcombine.low %v8465, %v8472
      %v8476 = vunpack.c.l.s4 1966171168
      %v8477 = vunpack.c.0.s8 %v8476
      %v8478 = vlaneseq
      %v8479 = vshrl.u32 %v8478, 7
      %v8480 = vsub.s32 %v8477, %v8479
      %v8481 = vrot.slane %v8473, %v8480
      %v8483 = vunpack.c.l.s4 1966171168
      %v8484 = vunpack.c.0.s8 %v8483
      %v8485 = vlaneseq
      %v8486 = vshrl.u32 %v8485, 7
      %v8487 = vsub.s32 %v8484, %v8486
      %v8488 = vrot.slane %v8474, %v8487
      %v8489 = vcombine.low %v8481, %v8488
      %v8490 = vcombine.low %v8043, %v8026
      %v8491 = vcombine.low %v8040, %v8042
      %v8492 = vcombine.low %v8044, %v8058
      %v8493 = vcombine.low %v8082, %v8096
      %v8495 = vunpack.c.l.s4 1966171168
      %v8496 = vunpack.c.0.s8 %v8495
      %v8497 = vlaneseq
      %v8498 = vshrl.u32 %v8497, 7
      %v8499 = vsub.s32 %v8496, %v8498
      %v8500 = vrot.slane %v8490, %v8499
      %v8502 = vunpack.c.l.s4 1966171168
      %v8503 = vunpack.c.0.s8 %v8502
      %v8504 = vlaneseq
      %v8505 = vshrl.u32 %v8504, 7
      %v8506 = vsub.s32 %v8503, %v8505
      %v8507 = vrot.slane %v8491, %v8506
      %v8509 = vunpack.c.l.s4 1966171168
      %v8510 = vunpack.c.0.s8 %v8509
      %v8511 = vlaneseq
      %v8512 = vshrl.u32 %v8511, 7
      %v8513 = vsub.s32 %v8510, %v8512
      %v8514 = vrot.slane %v8492, %v8513
      %v8516 = vunpack.c.l.s4 1966171168
      %v8517 = vunpack.c.0.s8 %v8516
      %v8518 = vlaneseq
      %v8519 = vshrl.u32 %v8518, 7
      %v8520 = vsub.s32 %v8517, %v8519
      %v8521 = vrot.slane %v8493, %v8520
      %v8522 = vcombine.low %v8500, %v8507
      %v8523 = vcombine.low %v8514, %v8521
      %v8525 = vunpack.c.l.s4 1966171168
      %v8526 = vunpack.c.0.s8 %v8525
      %v8527 = vlaneseq
      %v8528 = vshrl.u32 %v8527, 7
      %v8529 = vsub.s32 %v8526, %v8528
      %v8530 = vrot.slane %v8522, %v8529
      %v8532 = vunpack.c.l.s4 1966171168
      %v8533 = vunpack.c.0.s8 %v8532
      %v8534 = vlaneseq
      %v8535 = vshrl.u32 %v8534, 7
      %v8536 = vsub.s32 %v8533, %v8535
      %v8537 = vrot.slane %v8523, %v8536
      %v8538 = vcombine.low %v8530, %v8537
      %v8539 = vcombine.low %v8104, %v8106
      %v8540 = vcombine.low %v8089, %v8103
      %v8541 = vcombine.low %v8105, %v8107
      %v8542 = vcombine.low %v8121, %v8145
      %v8544 = vunpack.c.l.s4 1966171168
      %v8545 = vunpack.c.0.s8 %v8544
      %v8546 = vlaneseq
      %v8547 = vshrl.u32 %v8546, 7
      %v8548 = vsub.s32 %v8545, %v8547
      %v8549 = vrot.slane %v8539, %v8548
      %v8551 = vunpack.c.l.s4 1966171168
      %v8552 = vunpack.c.0.s8 %v8551
      %v8553 = vlaneseq
      %v8554 = vshrl.u32 %v8553, 7
      %v8555 = vsub.s32 %v8552, %v8554
      %v8556 = vrot.slane %v8540, %v8555
      %v8558 = vunpack.c.l.s4 1966171168
      %v8559 = vunpack.c.0.s8 %v8558
      %v8560 = vlaneseq
      %v8561 = vshrl.u32 %v8560, 7
      %v8562 = vsub.s32 %v8559, %v8561
      %v8563 = vrot.slane %v8541, %v8562
      %v8565 = vunpack.c.l.s4 1966171168
      %v8566 = vunpack.c.0.s8 %v8565
      %v8567 = vlaneseq
      %v8568 = vshrl.u32 %v8567, 7
      %v8569 = vsub.s32 %v8566, %v8568
      %v8570 = vrot.slane %v8542, %v8569
      %v8571 = vcombine.low %v8549, %v8556
      %v8572 = vcombine.low %v8563, %v8570
      %v8574 = vunpack.c.l.s4 1966171168
      %v8575 = vunpack.c.0.s8 %v8574
      %v8576 = vlaneseq
      %v8577 = vshrl.u32 %v8576, 7
      %v8578 = vsub.s32 %v8575, %v8577
      %v8579 = vrot.slane %v8571, %v8578
      %v8581 = vunpack.c.l.s4 1966171168
      %v8582 = vunpack.c.0.s8 %v8581
      %v8583 = vlaneseq
      %v8584 = vshrl.u32 %v8583, 7
      %v8585 = vsub.s32 %v8582, %v8584
      %v8586 = vrot.slane %v8572, %v8585
      %v8587 = vcombine.low %v8579, %v8586
      %v8588 = vcombine.low %v8159, %v8167
      %v8589 = vcombine.low %v8169, %v8152
      %v8590 = vcombine.low %v8166, %v8168
      %v8591 = vcombine.low %v8170, %v8184
      %v8593 = vunpack.c.l.s4 1966171168
      %v8594 = vunpack.c.0.s8 %v8593
      %v8595 = vlaneseq
      %v8596 = vshrl.u32 %v8595, 7
      %v8597 = vsub.s32 %v8594, %v8596
      %v8598 = vrot.slane %v8588, %v8597
      %v8600 = vunpack.c.l.s4 1966171168
      %v8601 = vunpack.c.0.s8 %v8600
      %v8602 = vlaneseq
      %v8603 = vshrl.u32 %v8602, 7
      %v8604 = vsub.s32 %v8601, %v8603
      %v8605 = vrot.slane %v8589, %v8604
      %v8607 = vunpack.c.l.s4 1966171168
      %v8608 = vunpack.c.0.s8 %v8607
      %v8609 = vlaneseq
      %v8610 = vshrl.u32 %v8609, 7
      %v8611 = vsub.s32 %v8608, %v8610
      %v8612 = vrot.slane %v8590, %v8611
      %v8614 = vunpack.c.l.s4 1966171168
      %v8615 = vunpack.c.0.s8 %v8614
      %v8616 = vlaneseq
      %v8617 = vshrl.u32 %v8616, 7
      %v8618 = vsub.s32 %v8615, %v8617
      %v8619 = vrot.slane %v8591, %v8618
      %v8620 = vcombine.low %v8598, %v8605
      %v8621 = vcombine.low %v8612, %v8619
      %v8623 = vunpack.c.l.s4 1966171168
      %v8624 = vunpack.c.0.s8 %v8623
      %v8625 = vlaneseq
      %v8626 = vshrl.u32 %v8625, 7
      %v8627 = vsub.s32 %v8624, %v8626
      %v8628 = vrot.slane %v8620, %v8627
      %v8630 = vunpack.c.l.s4 1966171168
      %v8631 = vunpack.c.0.s8 %v8630
      %v8632 = vlaneseq
      %v8633 = vshrl.u32 %v8632, 7
      %v8634 = vsub.s32 %v8631, %v8633
      %v8635 = vrot.slane %v8621, %v8634
      %v8636 = vcombine.low %v8628, %v8635
      %v8637 = vsel %vm3104, %v8244, 0
      %v8639 = vsel %vm3104, %v8293, 0
      %v8641 = vsel %vm3104, %v8342, 0
      %v8643 = vsel %vm3104, %v8391, 0
      %v8645 = vsel %vm3104, %v8440, 0
      %v8647 = vsel %vm3104, %v8489, 0
      %v8649 = vsel %vm3104, %v8538, 0
      %v8651 = vsel %vm3104, %v8587, 0
      %v8653 = vsel %vm3104, %v8636, 0
      %8655 = vmatprep.subr.mxu0 0.0
      %8656 = vmatpush1.msra.mxu0 0.0
      %8657 = vmatprep.subr.mxu0 0.0
      %8658 = vmatpush1.msra.mxu0 0.0
      %8659 = vmatprep.subr.mxu0 0.0
      %8660 = vmatpush1.msra.mxu0 0.0
      %8661 = vmatprep.subr.mxu0 0.0
      %8662 = vmatpush1.msra.mxu0 0.0
      %8663 = vmatprep.subr.mxu0 0.0
      %8664 = vmatpush1.msra.mxu0 0.0
      %8665 = vmatprep.subr.mxu0 0.0
      %8666 = vmatpush1.msra.mxu0 0.0
      %8667 = vmatprep.subr.mxu0 0.0
      %8668 = vmatpush1.msra.mxu0 0.0
      %8669 = vmatprep.subr.mxu0 0.0
      %8670 = vmatpush1.msra.mxu0 0.0
      %8671 = vmatprep.subr.mxu0 0.0
      %8672 = vmatpush1.msra.mxu0 0.0
      %8673 = vmatprep.subr.mxu0 0.0
      %8674 = vmatpush1.msra.mxu0 0.0
      %8675 = vmatprep.subr.mxu0 0.0
      %8676 = vmatpush1.msra.mxu0 0.0
      %8677 = vmatprep.subr.mxu0 0.0
      %8678 = vmatpush1.msra.mxu0 0.0
      %8679 = vmatprep.subr.mxu0 0.0
      %8680 = vmatpush1.msra.mxu0 0.0
      %8681 = vmatprep.subr.mxu0 0.0
      %8682 = vmatpush1.msra.mxu0 0.0
      %8683 = vmatprep.subr.mxu0 0.0
      %8684 = vmatpush1.msra.mxu0 %v8187
      %8685 = vmatprep.subr.mxu0 0.0
      %8686 = vmatpush1.msra.mxu0 %v8186
      %8687 = vmatprep.subr.mxu0 0.0
      %8688 = vmatpush2.msra.mxu0 0.0
      %8689 = vmatprep.subr.mxu0 0.0
      %8690 = vmatpush2.msra.mxu0 0.0
      %8691 = vmatprep.subr.mxu0 0.0
      %8692 = vmatpush2.msra.mxu0 0.0
      %8693 = vmatprep.subr.mxu0 0.0
      %8694 = vmatpush2.msra.mxu0 0.0
      %8695 = vmatprep.subr.mxu0 0.0
      %8696 = vmatpush2.msra.mxu0 0.0
      %8697 = vmatprep.subr.mxu0 0.0
      %8698 = vmatpush2.msra.mxu0 0.0
      %8699 = vmatprep.subr.mxu0 0.0
      %8700 = vmatpush2.msra.mxu0 0.0
      %8701 = vmatprep.subr.mxu0 0.0
      %8702 = vmatpush2.msra.mxu0 0.0
      %8703 = vmatprep.subr.mxu0 0.0
      %8704 = vmatpush2.msra.mxu0 0.0
      %8705 = vmatprep.subr.mxu0 0.0
      %8706 = vmatpush2.msra.mxu0 0.0
      %8707 = vmatprep.subr.mxu0 0.0
      %8708 = vmatpush2.msra.mxu0 0.0
      %8709 = vmatprep.subr.mxu0 0.0
      %8710 = vmatpush2.msra.mxu0 0.0
      %8711 = vmatprep.subr.mxu0 0.0
      %8712 = vmatpush2.msra.mxu0 0.0
      %8713 = vmatprep.subr.mxu0 0.0
      %8714 = vmatpush2.msra.mxu0 0.0
      %8715 = vmatprep.subr.mxu0 0.0
      %8716 = vmatpush2.msra.mxu0 0.0
      %8717 = vmatprep.subr.mxu0 0.0
      %8718 = vmatpush2.msra.mxu0 0.0
      %8719 = vmatprep.mubr.f32.mxu0 0.0
      %8720 = vmatmul.mubr.f32.gmra.mxu0 %v8637
      %v8721 = vpop.f32.mrf.mxu0
      %v8722 = vadd.f32 %v8194, %v8721
      %v8723 = vpop.f32.mrf.mxu0
      %8724 = vmatprep.mubr.f32.mxu0 0.0
      %8725 = vmatmul.mubr.f32.gmra.mxu0 %v8639
      %v8726 = vpop.f32.mrf.mxu0
      %v8727 = vadd.f32 %v8194, %v8726
      %v8728 = vpop.f32.mrf.mxu0
      %8729 = vmatprep.mubr.f32.mxu0 0.0
      %8730 = vmatmul.mubr.f32.gmra.mxu0 %v8641
      %v8731 = vpop.f32.mrf.mxu0
      %v8732 = vadd.f32 %v8194, %v8731
      %v8733 = vpop.f32.mrf.mxu0
      %8734 = vmatprep.mubr.f32.mxu0 0.0
      %8735 = vmatmul.mubr.f32.gmra.mxu0 %v8643
      %v8736 = vpop.f32.mrf.mxu0
      %v8737 = vadd.f32 %v8194, %v8736
      %v8738 = vpop.f32.mrf.mxu0
      %8739 = vmatprep.mubr.f32.mxu0 0.0
      %8740 = vmatmul.mubr.f32.gmra.mxu0 %v8645
      %v8741 = vpop.f32.mrf.mxu0
      %v8742 = vadd.f32 %v8194, %v8741
      %v8743 = vpop.f32.mrf.mxu0
      %8744 = vmatprep.mubr.f32.mxu0 0.0
      %8745 = vmatmul.mubr.f32.gmra.mxu0 %v8647
      %v8746 = vpop.f32.mrf.mxu0
      %v8747 = vadd.f32 %v8194, %v8746
      %v8748 = vpop.f32.mrf.mxu0
      %8749 = vmatprep.mubr.f32.mxu0 0.0
      %8750 = vmatmul.mubr.f32.gmra.mxu0 %v8649
      %v8751 = vpop.f32.mrf.mxu0
      %v8752 = vadd.f32 %v8194, %v8751
      %v8753 = vpop.f32.mrf.mxu0
      %8754 = vmatprep.mubr.f32.mxu0 0.0
      %8755 = vmatmul.mubr.f32.gmra.mxu0 %v8651
      %v8756 = vpop.f32.mrf.mxu0
      %v8757 = vadd.f32 %v8194, %v8756
      %v8758 = vpop.f32.mrf.mxu0
      %8759 = vmatprep.mubr.f32.mxu0 0.0
      %8760 = vmatmul.mubr.f32.gmra.mxu0 %v8653
      %v8761 = vpop.f32.mrf.mxu0
      %v8762 = vadd.f32 %v8194, %v8761
      %v8763 = vpop.f32.mrf.mxu0
      %8764 = vdwg.mxu0
      %v8765 = vmul.f32 %v8722, %v8722
      %v8766 = vmul.f32 %v8727, %v8727
      %v8767 = vmul.f32 %v8732, %v8732
      %v8768 = vmul.f32 %v8737, %v8737
      %v8769 = vmul.f32 %v8742, %v8742
      %v8770 = vmul.f32 %v8747, %v8747
      %v8771 = vmul.f32 %v8752, %v8752
      %v8772 = vmul.f32 %v8757, %v8757
      %v8773 = vmul.f32 %v8762, %v8762
      %v8774 = vmul.f32 %v8722, %v8765
      %v8775 = vmul.f32 %v8727, %v8766
      %v8776 = vmul.f32 %v8732, %v8767
      %v8777 = vmul.f32 %v8737, %v8768
      %v8778 = vmul.f32 %v8742, %v8769
      %v8779 = vmul.f32 %v8747, %v8770
      %v8780 = vmul.f32 %v8752, %v8771
      %v8781 = vmul.f32 %v8757, %v8772
      %v8782 = vmul.f32 %v8762, %v8773
      %v8783 = vmul.f32 %v8774, 0.044715
      %v8784 = vmul.f32 %v8775, 0.044715
      %v8785 = vmul.f32 %v8776, 0.044715
      %v8786 = vmul.f32 %v8777, 0.044715
      %v8787 = vmul.f32 %v8778, 0.044715
      %v8788 = vmul.f32 %v8779, 0.044715
      %v8789 = vmul.f32 %v8780, 0.044715
      %v8790 = vmul.f32 %v8781, 0.044715
      %v8791 = vmul.f32 %v8782, 0.044715
      %v8792 = vadd.f32 %v8722, %v8783
      %v8793 = vadd.f32 %v8727, %v8784
      %v8794 = vadd.f32 %v8732, %v8785
      %v8795 = vadd.f32 %v8737, %v8786
      %v8796 = vadd.f32 %v8742, %v8787
      %v8797 = vadd.f32 %v8747, %v8788
      %v8798 = vadd.f32 %v8752, %v8789
      %v8799 = vadd.f32 %v8757, %v8790
      %v8800 = vadd.f32 %v8762, %v8791
      %v8801 = vmul.f32 %v8792, 0.7978846
      %v8802 = vmul.f32 %v8793, 0.7978846
      %v8803 = vmul.f32 %v8794, 0.7978846
      %v8804 = vmul.f32 %v8795, 0.7978846
      %v8805 = vmul.f32 %v8796, 0.7978846
      %v8806 = vmul.f32 %v8797, 0.7978846
      %v8807 = vmul.f32 %v8798, 0.7978846
      %v8808 = vmul.f32 %v8799, 0.7978846
      %v8809 = vmul.f32 %v8800, 0.7978846
      %v8810 = vtanh.pop %v8801
      %v8811 = vtanh.pop %v8802
      %v8812 = vtanh.pop %v8803
      %v8813 = vtanh.pop %v8804
      %v8814 = vtanh.pop %v8805
      %v8815 = vtanh.pop %v8806
      %v8816 = vtanh.pop %v8807
      %v8817 = vtanh.pop %v8808
      %v8818 = vtanh.pop %v8809
      %v8819 = vadd.f32 %v8810, 1.0
      %v8820 = vadd.f32 %v8811, 1.0
      %v8821 = vadd.f32 %v8812, 1.0
      %v8822 = vadd.f32 %v8813, 1.0
      %v8823 = vadd.f32 %v8814, 1.0
      %v8824 = vadd.f32 %v8815, 1.0
      %v8825 = vadd.f32 %v8816, 1.0
      %v8826 = vadd.f32 %v8817, 1.0
      %v8827 = vadd.f32 %v8818, 1.0
      %v8828 = vmul.f32 %v8819, 0.5
      %v8829 = vmul.f32 %v8820, 0.5
      %v8830 = vmul.f32 %v8821, 0.5
      %v8831 = vmul.f32 %v8822, 0.5
      %v8832 = vmul.f32 %v8823, 0.5
      %v8833 = vmul.f32 %v8824, 0.5
      %v8834 = vmul.f32 %v8825, 0.5
      %v8835 = vmul.f32 %v8826, 0.5
      %v8836 = vmul.f32 %v8827, 0.5
      %v8837 = vmul.f32 %v8722, %v8828
      %v8838 = vmul.f32 %v8727, %v8829
      %v8839 = vmul.f32 %v8732, %v8830
      %v8840 = vmul.f32 %v8737, %v8831
      %v8841 = vmul.f32 %v8742, %v8832
      %v8842 = vmul.f32 %v8747, %v8833
      %v8843 = vmul.f32 %v8752, %v8834
      %v8844 = vmul.f32 %v8757, %v8835
      %v8845 = vmul.f32 %v8762, %v8836
      %s8846 = scalar_lea.vmem %s16, 32
      %v8847 = vld [vmem:[%s8846] sm:$0xff]
      %v8848 = vld [vmem:[%s8846 + $0x8] sm:$0xff]
      %v8849 = vld [vmem:[%s8846 + $0x10] sm:$0xff]
      %v8850 = vld [vmem:[%s8846 + $0x18] sm:$0xff]
      %s8851 = scalar_lea.vmem %s17, 1
      %v8852 = vld [vmem:[%s8851] sm:$0x1]
      %v8854 = vlaneseq
      %v8855 = vshrl.u32 %v8854, 7
      %v8856 = vsub.s32 0, %v8855
      %v8857 = vrot.slane %v8852, %v8856
      %v8860 = vsel %vm5546, %v8837, 0
      %v8863 = vsel %vm5546, %v8838, 0
      %v8866 = vsel %vm5546, %v8839, 0
      %v8869 = vsel %vm5546, %v8840, 0
      %v8872 = vsel %vm5546, %v8841, 0
      %v8875 = vsel %vm5546, %v8842, 0
      %v8878 = vsel %vm5546, %v8843, 0
      %v8881 = vsel %vm5546, %v8844, 0
      %v8884 = vsel %vm5546, %v8845, 0
      %8886 = vmatprep.subr.mxu0 0.0
      %8887 = vmatpush1.msra.mxu0 0.0
      %8888 = vmatprep.subr.mxu0 0.0
      %8889 = vmatpush1.msra.mxu0 0.0
      %8890 = vmatprep.subr.mxu0 0.0
      %8891 = vmatpush1.msra.mxu0 0.0
      %8892 = vmatprep.subr.mxu0 0.0
      %8893 = vmatpush1.msra.mxu0 0.0
      %8894 = vmatprep.subr.mxu0 0.0
      %8895 = vmatpush1.msra.mxu0 0.0
      %8896 = vmatprep.subr.mxu0 0.0
      %8897 = vmatpush1.msra.mxu0 0.0
      %8898 = vmatprep.subr.mxu0 0.0
      %8899 = vmatpush1.msra.mxu0 0.0
      %8900 = vmatprep.subr.mxu0 0.0
      %8901 = vmatpush1.msra.mxu0 0.0
      %8902 = vmatprep.subr.mxu0 0.0
      %8903 = vmatpush1.msra.mxu0 0.0
      %8904 = vmatprep.subr.mxu0 0.0
      %8905 = vmatpush1.msra.mxu0 0.0
      %8906 = vmatprep.subr.mxu0 0.0
      %8907 = vmatpush1.msra.mxu0 0.0
      %8908 = vmatprep.subr.mxu0 0.0
      %8909 = vmatpush1.msra.mxu0 0.0
      %8910 = vmatprep.subr.mxu0 0.0
      %8911 = vmatpush1.msra.mxu0 %v8850
      %8912 = vmatprep.subr.mxu0 0.0
      %8913 = vmatpush1.msra.mxu0 %v8849
      %8914 = vmatprep.subr.mxu0 0.0
      %8915 = vmatpush1.msra.mxu0 %v8848
      %8916 = vmatprep.subr.mxu0 0.0
      %8917 = vmatpush1.msra.mxu0 %v8847
      %8918 = vmatprep.subr.mxu0 0.0
      %8919 = vmatpush2.msra.mxu0 0.0
      %8920 = vmatprep.subr.mxu0 0.0
      %8921 = vmatpush2.msra.mxu0 0.0
      %8922 = vmatprep.subr.mxu0 0.0
      %8923 = vmatpush2.msra.mxu0 0.0
      %8924 = vmatprep.subr.mxu0 0.0
      %8925 = vmatpush2.msra.mxu0 0.0
      %8926 = vmatprep.subr.mxu0 0.0
      %8927 = vmatpush2.msra.mxu0 0.0
      %8928 = vmatprep.subr.mxu0 0.0
      %8929 = vmatpush2.msra.mxu0 0.0
      %8930 = vmatprep.subr.mxu0 0.0
      %8931 = vmatpush2.msra.mxu0 0.0
      %8932 = vmatprep.subr.mxu0 0.0
      %8933 = vmatpush2.msra.mxu0 0.0
      %8934 = vmatprep.subr.mxu0 0.0
      %8935 = vmatpush2.msra.mxu0 0.0
      %8936 = vmatprep.subr.mxu0 0.0
      %8937 = vmatpush2.msra.mxu0 0.0
      %8938 = vmatprep.subr.mxu0 0.0
      %8939 = vmatpush2.msra.mxu0 0.0
      %8940 = vmatprep.subr.mxu0 0.0
      %8941 = vmatpush2.msra.mxu0 0.0
      %8942 = vmatprep.subr.mxu0 0.0
      %8943 = vmatpush2.msra.mxu0 0.0
      %8944 = vmatprep.subr.mxu0 0.0
      %8945 = vmatpush2.msra.mxu0 0.0
      %8946 = vmatprep.subr.mxu0 0.0
      %8947 = vmatpush2.msra.mxu0 0.0
      %8948 = vmatprep.subr.mxu0 0.0
      %8949 = vmatpush2.msra.mxu0 0.0
      %8950 = vmatprep.mubr.f32.mxu0 0.0
      %8951 = vmatmul.mubr.f32.gmra.mxu0 %v8860
      %v8952 = vpop.f32.mrf.mxu0
      %v8953 = vadd.f32 %v8857, %v8952
      %v8954 = vpop.f32.mrf.mxu0
      %8955 = vmatprep.mubr.f32.mxu0 0.0
      %8956 = vmatmul.mubr.f32.gmra.mxu0 %v8863
      %v8957 = vpop.f32.mrf.mxu0
      %v8958 = vadd.f32 %v8857, %v8957
      %v8959 = vpop.f32.mrf.mxu0
      %8960 = vmatprep.mubr.f32.mxu0 0.0
      %8961 = vmatmul.mubr.f32.gmra.mxu0 %v8866
      %v8962 = vpop.f32.mrf.mxu0
      %v8963 = vadd.f32 %v8857, %v8962
      %v8964 = vpop.f32.mrf.mxu0
      %8965 = vmatprep.mubr.f32.mxu0 0.0
      %8966 = vmatmul.mubr.f32.gmra.mxu0 %v8869
      %v8967 = vpop.f32.mrf.mxu0
      %v8968 = vadd.f32 %v8857, %v8967
      %v8969 = vpop.f32.mrf.mxu0
      %8970 = vmatprep.mubr.f32.mxu0 0.0
      %8971 = vmatmul.mubr.f32.gmra.mxu0 %v8872
      %v8972 = vpop.f32.mrf.mxu0
      %v8973 = vadd.f32 %v8857, %v8972
      %v8974 = vpop.f32.mrf.mxu0
      %8975 = vmatprep.mubr.f32.mxu0 0.0
      %8976 = vmatmul.mubr.f32.gmra.mxu0 %v8875
      %v8977 = vpop.f32.mrf.mxu0
      %v8978 = vadd.f32 %v8857, %v8977
      %v8979 = vpop.f32.mrf.mxu0
      %8980 = vmatprep.mubr.f32.mxu0 0.0
      %8981 = vmatmul.mubr.f32.gmra.mxu0 %v8878
      %v8982 = vpop.f32.mrf.mxu0
      %v8983 = vadd.f32 %v8857, %v8982
      %v8984 = vpop.f32.mrf.mxu0
      %8985 = vmatprep.mubr.f32.mxu0 0.0
      %8986 = vmatmul.mubr.f32.gmra.mxu0 %v8881
      %v8987 = vpop.f32.mrf.mxu0
      %v8988 = vadd.f32 %v8857, %v8987
      %v8989 = vpop.f32.mrf.mxu0
      %8990 = vmatprep.mubr.f32.mxu0 0.0
      %8991 = vmatmul.mubr.f32.gmra.mxu0 %v8884
      %v8992 = vpop.f32.mrf.mxu0
      %v8993 = vadd.f32 %v8857, %v8992
      %v8994 = vpop.f32.mrf.mxu0
      %8995 = vdwg.mxu0
      %s8996 = scalar_lea.vmem %s18, 1
      %v8997 = vld [vmem:[%s8996] sm:$0x1]
      %v8999 = vlaneseq
      %v9000 = vshrl.u32 %v8999, 7
      %v9001 = vsub.s32 0, %v9000
      %v9002 = vrot.slane %v8997, %v9001
      %v9004 = vmul.f32 %v8953, %v9002
      %v9005 = vmul.f32 %v8958, %v9002
      %v9006 = vmul.f32 %v8963, %v9002
      %v9007 = vmul.f32 %v8968, %v9002
      %v9008 = vmul.f32 %v8973, %v9002
      %v9009 = vmul.f32 %v8978, %v9002
      %v9010 = vmul.f32 %v8983, %v9002
      %v9011 = vmul.f32 %v8988, %v9002
      %v9012 = vmul.f32 %v8993, %v9002
      %v9022 = vcombine.high %v9004, %v9004
      %v9024 = vunpack.c.l.s4 1966171168
      %v9025 = vunpack.c.0.s8 %v9024
      %v9026 = vlaneseq
      %v9027 = vshrl.u32 %v9026, 7
      %v9028 = vsub.s32 %v9025, %v9027
      %v9029 = vrot.slane %v9004, %v9028
      %v9031 = vunpack.c.l.s4 1966171168
      %v9032 = vunpack.c.0.s8 %v9031
      %v9033 = vlaneseq
      %v9034 = vshrl.u32 %v9033, 7
      %v9035 = vsub.s32 %v9032, %v9034
      %v9036 = vrot.slane %v9022, %v9035
      %v9037 = vcombine.high %v9029, %v9029
      %v9038 = vcombine.high %v9036, %v9036
      %v9040 = vunpack.c.l.s4 1966171168
      %v9041 = vunpack.c.0.s8 %v9040
      %v9042 = vlaneseq
      %v9043 = vshrl.u32 %v9042, 7
      %v9044 = vsub.s32 %v9041, %v9043
      %v9045 = vrot.slane %v9029, %v9044
      %v9047 = vunpack.c.l.s4 1966171168
      %v9048 = vunpack.c.0.s8 %v9047
      %v9049 = vlaneseq
      %v9050 = vshrl.u32 %v9049, 7
      %v9051 = vsub.s32 %v9048, %v9050
      %v9052 = vrot.slane %v9036, %v9051
      %v9054 = vunpack.c.l.s4 1966171168
      %v9055 = vunpack.c.0.s8 %v9054
      %v9056 = vlaneseq
      %v9057 = vshrl.u32 %v9056, 7
      %v9058 = vsub.s32 %v9055, %v9057
      %v9059 = vrot.slane %v9037, %v9058
      %v9061 = vunpack.c.l.s4 1966171168
      %v9062 = vunpack.c.0.s8 %v9061
      %v9063 = vlaneseq
      %v9064 = vshrl.u32 %v9063, 7
      %v9065 = vsub.s32 %v9062, %v9064
      %v9066 = vrot.slane %v9038, %v9065
      %v9067 = vcombine.high %v9045, %v9045
      %v9068 = vcombine.high %v9052, %v9052
      %v9069 = vcombine.high %v9059, %v9059
      %v9070 = vcombine.high %v9066, %v9066
      %v9071 = vcombine.high %v9005, %v9005
      %v9073 = vunpack.c.l.s4 1966171168
      %v9074 = vunpack.c.0.s8 %v9073
      %v9075 = vlaneseq
      %v9076 = vshrl.u32 %v9075, 7
      %v9077 = vsub.s32 %v9074, %v9076
      %v9078 = vrot.slane %v9005, %v9077
      %v9080 = vunpack.c.l.s4 1966171168
      %v9081 = vunpack.c.0.s8 %v9080
      %v9082 = vlaneseq
      %v9083 = vshrl.u32 %v9082, 7
      %v9084 = vsub.s32 %v9081, %v9083
      %v9085 = vrot.slane %v9071, %v9084
      %v9086 = vcombine.high %v9078, %v9078
      %v9087 = vcombine.high %v9085, %v9085
      %v9089 = vunpack.c.l.s4 1966171168
      %v9090 = vunpack.c.0.s8 %v9089
      %v9091 = vlaneseq
      %v9092 = vshrl.u32 %v9091, 7
      %v9093 = vsub.s32 %v9090, %v9092
      %v9094 = vrot.slane %v9078, %v9093
      %v9096 = vunpack.c.l.s4 1966171168
      %v9097 = vunpack.c.0.s8 %v9096
      %v9098 = vlaneseq
      %v9099 = vshrl.u32 %v9098, 7
      %v9100 = vsub.s32 %v9097, %v9099
      %v9101 = vrot.slane %v9085, %v9100
      %v9103 = vunpack.c.l.s4 1966171168
      %v9104 = vunpack.c.0.s8 %v9103
      %v9105 = vlaneseq
      %v9106 = vshrl.u32 %v9105, 7
      %v9107 = vsub.s32 %v9104, %v9106
      %v9108 = vrot.slane %v9086, %v9107
      %v9110 = vunpack.c.l.s4 1966171168
      %v9111 = vunpack.c.0.s8 %v9110
      %v9112 = vlaneseq
      %v9113 = vshrl.u32 %v9112, 7
      %v9114 = vsub.s32 %v9111, %v9113
      %v9115 = vrot.slane %v9087, %v9114
      %v9116 = vcombine.high %v9094, %v9094
      %v9117 = vcombine.high %v9101, %v9101
      %v9118 = vcombine.high %v9108, %v9108
      %v9119 = vcombine.high %v9115, %v9115
      %v9120 = vcombine.high %v9006, %v9006
      %v9122 = vunpack.c.l.s4 1966171168
      %v9123 = vunpack.c.0.s8 %v9122
      %v9124 = vlaneseq
      %v9125 = vshrl.u32 %v9124, 7
      %v9126 = vsub.s32 %v9123, %v9125
      %v9127 = vrot.slane %v9006, %v9126
      %v9129 = vunpack.c.l.s4 1966171168
      %v9130 = vunpack.c.0.s8 %v9129
      %v9131 = vlaneseq
      %v9132 = vshrl.u32 %v9131, 7
      %v9133 = vsub.s32 %v9130, %v9132
      %v9134 = vrot.slane %v9120, %v9133
      %v9135 = vcombine.high %v9127, %v9127
      %v9136 = vcombine.high %v9134, %v9134
      %v9138 = vunpack.c.l.s4 1966171168
      %v9139 = vunpack.c.0.s8 %v9138
      %v9140 = vlaneseq
      %v9141 = vshrl.u32 %v9140, 7
      %v9142 = vsub.s32 %v9139, %v9141
      %v9143 = vrot.slane %v9127, %v9142
      %v9145 = vunpack.c.l.s4 1966171168
      %v9146 = vunpack.c.0.s8 %v9145
      %v9147 = vlaneseq
      %v9148 = vshrl.u32 %v9147, 7
      %v9149 = vsub.s32 %v9146, %v9148
      %v9150 = vrot.slane %v9134, %v9149
      %v9152 = vunpack.c.l.s4 1966171168
      %v9153 = vunpack.c.0.s8 %v9152
      %v9154 = vlaneseq
      %v9155 = vshrl.u32 %v9154, 7
      %v9156 = vsub.s32 %v9153, %v9155
      %v9157 = vrot.slane %v9135, %v9156
      %v9159 = vunpack.c.l.s4 1966171168
      %v9160 = vunpack.c.0.s8 %v9159
      %v9161 = vlaneseq
      %v9162 = vshrl.u32 %v9161, 7
      %v9163 = vsub.s32 %v9160, %v9162
      %v9164 = vrot.slane %v9136, %v9163
      %v9165 = vcombine.high %v9143, %v9143
      %v9166 = vcombine.high %v9150, %v9150
      %v9167 = vcombine.high %v9157, %v9157
      %v9168 = vcombine.high %v9164, %v9164
      %v9169 = vcombine.high %v9007, %v9007
      %v9171 = vunpack.c.l.s4 1966171168
      %v9172 = vunpack.c.0.s8 %v9171
      %v9173 = vlaneseq
      %v9174 = vshrl.u32 %v9173, 7
      %v9175 = vsub.s32 %v9172, %v9174
      %v9176 = vrot.slane %v9007, %v9175
      %v9178 = vunpack.c.l.s4 1966171168
      %v9179 = vunpack.c.0.s8 %v9178
      %v9180 = vlaneseq
      %v9181 = vshrl.u32 %v9180, 7
      %v9182 = vsub.s32 %v9179, %v9181
      %v9183 = vrot.slane %v9169, %v9182
      %v9184 = vcombine.high %v9176, %v9176
      %v9185 = vcombine.high %v9183, %v9183
      %v9187 = vunpack.c.l.s4 1966171168
      %v9188 = vunpack.c.0.s8 %v9187
      %v9189 = vlaneseq
      %v9190 = vshrl.u32 %v9189, 7
      %v9191 = vsub.s32 %v9188, %v9190
      %v9192 = vrot.slane %v9176, %v9191
      %v9194 = vunpack.c.l.s4 1966171168
      %v9195 = vunpack.c.0.s8 %v9194
      %v9196 = vlaneseq
      %v9197 = vshrl.u32 %v9196, 7
      %v9198 = vsub.s32 %v9195, %v9197
      %v9199 = vrot.slane %v9183, %v9198
      %v9201 = vunpack.c.l.s4 1966171168
      %v9202 = vunpack.c.0.s8 %v9201
      %v9203 = vlaneseq
      %v9204 = vshrl.u32 %v9203, 7
      %v9205 = vsub.s32 %v9202, %v9204
      %v9206 = vrot.slane %v9184, %v9205
      %v9208 = vunpack.c.l.s4 1966171168
      %v9209 = vunpack.c.0.s8 %v9208
      %v9210 = vlaneseq
      %v9211 = vshrl.u32 %v9210, 7
      %v9212 = vsub.s32 %v9209, %v9211
      %v9213 = vrot.slane %v9185, %v9212
      %v9214 = vcombine.high %v9192, %v9192
      %v9215 = vcombine.high %v9199, %v9199
      %v9216 = vcombine.high %v9206, %v9206
      %v9217 = vcombine.high %v9213, %v9213
      %v9218 = vcombine.high %v9008, %v9008
      %v9220 = vunpack.c.l.s4 1966171168
      %v9221 = vunpack.c.0.s8 %v9220
      %v9222 = vlaneseq
      %v9223 = vshrl.u32 %v9222, 7
      %v9224 = vsub.s32 %v9221, %v9223
      %v9225 = vrot.slane %v9008, %v9224
      %v9227 = vunpack.c.l.s4 1966171168
      %v9228 = vunpack.c.0.s8 %v9227
      %v9229 = vlaneseq
      %v9230 = vshrl.u32 %v9229, 7
      %v9231 = vsub.s32 %v9228, %v9230
      %v9232 = vrot.slane %v9218, %v9231
      %v9233 = vcombine.high %v9225, %v9225
      %v9234 = vcombine.high %v9232, %v9232
      %v9236 = vunpack.c.l.s4 1966171168
      %v9237 = vunpack.c.0.s8 %v9236
      %v9238 = vlaneseq
      %v9239 = vshrl.u32 %v9238, 7
      %v9240 = vsub.s32 %v9237, %v9239
      %v9241 = vrot.slane %v9225, %v9240
      %v9243 = vunpack.c.l.s4 1966171168
      %v9244 = vunpack.c.0.s8 %v9243
      %v9245 = vlaneseq
      %v9246 = vshrl.u32 %v9245, 7
      %v9247 = vsub.s32 %v9244, %v9246
      %v9248 = vrot.slane %v9232, %v9247
      %v9250 = vunpack.c.l.s4 1966171168
      %v9251 = vunpack.c.0.s8 %v9250
      %v9252 = vlaneseq
      %v9253 = vshrl.u32 %v9252, 7
      %v9254 = vsub.s32 %v9251, %v9253
      %v9255 = vrot.slane %v9233, %v9254
      %v9257 = vunpack.c.l.s4 1966171168
      %v9258 = vunpack.c.0.s8 %v9257
      %v9259 = vlaneseq
      %v9260 = vshrl.u32 %v9259, 7
      %v9261 = vsub.s32 %v9258, %v9260
      %v9262 = vrot.slane %v9234, %v9261
      %v9263 = vcombine.high %v9241, %v9241
      %v9264 = vcombine.high %v9248, %v9248
      %v9265 = vcombine.high %v9255, %v9255
      %v9266 = vcombine.high %v9262, %v9262
      %v9267 = vcombine.high %v9009, %v9009
      %v9269 = vunpack.c.l.s4 1966171168
      %v9270 = vunpack.c.0.s8 %v9269
      %v9271 = vlaneseq
      %v9272 = vshrl.u32 %v9271, 7
      %v9273 = vsub.s32 %v9270, %v9272
      %v9274 = vrot.slane %v9009, %v9273
      %v9276 = vunpack.c.l.s4 1966171168
      %v9277 = vunpack.c.0.s8 %v9276
      %v9278 = vlaneseq
      %v9279 = vshrl.u32 %v9278, 7
      %v9280 = vsub.s32 %v9277, %v9279
      %v9281 = vrot.slane %v9267, %v9280
      %v9282 = vcombine.high %v9274, %v9274
      %v9283 = vcombine.high %v9281, %v9281
      %v9285 = vunpack.c.l.s4 1966171168
      %v9286 = vunpack.c.0.s8 %v9285
      %v9287 = vlaneseq
      %v9288 = vshrl.u32 %v9287, 7
      %v9289 = vsub.s32 %v9286, %v9288
      %v9290 = vrot.slane %v9274, %v9289
      %v9292 = vunpack.c.l.s4 1966171168
      %v9293 = vunpack.c.0.s8 %v9292
      %v9294 = vlaneseq
      %v9295 = vshrl.u32 %v9294, 7
      %v9296 = vsub.s32 %v9293, %v9295
      %v9297 = vrot.slane %v9281, %v9296
      %v9299 = vunpack.c.l.s4 1966171168
      %v9300 = vunpack.c.0.s8 %v9299
      %v9301 = vlaneseq
      %v9302 = vshrl.u32 %v9301, 7
      %v9303 = vsub.s32 %v9300, %v9302
      %v9304 = vrot.slane %v9282, %v9303
      %v9306 = vunpack.c.l.s4 1966171168
      %v9307 = vunpack.c.0.s8 %v9306
      %v9308 = vlaneseq
      %v9309 = vshrl.u32 %v9308, 7
      %v9310 = vsub.s32 %v9307, %v9309
      %v9311 = vrot.slane %v9283, %v9310
      %v9312 = vcombine.high %v9290, %v9290
      %v9313 = vcombine.high %v9297, %v9297
      %v9314 = vcombine.high %v9304, %v9304
      %v9315 = vcombine.high %v9311, %v9311
      %v9316 = vcombine.high %v9010, %v9010
      %v9318 = vunpack.c.l.s4 1966171168
      %v9319 = vunpack.c.0.s8 %v9318
      %v9320 = vlaneseq
      %v9321 = vshrl.u32 %v9320, 7
      %v9322 = vsub.s32 %v9319, %v9321
      %v9323 = vrot.slane %v9010, %v9322
      %v9325 = vunpack.c.l.s4 1966171168
      %v9326 = vunpack.c.0.s8 %v9325
      %v9327 = vlaneseq
      %v9328 = vshrl.u32 %v9327, 7
      %v9329 = vsub.s32 %v9326, %v9328
      %v9330 = vrot.slane %v9316, %v9329
      %v9331 = vcombine.high %v9323, %v9323
      %v9332 = vcombine.high %v9330, %v9330
      %v9334 = vunpack.c.l.s4 1966171168
      %v9335 = vunpack.c.0.s8 %v9334
      %v9336 = vlaneseq
      %v9337 = vshrl.u32 %v9336, 7
      %v9338 = vsub.s32 %v9335, %v9337
      %v9339 = vrot.slane %v9323, %v9338
      %v9341 = vunpack.c.l.s4 1966171168
      %v9342 = vunpack.c.0.s8 %v9341
      %v9343 = vlaneseq
      %v9344 = vshrl.u32 %v9343, 7
      %v9345 = vsub.s32 %v9342, %v9344
      %v9346 = vrot.slane %v9330, %v9345
      %v9348 = vunpack.c.l.s4 1966171168
      %v9349 = vunpack.c.0.s8 %v9348
      %v9350 = vlaneseq
      %v9351 = vshrl.u32 %v9350, 7
      %v9352 = vsub.s32 %v9349, %v9351
      %v9353 = vrot.slane %v9331, %v9352
      %v9355 = vunpack.c.l.s4 1966171168
      %v9356 = vunpack.c.0.s8 %v9355
      %v9357 = vlaneseq
      %v9358 = vshrl.u32 %v9357, 7
      %v9359 = vsub.s32 %v9356, %v9358
      %v9360 = vrot.slane %v9332, %v9359
      %v9361 = vcombine.high %v9339, %v9339
      %v9362 = vcombine.high %v9346, %v9346
      %v9363 = vcombine.high %v9353, %v9353
      %v9364 = vcombine.high %v9360, %v9360
      %v9365 = vcombine.high %v9011, %v9011
      %v9367 = vunpack.c.l.s4 1966171168
      %v9368 = vunpack.c.0.s8 %v9367
      %v9369 = vlaneseq
      %v9370 = vshrl.u32 %v9369, 7
      %v9371 = vsub.s32 %v9368, %v9370
      %v9372 = vrot.slane %v9011, %v9371
      %v9374 = vunpack.c.l.s4 1966171168
      %v9375 = vunpack.c.0.s8 %v9374
      %v9376 = vlaneseq
      %v9377 = vshrl.u32 %v9376, 7
      %v9378 = vsub.s32 %v9375, %v9377
      %v9379 = vrot.slane %v9365, %v9378
      %v9380 = vcombine.high %v9372, %v9372
      %v9381 = vcombine.high %v9379, %v9379
      %v9383 = vunpack.c.l.s4 1966171168
      %v9384 = vunpack.c.0.s8 %v9383
      %v9385 = vlaneseq
      %v9386 = vshrl.u32 %v9385, 7
      %v9387 = vsub.s32 %v9384, %v9386
      %v9388 = vrot.slane %v9372, %v9387
      %v9390 = vunpack.c.l.s4 1966171168
      %v9391 = vunpack.c.0.s8 %v9390
      %v9392 = vlaneseq
      %v9393 = vshrl.u32 %v9392, 7
      %v9394 = vsub.s32 %v9391, %v9393
      %v9395 = vrot.slane %v9379, %v9394
      %v9397 = vunpack.c.l.s4 1966171168
      %v9398 = vunpack.c.0.s8 %v9397
      %v9399 = vlaneseq
      %v9400 = vshrl.u32 %v9399, 7
      %v9401 = vsub.s32 %v9398, %v9400
      %v9402 = vrot.slane %v9380, %v9401
      %v9404 = vunpack.c.l.s4 1966171168
      %v9405 = vunpack.c.0.s8 %v9404
      %v9406 = vlaneseq
      %v9407 = vshrl.u32 %v9406, 7
      %v9408 = vsub.s32 %v9405, %v9407
      %v9409 = vrot.slane %v9381, %v9408
      %v9410 = vcombine.high %v9388, %v9388
      %v9411 = vcombine.high %v9395, %v9395
      %v9412 = vcombine.high %v9402, %v9402
      %v9413 = vcombine.high %v9409, %v9409
      %v9414 = vcombine.high %v9012, %v9012
      %v9416 = vunpack.c.l.s4 1966171168
      %v9417 = vunpack.c.0.s8 %v9416
      %v9418 = vlaneseq
      %v9419 = vshrl.u32 %v9418, 7
      %v9420 = vsub.s32 %v9417, %v9419
      %v9421 = vrot.slane %v9012, %v9420
      %v9423 = vunpack.c.l.s4 1966171168
      %v9424 = vunpack.c.0.s8 %v9423
      %v9425 = vlaneseq
      %v9426 = vshrl.u32 %v9425, 7
      %v9427 = vsub.s32 %v9424, %v9426
      %v9428 = vrot.slane %v9414, %v9427
      %v9429 = vcombine.high %v9421, %v9421
      %v9430 = vcombine.high %v9428, %v9428
      %v9432 = vunpack.c.l.s4 1966171168
      %v9433 = vunpack.c.0.s8 %v9432
      %v9434 = vlaneseq
      %v9435 = vshrl.u32 %v9434, 7
      %v9436 = vsub.s32 %v9433, %v9435
      %v9437 = vrot.slane %v9421, %v9436
      %v9439 = vunpack.c.l.s4 1966171168
      %v9440 = vunpack.c.0.s8 %v9439
      %v9441 = vlaneseq
      %v9442 = vshrl.u32 %v9441, 7
      %v9443 = vsub.s32 %v9440, %v9442
      %v9444 = vrot.slane %v9428, %v9443
      %v9446 = vunpack.c.l.s4 1966171168
      %v9447 = vunpack.c.0.s8 %v9446
      %v9448 = vlaneseq
      %v9449 = vshrl.u32 %v9448, 7
      %v9450 = vsub.s32 %v9447, %v9449
      %v9451 = vrot.slane %v9429, %v9450
      %v9453 = vunpack.c.l.s4 1966171168
      %v9454 = vunpack.c.0.s8 %v9453
      %v9455 = vlaneseq
      %v9456 = vshrl.u32 %v9455, 7
      %v9457 = vsub.s32 %v9454, %v9456
      %v9458 = vrot.slane %v9430, %v9457
      %v9459 = vcombine.high %v9437, %v9437
      %v9460 = vcombine.high %v9444, %v9444
      %v9461 = vcombine.high %v9451, %v9451
      %v9462 = vcombine.high %v9458, %v9458
      %v9463 = vcombine.low %v9045, %v9059
      %v9464 = vcombine.low %v9067, %v9069
      %v9465 = vcombine.low %v9052, %v9066
      %v9466 = vcombine.low %v9068, %v9070
      %v9468 = vunpack.c.l.s4 1966171168
      %v9469 = vunpack.c.0.s8 %v9468
      %v9470 = vlaneseq
      %v9471 = vshrl.u32 %v9470, 7
      %v9472 = vsub.s32 %v9469, %v9471
      %v9473 = vrot.slane %v9463, %v9472
      %v9475 = vunpack.c.l.s4 1966171168
      %v9476 = vunpack.c.0.s8 %v9475
      %v9477 = vlaneseq
      %v9478 = vshrl.u32 %v9477, 7
      %v9479 = vsub.s32 %v9476, %v9478
      %v9480 = vrot.slane %v9464, %v9479
      %v9482 = vunpack.c.l.s4 1966171168
      %v9483 = vunpack.c.0.s8 %v9482
      %v9484 = vlaneseq
      %v9485 = vshrl.u32 %v9484, 7
      %v9486 = vsub.s32 %v9483, %v9485
      %v9487 = vrot.slane %v9465, %v9486
      %v9489 = vunpack.c.l.s4 1966171168
      %v9490 = vunpack.c.0.s8 %v9489
      %v9491 = vlaneseq
      %v9492 = vshrl.u32 %v9491, 7
      %v9493 = vsub.s32 %v9490, %v9492
      %v9494 = vrot.slane %v9466, %v9493
      %v9495 = vcombine.low %v9473, %v9480
      %v9496 = vcombine.low %v9487, %v9494
      %v9498 = vunpack.c.l.s4 1966171168
      %v9499 = vunpack.c.0.s8 %v9498
      %v9500 = vlaneseq
      %v9501 = vshrl.u32 %v9500, 7
      %v9502 = vsub.s32 %v9499, %v9501
      %v9503 = vrot.slane %v9495, %v9502
      %v9505 = vunpack.c.l.s4 1966171168
      %v9506 = vunpack.c.0.s8 %v9505
      %v9507 = vlaneseq
      %v9508 = vshrl.u32 %v9507, 7
      %v9509 = vsub.s32 %v9506, %v9508
      %v9510 = vrot.slane %v9496, %v9509
      %v9511 = vcombine.low %v9503, %v9510
      %v9513 = vunpack.c.l.s4 1966171168
      %v9514 = vunpack.c.0.s8 %v9513
      %v9515 = vlaneseq
      %v9516 = vshrl.u32 %v9515, 7
      %v9517 = vsub.s32 %v9514, %v9516
      %v9518 = vrot.slane %v9094, %v9517
      %v9520 = vunpack.c.l.s4 1966171168
      %v9521 = vunpack.c.0.s8 %v9520
      %v9522 = vlaneseq
      %v9523 = vshrl.u32 %v9522, 7
      %v9524 = vsub.s32 %v9521, %v9523
      %v9525 = vrot.slane %v9518, %v9524
      %v9526 = vcombine.low %v9108, %v9116
      %v9527 = vcombine.low %v9118, %v9101
      %v9528 = vcombine.low %v9115, %v9117
      %v9529 = vcombine.low %v9119, %v9143
      %v9531 = vunpack.c.l.s4 1966171168
      %v9532 = vunpack.c.0.s8 %v9531
      %v9533 = vlaneseq
      %v9534 = vshrl.u32 %v9533, 7
      %v9535 = vsub.s32 %v9532, %v9534
      %v9536 = vrot.slane %v9526, %v9535
      %v9538 = vunpack.c.l.s4 1966171168
      %v9539 = vunpack.c.0.s8 %v9538
      %v9540 = vlaneseq
      %v9541 = vshrl.u32 %v9540, 7
      %v9542 = vsub.s32 %v9539, %v9541
      %v9543 = vrot.slane %v9527, %v9542
      %v9545 = vunpack.c.l.s4 1966171168
      %v9546 = vunpack.c.0.s8 %v9545
      %v9547 = vlaneseq
      %v9548 = vshrl.u32 %v9547, 7
      %v9549 = vsub.s32 %v9546, %v9548
      %v9550 = vrot.slane %v9528, %v9549
      %v9552 = vunpack.c.l.s4 1966171168
      %v9553 = vunpack.c.0.s8 %v9552
      %v9554 = vlaneseq
      %v9555 = vshrl.u32 %v9554, 7
      %v9556 = vsub.s32 %v9553, %v9555
      %v9557 = vrot.slane %v9529, %v9556
      %v9558 = vcombine.low %v9536, %v9543
      %v9559 = vcombine.low %v9550, %v9557
      %v9561 = vunpack.c.l.s4 1966171168
      %v9562 = vunpack.c.0.s8 %v9561
      %v9563 = vlaneseq
      %v9564 = vshrl.u32 %v9563, 7
      %v9565 = vsub.s32 %v9562, %v9564
      %v9566 = vrot.slane %v9558, %v9565
      %v9568 = vunpack.c.l.s4 1966171168
      %v9569 = vunpack.c.0.s8 %v9568
      %v9570 = vlaneseq
      %v9571 = vshrl.u32 %v9570, 7
      %v9572 = vsub.s32 %v9569, %v9571
      %v9573 = vrot.slane %v9559, %v9572
      %v9574 = vcombine.low %v9566, %v9573
      %v9576 = vunpack.c.l.s4 1966171168
      %v9577 = vunpack.c.0.s8 %v9576
      %v9578 = vlaneseq
      %v9579 = vshrl.u32 %v9578, 7
      %v9580 = vsub.s32 %v9577, %v9579
      %v9581 = vrot.slane %v9157, %v9580
      %v9583 = vunpack.c.l.s4 1966171168
      %v9584 = vunpack.c.0.s8 %v9583
      %v9585 = vlaneseq
      %v9586 = vshrl.u32 %v9585, 7
      %v9587 = vsub.s32 %v9584, %v9586
      %v9588 = vrot.slane %v9581, %v9587
      %v9589 = vcombine.low %v9165, %v9167
      %v9590 = vcombine.low %v9150, %v9164
      %v9591 = vcombine.low %v9166, %v9168
      %v9592 = vcombine.low %v9192, %v9206
      %v9594 = vunpack.c.l.s4 1966171168
      %v9595 = vunpack.c.0.s8 %v9594
      %v9596 = vlaneseq
      %v9597 = vshrl.u32 %v9596, 7
      %v9598 = vsub.s32 %v9595, %v9597
      %v9599 = vrot.slane %v9589, %v9598
      %v9601 = vunpack.c.l.s4 1966171168
      %v9602 = vunpack.c.0.s8 %v9601
      %v9603 = vlaneseq
      %v9604 = vshrl.u32 %v9603, 7
      %v9605 = vsub.s32 %v9602, %v9604
      %v9606 = vrot.slane %v9590, %v9605
      %v9608 = vunpack.c.l.s4 1966171168
      %v9609 = vunpack.c.0.s8 %v9608
      %v9610 = vlaneseq
      %v9611 = vshrl.u32 %v9610, 7
      %v9612 = vsub.s32 %v9609, %v9611
      %v9613 = vrot.slane %v9591, %v9612
      %v9615 = vunpack.c.l.s4 1966171168
      %v9616 = vunpack.c.0.s8 %v9615
      %v9617 = vlaneseq
      %v9618 = vshrl.u32 %v9617, 7
      %v9619 = vsub.s32 %v9616, %v9618
      %v9620 = vrot.slane %v9592, %v9619
      %v9621 = vcombine.low %v9599, %v9606
      %v9622 = vcombine.low %v9613, %v9620
      %v9624 = vunpack.c.l.s4 1966171168
      %v9625 = vunpack.c.0.s8 %v9624
      %v9626 = vlaneseq
      %v9627 = vshrl.u32 %v9626, 7
      %v9628 = vsub.s32 %v9625, %v9627
      %v9629 = vrot.slane %v9621, %v9628
      %v9631 = vunpack.c.l.s4 1966171168
      %v9632 = vunpack.c.0.s8 %v9631
      %v9633 = vlaneseq
      %v9634 = vshrl.u32 %v9633, 7
      %v9635 = vsub.s32 %v9632, %v9634
      %v9636 = vrot.slane %v9622, %v9635
      %v9637 = vcombine.low %v9629, %v9636
      %v9639 = vunpack.c.l.s4 1966171168
      %v9640 = vunpack.c.0.s8 %v9639
      %v9641 = vlaneseq
      %v9642 = vshrl.u32 %v9641, 7
      %v9643 = vsub.s32 %v9640, %v9642
      %v9644 = vrot.slane %v9214, %v9643
      %v9646 = vunpack.c.l.s4 1966171168
      %v9647 = vunpack.c.0.s8 %v9646
      %v9648 = vlaneseq
      %v9649 = vshrl.u32 %v9648, 7
      %v9650 = vsub.s32 %v9647, %v9649
      %v9651 = vrot.slane %v9644, %v9650
      %v9652 = vcombine.low %v9216, %v9199
      %v9653 = vcombine.low %v9213, %v9215
      %v9654 = vcombine.low %v9217, %v9241
      %v9655 = vcombine.low %v9255, %v9263
      %v9657 = vunpack.c.l.s4 1966171168
      %v9658 = vunpack.c.0.s8 %v9657
      %v9659 = vlaneseq
      %v9660 = vshrl.u32 %v9659, 7
      %v9661 = vsub.s32 %v9658, %v9660
      %v9662 = vrot.slane %v9652, %v9661
      %v9664 = vunpack.c.l.s4 1966171168
      %v9665 = vunpack.c.0.s8 %v9664
      %v9666 = vlaneseq
      %v9667 = vshrl.u32 %v9666, 7
      %v9668 = vsub.s32 %v9665, %v9667
      %v9669 = vrot.slane %v9653, %v9668
      %v9671 = vunpack.c.l.s4 1966171168
      %v9672 = vunpack.c.0.s8 %v9671
      %v9673 = vlaneseq
      %v9674 = vshrl.u32 %v9673, 7
      %v9675 = vsub.s32 %v9672, %v9674
      %v9676 = vrot.slane %v9654, %v9675
      %v9678 = vunpack.c.l.s4 1966171168
      %v9679 = vunpack.c.0.s8 %v9678
      %v9680 = vlaneseq
      %v9681 = vshrl.u32 %v9680, 7
      %v9682 = vsub.s32 %v9679, %v9681
      %v9683 = vrot.slane %v9655, %v9682
      %v9684 = vcombine.low %v9662, %v9669
      %v9685 = vcombine.low %v9676, %v9683
      %v9687 = vunpack.c.l.s4 1966171168
      %v9688 = vunpack.c.0.s8 %v9687
      %v9689 = vlaneseq
      %v9690 = vshrl.u32 %v9689, 7
      %v9691 = vsub.s32 %v9688, %v9690
      %v9692 = vrot.slane %v9684, %v9691
      %v9694 = vunpack.c.l.s4 1966171168
      %v9695 = vunpack.c.0.s8 %v9694
      %v9696 = vlaneseq
      %v9697 = vshrl.u32 %v9696, 7
      %v9698 = vsub.s32 %v9695, %v9697
      %v9699 = vrot.slane %v9685, %v9698
      %v9700 = vcombine.low %v9692, %v9699
      %v9702 = vunpack.c.l.s4 1966171168
      %v9703 = vunpack.c.0.s8 %v9702
      %v9704 = vlaneseq
      %v9705 = vshrl.u32 %v9704, 7
      %v9706 = vsub.s32 %v9703, %v9705
      %v9707 = vrot.slane %v9265, %v9706
      %v9709 = vunpack.c.l.s4 1966171168
      %v9710 = vunpack.c.0.s8 %v9709
      %v9711 = vlaneseq
      %v9712 = vshrl.u32 %v9711, 7
      %v9713 = vsub.s32 %v9710, %v9712
      %v9714 = vrot.slane %v9707, %v9713
      %v9715 = vcombine.low %v9248, %v9262
      %v9716 = vcombine.low %v9264, %v9266
      %v9717 = vcombine.low %v9290, %v9304
      %v9718 = vcombine.low %v9312, %v9314
      %v9720 = vunpack.c.l.s4 1966171168
      %v9721 = vunpack.c.0.s8 %v9720
      %v9722 = vlaneseq
      %v9723 = vshrl.u32 %v9722, 7
      %v9724 = vsub.s32 %v9721, %v9723
      %v9725 = vrot.slane %v9715, %v9724
      %v9727 = vunpack.c.l.s4 1966171168
      %v9728 = vunpack.c.0.s8 %v9727
      %v9729 = vlaneseq
      %v9730 = vshrl.u32 %v9729, 7
      %v9731 = vsub.s32 %v9728, %v9730
      %v9732 = vrot.slane %v9716, %v9731
      %v9734 = vunpack.c.l.s4 1966171168
      %v9735 = vunpack.c.0.s8 %v9734
      %v9736 = vlaneseq
      %v9737 = vshrl.u32 %v9736, 7
      %v9738 = vsub.s32 %v9735, %v9737
      %v9739 = vrot.slane %v9717, %v9738
      %v9741 = vunpack.c.l.s4 1966171168
      %v9742 = vunpack.c.0.s8 %v9741
      %v9743 = vlaneseq
      %v9744 = vshrl.u32 %v9743, 7
      %v9745 = vsub.s32 %v9742, %v9744
      %v9746 = vrot.slane %v9718, %v9745
      %v9747 = vcombine.low %v9725, %v9732
      %v9748 = vcombine.low %v9739, %v9746
      %v9750 = vunpack.c.l.s4 1966171168
      %v9751 = vunpack.c.0.s8 %v9750
      %v9752 = vlaneseq
      %v9753 = vshrl.u32 %v9752, 7
      %v9754 = vsub.s32 %v9751, %v9753
      %v9755 = vrot.slane %v9747, %v9754
      %v9757 = vunpack.c.l.s4 1966171168
      %v9758 = vunpack.c.0.s8 %v9757
      %v9759 = vlaneseq
      %v9760 = vshrl.u32 %v9759, 7
      %v9761 = vsub.s32 %v9758, %v9760
      %v9762 = vrot.slane %v9748, %v9761
      %v9763 = vcombine.low %v9755, %v9762
      %v9765 = vunpack.c.l.s4 1966171168
      %v9766 = vunpack.c.0.s8 %v9765
      %v9767 = vlaneseq
      %v9768 = vshrl.u32 %v9767, 7
      %v9769 = vsub.s32 %v9766, %v9768
      %v9770 = vrot.slane %v9297, %v9769
      %v9772 = vunpack.c.l.s4 1966171168
      %v9773 = vunpack.c.0.s8 %v9772
      %v9774 = vlaneseq
      %v9775 = vshrl.u32 %v9774, 7
      %v9776 = vsub.s32 %v9773, %v9775
      %v9777 = vrot.slane %v9770, %v9776
      %v9778 = vcombine.low %v9311, %v9313
      %v9779 = vcombine.low %v9315, %v9339
      %v9780 = vcombine.low %v9353, %v9361
      %v9781 = vcombine.low %v9363, %v9346
      %v9783 = vunpack.c.l.s4 1966171168
      %v9784 = vunpack.c.0.s8 %v9783
      %v9785 = vlaneseq
      %v9786 = vshrl.u32 %v9785, 7
      %v9787 = vsub.s32 %v9784, %v9786
      %v9788 = vrot.slane %v9778, %v9787
      %v9790 = vunpack.c.l.s4 1966171168
      %v9791 = vunpack.c.0.s8 %v9790
      %v9792 = vlaneseq
      %v9793 = vshrl.u32 %v9792, 7
      %v9794 = vsub.s32 %v9791, %v9793
      %v9795 = vrot.slane %v9779, %v9794
      %v9797 = vunpack.c.l.s4 1966171168
      %v9798 = vunpack.c.0.s8 %v9797
      %v9799 = vlaneseq
      %v9800 = vshrl.u32 %v9799, 7
      %v9801 = vsub.s32 %v9798, %v9800
      %v9802 = vrot.slane %v9780, %v9801
      %v9804 = vunpack.c.l.s4 1966171168
      %v9805 = vunpack.c.0.s8 %v9804
      %v9806 = vlaneseq
      %v9807 = vshrl.u32 %v9806, 7
      %v9808 = vsub.s32 %v9805, %v9807
      %v9809 = vrot.slane %v9781, %v9808
      %v9810 = vcombine.low %v9788, %v9795
      %v9811 = vcombine.low %v9802, %v9809
      %v9813 = vunpack.c.l.s4 1966171168
      %v9814 = vunpack.c.0.s8 %v9813
      %v9815 = vlaneseq
      %v9816 = vshrl.u32 %v9815, 7
      %v9817 = vsub.s32 %v9814, %v9816
      %v9818 = vrot.slane %v9810, %v9817
      %v9820 = vunpack.c.l.s4 1966171168
      %v9821 = vunpack.c.0.s8 %v9820
      %v9822 = vlaneseq
      %v9823 = vshrl.u32 %v9822, 7
      %v9824 = vsub.s32 %v9821, %v9823
      %v9825 = vrot.slane %v9811, %v9824
      %v9826 = vcombine.low %v9818, %v9825
      %v9828 = vunpack.c.l.s4 1966171168
      %v9829 = vunpack.c.0.s8 %v9828
      %v9830 = vlaneseq
      %v9831 = vshrl.u32 %v9830, 7
      %v9832 = vsub.s32 %v9829, %v9831
      %v9833 = vrot.slane %v9360, %v9832
      %v9835 = vunpack.c.l.s4 1966171168
      %v9836 = vunpack.c.0.s8 %v9835
      %v9837 = vlaneseq
      %v9838 = vshrl.u32 %v9837, 7
      %v9839 = vsub.s32 %v9836, %v9838
      %v9840 = vrot.slane %v9833, %v9839
      %v9841 = vcombine.low %v9362, %v9364
      %v9842 = vcombine.low %v9388, %v9402
      %v9843 = vcombine.low %v9410, %v9412
      %v9844 = vcombine.low %v9395, %v9409
      %v9846 = vunpack.c.l.s4 1966171168
      %v9847 = vunpack.c.0.s8 %v9846
      %v9848 = vlaneseq
      %v9849 = vshrl.u32 %v9848, 7
      %v9850 = vsub.s32 %v9847, %v9849
      %v9851 = vrot.slane %v9841, %v9850
      %v9853 = vunpack.c.l.s4 1966171168
      %v9854 = vunpack.c.0.s8 %v9853
      %v9855 = vlaneseq
      %v9856 = vshrl.u32 %v9855, 7
      %v9857 = vsub.s32 %v9854, %v9856
      %v9858 = vrot.slane %v9842, %v9857
      %v9860 = vunpack.c.l.s4 1966171168
      %v9861 = vunpack.c.0.s8 %v9860
      %v9862 = vlaneseq
      %v9863 = vshrl.u32 %v9862, 7
      %v9864 = vsub.s32 %v9861, %v9863
      %v9865 = vrot.slane %v9843, %v9864
      %v9867 = vunpack.c.l.s4 1966171168
      %v9868 = vunpack.c.0.s8 %v9867
      %v9869 = vlaneseq
      %v9870 = vshrl.u32 %v9869, 7
      %v9871 = vsub.s32 %v9868, %v9870
      %v9872 = vrot.slane %v9844, %v9871
      %v9873 = vcombine.low %v9851, %v9858
      %v9874 = vcombine.low %v9865, %v9872
      %v9876 = vunpack.c.l.s4 1966171168
      %v9877 = vunpack.c.0.s8 %v9876
      %v9878 = vlaneseq
      %v9879 = vshrl.u32 %v9878, 7
      %v9880 = vsub.s32 %v9877, %v9879
      %v9881 = vrot.slane %v9873, %v9880
      %v9883 = vunpack.c.l.s4 1966171168
      %v9884 = vunpack.c.0.s8 %v9883
      %v9885 = vlaneseq
      %v9886 = vshrl.u32 %v9885, 7
      %v9887 = vsub.s32 %v9884, %v9886
      %v9888 = vrot.slane %v9874, %v9887
      %v9889 = vcombine.low %v9881, %v9888
      %v9891 = vunpack.c.l.s4 1966171168
      %v9892 = vunpack.c.0.s8 %v9891
      %v9893 = vlaneseq
      %v9894 = vshrl.u32 %v9893, 7
      %v9895 = vsub.s32 %v9892, %v9894
      %v9896 = vrot.slane %v9411, %v9895
      %v9898 = vunpack.c.l.s4 1966171168
      %v9899 = vunpack.c.0.s8 %v9898
      %v9900 = vlaneseq
      %v9901 = vshrl.u32 %v9900, 7
      %v9902 = vsub.s32 %v9899, %v9901
      %v9903 = vrot.slane %v9896, %v9902
      %v9904 = vcombine.low %v9413, %v9437
      %v9905 = vcombine.low %v9451, %v9459
      %v9906 = vcombine.low %v9461, %v9444
      %v9907 = vcombine.low %v9458, %v9460
      %v9909 = vunpack.c.l.s4 1966171168
      %v9910 = vunpack.c.0.s8 %v9909
      %v9911 = vlaneseq
      %v9912 = vshrl.u32 %v9911, 7
      %v9913 = vsub.s32 %v9910, %v9912
      %v9914 = vrot.slane %v9904, %v9913
      %v9916 = vunpack.c.l.s4 1966171168
      %v9917 = vunpack.c.0.s8 %v9916
      %v9918 = vlaneseq
      %v9919 = vshrl.u32 %v9918, 7
      %v9920 = vsub.s32 %v9917, %v9919
      %v9921 = vrot.slane %v9905, %v9920
      %v9923 = vunpack.c.l.s4 1966171168
      %v9924 = vunpack.c.0.s8 %v9923
      %v9925 = vlaneseq
      %v9926 = vshrl.u32 %v9925, 7
      %v9927 = vsub.s32 %v9924, %v9926
      %v9928 = vrot.slane %v9906, %v9927
      %v9930 = vunpack.c.l.s4 1966171168
      %v9931 = vunpack.c.0.s8 %v9930
      %v9932 = vlaneseq
      %v9933 = vshrl.u32 %v9932, 7
      %v9934 = vsub.s32 %v9931, %v9933
      %v9935 = vrot.slane %v9907, %v9934
      %v9936 = vcombine.low %v9914, %v9921
      %v9937 = vcombine.low %v9928, %v9935
      %v9939 = vunpack.c.l.s4 1966171168
      %v9940 = vunpack.c.0.s8 %v9939
      %v9941 = vlaneseq
      %v9942 = vshrl.u32 %v9941, 7
      %v9943 = vsub.s32 %v9940, %v9942
      %v9944 = vrot.slane %v9936, %v9943
      %v9946 = vunpack.c.l.s4 1966171168
      %v9947 = vunpack.c.0.s8 %v9946
      %v9948 = vlaneseq
      %v9949 = vshrl.u32 %v9948, 7
      %v9950 = vsub.s32 %v9947, %v9949
      %v9951 = vrot.slane %v9937, %v9950
      %v9952 = vcombine.low %v9944, %v9951
      %v9954 = vunpack.c.l.s4 1966171168
      %v9955 = vunpack.c.0.s8 %v9954
      %v9956 = vlaneseq
      %v9957 = vshrl.u32 %v9956, 7
      %v9958 = vsub.s32 %v9955, %v9957
      %v9959 = vrot.slane %v9462, %v9958
      %v9961 = vunpack.c.l.s4 1966171168
      %v9962 = vunpack.c.0.s8 %v9961
      %v9963 = vlaneseq
      %v9964 = vshrl.u32 %v9963, 7
      %v9965 = vsub.s32 %v9962, %v9964
      %v9966 = vrot.slane %v9959, %v9965
      %v9983 = vadd.f32 %v6670, %v9511
      %v9984 = vadd.f32 %v6671, %v9525
      %v9985 = vadd.f32 %v6672, %v9574
      %v9986 = vadd.f32 %v6673, %v9588
      %v9987 = vadd.f32 %v6674, %v9637
      %v9988 = vadd.f32 %v6675, %v9651
      %v9989 = vadd.f32 %v6676, %v9700
      %v9990 = vadd.f32 %v6677, %v9714
      %v9991 = vadd.f32 %v6678, %v9763
      %v9992 = vadd.f32 %v6679, %v9777
      %v9993 = vadd.f32 %v6680, %v9826
      %v9994 = vadd.f32 %v6681, %v9840
      %v9995 = vadd.f32 %v6682, %v9889
      %v9996 = vadd.f32 %v6683, %v9903
      %v9997 = vadd.f32 %v6684, %v9952
      %v9998 = vadd.f32 %v6685, %v9966
      %v9999 = vld [vmem:[%s19] sm:$0x1]
      %v10000 = vld [vmem:[%s20] sm:$0x1]
      %v10001 = vsel %vm3104, %v9983, 0.0
      %10002 = vadd.xlane.f32.xlu0 %v10001
      %v10003 = vpop.xlane.xlu0 %10002
      %v10004 = vsel %vm3108, %v9984, 0.0
      %10005 = vadd.xlane.f32.xlu0 %v10004
      %v10006 = vpop.xlane.xlu0 %10005
      %v10007 = vsel %vm3104, %v9985, 0.0
      %10008 = vadd.xlane.f32.xlu0 %v10007
      %v10009 = vpop.xlane.xlu0 %10008
      %v10010 = vsel %vm3108, %v9986, 0.0
      %10011 = vadd.xlane.f32.xlu0 %v10010
      %v10012 = vpop.xlane.xlu0 %10011
      %v10013 = vsel %vm3104, %v9987, 0.0
      %10014 = vadd.xlane.f32.xlu0 %v10013
      %v10015 = vpop.xlane.xlu0 %10014
      %v10016 = vsel %vm3108, %v9988, 0.0
      %10017 = vadd.xlane.f32.xlu0 %v10016
      %v10018 = vpop.xlane.xlu0 %10017
      %v10019 = vsel %vm3104, %v9989, 0.0
      %10020 = vadd.xlane.f32.xlu0 %v10019
      %v10021 = vpop.xlane.xlu0 %10020
      %v10022 = vsel %vm3108, %v9990, 0.0
      %10023 = vadd.xlane.f32.xlu0 %v10022
      %v10024 = vpop.xlane.xlu0 %10023
      %v10025 = vsel %vm3104, %v9991, 0.0
      %10026 = vadd.xlane.f32.xlu0 %v10025
      %v10027 = vpop.xlane.xlu0 %10026
      %v10028 = vsel %vm3108, %v9992, 0.0
      %10029 = vadd.xlane.f32.xlu0 %v10028
      %v10030 = vpop.xlane.xlu0 %10029
      %v10031 = vsel %vm3104, %v9993, 0.0
      %10032 = vadd.xlane.f32.xlu0 %v10031
      %v10033 = vpop.xlane.xlu0 %10032
      %v10034 = vsel %vm3108, %v9994, 0.0
      %10035 = vadd.xlane.f32.xlu0 %v10034
      %v10036 = vpop.xlane.xlu0 %10035
      %v10037 = vsel %vm3104, %v9995, 0.0
      %10038 = vadd.xlane.f32.xlu0 %v10037
      %v10039 = vpop.xlane.xlu0 %10038
      %v10040 = vsel %vm3108, %v9996, 0.0
      %10041 = vadd.xlane.f32.xlu0 %v10040
      %v10042 = vpop.xlane.xlu0 %10041
      %v10043 = vsel %vm3104, %v9997, 0.0
      %10044 = vadd.xlane.f32.xlu0 %v10043
      %v10045 = vpop.xlane.xlu0 %10044
      %v10046 = vsel %vm3108, %v9998, 0.0
      %10047 = vadd.xlane.f32.xlu0 %v10046
      %v10048 = vpop.xlane.xlu0 %10047
      %v10049 = vmul.f32 %v10003, %v3154
      %v10050 = vmul.f32 %v10006, %v3154
      %v10051 = vmul.f32 %v10009, %v3154
      %v10052 = vmul.f32 %v10012, %v3154
      %v10053 = vmul.f32 %v10015, %v3154
      %v10054 = vmul.f32 %v10018, %v3154
      %v10055 = vmul.f32 %v10021, %v3154
      %v10056 = vmul.f32 %v10024, %v3154
      %v10057 = vmul.f32 %v10027, %v3154
      %v10058 = vmul.f32 %v10030, %v3154
      %v10059 = vmul.f32 %v10033, %v3154
      %v10060 = vmul.f32 %v10036, %v3154
      %v10061 = vmul.f32 %v10039, %v3154
      %v10062 = vmul.f32 %v10042, %v3154
      %v10063 = vmul.f32 %v10045, %v3154
      %v10064 = vmul.f32 %v10048, %v3154
      %v10065 = vsub.f32 %v9983, %v10049
      %v10066 = vsub.f32 %v9984, %v10050
      %v10067 = vsub.f32 %v9985, %v10051
      %v10068 = vsub.f32 %v9986, %v10052
      %v10069 = vsub.f32 %v9987, %v10053
      %v10070 = vsub.f32 %v9988, %v10054
      %v10071 = vsub.f32 %v9989, %v10055
      %v10072 = vsub.f32 %v9990, %v10056
      %v10073 = vsub.f32 %v9991, %v10057
      %v10074 = vsub.f32 %v9992, %v10058
      %v10075 = vsub.f32 %v9993, %v10059
      %v10076 = vsub.f32 %v9994, %v10060
      %v10077 = vsub.f32 %v9995, %v10061
      %v10078 = vsub.f32 %v9996, %v10062
      %v10079 = vsub.f32 %v9997, %v10063
      %v10080 = vsub.f32 %v9998, %v10064
      %v10081 = vmul.f32 %v10065, %v10065
      %v10082 = vmul.f32 %v10066, %v10066
      %v10083 = vmul.f32 %v10067, %v10067
      %v10084 = vmul.f32 %v10068, %v10068
      %v10085 = vmul.f32 %v10069, %v10069
      %v10086 = vmul.f32 %v10070, %v10070
      %v10087 = vmul.f32 %v10071, %v10071
      %v10088 = vmul.f32 %v10072, %v10072
      %v10089 = vmul.f32 %v10073, %v10073
      %v10090 = vmul.f32 %v10074, %v10074
      %v10091 = vmul.f32 %v10075, %v10075
      %v10092 = vmul.f32 %v10076, %v10076
      %v10093 = vmul.f32 %v10077, %v10077
      %v10094 = vmul.f32 %v10078, %v10078
      %v10095 = vmul.f32 %v10079, %v10079
      %v10096 = vmul.f32 %v10080, %v10080
      %v10097 = vsel %vm3104, %v10081, 0.0
      %10098 = vadd.xlane.f32.xlu0 %v10097
      %v10099 = vpop.xlane.xlu0 %10098
      %v10100 = vsel %vm3108, %v10082, 0.0
      %10101 = vadd.xlane.f32.xlu0 %v10100
      %v10102 = vpop.xlane.xlu0 %10101
      %v10103 = vsel %vm3104, %v10083, 0.0
      %10104 = vadd.xlane.f32.xlu0 %v10103
      %v10105 = vpop.xlane.xlu0 %10104
      %v10106 = vsel %vm3108, %v10084, 0.0
      %10107 = vadd.xlane.f32.xlu0 %v10106
      %v10108 = vpop.xlane.xlu0 %10107
      %v10109 = vsel %vm3104, %v10085, 0.0
      %10110 = vadd.xlane.f32.xlu0 %v10109
      %v10111 = vpop.xlane.xlu0 %10110
      %v10112 = vsel %vm3108, %v10086, 0.0
      %10113 = vadd.xlane.f32.xlu0 %v10112
      %v10114 = vpop.xlane.xlu0 %10113
      %v10115 = vsel %vm3104, %v10087, 0.0
      %10116 = vadd.xlane.f32.xlu0 %v10115
      %v10117 = vpop.xlane.xlu0 %10116
      %v10118 = vsel %vm3108, %v10088, 0.0
      %10119 = vadd.xlane.f32.xlu0 %v10118
      %v10120 = vpop.xlane.xlu0 %10119
      %v10121 = vsel %vm3104, %v10089, 0.0
      %10122 = vadd.xlane.f32.xlu0 %v10121
      %v10123 = vpop.xlane.xlu0 %10122
      %v10124 = vsel %vm3108, %v10090, 0.0
      %10125 = vadd.xlane.f32.xlu0 %v10124
      %v10126 = vpop.xlane.xlu0 %10125
      %v10127 = vsel %vm3104, %v10091, 0.0
      %10128 = vadd.xlane.f32.xlu0 %v10127
      %v10129 = vpop.xlane.xlu0 %10128
      %v10130 = vsel %vm3108, %v10092, 0.0
      %10131 = vadd.xlane.f32.xlu0 %v10130
      %v10132 = vpop.xlane.xlu0 %10131
      %v10133 = vsel %vm3104, %v10093, 0.0
      %10134 = vadd.xlane.f32.xlu0 %v10133
      %v10135 = vpop.xlane.xlu0 %10134
      %v10136 = vsel %vm3108, %v10094, 0.0
      %10137 = vadd.xlane.f32.xlu0 %v10136
      %v10138 = vpop.xlane.xlu0 %10137
      %v10139 = vsel %vm3104, %v10095, 0.0
      %10140 = vadd.xlane.f32.xlu0 %v10139
      %v10141 = vpop.xlane.xlu0 %10140
      %v10142 = vsel %vm3108, %v10096, 0.0
      %10143 = vadd.xlane.f32.xlu0 %v10142
      %v10144 = vpop.xlane.xlu0 %10143
      %v10145 = vmul.f32 %v10099, %v3154
      %v10146 = vmul.f32 %v10102, %v3154
      %v10147 = vmul.f32 %v10105, %v3154
      %v10148 = vmul.f32 %v10108, %v3154
      %v10149 = vmul.f32 %v10111, %v3154
      %v10150 = vmul.f32 %v10114, %v3154
      %v10151 = vmul.f32 %v10117, %v3154
      %v10152 = vmul.f32 %v10120, %v3154
      %v10153 = vmul.f32 %v10123, %v3154
      %v10154 = vmul.f32 %v10126, %v3154
      %v10155 = vmul.f32 %v10129, %v3154
      %v10156 = vmul.f32 %v10132, %v3154
      %v10157 = vmul.f32 %v10135, %v3154
      %v10158 = vmul.f32 %v10138, %v3154
      %v10159 = vmul.f32 %v10141, %v3154
      %v10160 = vmul.f32 %v10144, %v3154
      %v10161 = vadd.f32 %v10145, 1e-06
      %v10162 = vadd.f32 %v10146, 1e-06
      %v10163 = vadd.f32 %v10147, 1e-06
      %v10164 = vadd.f32 %v10148, 1e-06
      %v10165 = vadd.f32 %v10149, 1e-06
      %v10166 = vadd.f32 %v10150, 1e-06
      %v10167 = vadd.f32 %v10151, 1e-06
      %v10168 = vadd.f32 %v10152, 1e-06
      %v10169 = vadd.f32 %v10153, 1e-06
      %v10170 = vadd.f32 %v10154, 1e-06
      %v10171 = vadd.f32 %v10155, 1e-06
      %v10172 = vadd.f32 %v10156, 1e-06
      %v10173 = vadd.f32 %v10157, 1e-06
      %v10174 = vadd.f32 %v10158, 1e-06
      %v10175 = vadd.f32 %v10159, 1e-06
      %v10176 = vadd.f32 %v10160, 1e-06
      %v10177 = vrsqrt.pop %v10161
      %v10178 = vrsqrt.pop %v10162
      %v10179 = vrsqrt.pop %v10163
      %v10180 = vrsqrt.pop %v10164
      %v10181 = vrsqrt.pop %v10165
      %v10182 = vrsqrt.pop %v10166
      %v10183 = vrsqrt.pop %v10167
      %v10184 = vrsqrt.pop %v10168
      %v10185 = vrsqrt.pop %v10169
      %v10186 = vrsqrt.pop %v10170
      %v10187 = vrsqrt.pop %v10171
      %v10188 = vrsqrt.pop %v10172
      %v10189 = vrsqrt.pop %v10173
      %v10190 = vrsqrt.pop %v10174
      %v10191 = vrsqrt.pop %v10175
      %v10192 = vrsqrt.pop %v10176
      %v10193 = vmul.f32 %v10065, %v10177
      %v10194 = vmul.f32 %v10066, %v10178
      %v10195 = vmul.f32 %v10067, %v10179
      %v10196 = vmul.f32 %v10068, %v10180
      %v10197 = vmul.f32 %v10069, %v10181
      %v10198 = vmul.f32 %v10070, %v10182
      %v10199 = vmul.f32 %v10071, %v10183
      %v10200 = vmul.f32 %v10072, %v10184
      %v10201 = vmul.f32 %v10073, %v10185
      %v10202 = vmul.f32 %v10074, %v10186
      %v10203 = vmul.f32 %v10075, %v10187
      %v10204 = vmul.f32 %v10076, %v10188
      %v10205 = vmul.f32 %v10077, %v10189
      %v10206 = vmul.f32 %v10078, %v10190
      %v10207 = vmul.f32 %v10079, %v10191
      %v10208 = vmul.f32 %v10080, %v10192
      %v10210 = vlaneseq
      %v10211 = vshrl.u32 %v10210, 7
      %v10212 = vsub.s32 0, %v10211
      %v10213 = vrot.slane %v9999, %v10212
      %v10215 = vmul.f32 %v10193, %v10213
      %v10216 = vmul.f32 %v10194, %v10213
      %v10217 = vmul.f32 %v10195, %v10213
      %v10218 = vmul.f32 %v10196, %v10213
      %v10219 = vmul.f32 %v10197, %v10213
      %v10220 = vmul.f32 %v10198, %v10213
      %v10221 = vmul.f32 %v10199, %v10213
      %v10222 = vmul.f32 %v10200, %v10213
      %v10223 = vmul.f32 %v10201, %v10213
      %v10224 = vmul.f32 %v10202, %v10213
      %v10225 = vmul.f32 %v10203, %v10213
      %v10226 = vmul.f32 %v10204, %v10213
      %v10227 = vmul.f32 %v10205, %v10213
      %v10228 = vmul.f32 %v10206, %v10213
      %v10229 = vmul.f32 %v10207, %v10213
      %v10230 = vmul.f32 %v10208, %v10213
      %v10232 = vlaneseq
      %v10233 = vshrl.u32 %v10232, 7
      %v10234 = vsub.s32 0, %v10233
      %v10235 = vrot.slane %v10000, %v10234
      %v10237 = vadd.f32 %v10215, %v10235
      %v10238 = vadd.f32 %v10216, %v10235
      %v10239 = vadd.f32 %v10217, %v10235
      %v10240 = vadd.f32 %v10218, %v10235
      %v10241 = vadd.f32 %v10219, %v10235
      %v10242 = vadd.f32 %v10220, %v10235
      %v10243 = vadd.f32 %v10221, %v10235
      %v10244 = vadd.f32 %v10222, %v10235
      %v10245 = vadd.f32 %v10223, %v10235
      %v10246 = vadd.f32 %v10224, %v10235
      %v10247 = vadd.f32 %v10225, %v10235
      %v10248 = vadd.f32 %v10226, %v10235
      %v10249 = vadd.f32 %v10227, %v10235
      %v10250 = vadd.f32 %v10228, %v10235
      %v10251 = vadd.f32 %v10229, %v10235
      %v10252 = vadd.f32 %v10230, %v10235
      %v10253 = vld [vmem:[%s21] sm:$0x3]
      %v10254 = vld [vmem:[%s22] sm:$0x1]
      %v10255 = vlaneseq
      %v10256 = vshrl.u32 %v10255, 7
      %v10257 = vsub.s32 0, %v10256
      %v10258 = vrot.slane %v10253, %v10257
      %v10259 = vmul.f32 %v10237, %v10258
      %v10260 = vmul.f32 %v10238, %v10258
      %v10261 = vmul.f32 %v10239, %v10258
      %v10262 = vmul.f32 %v10240, %v10258
      %v10263 = vmul.f32 %v10241, %v10258
      %v10264 = vmul.f32 %v10242, %v10258
      %v10265 = vmul.f32 %v10243, %v10258
      %v10266 = vmul.f32 %v10244, %v10258
      %v10267 = vmul.f32 %v10245, %v10258
      %v10268 = vmul.f32 %v10246, %v10258
      %v10269 = vmul.f32 %v10247, %v10258
      %v10270 = vmul.f32 %v10248, %v10258
      %v10271 = vmul.f32 %v10249, %v10258
      %v10272 = vmul.f32 %v10250, %v10258
      %v10273 = vmul.f32 %v10251, %v10258
      %v10274 = vmul.f32 %v10252, %v10258
      %v10275 = vsel %vm3104, %v10259, 0.0
      %10276 = vadd.xlane.f32.xlu0 %v10275
      %v10277 = vpop.xlane.xlu0 %10276
      %v10278 = vsel %vm3108, %v10260, 0.0
      %10279 = vadd.xlane.f32.xlu0 %v10278
      %v10280 = vpop.xlane.xlu0 %10279
      %v10281 = vsel %vm3104, %v10261, 0.0
      %10282 = vadd.xlane.f32.xlu0 %v10281
      %v10283 = vpop.xlane.xlu0 %10282
      %v10284 = vsel %vm3108, %v10262, 0.0
      %10285 = vadd.xlane.f32.xlu0 %v10284
      %v10286 = vpop.xlane.xlu0 %10285
      %v10287 = vsel %vm3104, %v10263, 0.0
      %10288 = vadd.xlane.f32.xlu0 %v10287
      %v10289 = vpop.xlane.xlu0 %10288
      %v10290 = vsel %vm3108, %v10264, 0.0
      %10291 = vadd.xlane.f32.xlu0 %v10290
      %v10292 = vpop.xlane.xlu0 %10291
      %v10293 = vsel %vm3104, %v10265, 0.0
      %10294 = vadd.xlane.f32.xlu0 %v10293
      %v10295 = vpop.xlane.xlu0 %10294
      %v10296 = vsel %vm3108, %v10266, 0.0
      %10297 = vadd.xlane.f32.xlu0 %v10296
      %v10298 = vpop.xlane.xlu0 %10297
      %v10299 = vsel %vm3104, %v10267, 0.0
      %10300 = vadd.xlane.f32.xlu0 %v10299
      %v10301 = vpop.xlane.xlu0 %10300
      %v10302 = vsel %vm3108, %v10268, 0.0
      %10303 = vadd.xlane.f32.xlu0 %v10302
      %v10304 = vpop.xlane.xlu0 %10303
      %v10305 = vsel %vm3104, %v10269, 0.0
      %10306 = vadd.xlane.f32.xlu0 %v10305
      %v10307 = vpop.xlane.xlu0 %10306
      %v10308 = vsel %vm3108, %v10270, 0.0
      %10309 = vadd.xlane.f32.xlu0 %v10308
      %v10310 = vpop.xlane.xlu0 %10309
      %v10311 = vsel %vm3104, %v10271, 0.0
      %10312 = vadd.xlane.f32.xlu0 %v10311
      %v10313 = vpop.xlane.xlu0 %10312
      %v10314 = vsel %vm3108, %v10272, 0.0
      %10315 = vadd.xlane.f32.xlu0 %v10314
      %v10316 = vpop.xlane.xlu0 %10315
      %v10317 = vsel %vm3104, %v10273, 0.0
      %10318 = vadd.xlane.f32.xlu0 %v10317
      %v10319 = vpop.xlane.xlu0 %10318
      %v10320 = vsel %vm3108, %v10274, 0.0
      %10321 = vadd.xlane.f32.xlu0 %v10320
      %v10322 = vpop.xlane.xlu0 %10321
      %s10323 = vtos %v10254
      %v10324 = vstv %s10323
      %v10325 = vadd.f32 %v10277, %v10324
      %v10326 = vadd.f32 %v10280, %v10324
      %v10327 = vadd.f32 %v10283, %v10324
      %v10328 = vadd.f32 %v10286, %v10324
      %v10329 = vadd.f32 %v10289, %v10324
      %v10330 = vadd.f32 %v10292, %v10324
      %v10331 = vadd.f32 %v10295, %v10324
      %v10332 = vadd.f32 %v10298, %v10324
      %v10333 = vadd.f32 %v10301, %v10324
      %v10334 = vadd.f32 %v10304, %v10324
      %v10335 = vadd.f32 %v10307, %v10324
      %v10336 = vadd.f32 %v10310, %v10324
      %v10337 = vadd.f32 %v10313, %v10324
      %v10338 = vadd.f32 %v10316, %v10324
      %v10339 = vadd.f32 %v10319, %v10324
      %v10340 = vadd.f32 %v10322, %v10324
      %v10341 = vlaneseq
      %v10342 = vshrl.u32 %v10341, 7
      %v10343 = vsub.s32 1, %v10342
      %v10344 = vrot.slane %v10253, %v10343
      %v10345 = vmul.f32 %v10237, %v10344
      %v10346 = vmul.f32 %v10238, %v10344
      %v10347 = vmul.f32 %v10239, %v10344
      %v10348 = vmul.f32 %v10240, %v10344
      %v10349 = vmul.f32 %v10241, %v10344
      %v10350 = vmul.f32 %v10242, %v10344
      %v10351 = vmul.f32 %v10243, %v10344
      %v10352 = vmul.f32 %v10244, %v10344
      %v10353 = vmul.f32 %v10245, %v10344
      %v10354 = vmul.f32 %v10246, %v10344
      %v10355 = vmul.f32 %v10247, %v10344
      %v10356 = vmul.f32 %v10248, %v10344
      %v10357 = vmul.f32 %v10249, %v10344
      %v10358 = vmul.f32 %v10250, %v10344
      %v10359 = vmul.f32 %v10251, %v10344
      %v10360 = vmul.f32 %v10252, %v10344
      %v10361 = vsel %vm3104, %v10345, 0.0
      %10362 = vadd.xlane.f32.xlu0 %v10361
      %v10363 = vpop.xlane.xlu0 %10362
      %v10364 = vsel %vm3108, %v10346, 0.0
      %10365 = vadd.xlane.f32.xlu0 %v10364
      %v10366 = vpop.xlane.xlu0 %10365
      %v10367 = vsel %vm3104, %v10347, 0.0
      %10368 = vadd.xlane.f32.xlu0 %v10367
      %v10369 = vpop.xlane.xlu0 %10368
      %v10370 = vsel %vm3108, %v10348, 0.0
      %10371 = vadd.xlane.f32.xlu0 %v10370
      %v10372 = vpop.xlane.xlu0 %10371
      %v10373 = vsel %vm3104, %v10349, 0.0
      %10374 = vadd.xlane.f32.xlu0 %v10373
      %v10375 = vpop.xlane.xlu0 %10374
      %v10376 = vsel %vm3108, %v10350, 0.0
      %10377 = vadd.xlane.f32.xlu0 %v10376
      %v10378 = vpop.xlane.xlu0 %10377
      %v10379 = vsel %vm3104, %v10351, 0.0
      %10380 = vadd.xlane.f32.xlu0 %v10379
      %v10381 = vpop.xlane.xlu0 %10380
      %v10382 = vsel %vm3108, %v10352, 0.0
      %10383 = vadd.xlane.f32.xlu0 %v10382
      %v10384 = vpop.xlane.xlu0 %10383
      %v10385 = vsel %vm3104, %v10353, 0.0
      %10386 = vadd.xlane.f32.xlu0 %v10385
      %v10387 = vpop.xlane.xlu0 %10386
      %v10388 = vsel %vm3108, %v10354, 0.0
      %10389 = vadd.xlane.f32.xlu0 %v10388
      %v10390 = vpop.xlane.xlu0 %10389
      %v10391 = vsel %vm3104, %v10355, 0.0
      %10392 = vadd.xlane.f32.xlu0 %v10391
      %v10393 = vpop.xlane.xlu0 %10392
      %v10394 = vsel %vm3108, %v10356, 0.0
      %10395 = vadd.xlane.f32.xlu0 %v10394
      %v10396 = vpop.xlane.xlu0 %10395
      %v10397 = vsel %vm3104, %v10357, 0.0
      %10398 = vadd.xlane.f32.xlu0 %v10397
      %v10399 = vpop.xlane.xlu0 %10398
      %v10400 = vsel %vm3108, %v10358, 0.0
      %10401 = vadd.xlane.f32.xlu0 %v10400
      %v10402 = vpop.xlane.xlu0 %10401
      %v10403 = vsel %vm3104, %v10359, 0.0
      %10404 = vadd.xlane.f32.xlu0 %v10403
      %v10405 = vpop.xlane.xlu0 %10404
      %v10406 = vsel %vm3108, %v10360, 0.0
      %10407 = vadd.xlane.f32.xlu0 %v10406
      %v10408 = vpop.xlane.xlu0 %10407
      %10409 = vrot.lane.b32.xlu0 %v10254, 127
      %v10410 = vpop.permute.xlu0 %10409
      %s10411 = vtos %v10410
      %v10412 = vstv %s10411
      %v10413 = vadd.f32 %v10363, %v10412
      %v10414 = vadd.f32 %v10366, %v10412
      %v10415 = vadd.f32 %v10369, %v10412
      %v10416 = vadd.f32 %v10372, %v10412
      %v10417 = vadd.f32 %v10375, %v10412
      %v10418 = vadd.f32 %v10378, %v10412
      %v10419 = vadd.f32 %v10381, %v10412
      %v10420 = vadd.f32 %v10384, %v10412
      %v10421 = vadd.f32 %v10387, %v10412
      %v10422 = vadd.f32 %v10390, %v10412
      %v10423 = vadd.f32 %v10393, %v10412
      %v10424 = vadd.f32 %v10396, %v10412
      %v10425 = vadd.f32 %v10399, %v10412
      %v10426 = vadd.f32 %v10402, %v10412
      %v10427 = vadd.f32 %v10405, %v10412
      %v10428 = vadd.f32 %v10408, %v10412
      %v10429 = vld [vmem:[%s23] sm:$0xff]
      %v10430 = vld [vmem:[%s23 + $0x8] sm:$0x1]
      %v10431 = vld [vmem:[%s24] sm:$0xff]
      %v10432 = vld [vmem:[%s24 + $0x8] sm:$0x1]
      %v10449 = vlaneseq
      %v10450 = vand.u32 %v10449, 127
      %v10451 = vlaneseq
      %v10452 = vshrl.u32 %v10451, 7
      %v10453 = vsub.s32 %v10450, %v10452
      %v10454 = vrot.slane %v10413, %v10453
      %v10455 = vadd.s32 %v10450, 4294967288
      %v10456 = vlaneseq
      %v10457 = vshrl.u32 %v10456, 7
      %v10458 = vsub.s32 %v10455, %v10457
      %v10459 = vrot.slane %v10414, %v10458
      %vm10460 = vcmask 130112
      %v10461 = vsel %vm10460, %v10459, %v10454
      %v10462 = vlaneseq
      %v10463 = vshrl.u32 %v10462, 7
      %v10464 = vsub.s32 %v10450, %v10463
      %v10465 = vrot.slane %v10415, %v10464
      %v10466 = vlaneseq
      %v10467 = vshrl.u32 %v10466, 7
      %v10468 = vsub.s32 %v10455, %v10467
      %v10469 = vrot.slane %v10416, %v10468
      %v10470 = vsel %vm10460, %v10469, %v10465
      %v10471 = vlaneseq
      %v10472 = vshrl.u32 %v10471, 7
      %v10473 = vsub.s32 %v10450, %v10472
      %v10474 = vrot.slane %v10417, %v10473
      %v10475 = vlaneseq
      %v10476 = vshrl.u32 %v10475, 7
      %v10477 = vsub.s32 %v10455, %v10476
      %v10478 = vrot.slane %v10418, %v10477
      %v10479 = vsel %vm10460, %v10478, %v10474
      %v10480 = vlaneseq
      %v10481 = vshrl.u32 %v10480, 7
      %v10482 = vsub.s32 %v10450, %v10481
      %v10483 = vrot.slane %v10419, %v10482
      %v10484 = vlaneseq
      %v10485 = vshrl.u32 %v10484, 7
      %v10486 = vsub.s32 %v10455, %v10485
      %v10487 = vrot.slane %v10420, %v10486
      %v10488 = vsel %vm10460, %v10487, %v10483
      %v10489 = vlaneseq
      %v10490 = vshrl.u32 %v10489, 7
      %v10491 = vsub.s32 %v10450, %v10490
      %v10492 = vrot.slane %v10421, %v10491
      %v10493 = vlaneseq
      %v10494 = vshrl.u32 %v10493, 7
      %v10495 = vsub.s32 %v10455, %v10494
      %v10496 = vrot.slane %v10422, %v10495
      %v10497 = vsel %vm10460, %v10496, %v10492
      %v10498 = vlaneseq
      %v10499 = vshrl.u32 %v10498, 7
      %v10500 = vsub.s32 %v10450, %v10499
      %v10501 = vrot.slane %v10423, %v10500
      %v10502 = vlaneseq
      %v10503 = vshrl.u32 %v10502, 7
      %v10504 = vsub.s32 %v10455, %v10503
      %v10505 = vrot.slane %v10424, %v10504
      %v10506 = vsel %vm10460, %v10505, %v10501
      %v10507 = vlaneseq
      %v10508 = vshrl.u32 %v10507, 7
      %v10509 = vsub.s32 %v10450, %v10508
      %v10510 = vrot.slane %v10425, %v10509
      %v10511 = vlaneseq
      %v10512 = vshrl.u32 %v10511, 7
      %v10513 = vsub.s32 %v10455, %v10512
      %v10514 = vrot.slane %v10426, %v10513
      %v10515 = vsel %vm10460, %v10514, %v10510
      %v10516 = vlaneseq
      %v10517 = vshrl.u32 %v10516, 7
      %v10518 = vsub.s32 %v10450, %v10517
      %v10519 = vrot.slane %v10427, %v10518
      %v10520 = vlaneseq
      %v10521 = vshrl.u32 %v10520, 7
      %v10522 = vsub.s32 %v10455, %v10521
      %v10523 = vrot.slane %v10428, %v10522
      %v10524 = vsel %vm10460, %v10523, %v10519
      %vm10525 = vcmask 1041409
      %v10526 = vsel %vm10525, %v10470, %v10461
      %vm10527 = vcmask 1042434
      %v10528 = vsel %vm10527, %v10479, %v10526
      %vm10529 = vcmask 1043459
      %v10530 = vsel %vm10529, %v10488, %v10528
      %vm10531 = vcmask 1044484
      %v10532 = vsel %vm10531, %v10497, %v10530
      %vm10533 = vcmask 1045509
      %v10534 = vsel %vm10533, %v10506, %v10532
      %vm10535 = vcmask 1046534
      %v10536 = vsel %vm10535, %v10515, %v10534
      %vm10537 = vcmask 1047559
      %v10538 = vsel %vm10537, %v10524, %v10536
      %v10539 = vsel %vm821, %v10538, 0
      %v10542 = vsel %vm824, %v10432, 0
      %10544 = vmatprep.subr.mxu0 0.0
      %10545 = vmatpush1.msra.mxu0 0.0
      %10546 = vmatprep.subr.mxu0 0.0
      %10547 = vmatpush1.msra.mxu0 0.0
      %10548 = vmatprep.subr.mxu0 0.0
      %10549 = vmatpush1.msra.mxu0 0.0
      %10550 = vmatprep.subr.mxu0 0.0
      %10551 = vmatpush1.msra.mxu0 0.0
      %10552 = vmatprep.subr.mxu0 0.0
      %10553 = vmatpush1.msra.mxu0 0.0
      %10554 = vmatprep.subr.mxu0 0.0
      %10555 = vmatpush1.msra.mxu0 0.0
      %10556 = vmatprep.subr.mxu0 0.0
      %10557 = vmatpush1.msra.mxu0 0.0
      %10558 = vmatprep.subr.mxu0 0.0
      %10559 = vmatpush1.msra.mxu0 0.0
      %10560 = vmatprep.subr.mxu0 0.0
      %10561 = vmatpush1.msra.mxu0 0.0
      %10562 = vmatprep.subr.mxu0 0.0
      %10563 = vmatpush1.msra.mxu0 0.0
      %10564 = vmatprep.subr.mxu0 0.0
      %10565 = vmatpush1.msra.mxu0 0.0
      %10566 = vmatprep.subr.mxu0 0.0
      %10567 = vmatpush1.msra.mxu0 0.0
      %10568 = vmatprep.subr.mxu0 0.0
      %10569 = vmatpush1.msra.mxu0 0.0
      %10570 = vmatprep.subr.mxu0 0.0
      %10571 = vmatpush1.msra.mxu0 0.0
      %10572 = vmatprep.subr.mxu0 0.0
      %10573 = vmatpush1.msra.mxu0 %v10542
      %10574 = vmatprep.subr.mxu0 0.0
      %10575 = vmatpush1.msra.mxu0 %v10431
      %10576 = vmatprep.subr.mxu0 0.0
      %10577 = vmatpush2.msra.mxu0 0.0
      %10578 = vmatprep.subr.mxu0 0.0
      %10579 = vmatpush2.msra.mxu0 0.0
      %10580 = vmatprep.subr.mxu0 0.0
      %10581 = vmatpush2.msra.mxu0 0.0
      %10582 = vmatprep.subr.mxu0 0.0
      %10583 = vmatpush2.msra.mxu0 0.0
      %10584 = vmatprep.subr.mxu0 0.0
      %10585 = vmatpush2.msra.mxu0 0.0
      %10586 = vmatprep.subr.mxu0 0.0
      %10587 = vmatpush2.msra.mxu0 0.0
      %10588 = vmatprep.subr.mxu0 0.0
      %10589 = vmatpush2.msra.mxu0 0.0
      %10590 = vmatprep.subr.mxu0 0.0
      %10591 = vmatpush2.msra.mxu0 0.0
      %10592 = vmatprep.subr.mxu0 0.0
      %10593 = vmatpush2.msra.mxu0 0.0
      %10594 = vmatprep.subr.mxu0 0.0
      %10595 = vmatpush2.msra.mxu0 0.0
      %10596 = vmatprep.subr.mxu0 0.0
      %10597 = vmatpush2.msra.mxu0 0.0
      %10598 = vmatprep.subr.mxu0 0.0
      %10599 = vmatpush2.msra.mxu0 0.0
      %10600 = vmatprep.subr.mxu0 0.0
      %10601 = vmatpush2.msra.mxu0 0.0
      %10602 = vmatprep.subr.mxu0 0.0
      %10603 = vmatpush2.msra.mxu0 0.0
      %10604 = vmatprep.subr.mxu0 0.0
      %10605 = vmatpush2.msra.mxu0 0.0
      %10606 = vmatprep.subr.mxu0 0.0
      %10607 = vmatpush2.msra.mxu0 0.0
      %10608 = vmatprep.mubr.f32.mxu0 0.0
      %10609 = vmatmul.mubr.f32.gmra.mxu0 %v10539
      %v10610 = vpop.f32.mrf.mxu0
      %v10611 = vadd.f32 0.0, %v10610
      %v10612 = vpop.f32.mrf.mxu0
      %10613 = vdwg.mxu0
      %v10630 = vlaneseq
      %v10631 = vshrl.u32 %v10630, 7
      %v10632 = vsub.s32 %v10450, %v10631
      %v10633 = vrot.slane %v10325, %v10632
      %v10634 = vlaneseq
      %v10635 = vshrl.u32 %v10634, 7
      %v10636 = vsub.s32 %v10455, %v10635
      %v10637 = vrot.slane %v10326, %v10636
      %v10638 = vsel %vm10460, %v10637, %v10633
      %v10639 = vlaneseq
      %v10640 = vshrl.u32 %v10639, 7
      %v10641 = vsub.s32 %v10450, %v10640
      %v10642 = vrot.slane %v10327, %v10641
      %v10643 = vlaneseq
      %v10644 = vshrl.u32 %v10643, 7
      %v10645 = vsub.s32 %v10455, %v10644
      %v10646 = vrot.slane %v10328, %v10645
      %v10647 = vsel %vm10460, %v10646, %v10642
      %v10648 = vlaneseq
      %v10649 = vshrl.u32 %v10648, 7
      %v10650 = vsub.s32 %v10450, %v10649
      %v10651 = vrot.slane %v10329, %v10650
      %v10652 = vlaneseq
      %v10653 = vshrl.u32 %v10652, 7
      %v10654 = vsub.s32 %v10455, %v10653
      %v10655 = vrot.slane %v10330, %v10654
      %v10656 = vsel %vm10460, %v10655, %v10651
      %v10657 = vlaneseq
      %v10658 = vshrl.u32 %v10657, 7
      %v10659 = vsub.s32 %v10450, %v10658
      %v10660 = vrot.slane %v10331, %v10659
      %v10661 = vlaneseq
      %v10662 = vshrl.u32 %v10661, 7
      %v10663 = vsub.s32 %v10455, %v10662
      %v10664 = vrot.slane %v10332, %v10663
      %v10665 = vsel %vm10460, %v10664, %v10660
      %v10666 = vlaneseq
      %v10667 = vshrl.u32 %v10666, 7
      %v10668 = vsub.s32 %v10450, %v10667
      %v10669 = vrot.slane %v10333, %v10668
      %v10670 = vlaneseq
      %v10671 = vshrl.u32 %v10670, 7
      %v10672 = vsub.s32 %v10455, %v10671
      %v10673 = vrot.slane %v10334, %v10672
      %v10674 = vsel %vm10460, %v10673, %v10669
      %v10675 = vlaneseq
      %v10676 = vshrl.u32 %v10675, 7
      %v10677 = vsub.s32 %v10450, %v10676
      %v10678 = vrot.slane %v10335, %v10677
      %v10679 = vlaneseq
      %v10680 = vshrl.u32 %v10679, 7
      %v10681 = vsub.s32 %v10455, %v10680
      %v10682 = vrot.slane %v10336, %v10681
      %v10683 = vsel %vm10460, %v10682, %v10678
      %v10684 = vlaneseq
      %v10685 = vshrl.u32 %v10684, 7
      %v10686 = vsub.s32 %v10450, %v10685
      %v10687 = vrot.slane %v10337, %v10686
      %v10688 = vlaneseq
      %v10689 = vshrl.u32 %v10688, 7
      %v10690 = vsub.s32 %v10455, %v10689
      %v10691 = vrot.slane %v10338, %v10690
      %v10692 = vsel %vm10460, %v10691, %v10687
      %v10693 = vlaneseq
      %v10694 = vshrl.u32 %v10693, 7
      %v10695 = vsub.s32 %v10450, %v10694
      %v10696 = vrot.slane %v10339, %v10695
      %v10697 = vlaneseq
      %v10698 = vshrl.u32 %v10697, 7
      %v10699 = vsub.s32 %v10455, %v10698
      %v10700 = vrot.slane %v10340, %v10699
      %v10701 = vsel %vm10460, %v10700, %v10696
      %v10702 = vsel %vm10525, %v10647, %v10638
      %v10703 = vsel %vm10527, %v10656, %v10702
      %v10704 = vsel %vm10529, %v10665, %v10703
      %v10705 = vsel %vm10531, %v10674, %v10704
      %v10706 = vsel %vm10533, %v10683, %v10705
      %v10707 = vsel %vm10535, %v10692, %v10706
      %v10708 = vsel %vm10537, %v10701, %v10707
      %v10709 = vsel %vm821, %v10708, 0
      %v10712 = vsel %vm824, %v10430, 0
      %10714 = vmatprep.subr.mxu0 0.0
      %10715 = vmatpush1.msra.mxu0 0.0
      %10716 = vmatprep.subr.mxu0 0.0
      %10717 = vmatpush1.msra.mxu0 0.0
      %10718 = vmatprep.subr.mxu0 0.0
      %10719 = vmatpush1.msra.mxu0 0.0
      %10720 = vmatprep.subr.mxu0 0.0
      %10721 = vmatpush1.msra.mxu0 0.0
      %10722 = vmatprep.subr.mxu0 0.0
      %10723 = vmatpush1.msra.mxu0 0.0
      %10724 = vmatprep.subr.mxu0 0.0
      %10725 = vmatpush1.msra.mxu0 0.0
      %10726 = vmatprep.subr.mxu0 0.0
      %10727 = vmatpush1.msra.mxu0 0.0
      %10728 = vmatprep.subr.mxu0 0.0
      %10729 = vmatpush1.msra.mxu0 0.0
      %10730 = vmatprep.subr.mxu0 0.0
      %10731 = vmatpush1.msra.mxu0 0.0
      %10732 = vmatprep.subr.mxu0 0.0
      %10733 = vmatpush1.msra.mxu0 0.0
      %10734 = vmatprep.subr.mxu0 0.0
      %10735 = vmatpush1.msra.mxu0 0.0
      %10736 = vmatprep.subr.mxu0 0.0
      %10737 = vmatpush1.msra.mxu0 0.0
      %10738 = vmatprep.subr.mxu0 0.0
      %10739 = vmatpush1.msra.mxu0 0.0
      %10740 = vmatprep.subr.mxu0 0.0
      %10741 = vmatpush1.msra.mxu0 0.0
      %10742 = vmatprep.subr.mxu0 0.0
      %10743 = vmatpush1.msra.mxu0 %v10712
      %10744 = vmatprep.subr.mxu0 0.0
      %10745 = vmatpush1.msra.mxu0 %v10429
      %10746 = vmatprep.subr.mxu0 0.0
      %10747 = vmatpush2.msra.mxu0 0.0
      %10748 = vmatprep.subr.mxu0 0.0
      %10749 = vmatpush2.msra.mxu0 0.0
      %10750 = vmatprep.subr.mxu0 0.0
      %10751 = vmatpush2.msra.mxu0 0.0
      %10752 = vmatprep.subr.mxu0 0.0
      %10753 = vmatpush2.msra.mxu0 0.0
      %10754 = vmatprep.subr.mxu0 0.0
      %10755 = vmatpush2.msra.mxu0 0.0
      %10756 = vmatprep.subr.mxu0 0.0
      %10757 = vmatpush2.msra.mxu0 0.0
      %10758 = vmatprep.subr.mxu0 0.0
      %10759 = vmatpush2.msra.mxu0 0.0
      %10760 = vmatprep.subr.mxu0 0.0
      %10761 = vmatpush2.msra.mxu0 0.0
      %10762 = vmatprep.subr.mxu0 0.0
      %10763 = vmatpush2.msra.mxu0 0.0
      %10764 = vmatprep.subr.mxu0 0.0
      %10765 = vmatpush2.msra.mxu0 0.0
      %10766 = vmatprep.subr.mxu0 0.0
      %10767 = vmatpush2.msra.mxu0 0.0
      %10768 = vmatprep.subr.mxu0 0.0
      %10769 = vmatpush2.msra.mxu0 0.0
      %10770 = vmatprep.subr.mxu0 0.0
      %10771 = vmatpush2.msra.mxu0 0.0
      %10772 = vmatprep.subr.mxu0 0.0
      %10773 = vmatpush2.msra.mxu0 0.0
      %10774 = vmatprep.subr.mxu0 0.0
      %10775 = vmatpush2.msra.mxu0 0.0
      %10776 = vmatprep.subr.mxu0 0.0
      %10777 = vmatpush2.msra.mxu0 0.0
      %10778 = vmatprep.mubr.f32.mxu0 0.0
      %10779 = vmatmul.mubr.f32.gmra.mxu0 %v10709
      %v10780 = vpop.f32.mrf.mxu0
      %v10781 = vadd.f32 %v10611, %v10780
      %v10782 = vpop.f32.mrf.mxu0
      %10783 = vdwg.mxu0
      %10784 = vst.msk [vmem:[%s802] sm:$0xff] %vm3104, %v10781
      %p10785 = scmp.lt.s32.totalorder %s36, 1
      %s10786 = scalar_select %p10785, %s36, 1
      %s10787 = smul.addr %s10786, 8
      %s10788 = scalar_lea.vmem %s25, %s10787
      // Predicated region
      $region121: #{_lambda_.3} parent=119 // pred_check
        %p10789 = pneg %p594
      $region122: #{_lambda_.3} parent=119 // pred_check_branch
        %10791 = sbr.rel (%p10789) target = $region124
      $region123: #{_lambda_.3} parent=119 // pred_region
        _
      $region124: #{_lambda_.3} parent=119 // pred_fallthru
        _
    $region120: #{_lambda_.3} parent=5 // pred_fallthru
      _
    %p10792 = scmp.le.s32.totalorder 2, %s31
    // Predicated region
    $region125: #{_lambda_.3} parent=5 // pred_check
      %p10793 = pneg %p10792
    $region126: #{_lambda_.3} parent=5 // pred_check_branch
      %10795 = sbr.rel (%p10793) target = $region128
    $region127: #{_lambda_.3} parent=5 // pred_region
      %s10796 = ssub.s32 %s31, 2
      // Predicated region
      $region129: #{_lambda_.3} parent=127 // pred_check
        %p10797 = pneg %p600
      $region130: #{_lambda_.3} parent=127 // pred_check_branch
        %10799 = sbr.rel (%p10797) target = $region132
      $region131: #{_lambda_.3} parent=127 // pred_region
        %p10800 = scmp.lt.s32.totalorder %s37, 1
        %s10801 = scalar_select %p10800, %s37, 1
        %s10802 = smul.addr %s10801, 8
        %s10803 = scalar_lea.vmem %s25, %s10802
      $region132: #{_lambda_.3} parent=127 // pred_fallthru
        _
    $region128: #{_lambda_.3} parent=5 // pred_fallthru
      _
  $region6: #{_lambda_.3} parent=0 // loop_footer
    %s35 = sadd.s32 1, %s31
  $region7: #{_lambda_.3} parent=0 // loop_footer_branch
    %30 = sbr.rel target = $region3
  $region8: #{_lambda_.3} parent=0 // loop_exit
    _

</llo_original>
